<compile_context>
chip_gen: v7x
topology: tpu7x:2x2x1
jax: 0.10.0
libtpu: 0.0.40
codegen_flags: <defaults>
</compile_context>

<pallas_src>
import functools

import jax
import jax.numpy as jnp
from jax.experimental import pallas as pl
from jax.experimental.pallas import tpu as pltpu

BN_EPS = 1e-5
VMEM_LIMIT = 32 * 1024 * 1024  # safe on v5e/v6e (128 MiB phys) and v7x (64 MiB)


# ------------------------------- helpers ----------------------------------- #

def _round_up(x, m):
    return (x + m - 1) // m * m


def _choose_tile(dim, max_tile, align):
    """Largest multiple of `align` that divides `dim` and is <= max_tile."""
    t = min(dim, max_tile)
    t -= t % align
    while dim % t:
        t -= align
    return t


# ----------------------------- Pallas kernels ------------------------------ #

def _conv_matmul_kernel(p_ref, w_ref, y_ref, st_ref, acc_ref):
    """Tiled im2col matmul + per-M-tile BN partial statistics.

    Grid: (M tiles, N tiles, K tiles); K is the reduction ('arbitrary') axis.
    Inputs are bf16, accumulation is f32 (MXU preferred_element_type).
    At the last K step the f32 accumulator is written out and per-channel
    partial sum / sum-of-squares for this M tile are emitted.
    """
    k = pl.program_id(2)

    @pl.when(k == 0)
    def _init():
        acc_ref[...] = jnp.zeros_like(acc_ref)

    acc_ref[...] += jnp.dot(p_ref[...], w_ref[...],
                            preferred_element_type=jnp.float32)

    @pl.when(k == pl.num_programs(2) - 1)
    def _finalize():
        acc = acc_ref[...]
        y_ref[...] = acc.astype(y_ref.dtype)
        s = jnp.sum(acc, axis=0, keepdims=True)          # (1, TN)
        ss = jnp.sum(acc * acc, axis=0, keepdims=True)   # (1, TN)
        st_ref[...] = jnp.concatenate([s, ss], axis=0)[None, :, :]


def _bn_apply_kernel(y_ref, sc_ref, sh_ref, o_ref, *, relu_out):
    """out = y * scale + shift (+ ReLU). Tiled over (M, N)."""
    out = y_ref[...] * sc_ref[...] + sh_ref[...]
    if relu_out:
        out = jnp.maximum(out, 0.0)
    o_ref[...] = out.astype(o_ref.dtype)


def _bn_apply_res_kernel(y_ref, sc_ref, sh_ref, r_ref, o_ref, *, relu_out):
    """out = y * scale + shift + residual (+ ReLU). Tiled over (M, N)."""
    out = y_ref[...] * sc_ref[...] + sh_ref[...] + r_ref[...]
    if relu_out:
        out = jnp.maximum(out, 0.0)
    o_ref[...] = out.astype(o_ref.dtype)


def _maxpool_kernel(p_ref, o_ref, *, kk):
    """Max over KK tap positions of a (TM, KK, Cpad) block (lane-aligned)."""
    y = p_ref[:, 0, :]
    for t in range(1, kk):
        y = jnp.maximum(y, p_ref[:, t, :])
    o_ref[...] = y


# ------------------------------- JAX glue ---------------------------------- #

def _extract_patches(x, kh, kw, stride, padding, pad_value=0.0):
    """x: (N, H, W, C) -> patches (N, Ho, Wo, KH*KW, C)."""
    n, h, w, c = x.shape
    xp = jnp.pad(x, ((0, 0), (padding, padding), (padding, padding), (0, 0)),
                 constant_values=pad_value)
    ho = (h + 2 * padding - kh) // stride + 1
    wo = (w + 2 * padding - kw) // stride + 1
    cols = [xp[:, i:i + stride * ho:stride, j:j + stride * wo:stride, :]
            for i in range(kh) for j in range(kw)]
    patches = jnp.stack(cols, axis=3)          # (N, Ho, Wo, KH*KW, C)
    return patches, (n, ho, wo)


def conv_bn(x, w, gamma, beta, *, stride, padding, relu_out=False,
            residual=None):
    """Conv2d(bias=False) + training-mode BatchNorm2d (+ residual, + ReLU).

    x: (N, H, W, Cin) float32;  w: (KH, KW, Cin, Cout) float32.
    Implemented as two Pallas passes:
      1) tiled bf16 matmul over im2col patches -> f32 conv output + partial
         per-channel sum / sum-of-squares per M tile
      2) tiled BN apply (scale/shift) + optional residual + optional ReLU.
    """
    kh, kw, cin, cout = w.shape
    patches, (n, ho, wo) = _extract_patches(x, kh, kw, stride, padding)
    m = n * ho * wo
    k = kh * kw * cin
    patches = patches.reshape(m, k)

    # Padded / tiled problem sizes (lane-dense N & K, sublane-aligned M).
    mp = _round_up(m, 8)
    kp = _round_up(k, 128)
    npad = _round_up(cout, 128)
    tm = _choose_tile(mp, 512, 8)
    tk = _choose_tile(kp, 1024, 128)
    tn = _choose_tile(npad, 256, 128)
    gm, gn, gk = mp // tm, npad // tn, kp // tk

    # bf16 MXU operands (zero padding does not perturb sums or stats).
    p_pad = jnp.pad(patches.astype(jnp.bfloat16), ((0, mp - m), (0, kp - k)))
    w_pad = jnp.pad(w.reshape(k, cout).astype(jnp.bfloat16),
                    ((0, kp - k), (0, npad - cout)))

    y, stats = pl.pallas_call(
        _conv_matmul_kernel,
        out_shape=(jax.ShapeDtypeStruct((mp, npad), jnp.float32),
                   jax.ShapeDtypeStruct((gm, 2, npad), jnp.float32)),
        grid_spec=pltpu.PrefetchScalarGridSpec(
            num_scalar_prefetch=0,
            grid=(gm, gn, gk),
            in_specs=[pl.BlockSpec((tm, tk), lambda i, j, kk: (i, kk)),
                      pl.BlockSpec((tk, tn), lambda i, j, kk: (kk, j))],
            out_specs=[pl.BlockSpec((tm, tn), lambda i, j, kk: (i, j)),
                       pl.BlockSpec((1, 2, tn), lambda i, j, kk: (i, 0, j))],
            scratch_shapes=[pltpu.VMEM((tm, tn), jnp.float32)]),
        compiler_params=pltpu.CompilerParams(
            dimension_semantics=("parallel", "parallel", "arbitrary"),
            vmem_limit_bytes=VMEM_LIMIT),
        cost_estimate=pl.CostEstimate(
            flops=2 * mp * kp * npad,
            transcendentals=0,
            bytes_accessed=mp * kp * 2 + kp * npad * 2 + mp * npad * 4),
    )(p_pad, w_pad)

    # BN finalize (tiny per-channel reduction over M tiles, all f32).
    cnt = jnp.float32(m)
    mean = jnp.sum(stats[:, 0, :], axis=0) / cnt
    var = jnp.maximum(jnp.sum(stats[:, 1, :], axis=0) / cnt - mean * mean, 0.0)
    g_pad = jnp.pad(gamma.astype(jnp.float32), (0, npad - cout))
    b_pad = jnp.pad(beta.astype(jnp.float32), (0, npad - cout))
    inv = jax.lax.rsqrt(var + BN_EPS)
    scale = (g_pad * inv).reshape(1, npad)
    shift = (b_pad - mean * g_pad * inv).reshape(1, npad)

    # Lightweight tiled BN apply (+ residual, + ReLU).
    tma = _choose_tile(mp, 1024, 8)
    tna = _choose_tile(npad, 512, 128)
    gm2, gn2 = mp // tma, npad // tna
    y_spec = pl.BlockSpec((tma, tna), lambda i, j: (i, j))
    v_spec = pl.BlockSpec((1, tna), lambda i, j: (0, j))
    common = dict(
        out_shape=jax.ShapeDtypeStruct((mp, npad), jnp.float32),
        grid=(gm2, gn2),
        out_specs=pl.BlockSpec((tma, tna), lambda i, j: (i, j)),
        compiler_params=pltpu.CompilerParams(
            dimension_semantics=("parallel", "parallel"),
            vmem_limit_bytes=VMEM_LIMIT),
        cost_estimate=pl.CostEstimate(
            flops=3 * mp * npad,
            transcendentals=0,
            bytes_accessed=(3 if residual is not None else 2) * mp * npad * 4),
    )

    if residual is not None:
        r_pad = jnp.pad(residual.reshape(m, cout).astype(jnp.float32),
                        ((0, mp - m), (0, npad - cout)))
        out = pl.pallas_call(
            functools.partial(_bn_apply_res_kernel, relu_out=relu_out),
            in_specs=[y_spec, v_spec, v_spec, y_spec],
            **common)(y, scale, shift, r_pad)
    else:
        out = pl.pallas_call(
            functools.partial(_bn_apply_kernel, relu_out=relu_out),
            in_specs=[y_spec, v_spec, v_spec],
            **common)(y, scale, shift)

    return out[:m, :cout].reshape(n, ho, wo, cout)


def maxpool(x, kernel=3, stride=2, padding=1):
    """nn.MaxPool2d(kernel, stride, padding) on NHWC via a tiled Pallas kernel."""
    n, h, w, c = x.shape
    win, (n, ho, wo) = _extract_patches(x, kernel, kernel, stride, padding,
                                        pad_value=-jnp.inf)
    kk = kernel * kernel
    m = n * ho * wo
    win = win.reshape(m, kk, c)

    mp = _round_up(m, 8)
    cp = _round_up(c, 128)
    win_p = jnp.pad(win, ((0, mp - m), (0, 0), (0, cp - c)),
                    constant_values=-jnp.inf)
    tm = _choose_tile(mp, 512, 8)

    out = pl.pallas_call(
        functools.partial(_maxpool_kernel, kk=kk),
        out_shape=jax.ShapeDtypeStruct((mp, cp), jnp.float32),
        grid=(mp // tm,),
        in_specs=[pl.BlockSpec((tm, kk, cp), lambda i: (i, 0, 0))],
        out_specs=pl.BlockSpec((tm, cp), lambda i: (i, 0)),
        compiler_params=pltpu.CompilerParams(
            dimension_semantics=("parallel",),
            vmem_limit_bytes=VMEM_LIMIT),
        cost_estimate=pl.CostEstimate(
            flops=mp * kk * cp,
            transcendentals=0,
            bytes_accessed=mp * kk * cp * 4 + mp * cp * 4),
    )(win_p)
    return out[:m, :c].reshape(n, ho, wo, c)


# ------------------------------ Model pieces ------------------------------- #

def basic_block(x, blk):
    stride, has_ds = blk['stride'], blk['has_ds']
    identity = x
    # ReLU applied ONCE to the un-duplicated activation, shared by conv1 and
    # the downsample path (not 9x on patches, not computed twice).
    xr = jnp.maximum(x, 0.0)
    # out = relu(norm1(conv1(relu(x))))
    out = conv_bn(xr, blk['w1'], blk['g1'], blk['b1'], stride=stride,
                  padding=1, relu_out=True)
    if has_ds:
        identity = conv_bn(xr, blk['wd'], blk['gd'], blk['bd'], stride=stride,
                           padding=0, relu_out=False)
    # out = norm2(conv2(out)) + identity      (no trailing ReLU)
    out = conv_bn(out, blk['w2'], blk['g2'], blk['b2'], stride=1, padding=1,
                  relu_out=False, residual=identity)
    return out


def resnet_forward(x_nchw, params, out_indices=(3,)):
    x = jnp.transpose(x_nchw, (0, 2, 3, 1)).astype(jnp.float32)  # NCHW -> NHWC
    s = params['stem']
    x = conv_bn(x, s['w'], s['g'], s['b'], stride=2, padding=3, relu_out=True)
    x = maxpool(x, 3, 2, 1)
    outs = []
    for i, layer in enumerate(params['layers']):
        for blk in layer:
            x = basic_block(x, blk)
        if i in out_indices:
            outs.append(jnp.transpose(x, (0, 3, 1, 2)))          # NHWC -> NCHW
    return outs[0] if len(outs) == 1 else tuple(outs)


def make_params(key, depth=18, in_channels=3, stem_channels=8, base_channels=8,
                num_stages=4, strides=(1, 2, 2, 2)):
    """Deterministic synthetic weights (kaiming-style conv, BN gamma=1 beta=0)."""
    stage_blocks = {18: (2, 2, 2, 2), 34: (3, 4, 6, 3)}[depth][:num_stages]
    keys = iter(jax.random.split(key, 256))

    def conv_w(k, kh, kw, cin, cout):
        fan_in = kh * kw * cin
        return jax.random.normal(k, (kh, kw, cin, cout), jnp.float32) * \
            (2.0 / fan_in) ** 0.5

    params = {
        'stem': {'w': conv_w(next(keys), 7, 7, in_channels, stem_channels),
                 'g': jnp.ones((stem_channels,), jnp.float32),
                 'b': jnp.zeros((stem_channels,), jnp.float32)},
        'layers': [],
    }
    in_c = stem_channels
    out_c = base_channels          # BasicBlock expansion == 1
    for i, nb in enumerate(stage_blocks):
        layer = []
        for b in range(nb):
            stride = strides[i] if b == 0 else 1
            has_ds = (b == 0) and (stride != 1 or in_c != out_c)
            blk = {
                'w1': conv_w(next(keys), 3, 3, in_c, out_c),
                'g1': jnp.ones((out_c,), jnp.float32),
                'b1': jnp.zeros((out_c,), jnp.float32),
                'w2': conv_w(next(keys), 3, 3, out_c, out_c),
                'g2': jnp.ones((out_c,), jnp.float32),
                'b2': jnp.zeros((out_c,), jnp.float32),
                'stride': stride,
                'has_ds': has_ds,
            }
            if has_ds:
                blk['wd'] = conv_w(next(keys), 1, 1, in_c, out_c)
                blk['gd'] = jnp.ones((out_c,), jnp.float32)
                blk['bd'] = jnp.zeros((out_c,), jnp.float32)
            layer.append(blk)
            in_c = out_c
        params['layers'].append(layer)
        out_c *= 2
    return params


# --------------------------------- main ------------------------------------ #

if __name__ == "__main__":
    key = jax.random.PRNGKey(0)
    pkey, xkey = jax.random.split(key)

    # ResNet-18 topology with small channels (stem=8, base=8) for a fast demo.
    params = make_params(pkey, depth=18, in_channels=3,
                         stem_channels=8, base_channels=8)

    x = jax.random.normal(xkey, (2, 3, 32, 32), jnp.float32)  # NCHW input

    fwd = jax.jit(lambda inp: resnet_forward(inp, params))
    out = fwd(x)
    out = jax.block_until_ready(out)

    # 32 -> stem conv s2 (16) -> maxpool s2 (8) -> strides (1,2,2,2) -> 1x1
    assert out.shape == (2, 64, 1, 1), out.shape
    assert jnp.all(jnp.isfinite(out))
    # TODO(synk): frozen_stages / norm_eval / init_weights are training-time
    # utilities with no forward-compute equivalent here (BN uses batch stats,
    # matching the module's default training-mode forward).
    print("KERNEL_OK")
</pallas_src>

<mosaic_0001>
module attributes {stable_mosaic.version = 11 : i64} {
  func.func @_conv_matmul_kernel(%arg0: i32, %arg1: i32, %arg2: i32, %arg3: memref<512x256xbf16, #tpu.memory_space<vmem>>, %arg4: memref<256x128xbf16, #tpu.memory_space<vmem>>, %arg5: memref<512x128xf32, #tpu.memory_space<vmem>>, %arg6: memref<1x2x128xf32, #tpu.memory_space<vmem>>, %arg7: memref<512x128xf32, #tpu.memory_space<vmem>>) attributes {dimension_semantics = [#tpu.dimension_semantics<parallel>, #tpu.dimension_semantics<parallel>, #tpu.dimension_semantics<arbitrary>], iteration_bounds = array<i64: 1, 1, 1>, scalar_prefetch = 0 : i64, scratch_operands = 1 : i64, tpu.core_type = #tpu.core_type<tc>, window_params = [{transform_indices = @transform_0, window_bounds = array<i64: 512, 256>}, {transform_indices = @transform_1, window_bounds = array<i64: 256, 128>}, {transform_indices = @transform_2, window_bounds = array<i64: 512, 128>}, {transform_indices = @transform_3, window_bounds = array<i64: 1, 2, 128>}]} {
    %c0_i32 = arith.constant 0 : i32
    %0 = arith.cmpi eq, %arg2, %c0_i32 : i32
    %1 = arith.extui %0 : i1 to i32
    %c0_i32_0 = arith.constant 0 : i32
    %2 = arith.cmpi ne, %1, %c0_i32_0 : i32
    scf.if %2 {
      %cst_10 = arith.constant 0.000000e+00 : f32
      %12 = vector.broadcast %cst_10 : f32 to vector<512x128xf32>
      %c0_11 = arith.constant 0 : index
      %c0_12 = arith.constant 0 : index
      %13 = vector.load %arg7[%c0_11, %c0_12] : memref<512x128xf32, #tpu.memory_space<vmem>>, vector<512x128xf32>
      tpu.vector_store %arg7[%c0_11, %c0_12], %12 {strides = array<i32>} : memref<512x128xf32, #tpu.memory_space<vmem>>, vector<512x128xf32>,
    } else {
    }
    %c0 = arith.constant 0 : index
    %c0_1 = arith.constant 0 : index
    %3 = vector.load %arg7[%c0, %c0_1] : memref<512x128xf32, #tpu.memory_space<vmem>>, vector<512x128xf32>
    %c0_2 = arith.constant 0 : index
    %c0_3 = arith.constant 0 : index
    %4 = vector.load %arg3[%c0_2, %c0_3] : memref<512x256xbf16, #tpu.memory_space<vmem>>, vector<512x256xbf16>
    %c0_4 = arith.constant 0 : index
    %c0_5 = arith.constant 0 : index
    %5 = vector.load %arg4[%c0_4, %c0_5] : memref<256x128xbf16, #tpu.memory_space<vmem>>, vector<256x128xbf16>
    %cst = arith.constant dense<0.000000e+00> : vector<512x128xf32>
    %6 = tpu.matmul %4, %5, %cst {dimension_numbers = #tpu.dot_dimension_numbers<[1], [0], [0], [1], [0, 0, 1, 1], [], []>} : vector<512x256xbf16>, vector<256x128xbf16>, vector<512x128xf32> -> vector<512x128xf32>
    %7 = arith.addf %3, %6 : vector<512x128xf32>
    %c0_6 = arith.constant 0 : index
    %c0_7 = arith.constant 0 : index
    %8 = vector.load %arg7[%c0_6, %c0_7] : memref<512x128xf32, #tpu.memory_space<vmem>>, vector<512x128xf32>
    tpu.vector_store %arg7[%c0_6, %c0_7], %7 {strides = array<i32>} : memref<512x128xf32, #tpu.memory_space<vmem>>, vector<512x128xf32>,
    %c0_i32_8 = arith.constant 0 : i32
    %9 = arith.cmpi eq, %arg2, %c0_i32_8 : i32
    %10 = arith.extui %9 : i1 to i32
    %c0_i32_9 = arith.constant 0 : i32
    %11 = arith.cmpi ne, %10, %c0_i32_9 : i32
    scf.if %11 {
      %c0_10 = arith.constant 0 : index
      %c0_11 = arith.constant 0 : index
      %12 = vector.load %arg7[%c0_10, %c0_11] : memref<512x128xf32, #tpu.memory_space<vmem>>, vector<512x128xf32>
      %c0_12 = arith.constant 0 : index
      %c0_13 = arith.constant 0 : index
      %13 = vector.load %arg5[%c0_12, %c0_13] : memref<512x128xf32, #tpu.memory_space<vmem>>, vector<512x128xf32>
      tpu.vector_store %arg5[%c0_12, %c0_13], %12 {strides = array<i32>} : memref<512x128xf32, #tpu.memory_space<vmem>>, vector<512x128xf32>,
      %cst_14 = arith.constant dense<0.000000e+00> : vector<128xf32>
      %14 = vector.multi_reduction <add>, %12, %cst_14 [0] : vector<512x128xf32> to vector<128xf32>
      %15 = vector.shape_cast %14 : vector<128xf32> to vector<1x128xf32>
      %16 = arith.mulf %12, %12 : vector<512x128xf32>
      %cst_15 = arith.constant dense<0.000000e+00> : vector<128xf32>
      %17 = vector.multi_reduction <add>, %16, %cst_15 [0] : vector<512x128xf32> to vector<128xf32>
      %18 = vector.shape_cast %17 : vector<128xf32> to vector<1x128xf32>
      %19 = tpu.concatenate %15, %18 in 0 : vector<1x128xf32>, vector<1x128xf32> -> vector<2x128xf32>
      %20 = vector.shape_cast %19 : vector<2x128xf32> to vector<1x2x128xf32>
      %c0_16 = arith.constant 0 : index
      %c0_17 = arith.constant 0 : index
      %c0_18 = arith.constant 0 : index
      %21 = vector.load %arg6[%c0_16, %c0_17, %c0_18] : memref<1x2x128xf32, #tpu.memory_space<vmem>>, vector<1x2x128xf32>
      tpu.vector_store %arg6[%c0_16, %c0_17, %c0_18], %20 {strides = array<i32>} : memref<1x2x128xf32, #tpu.memory_space<vmem>>, vector<1x2x128xf32>,
    } else {
    }
    return
  }
  func.func @transform_0(%arg0: i32, %arg1: i32, %arg2: i32) -> (i32, i32) {
    %c0_i32 = arith.constant 0 : i32
    return %arg0, %arg2 : i32, i32
  }
  func.func @transform_1(%arg0: i32, %arg1: i32, %arg2: i32) -> (i32, i32) {
    %c0_i32 = arith.constant 0 : i32
    return %arg2, %arg1 : i32, i32
  }
  func.func @transform_2(%arg0: i32, %arg1: i32, %arg2: i32) -> (i32, i32) {
    %c0_i32 = arith.constant 0 : i32
    return %arg0, %arg1 : i32, i32
  }
  func.func @transform_3(%arg0: i32, %arg1: i32, %arg2: i32) -> (i32, i32, i32) {
    %c0_i32 = arith.constant 0 : i32
    %c0_i32_0 = arith.constant 0 : i32
    return %arg0, %c0_i32, %arg1 : i32, i32, i32
  }
}

module attributes {stable_mosaic.version = 11 : i64} {
  func.func @_bn_apply_kernel(%arg0: i32, %arg1: i32, %arg2: memref<512x128xf32, #tpu.memory_space<vmem>>, %arg3: memref<1x128xf32, #tpu.memory_space<vmem>>, %arg4: memref<1x128xf32, #tpu.memory_space<vmem>>, %arg5: memref<512x128xf32, #tpu.memory_space<vmem>>) attributes {dimension_semantics = [#tpu.dimension_semantics<parallel>, #tpu.dimension_semantics<parallel>], iteration_bounds = array<i64: 1, 1>, scalar_prefetch = 0 : i64, scratch_operands = 0 : i64, tpu.core_type = #tpu.core_type<tc>, window_params = [{transform_indices = @transform_0, window_bounds = array<i64: 512, 128>}, {transform_indices = @transform_1, window_bounds = array<i64: 1, 128>}, {transform_indices = @transform_2, window_bounds = array<i64: 1, 128>}, {transform_indices = @transform_3, window_bounds = array<i64: 512, 128>}]} {
    %c0 = arith.constant 0 : index
    %c0_0 = arith.constant 0 : index
    %0 = vector.load %arg2[%c0, %c0_0] : memref<512x128xf32, #tpu.memory_space<vmem>>, vector<512x128xf32>
    %c0_1 = arith.constant 0 : index
    %c0_2 = arith.constant 0 : index
    %1 = vector.load %arg3[%c0_1, %c0_2] : memref<1x128xf32, #tpu.memory_space<vmem>>, vector<1x128xf32>
    %2 = vector.broadcast %1 : vector<1x128xf32> to vector<512x128xf32>
    %3 = arith.mulf %0, %2 : vector<512x128xf32>
    %c0_3 = arith.constant 0 : index
    %c0_4 = arith.constant 0 : index
    %4 = vector.load %arg4[%c0_3, %c0_4] : memref<1x128xf32, #tpu.memory_space<vmem>>, vector<1x128xf32>
    %5 = vector.broadcast %4 : vector<1x128xf32> to vector<512x128xf32>
    %6 = arith.addf %3, %5 : vector<512x128xf32>
    %cst = arith.constant 0.000000e+00 : f32
    %7 = vector.broadcast %cst : f32 to vector<512x128xf32>
    %8 = arith.maximumf %6, %7 : vector<512x128xf32>
    %c0_5 = arith.constant 0 : index
    %c0_6 = arith.constant 0 : index
    %9 = vector.load %arg5[%c0_5, %c0_6] : memref<512x128xf32, #tpu.memory_space<vmem>>, vector<512x128xf32>
    tpu.vector_store %arg5[%c0_5, %c0_6], %8 {strides = array<i32>} : memref<512x128xf32, #tpu.memory_space<vmem>>, vector<512x128xf32>,
    return
  }
  func.func @transform_0(%arg0: i32, %arg1: i32) -> (i32, i32) {
    %c0_i32 = arith.constant 0 : i32
    return %arg0, %arg1 : i32, i32
  }
  func.func @transform_1(%arg0: i32, %arg1: i32) -> (i32, i32) {
    %c0_i32 = arith.constant 0 : i32
    %c0_i32_0 = arith.constant 0 : i32
    return %c0_i32, %arg1 : i32, i32
  }
  func.func @transform_2(%arg0: i32, %arg1: i32) -> (i32, i32) {
    %c0_i32 = arith.constant 0 : i32
    %c0_i32_0 = arith.constant 0 : i32
    return %c0_i32, %arg1 : i32, i32
  }
  func.func @transform_3(%arg0: i32, %arg1: i32) -> (i32, i32) {
    %c0_i32 = arith.constant 0 : i32
    return %arg0, %arg1 : i32, i32
  }
}

module attributes {stable_mosaic.version = 11 : i64} {
  func.func @_maxpool_kernel(%arg0: i32, %arg1: memref<128x9x128xf32, #tpu.memory_space<vmem>>, %arg2: memref<128x128xf32, #tpu.memory_space<vmem>>) attributes {dimension_semantics = [#tpu.dimension_semantics<parallel>], iteration_bounds = array<i64: 1>, scalar_prefetch = 0 : i64, scratch_operands = 0 : i64, tpu.core_type = #tpu.core_type<tc>, window_params = [{transform_indices = @transform_0, window_bounds = array<i64: 128, 9, 128>}, {transform_indices = @transform_1, window_bounds = array<i64: 128, 128>}]} {
    %c0 = arith.constant 0 : index
    %c0_0 = arith.constant 0 : index
    %c0_1 = arith.constant 0 : index
    %0 = vector.load %arg1[%c0, %c0_0, %c0_1] : memref<128x9x128xf32, #tpu.memory_space<vmem>>, vector<128x1x128xf32>
    %1 = vector.shape_cast %0 : vector<128x1x128xf32> to vector<128x128xf32>
    %c0_2 = arith.constant 0 : index
    %c1 = arith.constant 1 : index
    %c0_3 = arith.constant 0 : index
    %2 = vector.load %arg1[%c0_2, %c1, %c0_3] : memref<128x9x128xf32, #tpu.memory_space<vmem>>, vector<128x1x128xf32>
    %3 = vector.shape_cast %2 : vector<128x1x128xf32> to vector<128x128xf32>
    %4 = arith.maximumf %1, %3 : vector<128x128xf32>
    %c0_4 = arith.constant 0 : index
    %c2 = arith.constant 2 : index
    %c0_5 = arith.constant 0 : index
    %5 = vector.load %arg1[%c0_4, %c2, %c0_5] : memref<128x9x128xf32, #tpu.memory_space<vmem>>, vector<128x1x128xf32>
    %6 = vector.shape_cast %5 : vector<128x1x128xf32> to vector<128x128xf32>
    %7 = arith.maximumf %4, %6 : vector<128x128xf32>
    %c0_6 = arith.constant 0 : index
    %c3 = arith.constant 3 : index
    %c0_7 = arith.constant 0 : index
    %8 = vector.load %arg1[%c0_6, %c3, %c0_7] : memref<128x9x128xf32, #tpu.memory_space<vmem>>, vector<128x1x128xf32>
    %9 = vector.shape_cast %8 : vector<128x1x128xf32> to vector<128x128xf32>
    %10 = arith.maximumf %7, %9 : vector<128x128xf32>
    %c0_8 = arith.constant 0 : index
    %c4 = arith.constant 4 : index
    %c0_9 = arith.constant 0 : index
    %11 = vector.load %arg1[%c0_8, %c4, %c0_9] : memref<128x9x128xf32, #tpu.memory_space<vmem>>, vector<128x1x128xf32>
    %12 = vector.shape_cast %11 : vector<128x1x128xf32> to vector<128x128xf32>
    %13 = arith.maximumf %10, %12 : vector<128x128xf32>
    %c0_10 = arith.constant 0 : index
    %c5 = arith.constant 5 : index
    %c0_11 = arith.constant 0 : index
    %14 = vector.load %arg1[%c0_10, %c5, %c0_11] : memref<128x9x128xf32, #tpu.memory_space<vmem>>, vector<128x1x128xf32>
    %15 = vector.shape_cast %14 : vector<128x1x128xf32> to vector<128x128xf32>
    %16 = arith.maximumf %13, %15 : vector<128x128xf32>
    %c0_12 = arith.constant 0 : index
    %c6 = arith.constant 6 : index
    %c0_13 = arith.constant 0 : index
    %17 = vector.load %arg1[%c0_12, %c6, %c0_13] : memref<128x9x128xf32, #tpu.memory_space<vmem>>, vector<128x1x128xf32>
    %18 = vector.shape_cast %17 : vector<128x1x128xf32> to vector<128x128xf32>
    %19 = arith.maximumf %16, %18 : vector<128x128xf32>
    %c0_14 = arith.constant 0 : index
    %c7 = arith.constant 7 : index
    %c0_15 = arith.constant 0 : index
    %20 = vector.load %arg1[%c0_14, %c7, %c0_15] : memref<128x9x128xf32, #tpu.memory_space<vmem>>, vector<128x1x128xf32>
    %21 = vector.shape_cast %20 : vector<128x1x128xf32> to vector<128x128xf32>
    %22 = arith.maximumf %19, %21 : vector<128x128xf32>
    %c0_16 = arith.constant 0 : index
    %c8 = arith.constant 8 : index
    %c0_17 = arith.constant 0 : index
    %23 = vector.load %arg1[%c0_16, %c8, %c0_17] : memref<128x9x128xf32, #tpu.memory_space<vmem>>, vector<128x1x128xf32>
    %24 = vector.shape_cast %23 : vector<128x1x128xf32> to vector<128x128xf32>
    %25 = arith.maximumf %22, %24 : vector<128x128xf32>
    %c0_18 = arith.constant 0 : index
    %c0_19 = arith.constant 0 : index
    %26 = vector.load %arg2[%c0_18, %c0_19] : memref<128x128xf32, #tpu.memory_space<vmem>>, vector<128x128xf32>
    tpu.vector_store %arg2[%c0_18, %c0_19], %25 {strides = array<i32>} : memref<128x128xf32, #tpu.memory_space<vmem>>, vector<128x128xf32>,
    return
  }
  func.func @transform_0(%arg0: i32) -> (i32, i32, i32) {
    %c0_i32 = arith.constant 0 : i32
    %c0_i32_0 = arith.constant 0 : i32
    %c0_i32_1 = arith.constant 0 : i32
    return %arg0, %c0_i32, %c0_i32_0 : i32, i32, i32
  }
  func.func @transform_1(%arg0: i32) -> (i32, i32) {
    %c0_i32 = arith.constant 0 : i32
    %c0_i32_0 = arith.constant 0 : i32
    return %arg0, %c0_i32 : i32, i32
  }
}

module attributes {stable_mosaic.version = 11 : i64} {
  func.func @_conv_matmul_kernel(%arg0: i32, %arg1: i32, %arg2: i32, %arg3: memref<128x128xbf16, #tpu.memory_space<vmem>>, %arg4: memref<128x128xbf16, #tpu.memory_space<vmem>>, %arg5: memref<128x128xf32, #tpu.memory_space<vmem>>, %arg6: memref<1x2x128xf32, #tpu.memory_space<vmem>>, %arg7: memref<128x128xf32, #tpu.memory_space<vmem>>) attributes {dimension_semantics = [#tpu.dimension_semantics<parallel>, #tpu.dimension_semantics<parallel>, #tpu.dimension_semantics<arbitrary>], iteration_bounds = array<i64: 1, 1, 1>, scalar_prefetch = 0 : i64, scratch_operands = 1 : i64, tpu.core_type = #tpu.core_type<tc>, window_params = [{transform_indices = @transform_0, window_bounds = array<i64: 128, 128>}, {transform_indices = @transform_1, window_bounds = array<i64: 128, 128>}, {transform_indices = @transform_2, window_bounds = array<i64: 128, 128>}, {transform_indices = @transform_3, window_bounds = array<i64: 1, 2, 128>}]} {
    %c0_i32 = arith.constant 0 : i32
    %0 = arith.cmpi eq, %arg2, %c0_i32 : i32
    %1 = arith.extui %0 : i1 to i32
    %c0_i32_0 = arith.constant 0 : i32
    %2 = arith.cmpi ne, %1, %c0_i32_0 : i32
    scf.if %2 {
      %cst_10 = arith.constant 0.000000e+00 : f32
      %12 = vector.broadcast %cst_10 : f32 to vector<128x128xf32>
      %c0_11 = arith.constant 0 : index
      %c0_12 = arith.constant 0 : index
      %13 = vector.load %arg7[%c0_11, %c0_12] : memref<128x128xf32, #tpu.memory_space<vmem>>, vector<128x128xf32>
      tpu.vector_store %arg7[%c0_11, %c0_12], %12 {strides = array<i32>} : memref<128x128xf32, #tpu.memory_space<vmem>>, vector<128x128xf32>,
    } else {
    }
    %c0 = arith.constant 0 : index
    %c0_1 = arith.constant 0 : index
    %3 = vector.load %arg7[%c0, %c0_1] : memref<128x128xf32, #tpu.memory_space<vmem>>, vector<128x128xf32>
    %c0_2 = arith.constant 0 : index
    %c0_3 = arith.constant 0 : index
    %4 = vector.load %arg3[%c0_2, %c0_3] : memref<128x128xbf16, #tpu.memory_space<vmem>>, vector<128x128xbf16>
    %c0_4 = arith.constant 0 : index
    %c0_5 = arith.constant 0 : index
    %5 = vector.load %arg4[%c0_4, %c0_5] : memref<128x128xbf16, #tpu.memory_space<vmem>>, vector<128x128xbf16>
    %cst = arith.constant dense<0.000000e+00> : vector<128x128xf32>
    %6 = tpu.matmul %4, %5, %cst {dimension_numbers = #tpu.dot_dimension_numbers<[1], [0], [0], [1], [0, 0, 1, 1], [], []>} : vector<128x128xbf16>, vector<128x128xbf16>, vector<128x128xf32> -> vector<128x128xf32>
    %7 = arith.addf %3, %6 : vector<128x128xf32>
    %c0_6 = arith.constant 0 : index
    %c0_7 = arith.constant 0 : index
    %8 = vector.load %arg7[%c0_6, %c0_7] : memref<128x128xf32, #tpu.memory_space<vmem>>, vector<128x128xf32>
    tpu.vector_store %arg7[%c0_6, %c0_7], %7 {strides = array<i32>} : memref<128x128xf32, #tpu.memory_space<vmem>>, vector<128x128xf32>,
    %c0_i32_8 = arith.constant 0 : i32
    %9 = arith.cmpi eq, %arg2, %c0_i32_8 : i32
    %10 = arith.extui %9 : i1 to i32
    %c0_i32_9 = arith.constant 0 : i32
    %11 = arith.cmpi ne, %10, %c0_i32_9 : i32
    scf.if %11 {
      %c0_10 = arith.constant 0 : index
      %c0_11 = arith.constant 0 : index
      %12 = vector.load %arg7[%c0_10, %c0_11] : memref<128x128xf32, #tpu.memory_space<vmem>>, vector<128x128xf32>
      %c0_12 = arith.constant 0 : index
      %c0_13 = arith.constant 0 : index
      %13 = vector.load %arg5[%c0_12, %c0_13] : memref<128x128xf32, #tpu.memory_space<vmem>>, vector<128x128xf32>
      tpu.vector_store %arg5[%c0_12, %c0_13], %12 {strides = array<i32>} : memref<128x128xf32, #tpu.memory_space<vmem>>, vector<128x128xf32>,
      %cst_14 = arith.constant dense<0.000000e+00> : vector<128xf32>
      %14 = vector.multi_reduction <add>, %12, %cst_14 [0] : vector<128x128xf32> to vector<128xf32>
      %15 = vector.shape_cast %14 : vector<128xf32> to vector<1x128xf32>
      %16 = arith.mulf %12, %12 : vector<128x128xf32>
      %cst_15 = arith.constant dense<0.000000e+00> : vector<128xf32>
      %17 = vector.multi_reduction <add>, %16, %cst_15 [0] : vector<128x128xf32> to vector<128xf32>
      %18 = vector.shape_cast %17 : vector<128xf32> to vector<1x128xf32>
      %19 = tpu.concatenate %15, %18 in 0 : vector<1x128xf32>, vector<1x128xf32> -> vector<2x128xf32>
      %20 = vector.shape_cast %19 : vector<2x128xf32> to vector<1x2x128xf32>
      %c0_16 = arith.constant 0 : index
      %c0_17 = arith.constant 0 : index
      %c0_18 = arith.constant 0 : index
      %21 = vector.load %arg6[%c0_16, %c0_17, %c0_18] : memref<1x2x128xf32, #tpu.memory_space<vmem>>, vector<1x2x128xf32>
      tpu.vector_store %arg6[%c0_16, %c0_17, %c0_18], %20 {strides = array<i32>} : memref<1x2x128xf32, #tpu.memory_space<vmem>>, vector<1x2x128xf32>,
    } else {
    }
    return
  }
  func.func @transform_0(%arg0: i32, %arg1: i32, %arg2: i32) -> (i32, i32) {
    %c0_i32 = arith.constant 0 : i32
    return %arg0, %arg2 : i32, i32
  }
  func.func @transform_1(%arg0: i32, %arg1: i32, %arg2: i32) -> (i32, i32) {
    %c0_i32 = arith.constant 0 : i32
    return %arg2, %arg1 : i32, i32
  }
  func.func @transform_2(%arg0: i32, %arg1: i32, %arg2: i32) -> (i32, i32) {
    %c0_i32 = arith.constant 0 : i32
    return %arg0, %arg1 : i32, i32
  }
  func.func @transform_3(%arg0: i32, %arg1: i32, %arg2: i32) -> (i32, i32, i32) {
    %c0_i32 = arith.constant 0 : i32
    %c0_i32_0 = arith.constant 0 : i32
    return %arg0, %c0_i32, %arg1 : i32, i32, i32
  }
}

module attributes {stable_mosaic.version = 11 : i64} {
  func.func @_bn_apply_kernel(%arg0: i32, %arg1: i32, %arg2: memref<128x128xf32, #tpu.memory_space<vmem>>, %arg3: memref<1x128xf32, #tpu.memory_space<vmem>>, %arg4: memref<1x128xf32, #tpu.memory_space<vmem>>, %arg5: memref<128x128xf32, #tpu.memory_space<vmem>>) attributes {dimension_semantics = [#tpu.dimension_semantics<parallel>, #tpu.dimension_semantics<parallel>], iteration_bounds = array<i64: 1, 1>, scalar_prefetch = 0 : i64, scratch_operands = 0 : i64, tpu.core_type = #tpu.core_type<tc>, window_params = [{transform_indices = @transform_0, window_bounds = array<i64: 128, 128>}, {transform_indices = @transform_1, window_bounds = array<i64: 1, 128>}, {transform_indices = @transform_2, window_bounds = array<i64: 1, 128>}, {transform_indices = @transform_3, window_bounds = array<i64: 128, 128>}]} {
    %c0 = arith.constant 0 : index
    %c0_0 = arith.constant 0 : index
    %0 = vector.load %arg2[%c0, %c0_0] : memref<128x128xf32, #tpu.memory_space<vmem>>, vector<128x128xf32>
    %c0_1 = arith.constant 0 : index
    %c0_2 = arith.constant 0 : index
    %1 = vector.load %arg3[%c0_1, %c0_2] : memref<1x128xf32, #tpu.memory_space<vmem>>, vector<1x128xf32>
    %2 = vector.broadcast %1 : vector<1x128xf32> to vector<128x128xf32>
    %3 = arith.mulf %0, %2 : vector<128x128xf32>
    %c0_3 = arith.constant 0 : index
    %c0_4 = arith.constant 0 : index
    %4 = vector.load %arg4[%c0_3, %c0_4] : memref<1x128xf32, #tpu.memory_space<vmem>>, vector<1x128xf32>
    %5 = vector.broadcast %4 : vector<1x128xf32> to vector<128x128xf32>
    %6 = arith.addf %3, %5 : vector<128x128xf32>
    %cst = arith.constant 0.000000e+00 : f32
    %7 = vector.broadcast %cst : f32 to vector<128x128xf32>
    %8 = arith.maximumf %6, %7 : vector<128x128xf32>
    %c0_5 = arith.constant 0 : index
    %c0_6 = arith.constant 0 : index
    %9 = vector.load %arg5[%c0_5, %c0_6] : memref<128x128xf32, #tpu.memory_space<vmem>>, vector<128x128xf32>
    tpu.vector_store %arg5[%c0_5, %c0_6], %8 {strides = array<i32>} : memref<128x128xf32, #tpu.memory_space<vmem>>, vector<128x128xf32>,
    return
  }
  func.func @transform_0(%arg0: i32, %arg1: i32) -> (i32, i32) {
    %c0_i32 = arith.constant 0 : i32
    return %arg0, %arg1 : i32, i32
  }
  func.func @transform_1(%arg0: i32, %arg1: i32) -> (i32, i32) {
    %c0_i32 = arith.constant 0 : i32
    %c0_i32_0 = arith.constant 0 : i32
    return %c0_i32, %arg1 : i32, i32
  }
  func.func @transform_2(%arg0: i32, %arg1: i32) -> (i32, i32) {
    %c0_i32 = arith.constant 0 : i32
    %c0_i32_0 = arith.constant 0 : i32
    return %c0_i32, %arg1 : i32, i32
  }
  func.func @transform_3(%arg0: i32, %arg1: i32) -> (i32, i32) {
    %c0_i32 = arith.constant 0 : i32
    return %arg0, %arg1 : i32, i32
  }
}

module attributes {stable_mosaic.version = 11 : i64} {
  func.func @_bn_apply_res_kernel(%arg0: i32, %arg1: i32, %arg2: memref<128x128xf32, #tpu.memory_space<vmem>>, %arg3: memref<1x128xf32, #tpu.memory_space<vmem>>, %arg4: memref<1x128xf32, #tpu.memory_space<vmem>>, %arg5: memref<128x128xf32, #tpu.memory_space<vmem>>, %arg6: memref<128x128xf32, #tpu.memory_space<vmem>>) attributes {dimension_semantics = [#tpu.dimension_semantics<parallel>, #tpu.dimension_semantics<parallel>], iteration_bounds = array<i64: 1, 1>, scalar_prefetch = 0 : i64, scratch_operands = 0 : i64, tpu.core_type = #tpu.core_type<tc>, window_params = [{transform_indices = @transform_0, window_bounds = array<i64: 128, 128>}, {transform_indices = @transform_1, window_bounds = array<i64: 1, 128>}, {transform_indices = @transform_2, window_bounds = array<i64: 1, 128>}, {transform_indices = @transform_3, window_bounds = array<i64: 128, 128>}, {transform_indices = @transform_4, window_bounds = array<i64: 128, 128>}]} {
    %c0 = arith.constant 0 : index
    %c0_0 = arith.constant 0 : index
    %0 = vector.load %arg2[%c0, %c0_0] : memref<128x128xf32, #tpu.memory_space<vmem>>, vector<128x128xf32>
    %c0_1 = arith.constant 0 : index
    %c0_2 = arith.constant 0 : index
    %1 = vector.load %arg3[%c0_1, %c0_2] : memref<1x128xf32, #tpu.memory_space<vmem>>, vector<1x128xf32>
    %2 = vector.broadcast %1 : vector<1x128xf32> to vector<128x128xf32>
    %3 = arith.mulf %0, %2 : vector<128x128xf32>
    %c0_3 = arith.constant 0 : index
    %c0_4 = arith.constant 0 : index
    %4 = vector.load %arg4[%c0_3, %c0_4] : memref<1x128xf32, #tpu.memory_space<vmem>>, vector<1x128xf32>
    %5 = vector.broadcast %4 : vector<1x128xf32> to vector<128x128xf32>
    %6 = arith.addf %3, %5 : vector<128x128xf32>
    %c0_5 = arith.constant 0 : index
    %c0_6 = arith.constant 0 : index
    %7 = vector.load %arg5[%c0_5, %c0_6] : memref<128x128xf32, #tpu.memory_space<vmem>>, vector<128x128xf32>
    %8 = arith.addf %6, %7 : vector<128x128xf32>
    %c0_7 = arith.constant 0 : index
    %c0_8 = arith.constant 0 : index
    %9 = vector.load %arg6[%c0_7, %c0_8] : memref<128x128xf32, #tpu.memory_space<vmem>>, vector<128x128xf32>
    tpu.vector_store %arg6[%c0_7, %c0_8], %8 {strides = array<i32>} : memref<128x128xf32, #tpu.memory_space<vmem>>, vector<128x128xf32>,
    return
  }
  func.func @transform_0(%arg0: i32, %arg1: i32) -> (i32, i32) {
    %c0_i32 = arith.constant 0 : i32
    return %arg0, %arg1 : i32, i32
  }
  func.func @transform_1(%arg0: i32, %arg1: i32) -> (i32, i32) {
    %c0_i32 = arith.constant 0 : i32
    %c0_i32_0 = arith.constant 0 : i32
    return %c0_i32, %arg1 : i32, i32
  }
  func.func @transform_2(%arg0: i32, %arg1: i32) -> (i32, i32) {
    %c0_i32 = arith.constant 0 : i32
    %c0_i32_0 = arith.constant 0 : i32
    return %c0_i32, %arg1 : i32, i32
  }
  func.func @transform_3(%arg0: i32, %arg1: i32) -> (i32, i32) {
    %c0_i32 = arith.constant 0 : i32
    return %arg0, %arg1 : i32, i32
  }
  func.func @transform_4(%arg0: i32, %arg1: i32) -> (i32, i32) {
    %c0_i32 = arith.constant 0 : i32
    return %arg0, %arg1 : i32, i32
  }
}

module attributes {stable_mosaic.version = 11 : i64} {
  func.func @_bn_apply_kernel(%arg0: i32, %arg1: i32, %arg2: memref<32x128xf32, #tpu.memory_space<vmem>>, %arg3: memref<1x128xf32, #tpu.memory_space<vmem>>, %arg4: memref<1x128xf32, #tpu.memory_space<vmem>>, %arg5: memref<32x128xf32, #tpu.memory_space<vmem>>) attributes {dimension_semantics = [#tpu.dimension_semantics<parallel>, #tpu.dimension_semantics<parallel>], iteration_bounds = array<i64: 1, 1>, scalar_prefetch = 0 : i64, scratch_operands = 0 : i64, tpu.core_type = #tpu.core_type<tc>, window_params = [{transform_indices = @transform_0, window_bounds = array<i64: 32, 128>}, {transform_indices = @transform_1, window_bounds = array<i64: 1, 128>}, {transform_indices = @transform_2, window_bounds = array<i64: 1, 128>}, {transform_indices = @transform_3, window_bounds = array<i64: 32, 128>}]} {
    %c0 = arith.constant 0 : index
    %c0_0 = arith.constant 0 : index
    %0 = vector.load %arg2[%c0, %c0_0] : memref<32x128xf32, #tpu.memory_space<vmem>>, vector<32x128xf32>
    %c0_1 = arith.constant 0 : index
    %c0_2 = arith.constant 0 : index
    %1 = vector.load %arg3[%c0_1, %c0_2] : memref<1x128xf32, #tpu.memory_space<vmem>>, vector<1x128xf32>
    %2 = vector.broadcast %1 : vector<1x128xf32> to vector<32x128xf32>
    %3 = arith.mulf %0, %2 : vector<32x128xf32>
    %c0_3 = arith.constant 0 : index
    %c0_4 = arith.constant 0 : index
    %4 = vector.load %arg4[%c0_3, %c0_4] : memref<1x128xf32, #tpu.memory_space<vmem>>, vector<1x128xf32>
    %5 = vector.broadcast %4 : vector<1x128xf32> to vector<32x128xf32>
    %6 = arith.addf %3, %5 : vector<32x128xf32>
    %cst = arith.constant 0.000000e+00 : f32
    %7 = vector.broadcast %cst : f32 to vector<32x128xf32>
    %8 = arith.maximumf %6, %7 : vector<32x128xf32>
    %c0_5 = arith.constant 0 : index
    %c0_6 = arith.constant 0 : index
    %9 = vector.load %arg5[%c0_5, %c0_6] : memref<32x128xf32, #tpu.memory_space<vmem>>, vector<32x128xf32>
    tpu.vector_store %arg5[%c0_5, %c0_6], %8 {strides = array<i32>} : memref<32x128xf32, #tpu.memory_space<vmem>>, vector<32x128xf32>,
    return
  }
  func.func @transform_0(%arg0: i32, %arg1: i32) -> (i32, i32) {
    %c0_i32 = arith.constant 0 : i32
    return %arg0, %arg1 : i32, i32
  }
  func.func @transform_1(%arg0: i32, %arg1: i32) -> (i32, i32) {
    %c0_i32 = arith.constant 0 : i32
    %c0_i32_0 = arith.constant 0 : i32
    return %c0_i32, %arg1 : i32, i32
  }
  func.func @transform_2(%arg0: i32, %arg1: i32) -> (i32, i32) {
    %c0_i32 = arith.constant 0 : i32
    %c0_i32_0 = arith.constant 0 : i32
    return %c0_i32, %arg1 : i32, i32
  }
  func.func @transform_3(%arg0: i32, %arg1: i32) -> (i32, i32) {
    %c0_i32 = arith.constant 0 : i32
    return %arg0, %arg1 : i32, i32
  }
}

module attributes {stable_mosaic.version = 11 : i64} {
  func.func @_conv_matmul_kernel(%arg0: i32, %arg1: i32, %arg2: i32, %arg3: memref<32x128xbf16, #tpu.memory_space<vmem>>, %arg4: memref<128x128xbf16, #tpu.memory_space<vmem>>, %arg5: memref<32x128xf32, #tpu.memory_space<vmem>>, %arg6: memref<1x2x128xf32, #tpu.memory_space<vmem>>, %arg7: memref<32x128xf32, #tpu.memory_space<vmem>>) attributes {dimension_semantics = [#tpu.dimension_semantics<parallel>, #tpu.dimension_semantics<parallel>, #tpu.dimension_semantics<arbitrary>], iteration_bounds = array<i64: 1, 1, 1>, scalar_prefetch = 0 : i64, scratch_operands = 1 : i64, tpu.core_type = #tpu.core_type<tc>, window_params = [{transform_indices = @transform_0, window_bounds = array<i64: 32, 128>}, {transform_indices = @transform_1, window_bounds = array<i64: 128, 128>}, {transform_indices = @transform_2, window_bounds = array<i64: 32, 128>}, {transform_indices = @transform_3, window_bounds = array<i64: 1, 2, 128>}]} {
    %c0_i32 = arith.constant 0 : i32
    %0 = arith.cmpi eq, %arg2, %c0_i32 : i32
    %1 = arith.extui %0 : i1 to i32
    %c0_i32_0 = arith.constant 0 : i32
    %2 = arith.cmpi ne, %1, %c0_i32_0 : i32
    scf.if %2 {
      %cst_10 = arith.constant 0.000000e+00 : f32
      %12 = vector.broadcast %cst_10 : f32 to vector<32x128xf32>
      %c0_11 = arith.constant 0 : index
      %c0_12 = arith.constant 0 : index
      %13 = vector.load %arg7[%c0_11, %c0_12] : memref<32x128xf32, #tpu.memory_space<vmem>>, vector<32x128xf32>
      tpu.vector_store %arg7[%c0_11, %c0_12], %12 {strides = array<i32>} : memref<32x128xf32, #tpu.memory_space<vmem>>, vector<32x128xf32>,
    } else {
    }
    %c0 = arith.constant 0 : index
    %c0_1 = arith.constant 0 : index
    %3 = vector.load %arg7[%c0, %c0_1] : memref<32x128xf32, #tpu.memory_space<vmem>>, vector<32x128xf32>
    %c0_2 = arith.constant 0 : index
    %c0_3 = arith.constant 0 : index
    %4 = vector.load %arg3[%c0_2, %c0_3] : memref<32x128xbf16, #tpu.memory_space<vmem>>, vector<32x128xbf16>
    %c0_4 = arith.constant 0 : index
    %c0_5 = arith.constant 0 : index
    %5 = vector.load %arg4[%c0_4, %c0_5] : memref<128x128xbf16, #tpu.memory_space<vmem>>, vector<128x128xbf16>
    %cst = arith.constant dense<0.000000e+00> : vector<32x128xf32>
    %6 = tpu.matmul %4, %5, %cst {dimension_numbers = #tpu.dot_dimension_numbers<[1], [0], [0], [1], [0, 0, 1, 1], [], []>} : vector<32x128xbf16>, vector<128x128xbf16>, vector<32x128xf32> -> vector<32x128xf32>
    %7 = arith.addf %3, %6 : vector<32x128xf32>
    %c0_6 = arith.constant 0 : index
    %c0_7 = arith.constant 0 : index
    %8 = vector.load %arg7[%c0_6, %c0_7] : memref<32x128xf32, #tpu.memory_space<vmem>>, vector<32x128xf32>
    tpu.vector_store %arg7[%c0_6, %c0_7], %7 {strides = array<i32>} : memref<32x128xf32, #tpu.memory_space<vmem>>, vector<32x128xf32>,
    %c0_i32_8 = arith.constant 0 : i32
    %9 = arith.cmpi eq, %arg2, %c0_i32_8 : i32
    %10 = arith.extui %9 : i1 to i32
    %c0_i32_9 = arith.constant 0 : i32
    %11 = arith.cmpi ne, %10, %c0_i32_9 : i32
    scf.if %11 {
      %c0_10 = arith.constant 0 : index
      %c0_11 = arith.constant 0 : index
      %12 = vector.load %arg7[%c0_10, %c0_11] : memref<32x128xf32, #tpu.memory_space<vmem>>, vector<32x128xf32>
      %c0_12 = arith.constant 0 : index
      %c0_13 = arith.constant 0 : index
      %13 = vector.load %arg5[%c0_12, %c0_13] : memref<32x128xf32, #tpu.memory_space<vmem>>, vector<32x128xf32>
      tpu.vector_store %arg5[%c0_12, %c0_13], %12 {strides = array<i32>} : memref<32x128xf32, #tpu.memory_space<vmem>>, vector<32x128xf32>,
      %cst_14 = arith.constant dense<0.000000e+00> : vector<128xf32>
      %14 = vector.multi_reduction <add>, %12, %cst_14 [0] : vector<32x128xf32> to vector<128xf32>
      %15 = vector.shape_cast %14 : vector<128xf32> to vector<1x128xf32>
      %16 = arith.mulf %12, %12 : vector<32x128xf32>
      %cst_15 = arith.constant dense<0.000000e+00> : vector<128xf32>
      %17 = vector.multi_reduction <add>, %16, %cst_15 [0] : vector<32x128xf32> to vector<128xf32>
      %18 = vector.shape_cast %17 : vector<128xf32> to vector<1x128xf32>
      %19 = tpu.concatenate %15, %18 in 0 : vector<1x128xf32>, vector<1x128xf32> -> vector<2x128xf32>
      %20 = vector.shape_cast %19 : vector<2x128xf32> to vector<1x2x128xf32>
      %c0_16 = arith.constant 0 : index
      %c0_17 = arith.constant 0 : index
      %c0_18 = arith.constant 0 : index
      %21 = vector.load %arg6[%c0_16, %c0_17, %c0_18] : memref<1x2x128xf32, #tpu.memory_space<vmem>>, vector<1x2x128xf32>
      tpu.vector_store %arg6[%c0_16, %c0_17, %c0_18], %20 {strides = array<i32>} : memref<1x2x128xf32, #tpu.memory_space<vmem>>, vector<1x2x128xf32>,
    } else {
    }
    return
  }
  func.func @transform_0(%arg0: i32, %arg1: i32, %arg2: i32) -> (i32, i32) {
    %c0_i32 = arith.constant 0 : i32
    return %arg0, %arg2 : i32, i32
  }
  func.func @transform_1(%arg0: i32, %arg1: i32, %arg2: i32) -> (i32, i32) {
    %c0_i32 = arith.constant 0 : i32
    return %arg2, %arg1 : i32, i32
  }
  func.func @transform_2(%arg0: i32, %arg1: i32, %arg2: i32) -> (i32, i32) {
    %c0_i32 = arith.constant 0 : i32
    return %arg0, %arg1 : i32, i32
  }
  func.func @transform_3(%arg0: i32, %arg1: i32, %arg2: i32) -> (i32, i32, i32) {
    %c0_i32 = arith.constant 0 : i32
    %c0_i32_0 = arith.constant 0 : i32
    return %arg0, %c0_i32, %arg1 : i32, i32, i32
  }
}

module attributes {stable_mosaic.version = 11 : i64} {
  func.func @_conv_matmul_kernel(%arg0: i32, %arg1: i32, %arg2: i32, %arg3: memref<32x256xbf16, #tpu.memory_space<vmem>>, %arg4: memref<256x128xbf16, #tpu.memory_space<vmem>>, %arg5: memref<32x128xf32, #tpu.memory_space<vmem>>, %arg6: memref<1x2x128xf32, #tpu.memory_space<vmem>>, %arg7: memref<32x128xf32, #tpu.memory_space<vmem>>) attributes {dimension_semantics = [#tpu.dimension_semantics<parallel>, #tpu.dimension_semantics<parallel>, #tpu.dimension_semantics<arbitrary>], iteration_bounds = array<i64: 1, 1, 1>, scalar_prefetch = 0 : i64, scratch_operands = 1 : i64, tpu.core_type = #tpu.core_type<tc>, window_params = [{transform_indices = @transform_0, window_bounds = array<i64: 32, 256>}, {transform_indices = @transform_1, window_bounds = array<i64: 256, 128>}, {transform_indices = @transform_2, window_bounds = array<i64: 32, 128>}, {transform_indices = @transform_3, window_bounds = array<i64: 1, 2, 128>}]} {
    %c0_i32 = arith.constant 0 : i32
    %0 = arith.cmpi eq, %arg2, %c0_i32 : i32
    %1 = arith.extui %0 : i1 to i32
    %c0_i32_0 = arith.constant 0 : i32
    %2 = arith.cmpi ne, %1, %c0_i32_0 : i32
    scf.if %2 {
      %cst_10 = arith.constant 0.000000e+00 : f32
      %12 = vector.broadcast %cst_10 : f32 to vector<32x128xf32>
      %c0_11 = arith.constant 0 : index
      %c0_12 = arith.constant 0 : index
      %13 = vector.load %arg7[%c0_11, %c0_12] : memref<32x128xf32, #tpu.memory_space<vmem>>, vector<32x128xf32>
      tpu.vector_store %arg7[%c0_11, %c0_12], %12 {strides = array<i32>} : memref<32x128xf32, #tpu.memory_space<vmem>>, vector<32x128xf32>,
    } else {
    }
    %c0 = arith.constant 0 : index
    %c0_1 = arith.constant 0 : index
    %3 = vector.load %arg7[%c0, %c0_1] : memref<32x128xf32, #tpu.memory_space<vmem>>, vector<32x128xf32>
    %c0_2 = arith.constant 0 : index
    %c0_3 = arith.constant 0 : index
    %4 = vector.load %arg3[%c0_2, %c0_3] : memref<32x256xbf16, #tpu.memory_space<vmem>>, vector<32x256xbf16>
    %c0_4 = arith.constant 0 : index
    %c0_5 = arith.constant 0 : index
    %5 = vector.load %arg4[%c0_4, %c0_5] : memref<256x128xbf16, #tpu.memory_space<vmem>>, vector<256x128xbf16>
    %cst = arith.constant dense<0.000000e+00> : vector<32x128xf32>
    %6 = tpu.matmul %4, %5, %cst {dimension_numbers = #tpu.dot_dimension_numbers<[1], [0], [0], [1], [0, 0, 1, 1], [], []>} : vector<32x256xbf16>, vector<256x128xbf16>, vector<32x128xf32> -> vector<32x128xf32>
    %7 = arith.addf %3, %6 : vector<32x128xf32>
    %c0_6 = arith.constant 0 : index
    %c0_7 = arith.constant 0 : index
    %8 = vector.load %arg7[%c0_6, %c0_7] : memref<32x128xf32, #tpu.memory_space<vmem>>, vector<32x128xf32>
    tpu.vector_store %arg7[%c0_6, %c0_7], %7 {strides = array<i32>} : memref<32x128xf32, #tpu.memory_space<vmem>>, vector<32x128xf32>,
    %c0_i32_8 = arith.constant 0 : i32
    %9 = arith.cmpi eq, %arg2, %c0_i32_8 : i32
    %10 = arith.extui %9 : i1 to i32
    %c0_i32_9 = arith.constant 0 : i32
    %11 = arith.cmpi ne, %10, %c0_i32_9 : i32
    scf.if %11 {
      %c0_10 = arith.constant 0 : index
      %c0_11 = arith.constant 0 : index
      %12 = vector.load %arg7[%c0_10, %c0_11] : memref<32x128xf32, #tpu.memory_space<vmem>>, vector<32x128xf32>
      %c0_12 = arith.constant 0 : index
      %c0_13 = arith.constant 0 : index
      %13 = vector.load %arg5[%c0_12, %c0_13] : memref<32x128xf32, #tpu.memory_space<vmem>>, vector<32x128xf32>
      tpu.vector_store %arg5[%c0_12, %c0_13], %12 {strides = array<i32>} : memref<32x128xf32, #tpu.memory_space<vmem>>, vector<32x128xf32>,
      %cst_14 = arith.constant dense<0.000000e+00> : vector<128xf32>
      %14 = vector.multi_reduction <add>, %12, %cst_14 [0] : vector<32x128xf32> to vector<128xf32>
      %15 = vector.shape_cast %14 : vector<128xf32> to vector<1x128xf32>
      %16 = arith.mulf %12, %12 : vector<32x128xf32>
      %cst_15 = arith.constant dense<0.000000e+00> : vector<128xf32>
      %17 = vector.multi_reduction <add>, %16, %cst_15 [0] : vector<32x128xf32> to vector<128xf32>
      %18 = vector.shape_cast %17 : vector<128xf32> to vector<1x128xf32>
      %19 = tpu.concatenate %15, %18 in 0 : vector<1x128xf32>, vector<1x128xf32> -> vector<2x128xf32>
      %20 = vector.shape_cast %19 : vector<2x128xf32> to vector<1x2x128xf32>
      %c0_16 = arith.constant 0 : index
      %c0_17 = arith.constant 0 : index
      %c0_18 = arith.constant 0 : index
      %21 = vector.load %arg6[%c0_16, %c0_17, %c0_18] : memref<1x2x128xf32, #tpu.memory_space<vmem>>, vector<1x2x128xf32>
      tpu.vector_store %arg6[%c0_16, %c0_17, %c0_18], %20 {strides = array<i32>} : memref<1x2x128xf32, #tpu.memory_space<vmem>>, vector<1x2x128xf32>,
    } else {
    }
    return
  }
  func.func @transform_0(%arg0: i32, %arg1: i32, %arg2: i32) -> (i32, i32) {
    %c0_i32 = arith.constant 0 : i32
    return %arg0, %arg2 : i32, i32
  }
  func.func @transform_1(%arg0: i32, %arg1: i32, %arg2: i32) -> (i32, i32) {
    %c0_i32 = arith.constant 0 : i32
    return %arg2, %arg1 : i32, i32
  }
  func.func @transform_2(%arg0: i32, %arg1: i32, %arg2: i32) -> (i32, i32) {
    %c0_i32 = arith.constant 0 : i32
    return %arg0, %arg1 : i32, i32
  }
  func.func @transform_3(%arg0: i32, %arg1: i32, %arg2: i32) -> (i32, i32, i32) {
    %c0_i32 = arith.constant 0 : i32
    %c0_i32_0 = arith.constant 0 : i32
    return %arg0, %c0_i32, %arg1 : i32, i32, i32
  }
}

module attributes {stable_mosaic.version = 11 : i64} {
  func.func @_bn_apply_kernel(%arg0: i32, %arg1: i32, %arg2: memref<32x128xf32, #tpu.memory_space<vmem>>, %arg3: memref<1x128xf32, #tpu.memory_space<vmem>>, %arg4: memref<1x128xf32, #tpu.memory_space<vmem>>, %arg5: memref<32x128xf32, #tpu.memory_space<vmem>>) attributes {dimension_semantics = [#tpu.dimension_semantics<parallel>, #tpu.dimension_semantics<parallel>], iteration_bounds = array<i64: 1, 1>, scalar_prefetch = 0 : i64, scratch_operands = 0 : i64, tpu.core_type = #tpu.core_type<tc>, window_params = [{transform_indices = @transform_0, window_bounds = array<i64: 32, 128>}, {transform_indices = @transform_1, window_bounds = array<i64: 1, 128>}, {transform_indices = @transform_2, window_bounds = array<i64: 1, 128>}, {transform_indices = @transform_3, window_bounds = array<i64: 32, 128>}]} {
    %c0 = arith.constant 0 : index
    %c0_0 = arith.constant 0 : index
    %0 = vector.load %arg2[%c0, %c0_0] : memref<32x128xf32, #tpu.memory_space<vmem>>, vector<32x128xf32>
    %c0_1 = arith.constant 0 : index
    %c0_2 = arith.constant 0 : index
    %1 = vector.load %arg3[%c0_1, %c0_2] : memref<1x128xf32, #tpu.memory_space<vmem>>, vector<1x128xf32>
    %2 = vector.broadcast %1 : vector<1x128xf32> to vector<32x128xf32>
    %3 = arith.mulf %0, %2 : vector<32x128xf32>
    %c0_3 = arith.constant 0 : index
    %c0_4 = arith.constant 0 : index
    %4 = vector.load %arg4[%c0_3, %c0_4] : memref<1x128xf32, #tpu.memory_space<vmem>>, vector<1x128xf32>
    %5 = vector.broadcast %4 : vector<1x128xf32> to vector<32x128xf32>
    %6 = arith.addf %3, %5 : vector<32x128xf32>
    %c0_5 = arith.constant 0 : index
    %c0_6 = arith.constant 0 : index
    %7 = vector.load %arg5[%c0_5, %c0_6] : memref<32x128xf32, #tpu.memory_space<vmem>>, vector<32x128xf32>
    tpu.vector_store %arg5[%c0_5, %c0_6], %6 {strides = array<i32>} : memref<32x128xf32, #tpu.memory_space<vmem>>, vector<32x128xf32>,
    return
  }
  func.func @transform_0(%arg0: i32, %arg1: i32) -> (i32, i32) {
    %c0_i32 = arith.constant 0 : i32
    return %arg0, %arg1 : i32, i32
  }
  func.func @transform_1(%arg0: i32, %arg1: i32) -> (i32, i32) {
    %c0_i32 = arith.constant 0 : i32
    %c0_i32_0 = arith.constant 0 : i32
    return %c0_i32, %arg1 : i32, i32
  }
  func.func @transform_2(%arg0: i32, %arg1: i32) -> (i32, i32) {
    %c0_i32 = arith.constant 0 : i32
    %c0_i32_0 = arith.constant 0 : i32
    return %c0_i32, %arg1 : i32, i32
  }
  func.func @transform_3(%arg0: i32, %arg1: i32) -> (i32, i32) {
    %c0_i32 = arith.constant 0 : i32
    return %arg0, %arg1 : i32, i32
  }
}

module attributes {stable_mosaic.version = 11 : i64} {
  func.func @_bn_apply_res_kernel(%arg0: i32, %arg1: i32, %arg2: memref<32x128xf32, #tpu.memory_space<vmem>>, %arg3: memref<1x128xf32, #tpu.memory_space<vmem>>, %arg4: memref<1x128xf32, #tpu.memory_space<vmem>>, %arg5: memref<32x128xf32, #tpu.memory_space<vmem>>, %arg6: memref<32x128xf32, #tpu.memory_space<vmem>>) attributes {dimension_semantics = [#tpu.dimension_semantics<parallel>, #tpu.dimension_semantics<parallel>], iteration_bounds = array<i64: 1, 1>, scalar_prefetch = 0 : i64, scratch_operands = 0 : i64, tpu.core_type = #tpu.core_type<tc>, window_params = [{transform_indices = @transform_0, window_bounds = array<i64: 32, 128>}, {transform_indices = @transform_1, window_bounds = array<i64: 1, 128>}, {transform_indices = @transform_2, window_bounds = array<i64: 1, 128>}, {transform_indices = @transform_3, window_bounds = array<i64: 32, 128>}, {transform_indices = @transform_4, window_bounds = array<i64: 32, 128>}]} {
    %c0 = arith.constant 0 : index
    %c0_0 = arith.constant 0 : index
    %0 = vector.load %arg2[%c0, %c0_0] : memref<32x128xf32, #tpu.memory_space<vmem>>, vector<32x128xf32>
    %c0_1 = arith.constant 0 : index
    %c0_2 = arith.constant 0 : index
    %1 = vector.load %arg3[%c0_1, %c0_2] : memref<1x128xf32, #tpu.memory_space<vmem>>, vector<1x128xf32>
    %2 = vector.broadcast %1 : vector<1x128xf32> to vector<32x128xf32>
    %3 = arith.mulf %0, %2 : vector<32x128xf32>
    %c0_3 = arith.constant 0 : index
    %c0_4 = arith.constant 0 : index
    %4 = vector.load %arg4[%c0_3, %c0_4] : memref<1x128xf32, #tpu.memory_space<vmem>>, vector<1x128xf32>
    %5 = vector.broadcast %4 : vector<1x128xf32> to vector<32x128xf32>
    %6 = arith.addf %3, %5 : vector<32x128xf32>
    %c0_5 = arith.constant 0 : index
    %c0_6 = arith.constant 0 : index
    %7 = vector.load %arg5[%c0_5, %c0_6] : memref<32x128xf32, #tpu.memory_space<vmem>>, vector<32x128xf32>
    %8 = arith.addf %6, %7 : vector<32x128xf32>
    %c0_7 = arith.constant 0 : index
    %c0_8 = arith.constant 0 : index
    %9 = vector.load %arg6[%c0_7, %c0_8] : memref<32x128xf32, #tpu.memory_space<vmem>>, vector<32x128xf32>
    tpu.vector_store %arg6[%c0_7, %c0_8], %8 {strides = array<i32>} : memref<32x128xf32, #tpu.memory_space<vmem>>, vector<32x128xf32>,
    return
  }
  func.func @transform_0(%arg0: i32, %arg1: i32) -> (i32, i32) {
    %c0_i32 = arith.constant 0 : i32
    return %arg0, %arg1 : i32, i32
  }
  func.func @transform_1(%arg0: i32, %arg1: i32) -> (i32, i32) {
    %c0_i32 = arith.constant 0 : i32
    %c0_i32_0 = arith.constant 0 : i32
    return %c0_i32, %arg1 : i32, i32
  }
  func.func @transform_2(%arg0: i32, %arg1: i32) -> (i32, i32) {
    %c0_i32 = arith.constant 0 : i32
    %c0_i32_0 = arith.constant 0 : i32
    return %c0_i32, %arg1 : i32, i32
  }
  func.func @transform_3(%arg0: i32, %arg1: i32) -> (i32, i32) {
    %c0_i32 = arith.constant 0 : i32
    return %arg0, %arg1 : i32, i32
  }
  func.func @transform_4(%arg0: i32, %arg1: i32) -> (i32, i32) {
    %c0_i32 = arith.constant 0 : i32
    return %arg0, %arg1 : i32, i32
  }
}

module attributes {stable_mosaic.version = 11 : i64} {
  func.func @_bn_apply_kernel(%arg0: i32, %arg1: i32, %arg2: memref<8x128xf32, #tpu.memory_space<vmem>>, %arg3: memref<1x128xf32, #tpu.memory_space<vmem>>, %arg4: memref<1x128xf32, #tpu.memory_space<vmem>>, %arg5: memref<8x128xf32, #tpu.memory_space<vmem>>) attributes {dimension_semantics = [#tpu.dimension_semantics<parallel>, #tpu.dimension_semantics<parallel>], iteration_bounds = array<i64: 1, 1>, scalar_prefetch = 0 : i64, scratch_operands = 0 : i64, tpu.core_type = #tpu.core_type<tc>, window_params = [{transform_indices = @transform_0, window_bounds = array<i64: 8, 128>}, {transform_indices = @transform_1, window_bounds = array<i64: 1, 128>}, {transform_indices = @transform_2, window_bounds = array<i64: 1, 128>}, {transform_indices = @transform_3, window_bounds = array<i64: 8, 128>}]} {
    %c0 = arith.constant 0 : index
    %c0_0 = arith.constant 0 : index
    %0 = vector.load %arg2[%c0, %c0_0] : memref<8x128xf32, #tpu.memory_space<vmem>>, vector<8x128xf32>
    %c0_1 = arith.constant 0 : index
    %c0_2 = arith.constant 0 : index
    %1 = vector.load %arg3[%c0_1, %c0_2] : memref<1x128xf32, #tpu.memory_space<vmem>>, vector<1x128xf32>
    %2 = vector.broadcast %1 : vector<1x128xf32> to vector<8x128xf32>
    %3 = arith.mulf %0, %2 : vector<8x128xf32>
    %c0_3 = arith.constant 0 : index
    %c0_4 = arith.constant 0 : index
    %4 = vector.load %arg4[%c0_3, %c0_4] : memref<1x128xf32, #tpu.memory_space<vmem>>, vector<1x128xf32>
    %5 = vector.broadcast %4 : vector<1x128xf32> to vector<8x128xf32>
    %6 = arith.addf %3, %5 : vector<8x128xf32>
    %cst = arith.constant 0.000000e+00 : f32
    %7 = vector.broadcast %cst : f32 to vector<8x128xf32>
    %8 = arith.maximumf %6, %7 : vector<8x128xf32>
    %c0_5 = arith.constant 0 : index
    %c0_6 = arith.constant 0 : index
    %9 = vector.load %arg5[%c0_5, %c0_6] : memref<8x128xf32, #tpu.memory_space<vmem>>, vector<8x128xf32>
    tpu.vector_store %arg5[%c0_5, %c0_6], %8 {strides = array<i32>} : memref<8x128xf32, #tpu.memory_space<vmem>>, vector<8x128xf32>,
    return
  }
  func.func @transform_0(%arg0: i32, %arg1: i32) -> (i32, i32) {
    %c0_i32 = arith.constant 0 : i32
    return %arg0, %arg1 : i32, i32
  }
  func.func @transform_1(%arg0: i32, %arg1: i32) -> (i32, i32) {
    %c0_i32 = arith.constant 0 : i32
    %c0_i32_0 = arith.constant 0 : i32
    return %c0_i32, %arg1 : i32, i32
  }
  func.func @transform_2(%arg0: i32, %arg1: i32) -> (i32, i32) {
    %c0_i32 = arith.constant 0 : i32
    %c0_i32_0 = arith.constant 0 : i32
    return %c0_i32, %arg1 : i32, i32
  }
  func.func @transform_3(%arg0: i32, %arg1: i32) -> (i32, i32) {
    %c0_i32 = arith.constant 0 : i32
    return %arg0, %arg1 : i32, i32
  }
}

module attributes {stable_mosaic.version = 11 : i64} {
  func.func @_conv_matmul_kernel(%arg0: i32, %arg1: i32, %arg2: i32, %arg3: memref<8x256xbf16, #tpu.memory_space<vmem>>, %arg4: memref<256x128xbf16, #tpu.memory_space<vmem>>, %arg5: memref<8x128xf32, #tpu.memory_space<vmem>>, %arg6: memref<1x2x128xf32, #tpu.memory_space<vmem>>, %arg7: memref<8x128xf32, #tpu.memory_space<vmem>>) attributes {dimension_semantics = [#tpu.dimension_semantics<parallel>, #tpu.dimension_semantics<parallel>, #tpu.dimension_semantics<arbitrary>], iteration_bounds = array<i64: 1, 1, 1>, scalar_prefetch = 0 : i64, scratch_operands = 1 : i64, tpu.core_type = #tpu.core_type<tc>, window_params = [{transform_indices = @transform_0, window_bounds = array<i64: 8, 256>}, {transform_indices = @transform_1, window_bounds = array<i64: 256, 128>}, {transform_indices = @transform_2, window_bounds = array<i64: 8, 128>}, {transform_indices = @transform_3, window_bounds = array<i64: 1, 2, 128>}]} {
    %c0_i32 = arith.constant 0 : i32
    %0 = arith.cmpi eq, %arg2, %c0_i32 : i32
    %1 = arith.extui %0 : i1 to i32
    %c0_i32_0 = arith.constant 0 : i32
    %2 = arith.cmpi ne, %1, %c0_i32_0 : i32
    scf.if %2 {
      %cst_10 = arith.constant 0.000000e+00 : f32
      %12 = vector.broadcast %cst_10 : f32 to vector<8x128xf32>
      %c0_11 = arith.constant 0 : index
      %c0_12 = arith.constant 0 : index
      %13 = vector.load %arg7[%c0_11, %c0_12] : memref<8x128xf32, #tpu.memory_space<vmem>>, vector<8x128xf32>
      tpu.vector_store %arg7[%c0_11, %c0_12], %12 {strides = array<i32>} : memref<8x128xf32, #tpu.memory_space<vmem>>, vector<8x128xf32>,
    } else {
    }
    %c0 = arith.constant 0 : index
    %c0_1 = arith.constant 0 : index
    %3 = vector.load %arg7[%c0, %c0_1] : memref<8x128xf32, #tpu.memory_space<vmem>>, vector<8x128xf32>
    %c0_2 = arith.constant 0 : index
    %c0_3 = arith.constant 0 : index
    %4 = vector.load %arg3[%c0_2, %c0_3] : memref<8x256xbf16, #tpu.memory_space<vmem>>, vector<8x256xbf16>
    %c0_4 = arith.constant 0 : index
    %c0_5 = arith.constant 0 : index
    %5 = vector.load %arg4[%c0_4, %c0_5] : memref<256x128xbf16, #tpu.memory_space<vmem>>, vector<256x128xbf16>
    %cst = arith.constant dense<0.000000e+00> : vector<8x128xf32>
    %6 = tpu.matmul %4, %5, %cst {dimension_numbers = #tpu.dot_dimension_numbers<[1], [0], [0], [1], [0, 0, 1, 1], [], []>} : vector<8x256xbf16>, vector<256x128xbf16>, vector<8x128xf32> -> vector<8x128xf32>
    %7 = arith.addf %3, %6 : vector<8x128xf32>
    %c0_6 = arith.constant 0 : index
    %c0_7 = arith.constant 0 : index
    %8 = vector.load %arg7[%c0_6, %c0_7] : memref<8x128xf32, #tpu.memory_space<vmem>>, vector<8x128xf32>
    tpu.vector_store %arg7[%c0_6, %c0_7], %7 {strides = array<i32>} : memref<8x128xf32, #tpu.memory_space<vmem>>, vector<8x128xf32>,
    %c0_i32_8 = arith.constant 0 : i32
    %9 = arith.cmpi eq, %arg2, %c0_i32_8 : i32
    %10 = arith.extui %9 : i1 to i32
    %c0_i32_9 = arith.constant 0 : i32
    %11 = arith.cmpi ne, %10, %c0_i32_9 : i32
    scf.if %11 {
      %c0_10 = arith.constant 0 : index
      %c0_11 = arith.constant 0 : index
      %12 = vector.load %arg7[%c0_10, %c0_11] : memref<8x128xf32, #tpu.memory_space<vmem>>, vector<8x128xf32>
      %c0_12 = arith.constant 0 : index
      %c0_13 = arith.constant 0 : index
      %13 = vector.load %arg5[%c0_12, %c0_13] : memref<8x128xf32, #tpu.memory_space<vmem>>, vector<8x128xf32>
      tpu.vector_store %arg5[%c0_12, %c0_13], %12 {strides = array<i32>} : memref<8x128xf32, #tpu.memory_space<vmem>>, vector<8x128xf32>,
      %cst_14 = arith.constant dense<0.000000e+00> : vector<128xf32>
      %14 = vector.multi_reduction <add>, %12, %cst_14 [0] : vector<8x128xf32> to vector<128xf32>
      %15 = vector.shape_cast %14 : vector<128xf32> to vector<1x128xf32>
      %16 = arith.mulf %12, %12 : vector<8x128xf32>
      %cst_15 = arith.constant dense<0.000000e+00> : vector<128xf32>
      %17 = vector.multi_reduction <add>, %16, %cst_15 [0] : vector<8x128xf32> to vector<128xf32>
      %18 = vector.shape_cast %17 : vector<128xf32> to vector<1x128xf32>
      %19 = tpu.concatenate %15, %18 in 0 : vector<1x128xf32>, vector<1x128xf32> -> vector<2x128xf32>
      %20 = vector.shape_cast %19 : vector<2x128xf32> to vector<1x2x128xf32>
      %c0_16 = arith.constant 0 : index
      %c0_17 = arith.constant 0 : index
      %c0_18 = arith.constant 0 : index
      %21 = vector.load %arg6[%c0_16, %c0_17, %c0_18] : memref<1x2x128xf32, #tpu.memory_space<vmem>>, vector<1x2x128xf32>
      tpu.vector_store %arg6[%c0_16, %c0_17, %c0_18], %20 {strides = array<i32>} : memref<1x2x128xf32, #tpu.memory_space<vmem>>, vector<1x2x128xf32>,
    } else {
    }
    return
  }
  func.func @transform_0(%arg0: i32, %arg1: i32, %arg2: i32) -> (i32, i32) {
    %c0_i32 = arith.constant 0 : i32
    return %arg0, %arg2 : i32, i32
  }
  func.func @transform_1(%arg0: i32, %arg1: i32, %arg2: i32) -> (i32, i32) {
    %c0_i32 = arith.constant 0 : i32
    return %arg2, %arg1 : i32, i32
  }
  func.func @transform_2(%arg0: i32, %arg1: i32, %arg2: i32) -> (i32, i32) {
    %c0_i32 = arith.constant 0 : i32
    return %arg0, %arg1 : i32, i32
  }
  func.func @transform_3(%arg0: i32, %arg1: i32, %arg2: i32) -> (i32, i32, i32) {
    %c0_i32 = arith.constant 0 : i32
    %c0_i32_0 = arith.constant 0 : i32
    return %arg0, %c0_i32, %arg1 : i32, i32, i32
  }
}

module attributes {stable_mosaic.version = 11 : i64} {
  func.func @_conv_matmul_kernel(%arg0: i32, %arg1: i32, %arg2: i32, %arg3: memref<8x128xbf16, #tpu.memory_space<vmem>>, %arg4: memref<128x128xbf16, #tpu.memory_space<vmem>>, %arg5: memref<8x128xf32, #tpu.memory_space<vmem>>, %arg6: memref<1x2x128xf32, #tpu.memory_space<vmem>>, %arg7: memref<8x128xf32, #tpu.memory_space<vmem>>) attributes {dimension_semantics = [#tpu.dimension_semantics<parallel>, #tpu.dimension_semantics<parallel>, #tpu.dimension_semantics<arbitrary>], iteration_bounds = array<i64: 1, 1, 1>, scalar_prefetch = 0 : i64, scratch_operands = 1 : i64, tpu.core_type = #tpu.core_type<tc>, window_params = [{transform_indices = @transform_0, window_bounds = array<i64: 8, 128>}, {transform_indices = @transform_1, window_bounds = array<i64: 128, 128>}, {transform_indices = @transform_2, window_bounds = array<i64: 8, 128>}, {transform_indices = @transform_3, window_bounds = array<i64: 1, 2, 128>}]} {
    %c0_i32 = arith.constant 0 : i32
    %0 = arith.cmpi eq, %arg2, %c0_i32 : i32
    %1 = arith.extui %0 : i1 to i32
    %c0_i32_0 = arith.constant 0 : i32
    %2 = arith.cmpi ne, %1, %c0_i32_0 : i32
    scf.if %2 {
      %cst_10 = arith.constant 0.000000e+00 : f32
      %12 = vector.broadcast %cst_10 : f32 to vector<8x128xf32>
      %c0_11 = arith.constant 0 : index
      %c0_12 = arith.constant 0 : index
      %13 = vector.load %arg7[%c0_11, %c0_12] : memref<8x128xf32, #tpu.memory_space<vmem>>, vector<8x128xf32>
      tpu.vector_store %arg7[%c0_11, %c0_12], %12 {strides = array<i32>} : memref<8x128xf32, #tpu.memory_space<vmem>>, vector<8x128xf32>,
    } else {
    }
    %c0 = arith.constant 0 : index
    %c0_1 = arith.constant 0 : index
    %3 = vector.load %arg7[%c0, %c0_1] : memref<8x128xf32, #tpu.memory_space<vmem>>, vector<8x128xf32>
    %c0_2 = arith.constant 0 : index
    %c0_3 = arith.constant 0 : index
    %4 = vector.load %arg3[%c0_2, %c0_3] : memref<8x128xbf16, #tpu.memory_space<vmem>>, vector<8x128xbf16>
    %c0_4 = arith.constant 0 : index
    %c0_5 = arith.constant 0 : index
    %5 = vector.load %arg4[%c0_4, %c0_5] : memref<128x128xbf16, #tpu.memory_space<vmem>>, vector<128x128xbf16>
    %cst = arith.constant dense<0.000000e+00> : vector<8x128xf32>
    %6 = tpu.matmul %4, %5, %cst {dimension_numbers = #tpu.dot_dimension_numbers<[1], [0], [0], [1], [0, 0, 1, 1], [], []>} : vector<8x128xbf16>, vector<128x128xbf16>, vector<8x128xf32> -> vector<8x128xf32>
    %7 = arith.addf %3, %6 : vector<8x128xf32>
    %c0_6 = arith.constant 0 : index
    %c0_7 = arith.constant 0 : index
    %8 = vector.load %arg7[%c0_6, %c0_7] : memref<8x128xf32, #tpu.memory_space<vmem>>, vector<8x128xf32>
    tpu.vector_store %arg7[%c0_6, %c0_7], %7 {strides = array<i32>} : memref<8x128xf32, #tpu.memory_space<vmem>>, vector<8x128xf32>,
    %c0_i32_8 = arith.constant 0 : i32
    %9 = arith.cmpi eq, %arg2, %c0_i32_8 : i32
    %10 = arith.extui %9 : i1 to i32
    %c0_i32_9 = arith.constant 0 : i32
    %11 = arith.cmpi ne, %10, %c0_i32_9 : i32
    scf.if %11 {
      %c0_10 = arith.constant 0 : index
      %c0_11 = arith.constant 0 : index
      %12 = vector.load %arg7[%c0_10, %c0_11] : memref<8x128xf32, #tpu.memory_space<vmem>>, vector<8x128xf32>
      %c0_12 = arith.constant 0 : index
      %c0_13 = arith.constant 0 : index
      %13 = vector.load %arg5[%c0_12, %c0_13] : memref<8x128xf32, #tpu.memory_space<vmem>>, vector<8x128xf32>
      tpu.vector_store %arg5[%c0_12, %c0_13], %12 {strides = array<i32>} : memref<8x128xf32, #tpu.memory_space<vmem>>, vector<8x128xf32>,
      %cst_14 = arith.constant dense<0.000000e+00> : vector<128xf32>
      %14 = vector.multi_reduction <add>, %12, %cst_14 [0] : vector<8x128xf32> to vector<128xf32>
      %15 = vector.shape_cast %14 : vector<128xf32> to vector<1x128xf32>
      %16 = arith.mulf %12, %12 : vector<8x128xf32>
      %cst_15 = arith.constant dense<0.000000e+00> : vector<128xf32>
      %17 = vector.multi_reduction <add>, %16, %cst_15 [0] : vector<8x128xf32> to vector<128xf32>
      %18 = vector.shape_cast %17 : vector<128xf32> to vector<1x128xf32>
      %19 = tpu.concatenate %15, %18 in 0 : vector<1x128xf32>, vector<1x128xf32> -> vector<2x128xf32>
      %20 = vector.shape_cast %19 : vector<2x128xf32> to vector<1x2x128xf32>
      %c0_16 = arith.constant 0 : index
      %c0_17 = arith.constant 0 : index
      %c0_18 = arith.constant 0 : index
      %21 = vector.load %arg6[%c0_16, %c0_17, %c0_18] : memref<1x2x128xf32, #tpu.memory_space<vmem>>, vector<1x2x128xf32>
      tpu.vector_store %arg6[%c0_16, %c0_17, %c0_18], %20 {strides = array<i32>} : memref<1x2x128xf32, #tpu.memory_space<vmem>>, vector<1x2x128xf32>,
    } else {
    }
    return
  }
  func.func @transform_0(%arg0: i32, %arg1: i32, %arg2: i32) -> (i32, i32) {
    %c0_i32 = arith.constant 0 : i32
    return %arg0, %arg2 : i32, i32
  }
  func.func @transform_1(%arg0: i32, %arg1: i32, %arg2: i32) -> (i32, i32) {
    %c0_i32 = arith.constant 0 : i32
    return %arg2, %arg1 : i32, i32
  }
  func.func @transform_2(%arg0: i32, %arg1: i32, %arg2: i32) -> (i32, i32) {
    %c0_i32 = arith.constant 0 : i32
    return %arg0, %arg1 : i32, i32
  }
  func.func @transform_3(%arg0: i32, %arg1: i32, %arg2: i32) -> (i32, i32, i32) {
    %c0_i32 = arith.constant 0 : i32
    %c0_i32_0 = arith.constant 0 : i32
    return %arg0, %c0_i32, %arg1 : i32, i32, i32
  }
}

module attributes {stable_mosaic.version = 11 : i64} {
  func.func @_conv_matmul_kernel(%arg0: i32, %arg1: i32, %arg2: i32, %arg3: memref<8x384xbf16, #tpu.memory_space<vmem>>, %arg4: memref<384x128xbf16, #tpu.memory_space<vmem>>, %arg5: memref<8x128xf32, #tpu.memory_space<vmem>>, %arg6: memref<1x2x128xf32, #tpu.memory_space<vmem>>, %arg7: memref<8x128xf32, #tpu.memory_space<vmem>>) attributes {dimension_semantics = [#tpu.dimension_semantics<parallel>, #tpu.dimension_semantics<parallel>, #tpu.dimension_semantics<arbitrary>], iteration_bounds = array<i64: 1, 1, 1>, scalar_prefetch = 0 : i64, scratch_operands = 1 : i64, tpu.core_type = #tpu.core_type<tc>, window_params = [{transform_indices = @transform_0, window_bounds = array<i64: 8, 384>}, {transform_indices = @transform_1, window_bounds = array<i64: 384, 128>}, {transform_indices = @transform_2, window_bounds = array<i64: 8, 128>}, {transform_indices = @transform_3, window_bounds = array<i64: 1, 2, 128>}]} {
    %c0_i32 = arith.constant 0 : i32
    %0 = arith.cmpi eq, %arg2, %c0_i32 : i32
    %1 = arith.extui %0 : i1 to i32
    %c0_i32_0 = arith.constant 0 : i32
    %2 = arith.cmpi ne, %1, %c0_i32_0 : i32
    scf.if %2 {
      %cst_10 = arith.constant 0.000000e+00 : f32
      %12 = vector.broadcast %cst_10 : f32 to vector<8x128xf32>
      %c0_11 = arith.constant 0 : index
      %c0_12 = arith.constant 0 : index
      %13 = vector.load %arg7[%c0_11, %c0_12] : memref<8x128xf32, #tpu.memory_space<vmem>>, vector<8x128xf32>
      tpu.vector_store %arg7[%c0_11, %c0_12], %12 {strides = array<i32>} : memref<8x128xf32, #tpu.memory_space<vmem>>, vector<8x128xf32>,
    } else {
    }
    %c0 = arith.constant 0 : index
    %c0_1 = arith.constant 0 : index
    %3 = vector.load %arg7[%c0, %c0_1] : memref<8x128xf32, #tpu.memory_space<vmem>>, vector<8x128xf32>
    %c0_2 = arith.constant 0 : index
    %c0_3 = arith.constant 0 : index
    %4 = vector.load %arg3[%c0_2, %c0_3] : memref<8x384xbf16, #tpu.memory_space<vmem>>, vector<8x384xbf16>
    %c0_4 = arith.constant 0 : index
    %c0_5 = arith.constant 0 : index
    %5 = vector.load %arg4[%c0_4, %c0_5] : memref<384x128xbf16, #tpu.memory_space<vmem>>, vector<384x128xbf16>
    %cst = arith.constant dense<0.000000e+00> : vector<8x128xf32>
    %6 = tpu.matmul %4, %5, %cst {dimension_numbers = #tpu.dot_dimension_numbers<[1], [0], [0], [1], [0, 0, 1, 1], [], []>} : vector<8x384xbf16>, vector<384x128xbf16>, vector<8x128xf32> -> vector<8x128xf32>
    %7 = arith.addf %3, %6 : vector<8x128xf32>
    %c0_6 = arith.constant 0 : index
    %c0_7 = arith.constant 0 : index
    %8 = vector.load %arg7[%c0_6, %c0_7] : memref<8x128xf32, #tpu.memory_space<vmem>>, vector<8x128xf32>
    tpu.vector_store %arg7[%c0_6, %c0_7], %7 {strides = array<i32>} : memref<8x128xf32, #tpu.memory_space<vmem>>, vector<8x128xf32>,
    %c0_i32_8 = arith.constant 0 : i32
    %9 = arith.cmpi eq, %arg2, %c0_i32_8 : i32
    %10 = arith.extui %9 : i1 to i32
    %c0_i32_9 = arith.constant 0 : i32
    %11 = arith.cmpi ne, %10, %c0_i32_9 : i32
    scf.if %11 {
      %c0_10 = arith.constant 0 : index
      %c0_11 = arith.constant 0 : index
      %12 = vector.load %arg7[%c0_10, %c0_11] : memref<8x128xf32, #tpu.memory_space<vmem>>, vector<8x128xf32>
      %c0_12 = arith.constant 0 : index
      %c0_13 = arith.constant 0 : index
      %13 = vector.load %arg5[%c0_12, %c0_13] : memref<8x128xf32, #tpu.memory_space<vmem>>, vector<8x128xf32>
      tpu.vector_store %arg5[%c0_12, %c0_13], %12 {strides = array<i32>} : memref<8x128xf32, #tpu.memory_space<vmem>>, vector<8x128xf32>,
      %cst_14 = arith.constant dense<0.000000e+00> : vector<128xf32>
      %14 = vector.multi_reduction <add>, %12, %cst_14 [0] : vector<8x128xf32> to vector<128xf32>
      %15 = vector.shape_cast %14 : vector<128xf32> to vector<1x128xf32>
      %16 = arith.mulf %12, %12 : vector<8x128xf32>
      %cst_15 = arith.constant dense<0.000000e+00> : vector<128xf32>
      %17 = vector.multi_reduction <add>, %16, %cst_15 [0] : vector<8x128xf32> to vector<128xf32>
      %18 = vector.shape_cast %17 : vector<128xf32> to vector<1x128xf32>
      %19 = tpu.concatenate %15, %18 in 0 : vector<1x128xf32>, vector<1x128xf32> -> vector<2x128xf32>
      %20 = vector.shape_cast %19 : vector<2x128xf32> to vector<1x2x128xf32>
      %c0_16 = arith.constant 0 : index
      %c0_17 = arith.constant 0 : index
      %c0_18 = arith.constant 0 : index
      %21 = vector.load %arg6[%c0_16, %c0_17, %c0_18] : memref<1x2x128xf32, #tpu.memory_space<vmem>>, vector<1x2x128xf32>
      tpu.vector_store %arg6[%c0_16, %c0_17, %c0_18], %20 {strides = array<i32>} : memref<1x2x128xf32, #tpu.memory_space<vmem>>, vector<1x2x128xf32>,
    } else {
    }
    return
  }
  func.func @transform_0(%arg0: i32, %arg1: i32, %arg2: i32) -> (i32, i32) {
    %c0_i32 = arith.constant 0 : i32
    return %arg0, %arg2 : i32, i32
  }
  func.func @transform_1(%arg0: i32, %arg1: i32, %arg2: i32) -> (i32, i32) {
    %c0_i32 = arith.constant 0 : i32
    return %arg2, %arg1 : i32, i32
  }
  func.func @transform_2(%arg0: i32, %arg1: i32, %arg2: i32) -> (i32, i32) {
    %c0_i32 = arith.constant 0 : i32
    return %arg0, %arg1 : i32, i32
  }
  func.func @transform_3(%arg0: i32, %arg1: i32, %arg2: i32) -> (i32, i32, i32) {
    %c0_i32 = arith.constant 0 : i32
    %c0_i32_0 = arith.constant 0 : i32
    return %arg0, %c0_i32, %arg1 : i32, i32, i32
  }
}

module attributes {stable_mosaic.version = 11 : i64} {
  func.func @_bn_apply_kernel(%arg0: i32, %arg1: i32, %arg2: memref<8x128xf32, #tpu.memory_space<vmem>>, %arg3: memref<1x128xf32, #tpu.memory_space<vmem>>, %arg4: memref<1x128xf32, #tpu.memory_space<vmem>>, %arg5: memref<8x128xf32, #tpu.memory_space<vmem>>) attributes {dimension_semantics = [#tpu.dimension_semantics<parallel>, #tpu.dimension_semantics<parallel>], iteration_bounds = array<i64: 1, 1>, scalar_prefetch = 0 : i64, scratch_operands = 0 : i64, tpu.core_type = #tpu.core_type<tc>, window_params = [{transform_indices = @transform_0, window_bounds = array<i64: 8, 128>}, {transform_indices = @transform_1, window_bounds = array<i64: 1, 128>}, {transform_indices = @transform_2, window_bounds = array<i64: 1, 128>}, {transform_indices = @transform_3, window_bounds = array<i64: 8, 128>}]} {
    %c0 = arith.constant 0 : index
    %c0_0 = arith.constant 0 : index
    %0 = vector.load %arg2[%c0, %c0_0] : memref<8x128xf32, #tpu.memory_space<vmem>>, vector<8x128xf32>
    %c0_1 = arith.constant 0 : index
    %c0_2 = arith.constant 0 : index
    %1 = vector.load %arg3[%c0_1, %c0_2] : memref<1x128xf32, #tpu.memory_space<vmem>>, vector<1x128xf32>
    %2 = vector.broadcast %1 : vector<1x128xf32> to vector<8x128xf32>
    %3 = arith.mulf %0, %2 : vector<8x128xf32>
    %c0_3 = arith.constant 0 : index
    %c0_4 = arith.constant 0 : index
    %4 = vector.load %arg4[%c0_3, %c0_4] : memref<1x128xf32, #tpu.memory_space<vmem>>, vector<1x128xf32>
    %5 = vector.broadcast %4 : vector<1x128xf32> to vector<8x128xf32>
    %6 = arith.addf %3, %5 : vector<8x128xf32>
    %c0_5 = arith.constant 0 : index
    %c0_6 = arith.constant 0 : index
    %7 = vector.load %arg5[%c0_5, %c0_6] : memref<8x128xf32, #tpu.memory_space<vmem>>, vector<8x128xf32>
    tpu.vector_store %arg5[%c0_5, %c0_6], %6 {strides = array<i32>} : memref<8x128xf32, #tpu.memory_space<vmem>>, vector<8x128xf32>,
    return
  }
  func.func @transform_0(%arg0: i32, %arg1: i32) -> (i32, i32) {
    %c0_i32 = arith.constant 0 : i32
    return %arg0, %arg1 : i32, i32
  }
  func.func @transform_1(%arg0: i32, %arg1: i32) -> (i32, i32) {
    %c0_i32 = arith.constant 0 : i32
    %c0_i32_0 = arith.constant 0 : i32
    return %c0_i32, %arg1 : i32, i32
  }
  func.func @transform_2(%arg0: i32, %arg1: i32) -> (i32, i32) {
    %c0_i32 = arith.constant 0 : i32
    %c0_i32_0 = arith.constant 0 : i32
    return %c0_i32, %arg1 : i32, i32
  }
  func.func @transform_3(%arg0: i32, %arg1: i32) -> (i32, i32) {
    %c0_i32 = arith.constant 0 : i32
    return %arg0, %arg1 : i32, i32
  }
}

module attributes {stable_mosaic.version = 11 : i64} {
  func.func @_bn_apply_res_kernel(%arg0: i32, %arg1: i32, %arg2: memref<8x128xf32, #tpu.memory_space<vmem>>, %arg3: memref<1x128xf32, #tpu.memory_space<vmem>>, %arg4: memref<1x128xf32, #tpu.memory_space<vmem>>, %arg5: memref<8x128xf32, #tpu.memory_space<vmem>>, %arg6: memref<8x128xf32, #tpu.memory_space<vmem>>) attributes {dimension_semantics = [#tpu.dimension_semantics<parallel>, #tpu.dimension_semantics<parallel>], iteration_bounds = array<i64: 1, 1>, scalar_prefetch = 0 : i64, scratch_operands = 0 : i64, tpu.core_type = #tpu.core_type<tc>, window_params = [{transform_indices = @transform_0, window_bounds = array<i64: 8, 128>}, {transform_indices = @transform_1, window_bounds = array<i64: 1, 128>}, {transform_indices = @transform_2, window_bounds = array<i64: 1, 128>}, {transform_indices = @transform_3, window_bounds = array<i64: 8, 128>}, {transform_indices = @transform_4, window_bounds = array<i64: 8, 128>}]} {
    %c0 = arith.constant 0 : index
    %c0_0 = arith.constant 0 : index
    %0 = vector.load %arg2[%c0, %c0_0] : memref<8x128xf32, #tpu.memory_space<vmem>>, vector<8x128xf32>
    %c0_1 = arith.constant 0 : index
    %c0_2 = arith.constant 0 : index
    %1 = vector.load %arg3[%c0_1, %c0_2] : memref<1x128xf32, #tpu.memory_space<vmem>>, vector<1x128xf32>
    %2 = vector.broadcast %1 : vector<1x128xf32> to vector<8x128xf32>
    %3 = arith.mulf %0, %2 : vector<8x128xf32>
    %c0_3 = arith.constant 0 : index
    %c0_4 = arith.constant 0 : index
    %4 = vector.load %arg4[%c0_3, %c0_4] : memref<1x128xf32, #tpu.memory_space<vmem>>, vector<1x128xf32>
    %5 = vector.broadcast %4 : vector<1x128xf32> to vector<8x128xf32>
    %6 = arith.addf %3, %5 : vector<8x128xf32>
    %c0_5 = arith.constant 0 : index
    %c0_6 = arith.constant 0 : index
    %7 = vector.load %arg5[%c0_5, %c0_6] : memref<8x128xf32, #tpu.memory_space<vmem>>, vector<8x128xf32>
    %8 = arith.addf %6, %7 : vector<8x128xf32>
    %c0_7 = arith.constant 0 : index
    %c0_8 = arith.constant 0 : index
    %9 = vector.load %arg6[%c0_7, %c0_8] : memref<8x128xf32, #tpu.memory_space<vmem>>, vector<8x128xf32>
    tpu.vector_store %arg6[%c0_7, %c0_8], %8 {strides = array<i32>} : memref<8x128xf32, #tpu.memory_space<vmem>>, vector<8x128xf32>,
    return
  }
  func.func @transform_0(%arg0: i32, %arg1: i32) -> (i32, i32) {
    %c0_i32 = arith.constant 0 : i32
    return %arg0, %arg1 : i32, i32
  }
  func.func @transform_1(%arg0: i32, %arg1: i32) -> (i32, i32) {
    %c0_i32 = arith.constant 0 : i32
    %c0_i32_0 = arith.constant 0 : i32
    return %c0_i32, %arg1 : i32, i32
  }
  func.func @transform_2(%arg0: i32, %arg1: i32) -> (i32, i32) {
    %c0_i32 = arith.constant 0 : i32
    %c0_i32_0 = arith.constant 0 : i32
    return %c0_i32, %arg1 : i32, i32
  }
  func.func @transform_3(%arg0: i32, %arg1: i32) -> (i32, i32) {
    %c0_i32 = arith.constant 0 : i32
    return %arg0, %arg1 : i32, i32
  }
  func.func @transform_4(%arg0: i32, %arg1: i32) -> (i32, i32) {
    %c0_i32 = arith.constant 0 : i32
    return %arg0, %arg1 : i32, i32
  }
}

module attributes {stable_mosaic.version = 11 : i64} {
  func.func @_conv_matmul_kernel(%arg0: i32, %arg1: i32, %arg2: i32, %arg3: memref<8x640xbf16, #tpu.memory_space<vmem>>, %arg4: memref<640x128xbf16, #tpu.memory_space<vmem>>, %arg5: memref<8x128xf32, #tpu.memory_space<vmem>>, %arg6: memref<1x2x128xf32, #tpu.memory_space<vmem>>, %arg7: memref<8x128xf32, #tpu.memory_space<vmem>>) attributes {dimension_semantics = [#tpu.dimension_semantics<parallel>, #tpu.dimension_semantics<parallel>, #tpu.dimension_semantics<arbitrary>], iteration_bounds = array<i64: 1, 1, 1>, scalar_prefetch = 0 : i64, scratch_operands = 1 : i64, tpu.core_type = #tpu.core_type<tc>, window_params = [{transform_indices = @transform_0, window_bounds = array<i64: 8, 640>}, {transform_indices = @transform_1, window_bounds = array<i64: 640, 128>}, {transform_indices = @transform_2, window_bounds = array<i64: 8, 128>}, {transform_indices = @transform_3, window_bounds = array<i64: 1, 2, 128>}]} {
    %c0_i32 = arith.constant 0 : i32
    %0 = arith.cmpi eq, %arg2, %c0_i32 : i32
    %1 = arith.extui %0 : i1 to i32
    %c0_i32_0 = arith.constant 0 : i32
    %2 = arith.cmpi ne, %1, %c0_i32_0 : i32
    scf.if %2 {
      %cst_10 = arith.constant 0.000000e+00 : f32
      %12 = vector.broadcast %cst_10 : f32 to vector<8x128xf32>
      %c0_11 = arith.constant 0 : index
      %c0_12 = arith.constant 0 : index
      %13 = vector.load %arg7[%c0_11, %c0_12] : memref<8x128xf32, #tpu.memory_space<vmem>>, vector<8x128xf32>
      tpu.vector_store %arg7[%c0_11, %c0_12], %12 {strides = array<i32>} : memref<8x128xf32, #tpu.memory_space<vmem>>, vector<8x128xf32>,
    } else {
    }
    %c0 = arith.constant 0 : index
    %c0_1 = arith.constant 0 : index
    %3 = vector.load %arg7[%c0, %c0_1] : memref<8x128xf32, #tpu.memory_space<vmem>>, vector<8x128xf32>
    %c0_2 = arith.constant 0 : index
    %c0_3 = arith.constant 0 : index
    %4 = vector.load %arg3[%c0_2, %c0_3] : memref<8x640xbf16, #tpu.memory_space<vmem>>, vector<8x640xbf16>
    %c0_4 = arith.constant 0 : index
    %c0_5 = arith.constant 0 : index
    %5 = vector.load %arg4[%c0_4, %c0_5] : memref<640x128xbf16, #tpu.memory_space<vmem>>, vector<640x128xbf16>
    %cst = arith.constant dense<0.000000e+00> : vector<8x128xf32>
    %6 = tpu.matmul %4, %5, %cst {dimension_numbers = #tpu.dot_dimension_numbers<[1], [0], [0], [1], [0, 0, 1, 1], [], []>} : vector<8x640xbf16>, vector<640x128xbf16>, vector<8x128xf32> -> vector<8x128xf32>
    %7 = arith.addf %3, %6 : vector<8x128xf32>
    %c0_6 = arith.constant 0 : index
    %c0_7 = arith.constant 0 : index
    %8 = vector.load %arg7[%c0_6, %c0_7] : memref<8x128xf32, #tpu.memory_space<vmem>>, vector<8x128xf32>
    tpu.vector_store %arg7[%c0_6, %c0_7], %7 {strides = array<i32>} : memref<8x128xf32, #tpu.memory_space<vmem>>, vector<8x128xf32>,
    %c0_i32_8 = arith.constant 0 : i32
    %9 = arith.cmpi eq, %arg2, %c0_i32_8 : i32
    %10 = arith.extui %9 : i1 to i32
    %c0_i32_9 = arith.constant 0 : i32
    %11 = arith.cmpi ne, %10, %c0_i32_9 : i32
    scf.if %11 {
      %c0_10 = arith.constant 0 : index
      %c0_11 = arith.constant 0 : index
      %12 = vector.load %arg7[%c0_10, %c0_11] : memref<8x128xf32, #tpu.memory_space<vmem>>, vector<8x128xf32>
      %c0_12 = arith.constant 0 : index
      %c0_13 = arith.constant 0 : index
      %13 = vector.load %arg5[%c0_12, %c0_13] : memref<8x128xf32, #tpu.memory_space<vmem>>, vector<8x128xf32>
      tpu.vector_store %arg5[%c0_12, %c0_13], %12 {strides = array<i32>} : memref<8x128xf32, #tpu.memory_space<vmem>>, vector<8x128xf32>,
      %cst_14 = arith.constant dense<0.000000e+00> : vector<128xf32>
      %14 = vector.multi_reduction <add>, %12, %cst_14 [0] : vector<8x128xf32> to vector<128xf32>
      %15 = vector.shape_cast %14 : vector<128xf32> to vector<1x128xf32>
      %16 = arith.mulf %12, %12 : vector<8x128xf32>
      %cst_15 = arith.constant dense<0.000000e+00> : vector<128xf32>
      %17 = vector.multi_reduction <add>, %16, %cst_15 [0] : vector<8x128xf32> to vector<128xf32>
      %18 = vector.shape_cast %17 : vector<128xf32> to vector<1x128xf32>
      %19 = tpu.concatenate %15, %18 in 0 : vector<1x128xf32>, vector<1x128xf32> -> vector<2x128xf32>
      %20 = vector.shape_cast %19 : vector<2x128xf32> to vector<1x2x128xf32>
      %c0_16 = arith.constant 0 : index
      %c0_17 = arith.constant 0 : index
      %c0_18 = arith.constant 0 : index
      %21 = vector.load %arg6[%c0_16, %c0_17, %c0_18] : memref<1x2x128xf32, #tpu.memory_space<vmem>>, vector<1x2x128xf32>
      tpu.vector_store %arg6[%c0_16, %c0_17, %c0_18], %20 {strides = array<i32>} : memref<1x2x128xf32, #tpu.memory_space<vmem>>, vector<1x2x128xf32>,
    } else {
    }
    return
  }
  func.func @transform_0(%arg0: i32, %arg1: i32, %arg2: i32) -> (i32, i32) {
    %c0_i32 = arith.constant 0 : i32
    return %arg0, %arg2 : i32, i32
  }
  func.func @transform_1(%arg0: i32, %arg1: i32, %arg2: i32) -> (i32, i32) {
    %c0_i32 = arith.constant 0 : i32
    return %arg2, %arg1 : i32, i32
  }
  func.func @transform_2(%arg0: i32, %arg1: i32, %arg2: i32) -> (i32, i32) {
    %c0_i32 = arith.constant 0 : i32
    return %arg0, %arg1 : i32, i32
  }
  func.func @transform_3(%arg0: i32, %arg1: i32, %arg2: i32) -> (i32, i32, i32) {
    %c0_i32 = arith.constant 0 : i32
    %c0_i32_0 = arith.constant 0 : i32
    return %arg0, %c0_i32, %arg1 : i32, i32, i32
  }
}

</mosaic_0001>

<llo_original>
// kernel: _lambda_.42
$region0: #{_lambda_.42}
  #allocation0 [shape = 'u32[]', space=smem, size = 0x4, offset = 0x4, fixed_abs, tag = 'smem constant byte address 0x4 - core index']
  #allocation1 [shape = 'u32[144,128]{1,0:T(1,128)}', space=vmem, size = 0x12000, scoped, tag = 'internal scratch']
  %s0 = inlined_call_operand.vmem [shape: f32[512,128], index: 0, kind: input, shape index: {}]
  %s1 = inlined_call_operand.vmem [shape: f32[1,128], index: 1, kind: input, shape index: {}]
  %s2 = inlined_call_operand.vmem [shape: f32[1,128], index: 2, kind: input, shape index: {}]
  %s3 = inlined_call_operand.vmem [shape: f32[512,128], index: 3, kind: output, shape index: {}]
  %s4 = sld [smem:[#allocation0]]
  $region22: #{_lambda_.42} parent=0
    _
  %s6 = ssub.s32 1, %s4
  %s7 = scalar_select 0, %s6, %s4
  // Predicated region
  $region2: #{_lambda_.42} parent=0 // pred_check
    _
  $region3: #{_lambda_.42} parent=0 // pred_check_branch
    %9 = sbr.rel (0) target = $region5
  $region4: #{_lambda_.42} parent=0 // pred_region
    _
  $region5: #{_lambda_.42} parent=0 // pred_fallthru
    _
  // Predicated region
  $region6: #{_lambda_.42} parent=0 // pred_check
    _
  $region7: #{_lambda_.42} parent=0 // pred_check_branch
    %11 = sbr.rel (0) target = $region9
  $region8: #{_lambda_.42} parent=0 // pred_region
    _
  $region9: #{_lambda_.42} parent=0 // pred_fallthru
    _
  // Predicated region
  $region10: #{_lambda_.42} parent=0 // pred_check
    _
  $region11: #{_lambda_.42} parent=0 // pred_check_branch
    %13 = sbr.rel (0) target = $region13
  $region12: #{_lambda_.42} parent=0 // pred_region
    _
  $region13: #{_lambda_.42} parent=0 // pred_fallthru
    _
  %v14 = vld [vmem:[%s0] sm:$0xff]
  %v15 = vld [vmem:[%s0 + $0x8] sm:$0xff]
  %v16 = vld [vmem:[%s0 + $0x10] sm:$0xff]
  %v17 = vld [vmem:[%s0 + $0x18] sm:$0xff]
  %v18 = vld [vmem:[%s0 + $0x20] sm:$0xff]
  %v19 = vld [vmem:[%s0 + $0x28] sm:$0xff]
  %v20 = vld [vmem:[%s0 + $0x30] sm:$0xff]
  %v21 = vld [vmem:[%s0 + $0x38] sm:$0xff]
  %v22 = vld [vmem:[%s0 + $0x40] sm:$0xff]
  %v23 = vld [vmem:[%s0 + $0x48] sm:$0xff]
  %v24 = vld [vmem:[%s0 + $0x50] sm:$0xff]
  %v25 = vld [vmem:[%s0 + $0x58] sm:$0xff]
  %v26 = vld [vmem:[%s0 + $0x60] sm:$0xff]
  %v27 = vld [vmem:[%s0 + $0x68] sm:$0xff]
  %v28 = vld [vmem:[%s0 + $0x70] sm:$0xff]
  %v29 = vld [vmem:[%s0 + $0x78] sm:$0xff]
  %v30 = vld [vmem:[%s0 + $0x80] sm:$0xff]
  %v31 = vld [vmem:[%s0 + $0x88] sm:$0xff]
  %v32 = vld [vmem:[%s0 + $0x90] sm:$0xff]
  %v33 = vld [vmem:[%s0 + $0x98] sm:$0xff]
  %v34 = vld [vmem:[%s0 + $0xa0] sm:$0xff]
  %v35 = vld [vmem:[%s0 + $0xa8] sm:$0xff]
  %v36 = vld [vmem:[%s0 + $0xb0] sm:$0xff]
  %v37 = vld [vmem:[%s0 + $0xb8] sm:$0xff]
  %v38 = vld [vmem:[%s0 + $0xc0] sm:$0xff]
  %v39 = vld [vmem:[%s0 + $0xc8] sm:$0xff]
  %v40 = vld [vmem:[%s0 + $0xd0] sm:$0xff]
  %v41 = vld [vmem:[%s0 + $0xd8] sm:$0xff]
  %v42 = vld [vmem:[%s0 + $0xe0] sm:$0xff]
  %v43 = vld [vmem:[%s0 + $0xe8] sm:$0xff]
  %v44 = vld [vmem:[%s0 + $0xf0] sm:$0xff]
  %v45 = vld [vmem:[%s0 + $0xf8] sm:$0xff]
  %v46 = vld [vmem:[%s0 + $0x100] sm:$0xff]
  %v47 = vld [vmem:[%s0 + $0x108] sm:$0xff]
  %v48 = vld [vmem:[%s0 + $0x110] sm:$0xff]
  %v49 = vld [vmem:[%s0 + $0x118] sm:$0xff]
  %v50 = vld [vmem:[%s0 + $0x120] sm:$0xff]
  %v51 = vld [vmem:[%s0 + $0x128] sm:$0xff]
  %v52 = vld [vmem:[%s0 + $0x130] sm:$0xff]
  %v53 = vld [vmem:[%s0 + $0x138] sm:$0xff]
  %v54 = vld [vmem:[%s0 + $0x140] sm:$0xff]
  %v55 = vld [vmem:[%s0 + $0x148] sm:$0xff]
  %v56 = vld [vmem:[%s0 + $0x150] sm:$0xff]
  %v57 = vld [vmem:[%s0 + $0x158] sm:$0xff]
  %v58 = vld [vmem:[%s0 + $0x160] sm:$0xff]
  %v59 = vld [vmem:[%s0 + $0x168] sm:$0xff]
  %v60 = vld [vmem:[%s0 + $0x170] sm:$0xff]
  %v61 = vld [vmem:[%s0 + $0x178] sm:$0xff]
  %v62 = vld [vmem:[%s0 + $0x180] sm:$0xff]
  %v63 = vld [vmem:[%s0 + $0x188] sm:$0xff]
  %v64 = vld [vmem:[%s0 + $0x190] sm:$0xff]
  %v65 = vld [vmem:[%s0 + $0x198] sm:$0xff]
  %v66 = vld [vmem:[%s0 + $0x1a0] sm:$0xff]
  %v67 = vld [vmem:[%s0 + $0x1a8] sm:$0xff]
  %v68 = vld [vmem:[%s0 + $0x1b0] sm:$0xff]
  %v69 = vld [vmem:[%s0 + $0x1b8] sm:$0xff]
  %v70 = vld [vmem:[%s0 + $0x1c0] sm:$0xff]
  %v71 = vld [vmem:[%s0 + $0x1c8] sm:$0xff]
  %v72 = vld [vmem:[%s0 + $0x1d0] sm:$0xff]
  %v73 = vld [vmem:[%s0 + $0x1d8] sm:$0xff]
  %v74 = vld [vmem:[%s0 + $0x1e0] sm:$0xff]
  %v75 = vld [vmem:[%s0 + $0x1e8] sm:$0xff]
  %v76 = vld [vmem:[%s0 + $0x1f0] sm:$0xff]
  %v77 = vld [vmem:[%s0 + $0x1f8] sm:$0xff]
  %v78 = vld [vmem:[%s1] sm:$0x1]
  %v80 = vlaneseq
  %v81 = vshrl.u32 %v80, 7
  %v82 = vsub.s32 0, %v81
  %v83 = vrot.slane %v78, %v82
  %v85 = vmul.f32 %v14, %v83
  %v86 = vmul.f32 %v15, %v83
  %v87 = vmul.f32 %v16, %v83
  %v88 = vmul.f32 %v17, %v83
  %v89 = vmul.f32 %v18, %v83
  %v90 = vmul.f32 %v19, %v83
  %v91 = vmul.f32 %v20, %v83
  %v92 = vmul.f32 %v21, %v83
  %v93 = vmul.f32 %v22, %v83
  %v94 = vmul.f32 %v23, %v83
  %v95 = vmul.f32 %v24, %v83
  %v96 = vmul.f32 %v25, %v83
  %v97 = vmul.f32 %v26, %v83
  %v98 = vmul.f32 %v27, %v83
  %v99 = vmul.f32 %v28, %v83
  %v100 = vmul.f32 %v29, %v83
  %v101 = vmul.f32 %v30, %v83
  %v102 = vmul.f32 %v31, %v83
  %v103 = vmul.f32 %v32, %v83
  %v104 = vmul.f32 %v33, %v83
  %v105 = vmul.f32 %v34, %v83
  %v106 = vmul.f32 %v35, %v83
  %v107 = vmul.f32 %v36, %v83
  %v108 = vmul.f32 %v37, %v83
  %v109 = vmul.f32 %v38, %v83
  %v110 = vmul.f32 %v39, %v83
  %v111 = vmul.f32 %v40, %v83
  %v112 = vmul.f32 %v41, %v83
  %v113 = vmul.f32 %v42, %v83
  %v114 = vmul.f32 %v43, %v83
  %v115 = vmul.f32 %v44, %v83
  %v116 = vmul.f32 %v45, %v83
  %v117 = vmul.f32 %v46, %v83
  %v118 = vmul.f32 %v47, %v83
  %v119 = vmul.f32 %v48, %v83
  %v120 = vmul.f32 %v49, %v83
  %v121 = vmul.f32 %v50, %v83
  %v122 = vmul.f32 %v51, %v83
  %v123 = vmul.f32 %v52, %v83
  %v124 = vmul.f32 %v53, %v83
  %v125 = vmul.f32 %v54, %v83
  %v126 = vmul.f32 %v55, %v83
  %v127 = vmul.f32 %v56, %v83
  %v128 = vmul.f32 %v57, %v83
  %v129 = vmul.f32 %v58, %v83
  %v130 = vmul.f32 %v59, %v83
  %v131 = vmul.f32 %v60, %v83
  %v132 = vmul.f32 %v61, %v83
  %v133 = vmul.f32 %v62, %v83
  %v134 = vmul.f32 %v63, %v83
  %v135 = vmul.f32 %v64, %v83
  %v136 = vmul.f32 %v65, %v83
  %v137 = vmul.f32 %v66, %v83
  %v138 = vmul.f32 %v67, %v83
  %v139 = vmul.f32 %v68, %v83
  %v140 = vmul.f32 %v69, %v83
  %v141 = vmul.f32 %v70, %v83
  %v142 = vmul.f32 %v71, %v83
  %v143 = vmul.f32 %v72, %v83
  %v144 = vmul.f32 %v73, %v83
  %v145 = vmul.f32 %v74, %v83
  %v146 = vmul.f32 %v75, %v83
  %v147 = vmul.f32 %v76, %v83
  %v148 = vmul.f32 %v77, %v83
  %v149 = vld [vmem:[%s2] sm:$0x1]
  %v151 = vlaneseq
  %v152 = vshrl.u32 %v151, 7
  %v153 = vsub.s32 0, %v152
  %v154 = vrot.slane %v149, %v153
  %v156 = vadd.f32 %v85, %v154
  %v157 = vadd.f32 %v86, %v154
  %v158 = vadd.f32 %v87, %v154
  %v159 = vadd.f32 %v88, %v154
  %v160 = vadd.f32 %v89, %v154
  %v161 = vadd.f32 %v90, %v154
  %v162 = vadd.f32 %v91, %v154
  %v163 = vadd.f32 %v92, %v154
  %v164 = vadd.f32 %v93, %v154
  %v165 = vadd.f32 %v94, %v154
  %v166 = vadd.f32 %v95, %v154
  %v167 = vadd.f32 %v96, %v154
  %v168 = vadd.f32 %v97, %v154
  %v169 = vadd.f32 %v98, %v154
  %v170 = vadd.f32 %v99, %v154
  %v171 = vadd.f32 %v100, %v154
  %v172 = vadd.f32 %v101, %v154
  %v173 = vadd.f32 %v102, %v154
  %v174 = vadd.f32 %v103, %v154
  %v175 = vadd.f32 %v104, %v154
  %v176 = vadd.f32 %v105, %v154
  %v177 = vadd.f32 %v106, %v154
  %v178 = vadd.f32 %v107, %v154
  %v179 = vadd.f32 %v108, %v154
  %v180 = vadd.f32 %v109, %v154
  %v181 = vadd.f32 %v110, %v154
  %v182 = vadd.f32 %v111, %v154
  %v183 = vadd.f32 %v112, %v154
  %v184 = vadd.f32 %v113, %v154
  %v185 = vadd.f32 %v114, %v154
  %v186 = vadd.f32 %v115, %v154
  %v187 = vadd.f32 %v116, %v154
  %v188 = vadd.f32 %v117, %v154
  %v189 = vadd.f32 %v118, %v154
  %v190 = vadd.f32 %v119, %v154
  %v191 = vadd.f32 %v120, %v154
  %v192 = vadd.f32 %v121, %v154
  %v193 = vadd.f32 %v122, %v154
  %v194 = vadd.f32 %v123, %v154
  %v195 = vadd.f32 %v124, %v154
  %v196 = vadd.f32 %v125, %v154
  %v197 = vadd.f32 %v126, %v154
  %v198 = vadd.f32 %v127, %v154
  %v199 = vadd.f32 %v128, %v154
  %v200 = vadd.f32 %v129, %v154
  %v201 = vadd.f32 %v130, %v154
  %v202 = vadd.f32 %v131, %v154
  %v203 = vadd.f32 %v132, %v154
  %v204 = vadd.f32 %v133, %v154
  %v205 = vadd.f32 %v134, %v154
  %v206 = vadd.f32 %v135, %v154
  %v207 = vadd.f32 %v136, %v154
  %v208 = vadd.f32 %v137, %v154
  %v209 = vadd.f32 %v138, %v154
  %v210 = vadd.f32 %v139, %v154
  %v211 = vadd.f32 %v140, %v154
  %v212 = vadd.f32 %v141, %v154
  %v213 = vadd.f32 %v142, %v154
  %v214 = vadd.f32 %v143, %v154
  %v215 = vadd.f32 %v144, %v154
  %v216 = vadd.f32 %v145, %v154
  %v217 = vadd.f32 %v146, %v154
  %v218 = vadd.f32 %v147, %v154
  %v219 = vadd.f32 %v148, %v154
  %v220 = vmax.f32 %v156, 0.0
  %v221 = vmax.f32 %v157, 0.0
  %v222 = vmax.f32 %v158, 0.0
  %v223 = vmax.f32 %v159, 0.0
  %v224 = vmax.f32 %v160, 0.0
  %v225 = vmax.f32 %v161, 0.0
  %v226 = vmax.f32 %v162, 0.0
  %v227 = vmax.f32 %v163, 0.0
  %v228 = vmax.f32 %v164, 0.0
  %v229 = vmax.f32 %v165, 0.0
  %v230 = vmax.f32 %v166, 0.0
  %v231 = vmax.f32 %v167, 0.0
  %v232 = vmax.f32 %v168, 0.0
  %v233 = vmax.f32 %v169, 0.0
  %v234 = vmax.f32 %v170, 0.0
  %v235 = vmax.f32 %v171, 0.0
  %v236 = vmax.f32 %v172, 0.0
  %v237 = vmax.f32 %v173, 0.0
  %v238 = vmax.f32 %v174, 0.0
  %v239 = vmax.f32 %v175, 0.0
  %v240 = vmax.f32 %v176, 0.0
  %v241 = vmax.f32 %v177, 0.0
  %v242 = vmax.f32 %v178, 0.0
  %v243 = vmax.f32 %v179, 0.0
  %v244 = vmax.f32 %v180, 0.0
  %v245 = vmax.f32 %v181, 0.0
  %v246 = vmax.f32 %v182, 0.0
  %v247 = vmax.f32 %v183, 0.0
  %v248 = vmax.f32 %v184, 0.0
  %v249 = vmax.f32 %v185, 0.0
  %v250 = vmax.f32 %v186, 0.0
  %v251 = vmax.f32 %v187, 0.0
  %v252 = vmax.f32 %v188, 0.0
  %v253 = vmax.f32 %v189, 0.0
  %v254 = vmax.f32 %v190, 0.0
  %v255 = vmax.f32 %v191, 0.0
  %v256 = vmax.f32 %v192, 0.0
  %v257 = vmax.f32 %v193, 0.0
  %v258 = vmax.f32 %v194, 0.0
  %v259 = vmax.f32 %v195, 0.0
  %v260 = vmax.f32 %v196, 0.0
  %v261 = vmax.f32 %v197, 0.0
  %v262 = vmax.f32 %v198, 0.0
  %v263 = vmax.f32 %v199, 0.0
  %v264 = vmax.f32 %v200, 0.0
  %v265 = vmax.f32 %v201, 0.0
  %v266 = vmax.f32 %v202, 0.0
  %v267 = vmax.f32 %v203, 0.0
  %v268 = vmax.f32 %v204, 0.0
  %v269 = vmax.f32 %v205, 0.0
  %v270 = vmax.f32 %v206, 0.0
  %v271 = vmax.f32 %v207, 0.0
  %v272 = vmax.f32 %v208, 0.0
  %v273 = vmax.f32 %v209, 0.0
  %v274 = vmax.f32 %v210, 0.0
  %v275 = vmax.f32 %v211, 0.0
  %v276 = vmax.f32 %v212, 0.0
  %v277 = vmax.f32 %v213, 0.0
  %v278 = vmax.f32 %v214, 0.0
  %v279 = vmax.f32 %v215, 0.0
  %v280 = vmax.f32 %v216, 0.0
  %v281 = vmax.f32 %v217, 0.0
  %v282 = vmax.f32 %v218, 0.0
  %v283 = vmax.f32 %v219, 0.0
  %284 = vst [vmem:[%s3] sm:$0xff] %v220
  %285 = vst [vmem:[%s3 + $0x8] sm:$0xff] %v221
  %286 = vst [vmem:[%s3 + $0x10] sm:$0xff] %v222
  %287 = vst [vmem:[%s3 + $0x18] sm:$0xff] %v223
  %288 = vst [vmem:[%s3 + $0x20] sm:$0xff] %v224
  %289 = vst [vmem:[%s3 + $0x28] sm:$0xff] %v225
  %290 = vst [vmem:[%s3 + $0x30] sm:$0xff] %v226
  %291 = vst [vmem:[%s3 + $0x38] sm:$0xff] %v227
  %292 = vst [vmem:[%s3 + $0x40] sm:$0xff] %v228
  %293 = vst [vmem:[%s3 + $0x48] sm:$0xff] %v229
  %294 = vst [vmem:[%s3 + $0x50] sm:$0xff] %v230
  %295 = vst [vmem:[%s3 + $0x58] sm:$0xff] %v231
  %296 = vst [vmem:[%s3 + $0x60] sm:$0xff] %v232
  %297 = vst [vmem:[%s3 + $0x68] sm:$0xff] %v233
  %298 = vst [vmem:[%s3 + $0x70] sm:$0xff] %v234
  %299 = vst [vmem:[%s3 + $0x78] sm:$0xff] %v235
  %300 = vst [vmem:[%s3 + $0x80] sm:$0xff] %v236
  %301 = vst [vmem:[%s3 + $0x88] sm:$0xff] %v237
  %302 = vst [vmem:[%s3 + $0x90] sm:$0xff] %v238
  %303 = vst [vmem:[%s3 + $0x98] sm:$0xff] %v239
  %304 = vst [vmem:[%s3 + $0xa0] sm:$0xff] %v240
  %305 = vst [vmem:[%s3 + $0xa8] sm:$0xff] %v241
  %306 = vst [vmem:[%s3 + $0xb0] sm:$0xff] %v242
  %307 = vst [vmem:[%s3 + $0xb8] sm:$0xff] %v243
  %308 = vst [vmem:[%s3 + $0xc0] sm:$0xff] %v244
  %309 = vst [vmem:[%s3 + $0xc8] sm:$0xff] %v245
  %310 = vst [vmem:[%s3 + $0xd0] sm:$0xff] %v246
  %311 = vst [vmem:[%s3 + $0xd8] sm:$0xff] %v247
  %312 = vst [vmem:[%s3 + $0xe0] sm:$0xff] %v248
  %313 = vst [vmem:[%s3 + $0xe8] sm:$0xff] %v249
  %314 = vst [vmem:[%s3 + $0xf0] sm:$0xff] %v250
  %315 = vst [vmem:[%s3 + $0xf8] sm:$0xff] %v251
  %316 = vst [vmem:[%s3 + $0x100] sm:$0xff] %v252
  %317 = vst [vmem:[%s3 + $0x108] sm:$0xff] %v253
  %318 = vst [vmem:[%s3 + $0x110] sm:$0xff] %v254
  %319 = vst [vmem:[%s3 + $0x118] sm:$0xff] %v255
  %320 = vst [vmem:[%s3 + $0x120] sm:$0xff] %v256
  %321 = vst [vmem:[%s3 + $0x128] sm:$0xff] %v257
  %322 = vst [vmem:[%s3 + $0x130] sm:$0xff] %v258
  %323 = vst [vmem:[%s3 + $0x138] sm:$0xff] %v259
  %324 = vst [vmem:[%s3 + $0x140] sm:$0xff] %v260
  %325 = vst [vmem:[%s3 + $0x148] sm:$0xff] %v261
  %326 = vst [vmem:[%s3 + $0x150] sm:$0xff] %v262
  %327 = vst [vmem:[%s3 + $0x158] sm:$0xff] %v263
  %328 = vst [vmem:[%s3 + $0x160] sm:$0xff] %v264
  %329 = vst [vmem:[%s3 + $0x168] sm:$0xff] %v265
  %330 = vst [vmem:[%s3 + $0x170] sm:$0xff] %v266
  %331 = vst [vmem:[%s3 + $0x178] sm:$0xff] %v267
  %332 = vst [vmem:[%s3 + $0x180] sm:$0xff] %v268
  %333 = vst [vmem:[%s3 + $0x188] sm:$0xff] %v269
  %334 = vst [vmem:[%s3 + $0x190] sm:$0xff] %v270
  %335 = vst [vmem:[%s3 + $0x198] sm:$0xff] %v271
  %336 = vst [vmem:[%s3 + $0x1a0] sm:$0xff] %v272
  %337 = vst [vmem:[%s3 + $0x1a8] sm:$0xff] %v273
  %338 = vst [vmem:[%s3 + $0x1b0] sm:$0xff] %v274
  %339 = vst [vmem:[%s3 + $0x1b8] sm:$0xff] %v275
  %340 = vst [vmem:[%s3 + $0x1c0] sm:$0xff] %v276
  %341 = vst [vmem:[%s3 + $0x1c8] sm:$0xff] %v277
  %342 = vst [vmem:[%s3 + $0x1d0] sm:$0xff] %v278
  %343 = vst [vmem:[%s3 + $0x1d8] sm:$0xff] %v279
  %344 = vst [vmem:[%s3 + $0x1e0] sm:$0xff] %v280
  %345 = vst [vmem:[%s3 + $0x1e8] sm:$0xff] %v281
  %346 = vst [vmem:[%s3 + $0x1f0] sm:$0xff] %v282
  %347 = vst [vmem:[%s3 + $0x1f8] sm:$0xff] %v283
  // Predicated region
  $region14: #{_lambda_.42} parent=0 // pred_check
    _
  $region15: #{_lambda_.42} parent=0 // pred_check_branch
    %349 = sbr.rel (0) target = $region17
  $region16: #{_lambda_.42} parent=0 // pred_region
    _
  $region17: #{_lambda_.42} parent=0 // pred_fallthru
    _
  // Predicated region
  $region18: #{_lambda_.42} parent=0 // pred_check
    _
  $region19: #{_lambda_.42} parent=0 // pred_check_branch
    %351 = sbr.rel (0) target = $region21
  $region20: #{_lambda_.42} parent=0 // pred_region
    _
  $region21: #{_lambda_.42} parent=0 // pred_fallthru
    _

// kernel: _lambda_.41
$region0: #{_lambda_.41}
  #allocation0 [shape = 'u32[]', space=smem, size = 0x4, offset = 0x4, fixed_abs, tag = 'smem constant byte address 0x4 - core index']
  #allocation1 [shape = 'u32[144,128]{1,0:T(1,128)}', space=vmem, size = 0x12000, scoped, tag = 'internal scratch']
  #allocation2 [shape = 'f32[512,128]{1,0:T(8,128)}', space=vmem, size = 0x40000, scoped, tag = 'scratch operand']
  %s0 = inlined_call_operand.vmem [shape: bf16[512,256], index: 0, kind: input, shape index: {}]
  %s1 = inlined_call_operand.vmem [shape: bf16[256,128], index: 1, kind: input, shape index: {}]
  %s2 = inlined_call_operand.vmem [shape: f32[512,128], index: 2, kind: output, shape index: {0}]
  %s3 = inlined_call_operand.vmem [shape: f32[1,2,128], index: 3, kind: output, shape index: {1}]
  %4 = xla_tuple %s2, %s3
  %s5 = sld [smem:[#allocation0]]
  $region34: #{_lambda_.41} parent=0
    _
  %s7 = ssub.s32 1, %s5
  %s8 = scalar_select 0, %s7, %s5
  // Predicated region
  $region2: #{_lambda_.41} parent=0 // pred_check
    _
  $region3: #{_lambda_.41} parent=0 // pred_check_branch
    %10 = sbr.rel (0) target = $region5
  $region4: #{_lambda_.41} parent=0 // pred_region
    _
  $region5: #{_lambda_.41} parent=0 // pred_fallthru
    _
  // Predicated region
  $region6: #{_lambda_.41} parent=0 // pred_check
    _
  $region7: #{_lambda_.41} parent=0 // pred_check_branch
    %12 = sbr.rel (0) target = $region9
  $region8: #{_lambda_.41} parent=0 // pred_region
    _
  $region9: #{_lambda_.41} parent=0 // pred_fallthru
    _
  %p14 = scmp.eq.s32.totalorder 0, 0
  // Predicated region
  $region10: #{_lambda_.41} parent=0 // pred_check
    %p15 = pneg %p14
  $region11: #{_lambda_.41} parent=0 // pred_check_branch
    %17 = sbr.rel (%p15) target = $region13
  $region12: #{_lambda_.41} parent=0 // pred_region
    %18 = vst [vmem:[#allocation2] sm:$0xff] 0.0
    %19 = vst [vmem:[#allocation2 + $0x8] sm:$0xff] 0.0
    %20 = vst [vmem:[#allocation2 + $0x10] sm:$0xff] 0.0
    %21 = vst [vmem:[#allocation2 + $0x18] sm:$0xff] 0.0
    %22 = vst [vmem:[#allocation2 + $0x20] sm:$0xff] 0.0
    %23 = vst [vmem:[#allocation2 + $0x28] sm:$0xff] 0.0
    %24 = vst [vmem:[#allocation2 + $0x30] sm:$0xff] 0.0
    %25 = vst [vmem:[#allocation2 + $0x38] sm:$0xff] 0.0
    %26 = vst [vmem:[#allocation2 + $0x40] sm:$0xff] 0.0
    %27 = vst [vmem:[#allocation2 + $0x48] sm:$0xff] 0.0
    %28 = vst [vmem:[#allocation2 + $0x50] sm:$0xff] 0.0
    %29 = vst [vmem:[#allocation2 + $0x58] sm:$0xff] 0.0
    %30 = vst [vmem:[#allocation2 + $0x60] sm:$0xff] 0.0
    %31 = vst [vmem:[#allocation2 + $0x68] sm:$0xff] 0.0
    %32 = vst [vmem:[#allocation2 + $0x70] sm:$0xff] 0.0
    %33 = vst [vmem:[#allocation2 + $0x78] sm:$0xff] 0.0
    %34 = vst [vmem:[#allocation2 + $0x80] sm:$0xff] 0.0
    %35 = vst [vmem:[#allocation2 + $0x88] sm:$0xff] 0.0
    %36 = vst [vmem:[#allocation2 + $0x90] sm:$0xff] 0.0
    %37 = vst [vmem:[#allocation2 + $0x98] sm:$0xff] 0.0
    %38 = vst [vmem:[#allocation2 + $0xa0] sm:$0xff] 0.0
    %39 = vst [vmem:[#allocation2 + $0xa8] sm:$0xff] 0.0
    %40 = vst [vmem:[#allocation2 + $0xb0] sm:$0xff] 0.0
    %41 = vst [vmem:[#allocation2 + $0xb8] sm:$0xff] 0.0
    %42 = vst [vmem:[#allocation2 + $0xc0] sm:$0xff] 0.0
    %43 = vst [vmem:[#allocation2 + $0xc8] sm:$0xff] 0.0
    %44 = vst [vmem:[#allocation2 + $0xd0] sm:$0xff] 0.0
    %45 = vst [vmem:[#allocation2 + $0xd8] sm:$0xff] 0.0
    %46 = vst [vmem:[#allocation2 + $0xe0] sm:$0xff] 0.0
    %47 = vst [vmem:[#allocation2 + $0xe8] sm:$0xff] 0.0
    %48 = vst [vmem:[#allocation2 + $0xf0] sm:$0xff] 0.0
    %49 = vst [vmem:[#allocation2 + $0xf8] sm:$0xff] 0.0
    %50 = vst [vmem:[#allocation2 + $0x100] sm:$0xff] 0.0
    %51 = vst [vmem:[#allocation2 + $0x108] sm:$0xff] 0.0
    %52 = vst [vmem:[#allocation2 + $0x110] sm:$0xff] 0.0
    %53 = vst [vmem:[#allocation2 + $0x118] sm:$0xff] 0.0
    %54 = vst [vmem:[#allocation2 + $0x120] sm:$0xff] 0.0
    %55 = vst [vmem:[#allocation2 + $0x128] sm:$0xff] 0.0
    %56 = vst [vmem:[#allocation2 + $0x130] sm:$0xff] 0.0
    %57 = vst [vmem:[#allocation2 + $0x138] sm:$0xff] 0.0
    %58 = vst [vmem:[#allocation2 + $0x140] sm:$0xff] 0.0
    %59 = vst [vmem:[#allocation2 + $0x148] sm:$0xff] 0.0
    %60 = vst [vmem:[#allocation2 + $0x150] sm:$0xff] 0.0
    %61 = vst [vmem:[#allocation2 + $0x158] sm:$0xff] 0.0
    %62 = vst [vmem:[#allocation2 + $0x160] sm:$0xff] 0.0
    %63 = vst [vmem:[#allocation2 + $0x168] sm:$0xff] 0.0
    %64 = vst [vmem:[#allocation2 + $0x170] sm:$0xff] 0.0
    %65 = vst [vmem:[#allocation2 + $0x178] sm:$0xff] 0.0
    %66 = vst [vmem:[#allocation2 + $0x180] sm:$0xff] 0.0
    %67 = vst [vmem:[#allocation2 + $0x188] sm:$0xff] 0.0
    %68 = vst [vmem:[#allocation2 + $0x190] sm:$0xff] 0.0
    %69 = vst [vmem:[#allocation2 + $0x198] sm:$0xff] 0.0
    %70 = vst [vmem:[#allocation2 + $0x1a0] sm:$0xff] 0.0
    %71 = vst [vmem:[#allocation2 + $0x1a8] sm:$0xff] 0.0
    %72 = vst [vmem:[#allocation2 + $0x1b0] sm:$0xff] 0.0
    %73 = vst [vmem:[#allocation2 + $0x1b8] sm:$0xff] 0.0
    %74 = vst [vmem:[#allocation2 + $0x1c0] sm:$0xff] 0.0
    %75 = vst [vmem:[#allocation2 + $0x1c8] sm:$0xff] 0.0
    %76 = vst [vmem:[#allocation2 + $0x1d0] sm:$0xff] 0.0
    %77 = vst [vmem:[#allocation2 + $0x1d8] sm:$0xff] 0.0
    %78 = vst [vmem:[#allocation2 + $0x1e0] sm:$0xff] 0.0
    %79 = vst [vmem:[#allocation2 + $0x1e8] sm:$0xff] 0.0
    %80 = vst [vmem:[#allocation2 + $0x1f0] sm:$0xff] 0.0
    %81 = vst [vmem:[#allocation2 + $0x1f8] sm:$0xff] 0.0
  $region13: #{_lambda_.41} parent=0 // pred_fallthru
    _
  %v82 = vld [vmem:[#allocation2] sm:$0xff]
  %v83 = vld [vmem:[#allocation2 + $0x8] sm:$0xff]
  %v84 = vld [vmem:[#allocation2 + $0x10] sm:$0xff]
  %v85 = vld [vmem:[#allocation2 + $0x18] sm:$0xff]
  %v86 = vld [vmem:[#allocation2 + $0x20] sm:$0xff]
  %v87 = vld [vmem:[#allocation2 + $0x28] sm:$0xff]
  %v88 = vld [vmem:[#allocation2 + $0x30] sm:$0xff]
  %v89 = vld [vmem:[#allocation2 + $0x38] sm:$0xff]
  %v90 = vld [vmem:[#allocation2 + $0x40] sm:$0xff]
  %v91 = vld [vmem:[#allocation2 + $0x48] sm:$0xff]
  %v92 = vld [vmem:[#allocation2 + $0x50] sm:$0xff]
  %v93 = vld [vmem:[#allocation2 + $0x58] sm:$0xff]
  %v94 = vld [vmem:[#allocation2 + $0x60] sm:$0xff]
  %v95 = vld [vmem:[#allocation2 + $0x68] sm:$0xff]
  %v96 = vld [vmem:[#allocation2 + $0x70] sm:$0xff]
  %v97 = vld [vmem:[#allocation2 + $0x78] sm:$0xff]
  %v98 = vld [vmem:[#allocation2 + $0x80] sm:$0xff]
  %v99 = vld [vmem:[#allocation2 + $0x88] sm:$0xff]
  %v100 = vld [vmem:[#allocation2 + $0x90] sm:$0xff]
  %v101 = vld [vmem:[#allocation2 + $0x98] sm:$0xff]
  %v102 = vld [vmem:[#allocation2 + $0xa0] sm:$0xff]
  %v103 = vld [vmem:[#allocation2 + $0xa8] sm:$0xff]
  %v104 = vld [vmem:[#allocation2 + $0xb0] sm:$0xff]
  %v105 = vld [vmem:[#allocation2 + $0xb8] sm:$0xff]
  %v106 = vld [vmem:[#allocation2 + $0xc0] sm:$0xff]
  %v107 = vld [vmem:[#allocation2 + $0xc8] sm:$0xff]
  %v108 = vld [vmem:[#allocation2 + $0xd0] sm:$0xff]
  %v109 = vld [vmem:[#allocation2 + $0xd8] sm:$0xff]
  %v110 = vld [vmem:[#allocation2 + $0xe0] sm:$0xff]
  %v111 = vld [vmem:[#allocation2 + $0xe8] sm:$0xff]
  %v112 = vld [vmem:[#allocation2 + $0xf0] sm:$0xff]
  %v113 = vld [vmem:[#allocation2 + $0xf8] sm:$0xff]
  %v114 = vld [vmem:[#allocation2 + $0x100] sm:$0xff]
  %v115 = vld [vmem:[#allocation2 + $0x108] sm:$0xff]
  %v116 = vld [vmem:[#allocation2 + $0x110] sm:$0xff]
  %v117 = vld [vmem:[#allocation2 + $0x118] sm:$0xff]
  %v118 = vld [vmem:[#allocation2 + $0x120] sm:$0xff]
  %v119 = vld [vmem:[#allocation2 + $0x128] sm:$0xff]
  %v120 = vld [vmem:[#allocation2 + $0x130] sm:$0xff]
  %v121 = vld [vmem:[#allocation2 + $0x138] sm:$0xff]
  %v122 = vld [vmem:[#allocation2 + $0x140] sm:$0xff]
  %v123 = vld [vmem:[#allocation2 + $0x148] sm:$0xff]
  %v124 = vld [vmem:[#allocation2 + $0x150] sm:$0xff]
  %v125 = vld [vmem:[#allocation2 + $0x158] sm:$0xff]
  %v126 = vld [vmem:[#allocation2 + $0x160] sm:$0xff]
  %v127 = vld [vmem:[#allocation2 + $0x168] sm:$0xff]
  %v128 = vld [vmem:[#allocation2 + $0x170] sm:$0xff]
  %v129 = vld [vmem:[#allocation2 + $0x178] sm:$0xff]
  %v130 = vld [vmem:[#allocation2 + $0x180] sm:$0xff]
  %v131 = vld [vmem:[#allocation2 + $0x188] sm:$0xff]
  %v132 = vld [vmem:[#allocation2 + $0x190] sm:$0xff]
  %v133 = vld [vmem:[#allocation2 + $0x198] sm:$0xff]
  %v134 = vld [vmem:[#allocation2 + $0x1a0] sm:$0xff]
  %v135 = vld [vmem:[#allocation2 + $0x1a8] sm:$0xff]
  %v136 = vld [vmem:[#allocation2 + $0x1b0] sm:$0xff]
  %v137 = vld [vmem:[#allocation2 + $0x1b8] sm:$0xff]
  %v138 = vld [vmem:[#allocation2 + $0x1c0] sm:$0xff]
  %v139 = vld [vmem:[#allocation2 + $0x1c8] sm:$0xff]
  %v140 = vld [vmem:[#allocation2 + $0x1d0] sm:$0xff]
  %v141 = vld [vmem:[#allocation2 + $0x1d8] sm:$0xff]
  %v142 = vld [vmem:[#allocation2 + $0x1e0] sm:$0xff]
  %v143 = vld [vmem:[#allocation2 + $0x1e8] sm:$0xff]
  %v144 = vld [vmem:[#allocation2 + $0x1f0] sm:$0xff]
  %v145 = vld [vmem:[#allocation2 + $0x1f8] sm:$0xff]
  %v146 = vld [vmem:[%s0] sm:$0xff]
  %v147 = vld [vmem:[%s0 + $0x8] sm:$0xff]
  %v148 = vld [vmem:[%s0 + $0x10] sm:$0xff]
  %v149 = vld [vmem:[%s0 + $0x18] sm:$0xff]
  %v150 = vld [vmem:[%s0 + $0x20] sm:$0xff]
  %v151 = vld [vmem:[%s0 + $0x28] sm:$0xff]
  %v152 = vld [vmem:[%s0 + $0x30] sm:$0xff]
  %v153 = vld [vmem:[%s0 + $0x38] sm:$0xff]
  %v154 = vld [vmem:[%s0 + $0x40] sm:$0xff]
  %v155 = vld [vmem:[%s0 + $0x48] sm:$0xff]
  %v156 = vld [vmem:[%s0 + $0x50] sm:$0xff]
  %v157 = vld [vmem:[%s0 + $0x58] sm:$0xff]
  %v158 = vld [vmem:[%s0 + $0x60] sm:$0xff]
  %v159 = vld [vmem:[%s0 + $0x68] sm:$0xff]
  %v160 = vld [vmem:[%s0 + $0x70] sm:$0xff]
  %v161 = vld [vmem:[%s0 + $0x78] sm:$0xff]
  %v162 = vld [vmem:[%s0 + $0x80] sm:$0xff]
  %v163 = vld [vmem:[%s0 + $0x88] sm:$0xff]
  %v164 = vld [vmem:[%s0 + $0x90] sm:$0xff]
  %v165 = vld [vmem:[%s0 + $0x98] sm:$0xff]
  %v166 = vld [vmem:[%s0 + $0xa0] sm:$0xff]
  %v167 = vld [vmem:[%s0 + $0xa8] sm:$0xff]
  %v168 = vld [vmem:[%s0 + $0xb0] sm:$0xff]
  %v169 = vld [vmem:[%s0 + $0xb8] sm:$0xff]
  %v170 = vld [vmem:[%s0 + $0xc0] sm:$0xff]
  %v171 = vld [vmem:[%s0 + $0xc8] sm:$0xff]
  %v172 = vld [vmem:[%s0 + $0xd0] sm:$0xff]
  %v173 = vld [vmem:[%s0 + $0xd8] sm:$0xff]
  %v174 = vld [vmem:[%s0 + $0xe0] sm:$0xff]
  %v175 = vld [vmem:[%s0 + $0xe8] sm:$0xff]
  %v176 = vld [vmem:[%s0 + $0xf0] sm:$0xff]
  %v177 = vld [vmem:[%s0 + $0xf8] sm:$0xff]
  %v178 = vld [vmem:[%s0 + $0x100] sm:$0xff]
  %v179 = vld [vmem:[%s0 + $0x108] sm:$0xff]
  %v180 = vld [vmem:[%s0 + $0x110] sm:$0xff]
  %v181 = vld [vmem:[%s0 + $0x118] sm:$0xff]
  %v182 = vld [vmem:[%s0 + $0x120] sm:$0xff]
  %v183 = vld [vmem:[%s0 + $0x128] sm:$0xff]
  %v184 = vld [vmem:[%s0 + $0x130] sm:$0xff]
  %v185 = vld [vmem:[%s0 + $0x138] sm:$0xff]
  %v186 = vld [vmem:[%s0 + $0x140] sm:$0xff]
  %v187 = vld [vmem:[%s0 + $0x148] sm:$0xff]
  %v188 = vld [vmem:[%s0 + $0x150] sm:$0xff]
  %v189 = vld [vmem:[%s0 + $0x158] sm:$0xff]
  %v190 = vld [vmem:[%s0 + $0x160] sm:$0xff]
  %v191 = vld [vmem:[%s0 + $0x168] sm:$0xff]
  %v192 = vld [vmem:[%s0 + $0x170] sm:$0xff]
  %v193 = vld [vmem:[%s0 + $0x178] sm:$0xff]
  %v194 = vld [vmem:[%s0 + $0x180] sm:$0xff]
  %v195 = vld [vmem:[%s0 + $0x188] sm:$0xff]
  %v196 = vld [vmem:[%s0 + $0x190] sm:$0xff]
  %v197 = vld [vmem:[%s0 + $0x198] sm:$0xff]
  %v198 = vld [vmem:[%s0 + $0x1a0] sm:$0xff]
  %v199 = vld [vmem:[%s0 + $0x1a8] sm:$0xff]
  %v200 = vld [vmem:[%s0 + $0x1b0] sm:$0xff]
  %v201 = vld [vmem:[%s0 + $0x1b8] sm:$0xff]
  %v202 = vld [vmem:[%s0 + $0x1c0] sm:$0xff]
  %v203 = vld [vmem:[%s0 + $0x1c8] sm:$0xff]
  %v204 = vld [vmem:[%s0 + $0x1d0] sm:$0xff]
  %v205 = vld [vmem:[%s0 + $0x1d8] sm:$0xff]
  %v206 = vld [vmem:[%s0 + $0x1e0] sm:$0xff]
  %v207 = vld [vmem:[%s0 + $0x1e8] sm:$0xff]
  %v208 = vld [vmem:[%s0 + $0x1f0] sm:$0xff]
  %v209 = vld [vmem:[%s0 + $0x1f8] sm:$0xff]
  %v210 = vld [vmem:[%s1] sm:$0xf]
  %v211 = vld [vmem:[%s1 + $0x4] sm:$0xf]
  %v212 = vld [vmem:[%s1 + $0x8] sm:$0xf]
  %v213 = vld [vmem:[%s1 + $0xc] sm:$0xf]
  %v214 = vld [vmem:[%s1 + $0x10] sm:$0xf]
  %v215 = vld [vmem:[%s1 + $0x14] sm:$0xf]
  %v216 = vld [vmem:[%s1 + $0x18] sm:$0xf]
  %v217 = vld [vmem:[%s1 + $0x1c] sm:$0xf]
  %v218 = vld [vmem:[%s1 + $0x20] sm:$0xf]
  %v219 = vld [vmem:[%s1 + $0x24] sm:$0xf]
  %v220 = vld [vmem:[%s1 + $0x28] sm:$0xf]
  %v221 = vld [vmem:[%s1 + $0x2c] sm:$0xf]
  %v222 = vld [vmem:[%s1 + $0x30] sm:$0xf]
  %v223 = vld [vmem:[%s1 + $0x34] sm:$0xf]
  %v224 = vld [vmem:[%s1 + $0x38] sm:$0xf]
  %v225 = vld [vmem:[%s1 + $0x3c] sm:$0xf]
  %v226 = vld [vmem:[%s1 + $0x40] sm:$0xf]
  %v227 = vld [vmem:[%s1 + $0x44] sm:$0xf]
  %v228 = vld [vmem:[%s1 + $0x48] sm:$0xf]
  %v229 = vld [vmem:[%s1 + $0x4c] sm:$0xf]
  %v230 = vld [vmem:[%s1 + $0x50] sm:$0xf]
  %v231 = vld [vmem:[%s1 + $0x54] sm:$0xf]
  %v232 = vld [vmem:[%s1 + $0x58] sm:$0xf]
  %v233 = vld [vmem:[%s1 + $0x5c] sm:$0xf]
  %v234 = vld [vmem:[%s1 + $0x60] sm:$0xf]
  %v235 = vld [vmem:[%s1 + $0x64] sm:$0xf]
  %v236 = vld [vmem:[%s1 + $0x68] sm:$0xf]
  %v237 = vld [vmem:[%s1 + $0x6c] sm:$0xf]
  %v238 = vld [vmem:[%s1 + $0x70] sm:$0xf]
  %v239 = vld [vmem:[%s1 + $0x74] sm:$0xf]
  %v240 = vld [vmem:[%s1 + $0x78] sm:$0xf]
  %v241 = vld [vmem:[%s1 + $0x7c] sm:$0xf]
  %v306 = vunpack.c.l.b16 %v146
  %v307 = vunpack.c.h.b16 %v146
  %v308 = vunpack.c.l.b16 %v147
  %v309 = vunpack.c.h.b16 %v147
  %v310 = vunpack.c.l.b16 %v148
  %v311 = vunpack.c.h.b16 %v148
  %v312 = vunpack.c.l.b16 %v149
  %v313 = vunpack.c.h.b16 %v149
  %v314 = vunpack.c.l.b16 %v150
  %v315 = vunpack.c.h.b16 %v150
  %v316 = vunpack.c.l.b16 %v151
  %v317 = vunpack.c.h.b16 %v151
  %v318 = vunpack.c.l.b16 %v152
  %v319 = vunpack.c.h.b16 %v152
  %v320 = vunpack.c.l.b16 %v153
  %v321 = vunpack.c.h.b16 %v153
  %v322 = vunpack.c.l.b16 %v154
  %v323 = vunpack.c.h.b16 %v154
  %v324 = vunpack.c.l.b16 %v155
  %v325 = vunpack.c.h.b16 %v155
  %v326 = vunpack.c.l.b16 %v156
  %v327 = vunpack.c.h.b16 %v156
  %v328 = vunpack.c.l.b16 %v157
  %v329 = vunpack.c.h.b16 %v157
  %v330 = vunpack.c.l.b16 %v158
  %v331 = vunpack.c.h.b16 %v158
  %v332 = vunpack.c.l.b16 %v159
  %v333 = vunpack.c.h.b16 %v159
  %v334 = vunpack.c.l.b16 %v160
  %v335 = vunpack.c.h.b16 %v160
  %v336 = vunpack.c.l.b16 %v161
  %v337 = vunpack.c.h.b16 %v161
  %v338 = vunpack.c.l.b16 %v162
  %v339 = vunpack.c.h.b16 %v162
  %v340 = vunpack.c.l.b16 %v163
  %v341 = vunpack.c.h.b16 %v163
  %v342 = vunpack.c.l.b16 %v164
  %v343 = vunpack.c.h.b16 %v164
  %v344 = vunpack.c.l.b16 %v165
  %v345 = vunpack.c.h.b16 %v165
  %v346 = vunpack.c.l.b16 %v166
  %v347 = vunpack.c.h.b16 %v166
  %v348 = vunpack.c.l.b16 %v167
  %v349 = vunpack.c.h.b16 %v167
  %v350 = vunpack.c.l.b16 %v168
  %v351 = vunpack.c.h.b16 %v168
  %v352 = vunpack.c.l.b16 %v169
  %v353 = vunpack.c.h.b16 %v169
  %v354 = vunpack.c.l.b16 %v170
  %v355 = vunpack.c.h.b16 %v170
  %v356 = vunpack.c.l.b16 %v171
  %v357 = vunpack.c.h.b16 %v171
  %v358 = vunpack.c.l.b16 %v172
  %v359 = vunpack.c.h.b16 %v172
  %v360 = vunpack.c.l.b16 %v173
  %v361 = vunpack.c.h.b16 %v173
  %v362 = vunpack.c.l.b16 %v174
  %v363 = vunpack.c.h.b16 %v174
  %v364 = vunpack.c.l.b16 %v175
  %v365 = vunpack.c.h.b16 %v175
  %v366 = vunpack.c.l.b16 %v176
  %v367 = vunpack.c.h.b16 %v176
  %v368 = vunpack.c.l.b16 %v177
  %v369 = vunpack.c.h.b16 %v177
  %v370 = vunpack.c.l.b16 %v178
  %v371 = vunpack.c.h.b16 %v178
  %v372 = vunpack.c.l.b16 %v179
  %v373 = vunpack.c.h.b16 %v179
  %v374 = vunpack.c.l.b16 %v180
  %v375 = vunpack.c.h.b16 %v180
  %v376 = vunpack.c.l.b16 %v181
  %v377 = vunpack.c.h.b16 %v181
  %v378 = vunpack.c.l.b16 %v182
  %v379 = vunpack.c.h.b16 %v182
  %v380 = vunpack.c.l.b16 %v183
  %v381 = vunpack.c.h.b16 %v183
  %v382 = vunpack.c.l.b16 %v184
  %v383 = vunpack.c.h.b16 %v184
  %v384 = vunpack.c.l.b16 %v185
  %v385 = vunpack.c.h.b16 %v185
  %v386 = vunpack.c.l.b16 %v186
  %v387 = vunpack.c.h.b16 %v186
  %v388 = vunpack.c.l.b16 %v187
  %v389 = vunpack.c.h.b16 %v187
  %v390 = vunpack.c.l.b16 %v188
  %v391 = vunpack.c.h.b16 %v188
  %v392 = vunpack.c.l.b16 %v189
  %v393 = vunpack.c.h.b16 %v189
  %v394 = vunpack.c.l.b16 %v190
  %v395 = vunpack.c.h.b16 %v190
  %v396 = vunpack.c.l.b16 %v191
  %v397 = vunpack.c.h.b16 %v191
  %v398 = vunpack.c.l.b16 %v192
  %v399 = vunpack.c.h.b16 %v192
  %v400 = vunpack.c.l.b16 %v193
  %v401 = vunpack.c.h.b16 %v193
  %v402 = vunpack.c.l.b16 %v194
  %v403 = vunpack.c.h.b16 %v194
  %v404 = vunpack.c.l.b16 %v195
  %v405 = vunpack.c.h.b16 %v195
  %v406 = vunpack.c.l.b16 %v196
  %v407 = vunpack.c.h.b16 %v196
  %v408 = vunpack.c.l.b16 %v197
  %v409 = vunpack.c.h.b16 %v197
  %v410 = vunpack.c.l.b16 %v198
  %v411 = vunpack.c.h.b16 %v198
  %v412 = vunpack.c.l.b16 %v199
  %v413 = vunpack.c.h.b16 %v199
  %v414 = vunpack.c.l.b16 %v200
  %v415 = vunpack.c.h.b16 %v200
  %v416 = vunpack.c.l.b16 %v201
  %v417 = vunpack.c.h.b16 %v201
  %v418 = vunpack.c.l.b16 %v202
  %v419 = vunpack.c.h.b16 %v202
  %v420 = vunpack.c.l.b16 %v203
  %v421 = vunpack.c.h.b16 %v203
  %v422 = vunpack.c.l.b16 %v204
  %v423 = vunpack.c.h.b16 %v204
  %v424 = vunpack.c.l.b16 %v205
  %v425 = vunpack.c.h.b16 %v205
  %v426 = vunpack.c.l.b16 %v206
  %v427 = vunpack.c.h.b16 %v206
  %v428 = vunpack.c.l.b16 %v207
  %v429 = vunpack.c.h.b16 %v207
  %v430 = vunpack.c.l.b16 %v208
  %v431 = vunpack.c.h.b16 %v208
  %v432 = vunpack.c.l.b16 %v209
  %v433 = vunpack.c.h.b16 %v209
  %v434 = vpack.c.b16 %v308, %v306
  %v435 = vpack.c.b16 %v309, %v307
  %v436 = vpack.c.b16 %v312, %v310
  %v437 = vpack.c.b16 %v313, %v311
  %v438 = vpack.c.b16 %v316, %v314
  %v439 = vpack.c.b16 %v317, %v315
  %v440 = vpack.c.b16 %v320, %v318
  %v441 = vpack.c.b16 %v321, %v319
  %v442 = vpack.c.b16 %v324, %v322
  %v443 = vpack.c.b16 %v325, %v323
  %v444 = vpack.c.b16 %v328, %v326
  %v445 = vpack.c.b16 %v329, %v327
  %v446 = vpack.c.b16 %v332, %v330
  %v447 = vpack.c.b16 %v333, %v331
  %v448 = vpack.c.b16 %v336, %v334
  %v449 = vpack.c.b16 %v337, %v335
  %v450 = vpack.c.b16 %v340, %v338
  %v451 = vpack.c.b16 %v341, %v339
  %v452 = vpack.c.b16 %v344, %v342
  %v453 = vpack.c.b16 %v345, %v343
  %v454 = vpack.c.b16 %v348, %v346
  %v455 = vpack.c.b16 %v349, %v347
  %v456 = vpack.c.b16 %v352, %v350
  %v457 = vpack.c.b16 %v353, %v351
  %v458 = vpack.c.b16 %v356, %v354
  %v459 = vpack.c.b16 %v357, %v355
  %v460 = vpack.c.b16 %v360, %v358
  %v461 = vpack.c.b16 %v361, %v359
  %v462 = vpack.c.b16 %v364, %v362
  %v463 = vpack.c.b16 %v365, %v363
  %v464 = vpack.c.b16 %v368, %v366
  %v465 = vpack.c.b16 %v369, %v367
  %v466 = vpack.c.b16 %v372, %v370
  %v467 = vpack.c.b16 %v373, %v371
  %v468 = vpack.c.b16 %v376, %v374
  %v469 = vpack.c.b16 %v377, %v375
  %v470 = vpack.c.b16 %v380, %v378
  %v471 = vpack.c.b16 %v381, %v379
  %v472 = vpack.c.b16 %v384, %v382
  %v473 = vpack.c.b16 %v385, %v383
  %v474 = vpack.c.b16 %v388, %v386
  %v475 = vpack.c.b16 %v389, %v387
  %v476 = vpack.c.b16 %v392, %v390
  %v477 = vpack.c.b16 %v393, %v391
  %v478 = vpack.c.b16 %v396, %v394
  %v479 = vpack.c.b16 %v397, %v395
  %v480 = vpack.c.b16 %v400, %v398
  %v481 = vpack.c.b16 %v401, %v399
  %v482 = vpack.c.b16 %v404, %v402
  %v483 = vpack.c.b16 %v405, %v403
  %v484 = vpack.c.b16 %v408, %v406
  %v485 = vpack.c.b16 %v409, %v407
  %v486 = vpack.c.b16 %v412, %v410
  %v487 = vpack.c.b16 %v413, %v411
  %v488 = vpack.c.b16 %v416, %v414
  %v489 = vpack.c.b16 %v417, %v415
  %v490 = vpack.c.b16 %v420, %v418
  %v491 = vpack.c.b16 %v421, %v419
  %v492 = vpack.c.b16 %v424, %v422
  %v493 = vpack.c.b16 %v425, %v423
  %v494 = vpack.c.b16 %v428, %v426
  %v495 = vpack.c.b16 %v429, %v427
  %v496 = vpack.c.b16 %v432, %v430
  %v497 = vpack.c.b16 %v433, %v431
  %v594 = vunpack.c.l.b16 %v210
  %v595 = vunpack.c.l.b16 %v211
  %v596 = vunpack.c.l.b16 %v212
  %v597 = vunpack.c.l.b16 %v213
  %v598 = vunpack.c.l.b16 %v214
  %v599 = vunpack.c.l.b16 %v215
  %v600 = vunpack.c.l.b16 %v216
  %v601 = vunpack.c.l.b16 %v217
  %v602 = vunpack.c.l.b16 %v218
  %v603 = vunpack.c.l.b16 %v219
  %v604 = vunpack.c.l.b16 %v220
  %v605 = vunpack.c.l.b16 %v221
  %v606 = vunpack.c.l.b16 %v222
  %v607 = vunpack.c.l.b16 %v223
  %v608 = vunpack.c.l.b16 %v224
  %v609 = vunpack.c.l.b16 %v225
  %v610 = vunpack.c.l.b16 %v226
  %v611 = vunpack.c.l.b16 %v227
  %v612 = vunpack.c.l.b16 %v228
  %v613 = vunpack.c.l.b16 %v229
  %v614 = vunpack.c.l.b16 %v230
  %v615 = vunpack.c.l.b16 %v231
  %v616 = vunpack.c.l.b16 %v232
  %v617 = vunpack.c.l.b16 %v233
  %v618 = vunpack.c.l.b16 %v234
  %v619 = vunpack.c.l.b16 %v235
  %v620 = vunpack.c.l.b16 %v236
  %v621 = vunpack.c.l.b16 %v237
  %v622 = vunpack.c.l.b16 %v238
  %v623 = vunpack.c.l.b16 %v239
  %v624 = vunpack.c.l.b16 %v240
  %v625 = vunpack.c.l.b16 %v241
  %v626 = vpack.c.b16 %v595, %v594
  %v627 = vpack.c.b16 %v597, %v596
  %v628 = vpack.c.b16 %v599, %v598
  %v629 = vpack.c.b16 %v601, %v600
  %v630 = vpack.c.b16 %v603, %v602
  %v631 = vpack.c.b16 %v605, %v604
  %v632 = vpack.c.b16 %v607, %v606
  %v633 = vpack.c.b16 %v609, %v608
  %v634 = vpack.c.b16 %v611, %v610
  %v635 = vpack.c.b16 %v613, %v612
  %v636 = vpack.c.b16 %v615, %v614
  %v637 = vpack.c.b16 %v617, %v616
  %v638 = vpack.c.b16 %v619, %v618
  %v639 = vpack.c.b16 %v621, %v620
  %v640 = vpack.c.b16 %v623, %v622
  %v641 = vpack.c.b16 %v625, %v624
  %658 = vmatprep.subr.bf16.mxu0 0
  %659 = vmatpush1.bf16.msra.mxu0 %v626
  %660 = vmatprep.subr.bf16.mxu0 0
  %661 = vmatpush1.bf16.msra.mxu0 %v627
  %662 = vmatprep.subr.bf16.mxu0 0
  %663 = vmatpush1.bf16.msra.mxu0 %v628
  %664 = vmatprep.subr.bf16.mxu0 0
  %665 = vmatpush1.bf16.msra.mxu0 %v629
  %666 = vmatprep.subr.bf16.mxu0 0
  %667 = vmatpush1.bf16.msra.mxu0 %v630
  %668 = vmatprep.subr.bf16.mxu0 0
  %669 = vmatpush1.bf16.msra.mxu0 %v631
  %670 = vmatprep.subr.bf16.mxu0 0
  %671 = vmatpush1.bf16.msra.mxu0 %v632
  %672 = vmatprep.subr.bf16.mxu0 0
  %673 = vmatpush1.bf16.msra.mxu0 %v633
  %674 = vmatprep.subr.bf16.mxu0 0
  %675 = vmatpush1.bf16.msra.mxu0 %v634
  %676 = vmatprep.subr.bf16.mxu0 0
  %677 = vmatpush1.bf16.msra.mxu0 %v635
  %678 = vmatprep.subr.bf16.mxu0 0
  %679 = vmatpush1.bf16.msra.mxu0 %v636
  %680 = vmatprep.subr.bf16.mxu0 0
  %681 = vmatpush1.bf16.msra.mxu0 %v637
  %682 = vmatprep.subr.bf16.mxu0 0
  %683 = vmatpush1.bf16.msra.mxu0 %v638
  %684 = vmatprep.subr.bf16.mxu0 0
  %685 = vmatpush1.bf16.msra.mxu0 %v639
  %686 = vmatprep.subr.bf16.mxu0 0
  %687 = vmatpush1.bf16.msra.mxu0 %v640
  %688 = vmatprep.subr.bf16.mxu0 0
  %689 = vmatpush1.bf16.msra.mxu0 %v641
  %690 = vmatprep.mubr.bf16.mxu0 %v435
  %691 = vmatmul.mubr.bf16.gmra.mrb[0].mxu0 %v434
  %v692 = vpop.f32.mrb[0].mxu0
  %v693 = vadd.f32 0.0, %v692
  %v694 = vpop.f32.mrb[0].mxu0
  %v695 = vpop.f32.mrb[0].mxu0
  %v696 = vadd.f32 0.0, %v695
  %v697 = vpop.f32.mrb[0].mxu0
  %698 = vmatprep.mubr.bf16.mxu0 %v437
  %699 = vmatmul.mubr.bf16.gmra.mrb[0].mxu0 %v436
  %v700 = vpop.f32.mrb[0].mxu0
  %v701 = vadd.f32 0.0, %v700
  %v702 = vpop.f32.mrb[0].mxu0
  %v703 = vpop.f32.mrb[0].mxu0
  %v704 = vadd.f32 0.0, %v703
  %v705 = vpop.f32.mrb[0].mxu0
  %706 = vmatprep.mubr.bf16.mxu0 %v439
  %707 = vmatmul.mubr.bf16.gmra.mrb[0].mxu0 %v438
  %v708 = vpop.f32.mrb[0].mxu0
  %v709 = vadd.f32 0.0, %v708
  %v710 = vpop.f32.mrb[0].mxu0
  %v711 = vpop.f32.mrb[0].mxu0
  %v712 = vadd.f32 0.0, %v711
  %v713 = vpop.f32.mrb[0].mxu0
  %714 = vmatprep.mubr.bf16.mxu0 %v441
  %715 = vmatmul.mubr.bf16.gmra.mrb[0].mxu0 %v440
  %v716 = vpop.f32.mrb[0].mxu0
  %v717 = vadd.f32 0.0, %v716
  %v718 = vpop.f32.mrb[0].mxu0
  %v719 = vpop.f32.mrb[0].mxu0
  %v720 = vadd.f32 0.0, %v719
  %v721 = vpop.f32.mrb[0].mxu0
  %722 = vmatprep.mubr.bf16.mxu0 %v443
  %723 = vmatmul.mubr.bf16.gmra.mrb[0].mxu0 %v442
  %v724 = vpop.f32.mrb[0].mxu0
  %v725 = vadd.f32 0.0, %v724
  %v726 = vpop.f32.mrb[0].mxu0
  %v727 = vpop.f32.mrb[0].mxu0
  %v728 = vadd.f32 0.0, %v727
  %v729 = vpop.f32.mrb[0].mxu0
  %730 = vmatprep.mubr.bf16.mxu0 %v445
  %731 = vmatmul.mubr.bf16.gmra.mrb[0].mxu0 %v444
  %v732 = vpop.f32.mrb[0].mxu0
  %v733 = vadd.f32 0.0, %v732
  %v734 = vpop.f32.mrb[0].mxu0
  %v735 = vpop.f32.mrb[0].mxu0
  %v736 = vadd.f32 0.0, %v735
  %v737 = vpop.f32.mrb[0].mxu0
  %738 = vmatprep.mubr.bf16.mxu0 %v447
  %739 = vmatmul.mubr.bf16.gmra.mrb[0].mxu0 %v446
  %v740 = vpop.f32.mrb[0].mxu0
  %v741 = vadd.f32 0.0, %v740
  %v742 = vpop.f32.mrb[0].mxu0
  %v743 = vpop.f32.mrb[0].mxu0
  %v744 = vadd.f32 0.0, %v743
  %v745 = vpop.f32.mrb[0].mxu0
  %746 = vmatprep.mubr.bf16.mxu0 %v449
  %747 = vmatmul.mubr.bf16.gmra.mrb[0].mxu0 %v448
  %v748 = vpop.f32.mrb[0].mxu0
  %v749 = vadd.f32 0.0, %v748
  %v750 = vpop.f32.mrb[0].mxu0
  %v751 = vpop.f32.mrb[0].mxu0
  %v752 = vadd.f32 0.0, %v751
  %v753 = vpop.f32.mrb[0].mxu0
  %754 = vmatprep.mubr.bf16.mxu0 %v451
  %755 = vmatmul.mubr.bf16.gmra.mrb[0].mxu0 %v450
  %v756 = vpop.f32.mrb[0].mxu0
  %v757 = vadd.f32 0.0, %v756
  %v758 = vpop.f32.mrb[0].mxu0
  %v759 = vpop.f32.mrb[0].mxu0
  %v760 = vadd.f32 0.0, %v759
  %v761 = vpop.f32.mrb[0].mxu0
  %762 = vmatprep.mubr.bf16.mxu0 %v453
  %763 = vmatmul.mubr.bf16.gmra.mrb[0].mxu0 %v452
  %v764 = vpop.f32.mrb[0].mxu0
  %v765 = vadd.f32 0.0, %v764
  %v766 = vpop.f32.mrb[0].mxu0
  %v767 = vpop.f32.mrb[0].mxu0
  %v768 = vadd.f32 0.0, %v767
  %v769 = vpop.f32.mrb[0].mxu0
  %770 = vmatprep.mubr.bf16.mxu0 %v455
  %771 = vmatmul.mubr.bf16.gmra.mrb[0].mxu0 %v454
  %v772 = vpop.f32.mrb[0].mxu0
  %v773 = vadd.f32 0.0, %v772
  %v774 = vpop.f32.mrb[0].mxu0
  %v775 = vpop.f32.mrb[0].mxu0
  %v776 = vadd.f32 0.0, %v775
  %v777 = vpop.f32.mrb[0].mxu0
  %778 = vmatprep.mubr.bf16.mxu0 %v457
  %779 = vmatmul.mubr.bf16.gmra.mrb[0].mxu0 %v456
  %v780 = vpop.f32.mrb[0].mxu0
  %v781 = vadd.f32 0.0, %v780
  %v782 = vpop.f32.mrb[0].mxu0
  %v783 = vpop.f32.mrb[0].mxu0
  %v784 = vadd.f32 0.0, %v783
  %v785 = vpop.f32.mrb[0].mxu0
  %786 = vmatprep.mubr.bf16.mxu0 %v459
  %787 = vmatmul.mubr.bf16.gmra.mrb[0].mxu0 %v458
  %v788 = vpop.f32.mrb[0].mxu0
  %v789 = vadd.f32 0.0, %v788
  %v790 = vpop.f32.mrb[0].mxu0
  %v791 = vpop.f32.mrb[0].mxu0
  %v792 = vadd.f32 0.0, %v791
  %v793 = vpop.f32.mrb[0].mxu0
  %794 = vmatprep.mubr.bf16.mxu0 %v461
  %795 = vmatmul.mubr.bf16.gmra.mrb[0].mxu0 %v460
  %v796 = vpop.f32.mrb[0].mxu0
  %v797 = vadd.f32 0.0, %v796
  %v798 = vpop.f32.mrb[0].mxu0
  %v799 = vpop.f32.mrb[0].mxu0
  %v800 = vadd.f32 0.0, %v799
  %v801 = vpop.f32.mrb[0].mxu0
  %802 = vmatprep.mubr.bf16.mxu0 %v463
  %803 = vmatmul.mubr.bf16.gmra.mrb[0].mxu0 %v462
  %v804 = vpop.f32.mrb[0].mxu0
  %v805 = vadd.f32 0.0, %v804
  %v806 = vpop.f32.mrb[0].mxu0
  %v807 = vpop.f32.mrb[0].mxu0
  %v808 = vadd.f32 0.0, %v807
  %v809 = vpop.f32.mrb[0].mxu0
  %810 = vmatprep.mubr.bf16.mxu0 %v465
  %811 = vmatmul.mubr.bf16.gmra.mrb[0].mxu0 %v464
  %v812 = vpop.f32.mrb[0].mxu0
  %v813 = vadd.f32 0.0, %v812
  %v814 = vpop.f32.mrb[0].mxu0
  %v815 = vpop.f32.mrb[0].mxu0
  %v816 = vadd.f32 0.0, %v815
  %v817 = vpop.f32.mrb[0].mxu0
  %818 = vmatprep.mubr.bf16.mxu0 %v467
  %819 = vmatmul.mubr.bf16.gmra.mrb[0].mxu0 %v466
  %v820 = vpop.f32.mrb[0].mxu0
  %v821 = vadd.f32 0.0, %v820
  %v822 = vpop.f32.mrb[0].mxu0
  %v823 = vpop.f32.mrb[0].mxu0
  %v824 = vadd.f32 0.0, %v823
  %v825 = vpop.f32.mrb[0].mxu0
  %826 = vmatprep.mubr.bf16.mxu0 %v469
  %827 = vmatmul.mubr.bf16.gmra.mrb[0].mxu0 %v468
  %v828 = vpop.f32.mrb[0].mxu0
  %v829 = vadd.f32 0.0, %v828
  %v830 = vpop.f32.mrb[0].mxu0
  %v831 = vpop.f32.mrb[0].mxu0
  %v832 = vadd.f32 0.0, %v831
  %v833 = vpop.f32.mrb[0].mxu0
  %834 = vmatprep.mubr.bf16.mxu0 %v471
  %835 = vmatmul.mubr.bf16.gmra.mrb[0].mxu0 %v470
  %v836 = vpop.f32.mrb[0].mxu0
  %v837 = vadd.f32 0.0, %v836
  %v838 = vpop.f32.mrb[0].mxu0
  %v839 = vpop.f32.mrb[0].mxu0
  %v840 = vadd.f32 0.0, %v839
  %v841 = vpop.f32.mrb[0].mxu0
  %842 = vmatprep.mubr.bf16.mxu0 %v473
  %843 = vmatmul.mubr.bf16.gmra.mrb[0].mxu0 %v472
  %v844 = vpop.f32.mrb[0].mxu0
  %v845 = vadd.f32 0.0, %v844
  %v846 = vpop.f32.mrb[0].mxu0
  %v847 = vpop.f32.mrb[0].mxu0
  %v848 = vadd.f32 0.0, %v847
  %v849 = vpop.f32.mrb[0].mxu0
  %850 = vmatprep.mubr.bf16.mxu0 %v475
  %851 = vmatmul.mubr.bf16.gmra.mrb[0].mxu0 %v474
  %v852 = vpop.f32.mrb[0].mxu0
  %v853 = vadd.f32 0.0, %v852
  %v854 = vpop.f32.mrb[0].mxu0
  %v855 = vpop.f32.mrb[0].mxu0
  %v856 = vadd.f32 0.0, %v855
  %v857 = vpop.f32.mrb[0].mxu0
  %858 = vmatprep.mubr.bf16.mxu0 %v477
  %859 = vmatmul.mubr.bf16.gmra.mrb[0].mxu0 %v476
  %v860 = vpop.f32.mrb[0].mxu0
  %v861 = vadd.f32 0.0, %v860
  %v862 = vpop.f32.mrb[0].mxu0
  %v863 = vpop.f32.mrb[0].mxu0
  %v864 = vadd.f32 0.0, %v863
  %v865 = vpop.f32.mrb[0].mxu0
  %866 = vmatprep.mubr.bf16.mxu0 %v479
  %867 = vmatmul.mubr.bf16.gmra.mrb[0].mxu0 %v478
  %v868 = vpop.f32.mrb[0].mxu0
  %v869 = vadd.f32 0.0, %v868
  %v870 = vpop.f32.mrb[0].mxu0
  %v871 = vpop.f32.mrb[0].mxu0
  %v872 = vadd.f32 0.0, %v871
  %v873 = vpop.f32.mrb[0].mxu0
  %874 = vmatprep.mubr.bf16.mxu0 %v481
  %875 = vmatmul.mubr.bf16.gmra.mrb[0].mxu0 %v480
  %v876 = vpop.f32.mrb[0].mxu0
  %v877 = vadd.f32 0.0, %v876
  %v878 = vpop.f32.mrb[0].mxu0
  %v879 = vpop.f32.mrb[0].mxu0
  %v880 = vadd.f32 0.0, %v879
  %v881 = vpop.f32.mrb[0].mxu0
  %882 = vmatprep.mubr.bf16.mxu0 %v483
  %883 = vmatmul.mubr.bf16.gmra.mrb[0].mxu0 %v482
  %v884 = vpop.f32.mrb[0].mxu0
  %v885 = vadd.f32 0.0, %v884
  %v886 = vpop.f32.mrb[0].mxu0
  %v887 = vpop.f32.mrb[0].mxu0
  %v888 = vadd.f32 0.0, %v887
  %v889 = vpop.f32.mrb[0].mxu0
  %890 = vmatprep.mubr.bf16.mxu0 %v485
  %891 = vmatmul.mubr.bf16.gmra.mrb[0].mxu0 %v484
  %v892 = vpop.f32.mrb[0].mxu0
  %v893 = vadd.f32 0.0, %v892
  %v894 = vpop.f32.mrb[0].mxu0
  %v895 = vpop.f32.mrb[0].mxu0
  %v896 = vadd.f32 0.0, %v895
  %v897 = vpop.f32.mrb[0].mxu0
  %898 = vmatprep.mubr.bf16.mxu0 %v487
  %899 = vmatmul.mubr.bf16.gmra.mrb[0].mxu0 %v486
  %v900 = vpop.f32.mrb[0].mxu0
  %v901 = vadd.f32 0.0, %v900
  %v902 = vpop.f32.mrb[0].mxu0
  %v903 = vpop.f32.mrb[0].mxu0
  %v904 = vadd.f32 0.0, %v903
  %v905 = vpop.f32.mrb[0].mxu0
  %906 = vmatprep.mubr.bf16.mxu0 %v489
  %907 = vmatmul.mubr.bf16.gmra.mrb[0].mxu0 %v488
  %v908 = vpop.f32.mrb[0].mxu0
  %v909 = vadd.f32 0.0, %v908
  %v910 = vpop.f32.mrb[0].mxu0
  %v911 = vpop.f32.mrb[0].mxu0
  %v912 = vadd.f32 0.0, %v911
  %v913 = vpop.f32.mrb[0].mxu0
  %914 = vmatprep.mubr.bf16.mxu0 %v491
  %915 = vmatmul.mubr.bf16.gmra.mrb[0].mxu0 %v490
  %v916 = vpop.f32.mrb[0].mxu0
  %v917 = vadd.f32 0.0, %v916
  %v918 = vpop.f32.mrb[0].mxu0
  %v919 = vpop.f32.mrb[0].mxu0
  %v920 = vadd.f32 0.0, %v919
  %v921 = vpop.f32.mrb[0].mxu0
  %922 = vmatprep.mubr.bf16.mxu0 %v493
  %923 = vmatmul.mubr.bf16.gmra.mrb[0].mxu0 %v492
  %v924 = vpop.f32.mrb[0].mxu0
  %v925 = vadd.f32 0.0, %v924
  %v926 = vpop.f32.mrb[0].mxu0
  %v927 = vpop.f32.mrb[0].mxu0
  %v928 = vadd.f32 0.0, %v927
  %v929 = vpop.f32.mrb[0].mxu0
  %930 = vmatprep.mubr.bf16.mxu0 %v495
  %931 = vmatmul.mubr.bf16.gmra.mrb[0].mxu0 %v494
  %v932 = vpop.f32.mrb[0].mxu0
  %v933 = vadd.f32 0.0, %v932
  %v934 = vpop.f32.mrb[0].mxu0
  %v935 = vpop.f32.mrb[0].mxu0
  %v936 = vadd.f32 0.0, %v935
  %v937 = vpop.f32.mrb[0].mxu0
  %938 = vmatprep.mubr.bf16.mxu0 %v497
  %939 = vmatmul.mubr.bf16.gmra.mrb[0].mxu0 %v496
  %v940 = vpop.f32.mrb[0].mxu0
  %v941 = vadd.f32 0.0, %v940
  %v942 = vpop.f32.mrb[0].mxu0
  %v943 = vpop.f32.mrb[0].mxu0
  %v944 = vadd.f32 0.0, %v943
  %v945 = vpop.f32.mrb[0].mxu0
  %946 = vdwg.mxu0
  %v947 = vadd.f32 %v82, %v693
  %v948 = vadd.f32 %v83, %v696
  %v949 = vadd.f32 %v84, %v701
  %v950 = vadd.f32 %v85, %v704
  %v951 = vadd.f32 %v86, %v709
  %v952 = vadd.f32 %v87, %v712
  %v953 = vadd.f32 %v88, %v717
  %v954 = vadd.f32 %v89, %v720
  %v955 = vadd.f32 %v90, %v725
  %v956 = vadd.f32 %v91, %v728
  %v957 = vadd.f32 %v92, %v733
  %v958 = vadd.f32 %v93, %v736
  %v959 = vadd.f32 %v94, %v741
  %v960 = vadd.f32 %v95, %v744
  %v961 = vadd.f32 %v96, %v749
  %v962 = vadd.f32 %v97, %v752
  %v963 = vadd.f32 %v98, %v757
  %v964 = vadd.f32 %v99, %v760
  %v965 = vadd.f32 %v100, %v765
  %v966 = vadd.f32 %v101, %v768
  %v967 = vadd.f32 %v102, %v773
  %v968 = vadd.f32 %v103, %v776
  %v969 = vadd.f32 %v104, %v781
  %v970 = vadd.f32 %v105, %v784
  %v971 = vadd.f32 %v106, %v789
  %v972 = vadd.f32 %v107, %v792
  %v973 = vadd.f32 %v108, %v797
  %v974 = vadd.f32 %v109, %v800
  %v975 = vadd.f32 %v110, %v805
  %v976 = vadd.f32 %v111, %v808
  %v977 = vadd.f32 %v112, %v813
  %v978 = vadd.f32 %v113, %v816
  %v979 = vadd.f32 %v114, %v821
  %v980 = vadd.f32 %v115, %v824
  %v981 = vadd.f32 %v116, %v829
  %v982 = vadd.f32 %v117, %v832
  %v983 = vadd.f32 %v118, %v837
  %v984 = vadd.f32 %v119, %v840
  %v985 = vadd.f32 %v120, %v845
  %v986 = vadd.f32 %v121, %v848
  %v987 = vadd.f32 %v122, %v853
  %v988 = vadd.f32 %v123, %v856
  %v989 = vadd.f32 %v124, %v861
  %v990 = vadd.f32 %v125, %v864
  %v991 = vadd.f32 %v126, %v869
  %v992 = vadd.f32 %v127, %v872
  %v993 = vadd.f32 %v128, %v877
  %v994 = vadd.f32 %v129, %v880
  %v995 = vadd.f32 %v130, %v885
  %v996 = vadd.f32 %v131, %v888
  %v997 = vadd.f32 %v132, %v893
  %v998 = vadd.f32 %v133, %v896
  %v999 = vadd.f32 %v134, %v901
  %v1000 = vadd.f32 %v135, %v904
  %v1001 = vadd.f32 %v136, %v909
  %v1002 = vadd.f32 %v137, %v912
  %v1003 = vadd.f32 %v138, %v917
  %v1004 = vadd.f32 %v139, %v920
  %v1005 = vadd.f32 %v140, %v925
  %v1006 = vadd.f32 %v141, %v928
  %v1007 = vadd.f32 %v142, %v933
  %v1008 = vadd.f32 %v143, %v936
  %v1009 = vadd.f32 %v144, %v941
  %v1010 = vadd.f32 %v145, %v944
  %1011 = vst [vmem:[#allocation2] sm:$0xff] %v947
  %1012 = vst [vmem:[#allocation2 + $0x8] sm:$0xff] %v948
  %1013 = vst [vmem:[#allocation2 + $0x10] sm:$0xff] %v949
  %1014 = vst [vmem:[#allocation2 + $0x18] sm:$0xff] %v950
  %1015 = vst [vmem:[#allocation2 + $0x20] sm:$0xff] %v951
  %1016 = vst [vmem:[#allocation2 + $0x28] sm:$0xff] %v952
  %1017 = vst [vmem:[#allocation2 + $0x30] sm:$0xff] %v953
  %1018 = vst [vmem:[#allocation2 + $0x38] sm:$0xff] %v954
  %1019 = vst [vmem:[#allocation2 + $0x40] sm:$0xff] %v955
  %1020 = vst [vmem:[#allocation2 + $0x48] sm:$0xff] %v956
  %1021 = vst [vmem:[#allocation2 + $0x50] sm:$0xff] %v957
  %1022 = vst [vmem:[#allocation2 + $0x58] sm:$0xff] %v958
  %1023 = vst [vmem:[#allocation2 + $0x60] sm:$0xff] %v959
  %1024 = vst [vmem:[#allocation2 + $0x68] sm:$0xff] %v960
  %1025 = vst [vmem:[#allocation2 + $0x70] sm:$0xff] %v961
  %1026 = vst [vmem:[#allocation2 + $0x78] sm:$0xff] %v962
  %1027 = vst [vmem:[#allocation2 + $0x80] sm:$0xff] %v963
  %1028 = vst [vmem:[#allocation2 + $0x88] sm:$0xff] %v964
  %1029 = vst [vmem:[#allocation2 + $0x90] sm:$0xff] %v965
  %1030 = vst [vmem:[#allocation2 + $0x98] sm:$0xff] %v966
  %1031 = vst [vmem:[#allocation2 + $0xa0] sm:$0xff] %v967
  %1032 = vst [vmem:[#allocation2 + $0xa8] sm:$0xff] %v968
  %1033 = vst [vmem:[#allocation2 + $0xb0] sm:$0xff] %v969
  %1034 = vst [vmem:[#allocation2 + $0xb8] sm:$0xff] %v970
  %1035 = vst [vmem:[#allocation2 + $0xc0] sm:$0xff] %v971
  %1036 = vst [vmem:[#allocation2 + $0xc8] sm:$0xff] %v972
  %1037 = vst [vmem:[#allocation2 + $0xd0] sm:$0xff] %v973
  %1038 = vst [vmem:[#allocation2 + $0xd8] sm:$0xff] %v974
  %1039 = vst [vmem:[#allocation2 + $0xe0] sm:$0xff] %v975
  %1040 = vst [vmem:[#allocation2 + $0xe8] sm:$0xff] %v976
  %1041 = vst [vmem:[#allocation2 + $0xf0] sm:$0xff] %v977
  %1042 = vst [vmem:[#allocation2 + $0xf8] sm:$0xff] %v978
  %1043 = vst [vmem:[#allocation2 + $0x100] sm:$0xff] %v979
  %1044 = vst [vmem:[#allocation2 + $0x108] sm:$0xff] %v980
  %1045 = vst [vmem:[#allocation2 + $0x110] sm:$0xff] %v981
  %1046 = vst [vmem:[#allocation2 + $0x118] sm:$0xff] %v982
  %1047 = vst [vmem:[#allocation2 + $0x120] sm:$0xff] %v983
  %1048 = vst [vmem:[#allocation2 + $0x128] sm:$0xff] %v984
  %1049 = vst [vmem:[#allocation2 + $0x130] sm:$0xff] %v985
  %1050 = vst [vmem:[#allocation2 + $0x138] sm:$0xff] %v986
  %1051 = vst [vmem:[#allocation2 + $0x140] sm:$0xff] %v987
  %1052 = vst [vmem:[#allocation2 + $0x148] sm:$0xff] %v988
  %1053 = vst [vmem:[#allocation2 + $0x150] sm:$0xff] %v989
  %1054 = vst [vmem:[#allocation2 + $0x158] sm:$0xff] %v990
  %1055 = vst [vmem:[#allocation2 + $0x160] sm:$0xff] %v991
  %1056 = vst [vmem:[#allocation2 + $0x168] sm:$0xff] %v992
  %1057 = vst [vmem:[#allocation2 + $0x170] sm:$0xff] %v993
  %1058 = vst [vmem:[#allocation2 + $0x178] sm:$0xff] %v994
  %1059 = vst [vmem:[#allocation2 + $0x180] sm:$0xff] %v995
  %1060 = vst [vmem:[#allocation2 + $0x188] sm:$0xff] %v996
  %1061 = vst [vmem:[#allocation2 + $0x190] sm:$0xff] %v997
  %1062 = vst [vmem:[#allocation2 + $0x198] sm:$0xff] %v998
  %1063 = vst [vmem:[#allocation2 + $0x1a0] sm:$0xff] %v999
  %1064 = vst [vmem:[#allocation2 + $0x1a8] sm:$0xff] %v1000
  %1065 = vst [vmem:[#allocation2 + $0x1b0] sm:$0xff] %v1001
  %1066 = vst [vmem:[#allocation2 + $0x1b8] sm:$0xff] %v1002
  %1067 = vst [vmem:[#allocation2 + $0x1c0] sm:$0xff] %v1003
  %1068 = vst [vmem:[#allocation2 + $0x1c8] sm:$0xff] %v1004
  %1069 = vst [vmem:[#allocation2 + $0x1d0] sm:$0xff] %v1005
  %1070 = vst [vmem:[#allocation2 + $0x1d8] sm:$0xff] %v1006
  %1071 = vst [vmem:[#allocation2 + $0x1e0] sm:$0xff] %v1007
  %1072 = vst [vmem:[#allocation2 + $0x1e8] sm:$0xff] %v1008
  %1073 = vst [vmem:[#allocation2 + $0x1f0] sm:$0xff] %v1009
  %1074 = vst [vmem:[#allocation2 + $0x1f8] sm:$0xff] %v1010
  // Predicated region
  $region14: #{_lambda_.41} parent=0 // pred_check
    %p1075 = pneg %p14
  $region15: #{_lambda_.41} parent=0 // pred_check_branch
    %1077 = sbr.rel (%p1075) target = $region17
  $region16: #{_lambda_.41} parent=0 // pred_region
    %v1078 = vld [vmem:[#allocation2] sm:$0xff]
    %v1079 = vld [vmem:[#allocation2 + $0x8] sm:$0xff]
    %v1080 = vld [vmem:[#allocation2 + $0x10] sm:$0xff]
    %v1081 = vld [vmem:[#allocation2 + $0x18] sm:$0xff]
    %v1082 = vld [vmem:[#allocation2 + $0x20] sm:$0xff]
    %v1083 = vld [vmem:[#allocation2 + $0x28] sm:$0xff]
    %v1084 = vld [vmem:[#allocation2 + $0x30] sm:$0xff]
    %v1085 = vld [vmem:[#allocation2 + $0x38] sm:$0xff]
    %v1086 = vld [vmem:[#allocation2 + $0x40] sm:$0xff]
    %v1087 = vld [vmem:[#allocation2 + $0x48] sm:$0xff]
    %v1088 = vld [vmem:[#allocation2 + $0x50] sm:$0xff]
    %v1089 = vld [vmem:[#allocation2 + $0x58] sm:$0xff]
    %v1090 = vld [vmem:[#allocation2 + $0x60] sm:$0xff]
    %v1091 = vld [vmem:[#allocation2 + $0x68] sm:$0xff]
    %v1092 = vld [vmem:[#allocation2 + $0x70] sm:$0xff]
    %v1093 = vld [vmem:[#allocation2 + $0x78] sm:$0xff]
    %v1094 = vld [vmem:[#allocation2 + $0x80] sm:$0xff]
    %v1095 = vld [vmem:[#allocation2 + $0x88] sm:$0xff]
    %v1096 = vld [vmem:[#allocation2 + $0x90] sm:$0xff]
    %v1097 = vld [vmem:[#allocation2 + $0x98] sm:$0xff]
    %v1098 = vld [vmem:[#allocation2 + $0xa0] sm:$0xff]
    %v1099 = vld [vmem:[#allocation2 + $0xa8] sm:$0xff]
    %v1100 = vld [vmem:[#allocation2 + $0xb0] sm:$0xff]
    %v1101 = vld [vmem:[#allocation2 + $0xb8] sm:$0xff]
    %v1102 = vld [vmem:[#allocation2 + $0xc0] sm:$0xff]
    %v1103 = vld [vmem:[#allocation2 + $0xc8] sm:$0xff]
    %v1104 = vld [vmem:[#allocation2 + $0xd0] sm:$0xff]
    %v1105 = vld [vmem:[#allocation2 + $0xd8] sm:$0xff]
    %v1106 = vld [vmem:[#allocation2 + $0xe0] sm:$0xff]
    %v1107 = vld [vmem:[#allocation2 + $0xe8] sm:$0xff]
    %v1108 = vld [vmem:[#allocation2 + $0xf0] sm:$0xff]
    %v1109 = vld [vmem:[#allocation2 + $0xf8] sm:$0xff]
    %v1110 = vld [vmem:[#allocation2 + $0x100] sm:$0xff]
    %v1111 = vld [vmem:[#allocation2 + $0x108] sm:$0xff]
    %v1112 = vld [vmem:[#allocation2 + $0x110] sm:$0xff]
    %v1113 = vld [vmem:[#allocation2 + $0x118] sm:$0xff]
    %v1114 = vld [vmem:[#allocation2 + $0x120] sm:$0xff]
    %v1115 = vld [vmem:[#allocation2 + $0x128] sm:$0xff]
    %v1116 = vld [vmem:[#allocation2 + $0x130] sm:$0xff]
    %v1117 = vld [vmem:[#allocation2 + $0x138] sm:$0xff]
    %v1118 = vld [vmem:[#allocation2 + $0x140] sm:$0xff]
    %v1119 = vld [vmem:[#allocation2 + $0x148] sm:$0xff]
    %v1120 = vld [vmem:[#allocation2 + $0x150] sm:$0xff]
    %v1121 = vld [vmem:[#allocation2 + $0x158] sm:$0xff]
    %v1122 = vld [vmem:[#allocation2 + $0x160] sm:$0xff]
    %v1123 = vld [vmem:[#allocation2 + $0x168] sm:$0xff]
    %v1124 = vld [vmem:[#allocation2 + $0x170] sm:$0xff]
    %v1125 = vld [vmem:[#allocation2 + $0x178] sm:$0xff]
    %v1126 = vld [vmem:[#allocation2 + $0x180] sm:$0xff]
    %v1127 = vld [vmem:[#allocation2 + $0x188] sm:$0xff]
    %v1128 = vld [vmem:[#allocation2 + $0x190] sm:$0xff]
    %v1129 = vld [vmem:[#allocation2 + $0x198] sm:$0xff]
    %v1130 = vld [vmem:[#allocation2 + $0x1a0] sm:$0xff]
    %v1131 = vld [vmem:[#allocation2 + $0x1a8] sm:$0xff]
    %v1132 = vld [vmem:[#allocation2 + $0x1b0] sm:$0xff]
    %v1133 = vld [vmem:[#allocation2 + $0x1b8] sm:$0xff]
    %v1134 = vld [vmem:[#allocation2 + $0x1c0] sm:$0xff]
    %v1135 = vld [vmem:[#allocation2 + $0x1c8] sm:$0xff]
    %v1136 = vld [vmem:[#allocation2 + $0x1d0] sm:$0xff]
    %v1137 = vld [vmem:[#allocation2 + $0x1d8] sm:$0xff]
    %v1138 = vld [vmem:[#allocation2 + $0x1e0] sm:$0xff]
    %v1139 = vld [vmem:[#allocation2 + $0x1e8] sm:$0xff]
    %v1140 = vld [vmem:[#allocation2 + $0x1f0] sm:$0xff]
    %v1141 = vld [vmem:[#allocation2 + $0x1f8] sm:$0xff]
    %1142 = vst [vmem:[%s2] sm:$0xff] %v1078
    %1143 = vst [vmem:[%s2 + $0x8] sm:$0xff] %v1079
    %1144 = vst [vmem:[%s2 + $0x10] sm:$0xff] %v1080
    %1145 = vst [vmem:[%s2 + $0x18] sm:$0xff] %v1081
    %1146 = vst [vmem:[%s2 + $0x20] sm:$0xff] %v1082
    %1147 = vst [vmem:[%s2 + $0x28] sm:$0xff] %v1083
    %1148 = vst [vmem:[%s2 + $0x30] sm:$0xff] %v1084
    %1149 = vst [vmem:[%s2 + $0x38] sm:$0xff] %v1085
    %1150 = vst [vmem:[%s2 + $0x40] sm:$0xff] %v1086
    %1151 = vst [vmem:[%s2 + $0x48] sm:$0xff] %v1087
    %1152 = vst [vmem:[%s2 + $0x50] sm:$0xff] %v1088
    %1153 = vst [vmem:[%s2 + $0x58] sm:$0xff] %v1089
    %1154 = vst [vmem:[%s2 + $0x60] sm:$0xff] %v1090
    %1155 = vst [vmem:[%s2 + $0x68] sm:$0xff] %v1091
    %1156 = vst [vmem:[%s2 + $0x70] sm:$0xff] %v1092
    %1157 = vst [vmem:[%s2 + $0x78] sm:$0xff] %v1093
    %1158 = vst [vmem:[%s2 + $0x80] sm:$0xff] %v1094
    %1159 = vst [vmem:[%s2 + $0x88] sm:$0xff] %v1095
    %1160 = vst [vmem:[%s2 + $0x90] sm:$0xff] %v1096
    %1161 = vst [vmem:[%s2 + $0x98] sm:$0xff] %v1097
    %1162 = vst [vmem:[%s2 + $0xa0] sm:$0xff] %v1098
    %1163 = vst [vmem:[%s2 + $0xa8] sm:$0xff] %v1099
    %1164 = vst [vmem:[%s2 + $0xb0] sm:$0xff] %v1100
    %1165 = vst [vmem:[%s2 + $0xb8] sm:$0xff] %v1101
    %1166 = vst [vmem:[%s2 + $0xc0] sm:$0xff] %v1102
    %1167 = vst [vmem:[%s2 + $0xc8] sm:$0xff] %v1103
    %1168 = vst [vmem:[%s2 + $0xd0] sm:$0xff] %v1104
    %1169 = vst [vmem:[%s2 + $0xd8] sm:$0xff] %v1105
    %1170 = vst [vmem:[%s2 + $0xe0] sm:$0xff] %v1106
    %1171 = vst [vmem:[%s2 + $0xe8] sm:$0xff] %v1107
    %1172 = vst [vmem:[%s2 + $0xf0] sm:$0xff] %v1108
    %1173 = vst [vmem:[%s2 + $0xf8] sm:$0xff] %v1109
    %1174 = vst [vmem:[%s2 + $0x100] sm:$0xff] %v1110
    %1175 = vst [vmem:[%s2 + $0x108] sm:$0xff] %v1111
    %1176 = vst [vmem:[%s2 + $0x110] sm:$0xff] %v1112
    %1177 = vst [vmem:[%s2 + $0x118] sm:$0xff] %v1113
    %1178 = vst [vmem:[%s2 + $0x120] sm:$0xff] %v1114
    %1179 = vst [vmem:[%s2 + $0x128] sm:$0xff] %v1115
    %1180 = vst [vmem:[%s2 + $0x130] sm:$0xff] %v1116
    %1181 = vst [vmem:[%s2 + $0x138] sm:$0xff] %v1117
    %1182 = vst [vmem:[%s2 + $0x140] sm:$0xff] %v1118
    %1183 = vst [vmem:[%s2 + $0x148] sm:$0xff] %v1119
    %1184 = vst [vmem:[%s2 + $0x150] sm:$0xff] %v1120
    %1185 = vst [vmem:[%s2 + $0x158] sm:$0xff] %v1121
    %1186 = vst [vmem:[%s2 + $0x160] sm:$0xff] %v1122
    %1187 = vst [vmem:[%s2 + $0x168] sm:$0xff] %v1123
    %1188 = vst [vmem:[%s2 + $0x170] sm:$0xff] %v1124
    %1189 = vst [vmem:[%s2 + $0x178] sm:$0xff] %v1125
    %1190 = vst [vmem:[%s2 + $0x180] sm:$0xff] %v1126
    %1191 = vst [vmem:[%s2 + $0x188] sm:$0xff] %v1127
    %1192 = vst [vmem:[%s2 + $0x190] sm:$0xff] %v1128
    %1193 = vst [vmem:[%s2 + $0x198] sm:$0xff] %v1129
    %1194 = vst [vmem:[%s2 + $0x1a0] sm:$0xff] %v1130
    %1195 = vst [vmem:[%s2 + $0x1a8] sm:$0xff] %v1131
    %1196 = vst [vmem:[%s2 + $0x1b0] sm:$0xff] %v1132
    %1197 = vst [vmem:[%s2 + $0x1b8] sm:$0xff] %v1133
    %1198 = vst [vmem:[%s2 + $0x1c0] sm:$0xff] %v1134
    %1199 = vst [vmem:[%s2 + $0x1c8] sm:$0xff] %v1135
    %1200 = vst [vmem:[%s2 + $0x1d0] sm:$0xff] %v1136
    %1201 = vst [vmem:[%s2 + $0x1d8] sm:$0xff] %v1137
    %1202 = vst [vmem:[%s2 + $0x1e0] sm:$0xff] %v1138
    %1203 = vst [vmem:[%s2 + $0x1e8] sm:$0xff] %v1139
    %1204 = vst [vmem:[%s2 + $0x1f0] sm:$0xff] %v1140
    %1205 = vst [vmem:[%s2 + $0x1f8] sm:$0xff] %v1141
    %v1206 = vadd.f32 %v1078, %v1079
    %v1207 = vadd.f32 %v1206, %v1080
    %v1208 = vadd.f32 %v1207, %v1081
    %v1209 = vadd.f32 %v1208, %v1082
    %v1210 = vadd.f32 %v1209, %v1083
    %v1211 = vadd.f32 %v1210, %v1084
    %v1212 = vadd.f32 %v1211, %v1085
    %v1213 = vadd.f32 %v1212, %v1086
    %v1214 = vadd.f32 %v1213, %v1087
    %v1215 = vadd.f32 %v1214, %v1088
    %v1216 = vadd.f32 %v1215, %v1089
    %v1217 = vadd.f32 %v1216, %v1090
    %v1218 = vadd.f32 %v1217, %v1091
    %v1219 = vadd.f32 %v1218, %v1092
    %v1220 = vadd.f32 %v1219, %v1093
    %v1221 = vadd.f32 %v1220, %v1094
    %v1222 = vadd.f32 %v1221, %v1095
    %v1223 = vadd.f32 %v1222, %v1096
    %v1224 = vadd.f32 %v1223, %v1097
    %v1225 = vadd.f32 %v1224, %v1098
    %v1226 = vadd.f32 %v1225, %v1099
    %v1227 = vadd.f32 %v1226, %v1100
    %v1228 = vadd.f32 %v1227, %v1101
    %v1229 = vadd.f32 %v1228, %v1102
    %v1230 = vadd.f32 %v1229, %v1103
    %v1231 = vadd.f32 %v1230, %v1104
    %v1232 = vadd.f32 %v1231, %v1105
    %v1233 = vadd.f32 %v1232, %v1106
    %v1234 = vadd.f32 %v1233, %v1107
    %v1235 = vadd.f32 %v1234, %v1108
    %v1236 = vadd.f32 %v1235, %v1109
    %v1237 = vadd.f32 %v1236, %v1110
    %v1238 = vadd.f32 %v1237, %v1111
    %v1239 = vadd.f32 %v1238, %v1112
    %v1240 = vadd.f32 %v1239, %v1113
    %v1241 = vadd.f32 %v1240, %v1114
    %v1242 = vadd.f32 %v1241, %v1115
    %v1243 = vadd.f32 %v1242, %v1116
    %v1244 = vadd.f32 %v1243, %v1117
    %v1245 = vadd.f32 %v1244, %v1118
    %v1246 = vadd.f32 %v1245, %v1119
    %v1247 = vadd.f32 %v1246, %v1120
    %v1248 = vadd.f32 %v1247, %v1121
    %v1249 = vadd.f32 %v1248, %v1122
    %v1250 = vadd.f32 %v1249, %v1123
    %v1251 = vadd.f32 %v1250, %v1124
    %v1252 = vadd.f32 %v1251, %v1125
    %v1253 = vadd.f32 %v1252, %v1126
    %v1254 = vadd.f32 %v1253, %v1127
    %v1255 = vadd.f32 %v1254, %v1128
    %v1256 = vadd.f32 %v1255, %v1129
    %v1257 = vadd.f32 %v1256, %v1130
    %v1258 = vadd.f32 %v1257, %v1131
    %v1259 = vadd.f32 %v1258, %v1132
    %v1260 = vadd.f32 %v1259, %v1133
    %v1261 = vadd.f32 %v1260, %v1134
    %v1262 = vadd.f32 %v1261, %v1135
    %v1263 = vadd.f32 %v1262, %v1136
    %v1264 = vadd.f32 %v1263, %v1137
    %v1265 = vadd.f32 %v1264, %v1138
    %v1266 = vadd.f32 %v1265, %v1139
    %v1267 = vadd.f32 %v1266, %v1140
    %v1268 = vadd.f32 %v1267, %v1141
    %v1269 = vrot.slane %v1268, 4
    %v1270 = vadd.f32 %v1268, %v1269
    %v1271 = vrot.slane %v1270, 2
    %v1272 = vadd.f32 %v1270, %v1271
    %v1273 = vrot.slane %v1272, 1
    %v1274 = vadd.f32 %v1272, %v1273
    %v1275 = vmul.f32 %v1078, %v1078
    %v1276 = vmul.f32 %v1079, %v1079
    %v1277 = vmul.f32 %v1080, %v1080
    %v1278 = vmul.f32 %v1081, %v1081
    %v1279 = vmul.f32 %v1082, %v1082
    %v1280 = vmul.f32 %v1083, %v1083
    %v1281 = vmul.f32 %v1084, %v1084
    %v1282 = vmul.f32 %v1085, %v1085
    %v1283 = vmul.f32 %v1086, %v1086
    %v1284 = vmul.f32 %v1087, %v1087
    %v1285 = vmul.f32 %v1088, %v1088
    %v1286 = vmul.f32 %v1089, %v1089
    %v1287 = vmul.f32 %v1090, %v1090
    %v1288 = vmul.f32 %v1091, %v1091
    %v1289 = vmul.f32 %v1092, %v1092
    %v1290 = vmul.f32 %v1093, %v1093
    %v1291 = vmul.f32 %v1094, %v1094
    %v1292 = vmul.f32 %v1095, %v1095
    %v1293 = vmul.f32 %v1096, %v1096
    %v1294 = vmul.f32 %v1097, %v1097
    %v1295 = vmul.f32 %v1098, %v1098
    %v1296 = vmul.f32 %v1099, %v1099
    %v1297 = vmul.f32 %v1100, %v1100
    %v1298 = vmul.f32 %v1101, %v1101
    %v1299 = vmul.f32 %v1102, %v1102
    %v1300 = vmul.f32 %v1103, %v1103
    %v1301 = vmul.f32 %v1104, %v1104
    %v1302 = vmul.f32 %v1105, %v1105
    %v1303 = vmul.f32 %v1106, %v1106
    %v1304 = vmul.f32 %v1107, %v1107
    %v1305 = vmul.f32 %v1108, %v1108
    %v1306 = vmul.f32 %v1109, %v1109
    %v1307 = vmul.f32 %v1110, %v1110
    %v1308 = vmul.f32 %v1111, %v1111
    %v1309 = vmul.f32 %v1112, %v1112
    %v1310 = vmul.f32 %v1113, %v1113
    %v1311 = vmul.f32 %v1114, %v1114
    %v1312 = vmul.f32 %v1115, %v1115
    %v1313 = vmul.f32 %v1116, %v1116
    %v1314 = vmul.f32 %v1117, %v1117
    %v1315 = vmul.f32 %v1118, %v1118
    %v1316 = vmul.f32 %v1119, %v1119
    %v1317 = vmul.f32 %v1120, %v1120
    %v1318 = vmul.f32 %v1121, %v1121
    %v1319 = vmul.f32 %v1122, %v1122
    %v1320 = vmul.f32 %v1123, %v1123
    %v1321 = vmul.f32 %v1124, %v1124
    %v1322 = vmul.f32 %v1125, %v1125
    %v1323 = vmul.f32 %v1126, %v1126
    %v1324 = vmul.f32 %v1127, %v1127
    %v1325 = vmul.f32 %v1128, %v1128
    %v1326 = vmul.f32 %v1129, %v1129
    %v1327 = vmul.f32 %v1130, %v1130
    %v1328 = vmul.f32 %v1131, %v1131
    %v1329 = vmul.f32 %v1132, %v1132
    %v1330 = vmul.f32 %v1133, %v1133
    %v1331 = vmul.f32 %v1134, %v1134
    %v1332 = vmul.f32 %v1135, %v1135
    %v1333 = vmul.f32 %v1136, %v1136
    %v1334 = vmul.f32 %v1137, %v1137
    %v1335 = vmul.f32 %v1138, %v1138
    %v1336 = vmul.f32 %v1139, %v1139
    %v1337 = vmul.f32 %v1140, %v1140
    %v1338 = vmul.f32 %v1141, %v1141
    %v1339 = vadd.f32 %v1275, %v1276
    %v1340 = vadd.f32 %v1339, %v1277
    %v1341 = vadd.f32 %v1340, %v1278
    %v1342 = vadd.f32 %v1341, %v1279
    %v1343 = vadd.f32 %v1342, %v1280
    %v1344 = vadd.f32 %v1343, %v1281
    %v1345 = vadd.f32 %v1344, %v1282
    %v1346 = vadd.f32 %v1345, %v1283
    %v1347 = vadd.f32 %v1346, %v1284
    %v1348 = vadd.f32 %v1347, %v1285
    %v1349 = vadd.f32 %v1348, %v1286
    %v1350 = vadd.f32 %v1349, %v1287
    %v1351 = vadd.f32 %v1350, %v1288
    %v1352 = vadd.f32 %v1351, %v1289
    %v1353 = vadd.f32 %v1352, %v1290
    %v1354 = vadd.f32 %v1353, %v1291
    %v1355 = vadd.f32 %v1354, %v1292
    %v1356 = vadd.f32 %v1355, %v1293
    %v1357 = vadd.f32 %v1356, %v1294
    %v1358 = vadd.f32 %v1357, %v1295
    %v1359 = vadd.f32 %v1358, %v1296
    %v1360 = vadd.f32 %v1359, %v1297
    %v1361 = vadd.f32 %v1360, %v1298
    %v1362 = vadd.f32 %v1361, %v1299
    %v1363 = vadd.f32 %v1362, %v1300
    %v1364 = vadd.f32 %v1363, %v1301
    %v1365 = vadd.f32 %v1364, %v1302
    %v1366 = vadd.f32 %v1365, %v1303
    %v1367 = vadd.f32 %v1366, %v1304
    %v1368 = vadd.f32 %v1367, %v1305
    %v1369 = vadd.f32 %v1368, %v1306
    %v1370 = vadd.f32 %v1369, %v1307
    %v1371 = vadd.f32 %v1370, %v1308
    %v1372 = vadd.f32 %v1371, %v1309
    %v1373 = vadd.f32 %v1372, %v1310
    %v1374 = vadd.f32 %v1373, %v1311
    %v1375 = vadd.f32 %v1374, %v1312
    %v1376 = vadd.f32 %v1375, %v1313
    %v1377 = vadd.f32 %v1376, %v1314
    %v1378 = vadd.f32 %v1377, %v1315
    %v1379 = vadd.f32 %v1378, %v1316
    %v1380 = vadd.f32 %v1379, %v1317
    %v1381 = vadd.f32 %v1380, %v1318
    %v1382 = vadd.f32 %v1381, %v1319
    %v1383 = vadd.f32 %v1382, %v1320
    %v1384 = vadd.f32 %v1383, %v1321
    %v1385 = vadd.f32 %v1384, %v1322
    %v1386 = vadd.f32 %v1385, %v1323
    %v1387 = vadd.f32 %v1386, %v1324
    %v1388 = vadd.f32 %v1387, %v1325
    %v1389 = vadd.f32 %v1388, %v1326
    %v1390 = vadd.f32 %v1389, %v1327
    %v1391 = vadd.f32 %v1390, %v1328
    %v1392 = vadd.f32 %v1391, %v1329
    %v1393 = vadd.f32 %v1392, %v1330
    %v1394 = vadd.f32 %v1393, %v1331
    %v1395 = vadd.f32 %v1394, %v1332
    %v1396 = vadd.f32 %v1395, %v1333
    %v1397 = vadd.f32 %v1396, %v1334
    %v1398 = vadd.f32 %v1397, %v1335
    %v1399 = vadd.f32 %v1398, %v1336
    %v1400 = vadd.f32 %v1399, %v1337
    %v1401 = vadd.f32 %v1400, %v1338
    %v1402 = vrot.slane %v1401, 4
    %v1403 = vadd.f32 %v1401, %v1402
    %v1404 = vrot.slane %v1403, 2
    %v1405 = vadd.f32 %v1403, %v1404
    %v1406 = vrot.slane %v1405, 1
    %v1407 = vadd.f32 %v1405, %v1406
    %vm1408 = vcmask 1040384
    %v1409 = vsel %vm1408, %v1274, %v1407
    %1410 = vst [vmem:[%s3] sm:$0x3] %v1409
  $region17: #{_lambda_.41} parent=0 // pred_fallthru
    _
  // Predicated region
  $region18: #{_lambda_.41} parent=0 // pred_check
    _
  $region19: #{_lambda_.41} parent=0 // pred_check_branch
    %1412 = sbr.rel (0) target = $region21
  $region20: #{_lambda_.41} parent=0 // pred_region
    _
  $region21: #{_lambda_.41} parent=0 // pred_fallthru
    _
  // Predicated region
  $region22: #{_lambda_.41} parent=0 // pred_check
    _
  $region23: #{_lambda_.41} parent=0 // pred_check_branch
    %1414 = sbr.rel (0) target = $region25
  $region24: #{_lambda_.41} parent=0 // pred_region
    _
  $region25: #{_lambda_.41} parent=0 // pred_fallthru
    _
  // Predicated region
  $region26: #{_lambda_.41} parent=0 // pred_check
    _
  $region27: #{_lambda_.41} parent=0 // pred_check_branch
    %1416 = sbr.rel (0) target = $region29
  $region28: #{_lambda_.41} parent=0 // pred_region
    _
  $region29: #{_lambda_.41} parent=0 // pred_fallthru
    _
  // Predicated region
  $region30: #{_lambda_.41} parent=0 // pred_check
    _
  $region31: #{_lambda_.41} parent=0 // pred_check_branch
    %1418 = sbr.rel (0) target = $region33
  $region32: #{_lambda_.41} parent=0 // pred_region
    _
  $region33: #{_lambda_.41} parent=0 // pred_fallthru
    _

// kernel: _lambda_.43
$region0: #{_lambda_.43}
  #allocation0 [shape = 'u32[]', space=smem, size = 0x4, offset = 0x4, fixed_abs, tag = 'smem constant byte address 0x4 - core index']
  #allocation1 [shape = 'u32[144,128]{1,0:T(1,128)}', space=vmem, size = 0x12000, scoped, tag = 'internal scratch']
  %s0 = inlined_call_operand.vmem [shape: f32[128,9,128], index: 0, kind: input, shape index: {}]
  %s1 = inlined_call_operand.vmem [shape: f32[128,128], index: 1, kind: output, shape index: {}]
  %s2 = sld [smem:[#allocation0]]
  $region14: #{_lambda_.43} parent=0
    _
  %s4 = ssub.s32 1, %s2
  %s5 = scalar_select 0, %s4, %s2
  // Predicated region
  $region2: #{_lambda_.43} parent=0 // pred_check
    _
  $region3: #{_lambda_.43} parent=0 // pred_check_branch
    %7 = sbr.rel (0) target = $region5
  $region4: #{_lambda_.43} parent=0 // pred_region
    _
  $region5: #{_lambda_.43} parent=0 // pred_fallthru
    _
  %v8 = vld [vmem:[%s0] sm:$0x1]
  %v9 = vld [vmem:[%s0 + $0x10] sm:$0x1]
  %v10 = vld [vmem:[%s0 + $0x20] sm:$0x1]
  %v11 = vld [vmem:[%s0 + $0x30] sm:$0x1]
  %v12 = vld [vmem:[%s0 + $0x40] sm:$0x1]
  %v13 = vld [vmem:[%s0 + $0x50] sm:$0x1]
  %v14 = vld [vmem:[%s0 + $0x60] sm:$0x1]
  %v15 = vld [vmem:[%s0 + $0x70] sm:$0x1]
  %v16 = vld [vmem:[%s0 + $0x80] sm:$0x1]
  %v17 = vld [vmem:[%s0 + $0x90] sm:$0x1]
  %v18 = vld [vmem:[%s0 + $0xa0] sm:$0x1]
  %v19 = vld [vmem:[%s0 + $0xb0] sm:$0x1]
  %v20 = vld [vmem:[%s0 + $0xc0] sm:$0x1]
  %v21 = vld [vmem:[%s0 + $0xd0] sm:$0x1]
  %v22 = vld [vmem:[%s0 + $0xe0] sm:$0x1]
  %v23 = vld [vmem:[%s0 + $0xf0] sm:$0x1]
  %v24 = vld [vmem:[%s0 + $0x100] sm:$0x1]
  %v25 = vld [vmem:[%s0 + $0x110] sm:$0x1]
  %v26 = vld [vmem:[%s0 + $0x120] sm:$0x1]
  %v27 = vld [vmem:[%s0 + $0x130] sm:$0x1]
  %v28 = vld [vmem:[%s0 + $0x140] sm:$0x1]
  %v29 = vld [vmem:[%s0 + $0x150] sm:$0x1]
  %v30 = vld [vmem:[%s0 + $0x160] sm:$0x1]
  %v31 = vld [vmem:[%s0 + $0x170] sm:$0x1]
  %v32 = vld [vmem:[%s0 + $0x180] sm:$0x1]
  %v33 = vld [vmem:[%s0 + $0x190] sm:$0x1]
  %v34 = vld [vmem:[%s0 + $0x1a0] sm:$0x1]
  %v35 = vld [vmem:[%s0 + $0x1b0] sm:$0x1]
  %v36 = vld [vmem:[%s0 + $0x1c0] sm:$0x1]
  %v37 = vld [vmem:[%s0 + $0x1d0] sm:$0x1]
  %v38 = vld [vmem:[%s0 + $0x1e0] sm:$0x1]
  %v39 = vld [vmem:[%s0 + $0x1f0] sm:$0x1]
  %v40 = vld [vmem:[%s0 + $0x200] sm:$0x1]
  %v41 = vld [vmem:[%s0 + $0x210] sm:$0x1]
  %v42 = vld [vmem:[%s0 + $0x220] sm:$0x1]
  %v43 = vld [vmem:[%s0 + $0x230] sm:$0x1]
  %v44 = vld [vmem:[%s0 + $0x240] sm:$0x1]
  %v45 = vld [vmem:[%s0 + $0x250] sm:$0x1]
  %v46 = vld [vmem:[%s0 + $0x260] sm:$0x1]
  %v47 = vld [vmem:[%s0 + $0x270] sm:$0x1]
  %v48 = vld [vmem:[%s0 + $0x280] sm:$0x1]
  %v49 = vld [vmem:[%s0 + $0x290] sm:$0x1]
  %v50 = vld [vmem:[%s0 + $0x2a0] sm:$0x1]
  %v51 = vld [vmem:[%s0 + $0x2b0] sm:$0x1]
  %v52 = vld [vmem:[%s0 + $0x2c0] sm:$0x1]
  %v53 = vld [vmem:[%s0 + $0x2d0] sm:$0x1]
  %v54 = vld [vmem:[%s0 + $0x2e0] sm:$0x1]
  %v55 = vld [vmem:[%s0 + $0x2f0] sm:$0x1]
  %v56 = vld [vmem:[%s0 + $0x300] sm:$0x1]
  %v57 = vld [vmem:[%s0 + $0x310] sm:$0x1]
  %v58 = vld [vmem:[%s0 + $0x320] sm:$0x1]
  %v59 = vld [vmem:[%s0 + $0x330] sm:$0x1]
  %v60 = vld [vmem:[%s0 + $0x340] sm:$0x1]
  %v61 = vld [vmem:[%s0 + $0x350] sm:$0x1]
  %v62 = vld [vmem:[%s0 + $0x360] sm:$0x1]
  %v63 = vld [vmem:[%s0 + $0x370] sm:$0x1]
  %v64 = vld [vmem:[%s0 + $0x380] sm:$0x1]
  %v65 = vld [vmem:[%s0 + $0x390] sm:$0x1]
  %v66 = vld [vmem:[%s0 + $0x3a0] sm:$0x1]
  %v67 = vld [vmem:[%s0 + $0x3b0] sm:$0x1]
  %v68 = vld [vmem:[%s0 + $0x3c0] sm:$0x1]
  %v69 = vld [vmem:[%s0 + $0x3d0] sm:$0x1]
  %v70 = vld [vmem:[%s0 + $0x3e0] sm:$0x1]
  %v71 = vld [vmem:[%s0 + $0x3f0] sm:$0x1]
  %v72 = vld [vmem:[%s0 + $0x400] sm:$0x1]
  %v73 = vld [vmem:[%s0 + $0x410] sm:$0x1]
  %v74 = vld [vmem:[%s0 + $0x420] sm:$0x1]
  %v75 = vld [vmem:[%s0 + $0x430] sm:$0x1]
  %v76 = vld [vmem:[%s0 + $0x440] sm:$0x1]
  %v77 = vld [vmem:[%s0 + $0x450] sm:$0x1]
  %v78 = vld [vmem:[%s0 + $0x460] sm:$0x1]
  %v79 = vld [vmem:[%s0 + $0x470] sm:$0x1]
  %v80 = vld [vmem:[%s0 + $0x480] sm:$0x1]
  %v81 = vld [vmem:[%s0 + $0x490] sm:$0x1]
  %v82 = vld [vmem:[%s0 + $0x4a0] sm:$0x1]
  %v83 = vld [vmem:[%s0 + $0x4b0] sm:$0x1]
  %v84 = vld [vmem:[%s0 + $0x4c0] sm:$0x1]
  %v85 = vld [vmem:[%s0 + $0x4d0] sm:$0x1]
  %v86 = vld [vmem:[%s0 + $0x4e0] sm:$0x1]
  %v87 = vld [vmem:[%s0 + $0x4f0] sm:$0x1]
  %v88 = vld [vmem:[%s0 + $0x500] sm:$0x1]
  %v89 = vld [vmem:[%s0 + $0x510] sm:$0x1]
  %v90 = vld [vmem:[%s0 + $0x520] sm:$0x1]
  %v91 = vld [vmem:[%s0 + $0x530] sm:$0x1]
  %v92 = vld [vmem:[%s0 + $0x540] sm:$0x1]
  %v93 = vld [vmem:[%s0 + $0x550] sm:$0x1]
  %v94 = vld [vmem:[%s0 + $0x560] sm:$0x1]
  %v95 = vld [vmem:[%s0 + $0x570] sm:$0x1]
  %v96 = vld [vmem:[%s0 + $0x580] sm:$0x1]
  %v97 = vld [vmem:[%s0 + $0x590] sm:$0x1]
  %v98 = vld [vmem:[%s0 + $0x5a0] sm:$0x1]
  %v99 = vld [vmem:[%s0 + $0x5b0] sm:$0x1]
  %v100 = vld [vmem:[%s0 + $0x5c0] sm:$0x1]
  %v101 = vld [vmem:[%s0 + $0x5d0] sm:$0x1]
  %v102 = vld [vmem:[%s0 + $0x5e0] sm:$0x1]
  %v103 = vld [vmem:[%s0 + $0x5f0] sm:$0x1]
  %v104 = vld [vmem:[%s0 + $0x600] sm:$0x1]
  %v105 = vld [vmem:[%s0 + $0x610] sm:$0x1]
  %v106 = vld [vmem:[%s0 + $0x620] sm:$0x1]
  %v107 = vld [vmem:[%s0 + $0x630] sm:$0x1]
  %v108 = vld [vmem:[%s0 + $0x640] sm:$0x1]
  %v109 = vld [vmem:[%s0 + $0x650] sm:$0x1]
  %v110 = vld [vmem:[%s0 + $0x660] sm:$0x1]
  %v111 = vld [vmem:[%s0 + $0x670] sm:$0x1]
  %v112 = vld [vmem:[%s0 + $0x680] sm:$0x1]
  %v113 = vld [vmem:[%s0 + $0x690] sm:$0x1]
  %v114 = vld [vmem:[%s0 + $0x6a0] sm:$0x1]
  %v115 = vld [vmem:[%s0 + $0x6b0] sm:$0x1]
  %v116 = vld [vmem:[%s0 + $0x6c0] sm:$0x1]
  %v117 = vld [vmem:[%s0 + $0x6d0] sm:$0x1]
  %v118 = vld [vmem:[%s0 + $0x6e0] sm:$0x1]
  %v119 = vld [vmem:[%s0 + $0x6f0] sm:$0x1]
  %v120 = vld [vmem:[%s0 + $0x700] sm:$0x1]
  %v121 = vld [vmem:[%s0 + $0x710] sm:$0x1]
  %v122 = vld [vmem:[%s0 + $0x720] sm:$0x1]
  %v123 = vld [vmem:[%s0 + $0x730] sm:$0x1]
  %v124 = vld [vmem:[%s0 + $0x740] sm:$0x1]
  %v125 = vld [vmem:[%s0 + $0x750] sm:$0x1]
  %v126 = vld [vmem:[%s0 + $0x760] sm:$0x1]
  %v127 = vld [vmem:[%s0 + $0x770] sm:$0x1]
  %v128 = vld [vmem:[%s0 + $0x780] sm:$0x1]
  %v129 = vld [vmem:[%s0 + $0x790] sm:$0x1]
  %v130 = vld [vmem:[%s0 + $0x7a0] sm:$0x1]
  %v131 = vld [vmem:[%s0 + $0x7b0] sm:$0x1]
  %v132 = vld [vmem:[%s0 + $0x7c0] sm:$0x1]
  %v133 = vld [vmem:[%s0 + $0x7d0] sm:$0x1]
  %v134 = vld [vmem:[%s0 + $0x7e0] sm:$0x1]
  %v135 = vld [vmem:[%s0 + $0x7f0] sm:$0x1]
  %v136 = vld [vmem:[%s0 + $0x1] sm:$0x1]
  %v137 = vld [vmem:[%s0 + $0x11] sm:$0x1]
  %v138 = vld [vmem:[%s0 + $0x21] sm:$0x1]
  %v139 = vld [vmem:[%s0 + $0x31] sm:$0x1]
  %v140 = vld [vmem:[%s0 + $0x41] sm:$0x1]
  %v141 = vld [vmem:[%s0 + $0x51] sm:$0x1]
  %v142 = vld [vmem:[%s0 + $0x61] sm:$0x1]
  %v143 = vld [vmem:[%s0 + $0x71] sm:$0x1]
  %v144 = vld [vmem:[%s0 + $0x81] sm:$0x1]
  %v145 = vld [vmem:[%s0 + $0x91] sm:$0x1]
  %v146 = vld [vmem:[%s0 + $0xa1] sm:$0x1]
  %v147 = vld [vmem:[%s0 + $0xb1] sm:$0x1]
  %v148 = vld [vmem:[%s0 + $0xc1] sm:$0x1]
  %v149 = vld [vmem:[%s0 + $0xd1] sm:$0x1]
  %v150 = vld [vmem:[%s0 + $0xe1] sm:$0x1]
  %v151 = vld [vmem:[%s0 + $0xf1] sm:$0x1]
  %v152 = vld [vmem:[%s0 + $0x101] sm:$0x1]
  %v153 = vld [vmem:[%s0 + $0x111] sm:$0x1]
  %v154 = vld [vmem:[%s0 + $0x121] sm:$0x1]
  %v155 = vld [vmem:[%s0 + $0x131] sm:$0x1]
  %v156 = vld [vmem:[%s0 + $0x141] sm:$0x1]
  %v157 = vld [vmem:[%s0 + $0x151] sm:$0x1]
  %v158 = vld [vmem:[%s0 + $0x161] sm:$0x1]
  %v159 = vld [vmem:[%s0 + $0x171] sm:$0x1]
  %v160 = vld [vmem:[%s0 + $0x181] sm:$0x1]
  %v161 = vld [vmem:[%s0 + $0x191] sm:$0x1]
  %v162 = vld [vmem:[%s0 + $0x1a1] sm:$0x1]
  %v163 = vld [vmem:[%s0 + $0x1b1] sm:$0x1]
  %v164 = vld [vmem:[%s0 + $0x1c1] sm:$0x1]
  %v165 = vld [vmem:[%s0 + $0x1d1] sm:$0x1]
  %v166 = vld [vmem:[%s0 + $0x1e1] sm:$0x1]
  %v167 = vld [vmem:[%s0 + $0x1f1] sm:$0x1]
  %v168 = vld [vmem:[%s0 + $0x201] sm:$0x1]
  %v169 = vld [vmem:[%s0 + $0x211] sm:$0x1]
  %v170 = vld [vmem:[%s0 + $0x221] sm:$0x1]
  %v171 = vld [vmem:[%s0 + $0x231] sm:$0x1]
  %v172 = vld [vmem:[%s0 + $0x241] sm:$0x1]
  %v173 = vld [vmem:[%s0 + $0x251] sm:$0x1]
  %v174 = vld [vmem:[%s0 + $0x261] sm:$0x1]
  %v175 = vld [vmem:[%s0 + $0x271] sm:$0x1]
  %v176 = vld [vmem:[%s0 + $0x281] sm:$0x1]
  %v177 = vld [vmem:[%s0 + $0x291] sm:$0x1]
  %v178 = vld [vmem:[%s0 + $0x2a1] sm:$0x1]
  %v179 = vld [vmem:[%s0 + $0x2b1] sm:$0x1]
  %v180 = vld [vmem:[%s0 + $0x2c1] sm:$0x1]
  %v181 = vld [vmem:[%s0 + $0x2d1] sm:$0x1]
  %v182 = vld [vmem:[%s0 + $0x2e1] sm:$0x1]
  %v183 = vld [vmem:[%s0 + $0x2f1] sm:$0x1]
  %v184 = vld [vmem:[%s0 + $0x301] sm:$0x1]
  %v185 = vld [vmem:[%s0 + $0x311] sm:$0x1]
  %v186 = vld [vmem:[%s0 + $0x321] sm:$0x1]
  %v187 = vld [vmem:[%s0 + $0x331] sm:$0x1]
  %v188 = vld [vmem:[%s0 + $0x341] sm:$0x1]
  %v189 = vld [vmem:[%s0 + $0x351] sm:$0x1]
  %v190 = vld [vmem:[%s0 + $0x361] sm:$0x1]
  %v191 = vld [vmem:[%s0 + $0x371] sm:$0x1]
  %v192 = vld [vmem:[%s0 + $0x381] sm:$0x1]
  %v193 = vld [vmem:[%s0 + $0x391] sm:$0x1]
  %v194 = vld [vmem:[%s0 + $0x3a1] sm:$0x1]
  %v195 = vld [vmem:[%s0 + $0x3b1] sm:$0x1]
  %v196 = vld [vmem:[%s0 + $0x3c1] sm:$0x1]
  %v197 = vld [vmem:[%s0 + $0x3d1] sm:$0x1]
  %v198 = vld [vmem:[%s0 + $0x3e1] sm:$0x1]
  %v199 = vld [vmem:[%s0 + $0x3f1] sm:$0x1]
  %v200 = vld [vmem:[%s0 + $0x401] sm:$0x1]
  %v201 = vld [vmem:[%s0 + $0x411] sm:$0x1]
  %v202 = vld [vmem:[%s0 + $0x421] sm:$0x1]
  %v203 = vld [vmem:[%s0 + $0x431] sm:$0x1]
  %v204 = vld [vmem:[%s0 + $0x441] sm:$0x1]
  %v205 = vld [vmem:[%s0 + $0x451] sm:$0x1]
  %v206 = vld [vmem:[%s0 + $0x461] sm:$0x1]
  %v207 = vld [vmem:[%s0 + $0x471] sm:$0x1]
  %v208 = vld [vmem:[%s0 + $0x481] sm:$0x1]
  %v209 = vld [vmem:[%s0 + $0x491] sm:$0x1]
  %v210 = vld [vmem:[%s0 + $0x4a1] sm:$0x1]
  %v211 = vld [vmem:[%s0 + $0x4b1] sm:$0x1]
  %v212 = vld [vmem:[%s0 + $0x4c1] sm:$0x1]
  %v213 = vld [vmem:[%s0 + $0x4d1] sm:$0x1]
  %v214 = vld [vmem:[%s0 + $0x4e1] sm:$0x1]
  %v215 = vld [vmem:[%s0 + $0x4f1] sm:$0x1]
  %v216 = vld [vmem:[%s0 + $0x501] sm:$0x1]
  %v217 = vld [vmem:[%s0 + $0x511] sm:$0x1]
  %v218 = vld [vmem:[%s0 + $0x521] sm:$0x1]
  %v219 = vld [vmem:[%s0 + $0x531] sm:$0x1]
  %v220 = vld [vmem:[%s0 + $0x541] sm:$0x1]
  %v221 = vld [vmem:[%s0 + $0x551] sm:$0x1]
  %v222 = vld [vmem:[%s0 + $0x561] sm:$0x1]
  %v223 = vld [vmem:[%s0 + $0x571] sm:$0x1]
  %v224 = vld [vmem:[%s0 + $0x581] sm:$0x1]
  %v225 = vld [vmem:[%s0 + $0x591] sm:$0x1]
  %v226 = vld [vmem:[%s0 + $0x5a1] sm:$0x1]
  %v227 = vld [vmem:[%s0 + $0x5b1] sm:$0x1]
  %v228 = vld [vmem:[%s0 + $0x5c1] sm:$0x1]
  %v229 = vld [vmem:[%s0 + $0x5d1] sm:$0x1]
  %v230 = vld [vmem:[%s0 + $0x5e1] sm:$0x1]
  %v231 = vld [vmem:[%s0 + $0x5f1] sm:$0x1]
  %v232 = vld [vmem:[%s0 + $0x601] sm:$0x1]
  %v233 = vld [vmem:[%s0 + $0x611] sm:$0x1]
  %v234 = vld [vmem:[%s0 + $0x621] sm:$0x1]
  %v235 = vld [vmem:[%s0 + $0x631] sm:$0x1]
  %v236 = vld [vmem:[%s0 + $0x641] sm:$0x1]
  %v237 = vld [vmem:[%s0 + $0x651] sm:$0x1]
  %v238 = vld [vmem:[%s0 + $0x661] sm:$0x1]
  %v239 = vld [vmem:[%s0 + $0x671] sm:$0x1]
  %v240 = vld [vmem:[%s0 + $0x681] sm:$0x1]
  %v241 = vld [vmem:[%s0 + $0x691] sm:$0x1]
  %v242 = vld [vmem:[%s0 + $0x6a1] sm:$0x1]
  %v243 = vld [vmem:[%s0 + $0x6b1] sm:$0x1]
  %v244 = vld [vmem:[%s0 + $0x6c1] sm:$0x1]
  %v245 = vld [vmem:[%s0 + $0x6d1] sm:$0x1]
  %v246 = vld [vmem:[%s0 + $0x6e1] sm:$0x1]
  %v247 = vld [vmem:[%s0 + $0x6f1] sm:$0x1]
  %v248 = vld [vmem:[%s0 + $0x701] sm:$0x1]
  %v249 = vld [vmem:[%s0 + $0x711] sm:$0x1]
  %v250 = vld [vmem:[%s0 + $0x721] sm:$0x1]
  %v251 = vld [vmem:[%s0 + $0x731] sm:$0x1]
  %v252 = vld [vmem:[%s0 + $0x741] sm:$0x1]
  %v253 = vld [vmem:[%s0 + $0x751] sm:$0x1]
  %v254 = vld [vmem:[%s0 + $0x761] sm:$0x1]
  %v255 = vld [vmem:[%s0 + $0x771] sm:$0x1]
  %v256 = vld [vmem:[%s0 + $0x781] sm:$0x1]
  %v257 = vld [vmem:[%s0 + $0x791] sm:$0x1]
  %v258 = vld [vmem:[%s0 + $0x7a1] sm:$0x1]
  %v259 = vld [vmem:[%s0 + $0x7b1] sm:$0x1]
  %v260 = vld [vmem:[%s0 + $0x7c1] sm:$0x1]
  %v261 = vld [vmem:[%s0 + $0x7d1] sm:$0x1]
  %v262 = vld [vmem:[%s0 + $0x7e1] sm:$0x1]
  %v263 = vld [vmem:[%s0 + $0x7f1] sm:$0x1]
  %v264 = vmax.f32 %v8, %v136
  %v265 = vmax.f32 %v9, %v137
  %v266 = vmax.f32 %v10, %v138
  %v267 = vmax.f32 %v11, %v139
  %v268 = vmax.f32 %v12, %v140
  %v269 = vmax.f32 %v13, %v141
  %v270 = vmax.f32 %v14, %v142
  %v271 = vmax.f32 %v15, %v143
  %v272 = vmax.f32 %v16, %v144
  %v273 = vmax.f32 %v17, %v145
  %v274 = vmax.f32 %v18, %v146
  %v275 = vmax.f32 %v19, %v147
  %v276 = vmax.f32 %v20, %v148
  %v277 = vmax.f32 %v21, %v149
  %v278 = vmax.f32 %v22, %v150
  %v279 = vmax.f32 %v23, %v151
  %v280 = vmax.f32 %v24, %v152
  %v281 = vmax.f32 %v25, %v153
  %v282 = vmax.f32 %v26, %v154
  %v283 = vmax.f32 %v27, %v155
  %v284 = vmax.f32 %v28, %v156
  %v285 = vmax.f32 %v29, %v157
  %v286 = vmax.f32 %v30, %v158
  %v287 = vmax.f32 %v31, %v159
  %v288 = vmax.f32 %v32, %v160
  %v289 = vmax.f32 %v33, %v161
  %v290 = vmax.f32 %v34, %v162
  %v291 = vmax.f32 %v35, %v163
  %v292 = vmax.f32 %v36, %v164
  %v293 = vmax.f32 %v37, %v165
  %v294 = vmax.f32 %v38, %v166
  %v295 = vmax.f32 %v39, %v167
  %v296 = vmax.f32 %v40, %v168
  %v297 = vmax.f32 %v41, %v169
  %v298 = vmax.f32 %v42, %v170
  %v299 = vmax.f32 %v43, %v171
  %v300 = vmax.f32 %v44, %v172
  %v301 = vmax.f32 %v45, %v173
  %v302 = vmax.f32 %v46, %v174
  %v303 = vmax.f32 %v47, %v175
  %v304 = vmax.f32 %v48, %v176
  %v305 = vmax.f32 %v49, %v177
  %v306 = vmax.f32 %v50, %v178
  %v307 = vmax.f32 %v51, %v179
  %v308 = vmax.f32 %v52, %v180
  %v309 = vmax.f32 %v53, %v181
  %v310 = vmax.f32 %v54, %v182
  %v311 = vmax.f32 %v55, %v183
  %v312 = vmax.f32 %v56, %v184
  %v313 = vmax.f32 %v57, %v185
  %v314 = vmax.f32 %v58, %v186
  %v315 = vmax.f32 %v59, %v187
  %v316 = vmax.f32 %v60, %v188
  %v317 = vmax.f32 %v61, %v189
  %v318 = vmax.f32 %v62, %v190
  %v319 = vmax.f32 %v63, %v191
  %v320 = vmax.f32 %v64, %v192
  %v321 = vmax.f32 %v65, %v193
  %v322 = vmax.f32 %v66, %v194
  %v323 = vmax.f32 %v67, %v195
  %v324 = vmax.f32 %v68, %v196
  %v325 = vmax.f32 %v69, %v197
  %v326 = vmax.f32 %v70, %v198
  %v327 = vmax.f32 %v71, %v199
  %v328 = vmax.f32 %v72, %v200
  %v329 = vmax.f32 %v73, %v201
  %v330 = vmax.f32 %v74, %v202
  %v331 = vmax.f32 %v75, %v203
  %v332 = vmax.f32 %v76, %v204
  %v333 = vmax.f32 %v77, %v205
  %v334 = vmax.f32 %v78, %v206
  %v335 = vmax.f32 %v79, %v207
  %v336 = vmax.f32 %v80, %v208
  %v337 = vmax.f32 %v81, %v209
  %v338 = vmax.f32 %v82, %v210
  %v339 = vmax.f32 %v83, %v211
  %v340 = vmax.f32 %v84, %v212
  %v341 = vmax.f32 %v85, %v213
  %v342 = vmax.f32 %v86, %v214
  %v343 = vmax.f32 %v87, %v215
  %v344 = vmax.f32 %v88, %v216
  %v345 = vmax.f32 %v89, %v217
  %v346 = vmax.f32 %v90, %v218
  %v347 = vmax.f32 %v91, %v219
  %v348 = vmax.f32 %v92, %v220
  %v349 = vmax.f32 %v93, %v221
  %v350 = vmax.f32 %v94, %v222
  %v351 = vmax.f32 %v95, %v223
  %v352 = vmax.f32 %v96, %v224
  %v353 = vmax.f32 %v97, %v225
  %v354 = vmax.f32 %v98, %v226
  %v355 = vmax.f32 %v99, %v227
  %v356 = vmax.f32 %v100, %v228
  %v357 = vmax.f32 %v101, %v229
  %v358 = vmax.f32 %v102, %v230
  %v359 = vmax.f32 %v103, %v231
  %v360 = vmax.f32 %v104, %v232
  %v361 = vmax.f32 %v105, %v233
  %v362 = vmax.f32 %v106, %v234
  %v363 = vmax.f32 %v107, %v235
  %v364 = vmax.f32 %v108, %v236
  %v365 = vmax.f32 %v109, %v237
  %v366 = vmax.f32 %v110, %v238
  %v367 = vmax.f32 %v111, %v239
  %v368 = vmax.f32 %v112, %v240
  %v369 = vmax.f32 %v113, %v241
  %v370 = vmax.f32 %v114, %v242
  %v371 = vmax.f32 %v115, %v243
  %v372 = vmax.f32 %v116, %v244
  %v373 = vmax.f32 %v117, %v245
  %v374 = vmax.f32 %v118, %v246
  %v375 = vmax.f32 %v119, %v247
  %v376 = vmax.f32 %v120, %v248
  %v377 = vmax.f32 %v121, %v249
  %v378 = vmax.f32 %v122, %v250
  %v379 = vmax.f32 %v123, %v251
  %v380 = vmax.f32 %v124, %v252
  %v381 = vmax.f32 %v125, %v253
  %v382 = vmax.f32 %v126, %v254
  %v383 = vmax.f32 %v127, %v255
  %v384 = vmax.f32 %v128, %v256
  %v385 = vmax.f32 %v129, %v257
  %v386 = vmax.f32 %v130, %v258
  %v387 = vmax.f32 %v131, %v259
  %v388 = vmax.f32 %v132, %v260
  %v389 = vmax.f32 %v133, %v261
  %v390 = vmax.f32 %v134, %v262
  %v391 = vmax.f32 %v135, %v263
  %v392 = vld [vmem:[%s0 + $0x2] sm:$0x1]
  %v393 = vld [vmem:[%s0 + $0x12] sm:$0x1]
  %v394 = vld [vmem:[%s0 + $0x22] sm:$0x1]
  %v395 = vld [vmem:[%s0 + $0x32] sm:$0x1]
  %v396 = vld [vmem:[%s0 + $0x42] sm:$0x1]
  %v397 = vld [vmem:[%s0 + $0x52] sm:$0x1]
  %v398 = vld [vmem:[%s0 + $0x62] sm:$0x1]
  %v399 = vld [vmem:[%s0 + $0x72] sm:$0x1]
  %v400 = vld [vmem:[%s0 + $0x82] sm:$0x1]
  %v401 = vld [vmem:[%s0 + $0x92] sm:$0x1]
  %v402 = vld [vmem:[%s0 + $0xa2] sm:$0x1]
  %v403 = vld [vmem:[%s0 + $0xb2] sm:$0x1]
  %v404 = vld [vmem:[%s0 + $0xc2] sm:$0x1]
  %v405 = vld [vmem:[%s0 + $0xd2] sm:$0x1]
  %v406 = vld [vmem:[%s0 + $0xe2] sm:$0x1]
  %v407 = vld [vmem:[%s0 + $0xf2] sm:$0x1]
  %v408 = vld [vmem:[%s0 + $0x102] sm:$0x1]
  %v409 = vld [vmem:[%s0 + $0x112] sm:$0x1]
  %v410 = vld [vmem:[%s0 + $0x122] sm:$0x1]
  %v411 = vld [vmem:[%s0 + $0x132] sm:$0x1]
  %v412 = vld [vmem:[%s0 + $0x142] sm:$0x1]
  %v413 = vld [vmem:[%s0 + $0x152] sm:$0x1]
  %v414 = vld [vmem:[%s0 + $0x162] sm:$0x1]
  %v415 = vld [vmem:[%s0 + $0x172] sm:$0x1]
  %v416 = vld [vmem:[%s0 + $0x182] sm:$0x1]
  %v417 = vld [vmem:[%s0 + $0x192] sm:$0x1]
  %v418 = vld [vmem:[%s0 + $0x1a2] sm:$0x1]
  %v419 = vld [vmem:[%s0 + $0x1b2] sm:$0x1]
  %v420 = vld [vmem:[%s0 + $0x1c2] sm:$0x1]
  %v421 = vld [vmem:[%s0 + $0x1d2] sm:$0x1]
  %v422 = vld [vmem:[%s0 + $0x1e2] sm:$0x1]
  %v423 = vld [vmem:[%s0 + $0x1f2] sm:$0x1]
  %v424 = vld [vmem:[%s0 + $0x202] sm:$0x1]
  %v425 = vld [vmem:[%s0 + $0x212] sm:$0x1]
  %v426 = vld [vmem:[%s0 + $0x222] sm:$0x1]
  %v427 = vld [vmem:[%s0 + $0x232] sm:$0x1]
  %v428 = vld [vmem:[%s0 + $0x242] sm:$0x1]
  %v429 = vld [vmem:[%s0 + $0x252] sm:$0x1]
  %v430 = vld [vmem:[%s0 + $0x262] sm:$0x1]
  %v431 = vld [vmem:[%s0 + $0x272] sm:$0x1]
  %v432 = vld [vmem:[%s0 + $0x282] sm:$0x1]
  %v433 = vld [vmem:[%s0 + $0x292] sm:$0x1]
  %v434 = vld [vmem:[%s0 + $0x2a2] sm:$0x1]
  %v435 = vld [vmem:[%s0 + $0x2b2] sm:$0x1]
  %v436 = vld [vmem:[%s0 + $0x2c2] sm:$0x1]
  %v437 = vld [vmem:[%s0 + $0x2d2] sm:$0x1]
  %v438 = vld [vmem:[%s0 + $0x2e2] sm:$0x1]
  %v439 = vld [vmem:[%s0 + $0x2f2] sm:$0x1]
  %v440 = vld [vmem:[%s0 + $0x302] sm:$0x1]
  %v441 = vld [vmem:[%s0 + $0x312] sm:$0x1]
  %v442 = vld [vmem:[%s0 + $0x322] sm:$0x1]
  %v443 = vld [vmem:[%s0 + $0x332] sm:$0x1]
  %v444 = vld [vmem:[%s0 + $0x342] sm:$0x1]
  %v445 = vld [vmem:[%s0 + $0x352] sm:$0x1]
  %v446 = vld [vmem:[%s0 + $0x362] sm:$0x1]
  %v447 = vld [vmem:[%s0 + $0x372] sm:$0x1]
  %v448 = vld [vmem:[%s0 + $0x382] sm:$0x1]
  %v449 = vld [vmem:[%s0 + $0x392] sm:$0x1]
  %v450 = vld [vmem:[%s0 + $0x3a2] sm:$0x1]
  %v451 = vld [vmem:[%s0 + $0x3b2] sm:$0x1]
  %v452 = vld [vmem:[%s0 + $0x3c2] sm:$0x1]
  %v453 = vld [vmem:[%s0 + $0x3d2] sm:$0x1]
  %v454 = vld [vmem:[%s0 + $0x3e2] sm:$0x1]
  %v455 = vld [vmem:[%s0 + $0x3f2] sm:$0x1]
  %v456 = vld [vmem:[%s0 + $0x402] sm:$0x1]
  %v457 = vld [vmem:[%s0 + $0x412] sm:$0x1]
  %v458 = vld [vmem:[%s0 + $0x422] sm:$0x1]
  %v459 = vld [vmem:[%s0 + $0x432] sm:$0x1]
  %v460 = vld [vmem:[%s0 + $0x442] sm:$0x1]
  %v461 = vld [vmem:[%s0 + $0x452] sm:$0x1]
  %v462 = vld [vmem:[%s0 + $0x462] sm:$0x1]
  %v463 = vld [vmem:[%s0 + $0x472] sm:$0x1]
  %v464 = vld [vmem:[%s0 + $0x482] sm:$0x1]
  %v465 = vld [vmem:[%s0 + $0x492] sm:$0x1]
  %v466 = vld [vmem:[%s0 + $0x4a2] sm:$0x1]
  %v467 = vld [vmem:[%s0 + $0x4b2] sm:$0x1]
  %v468 = vld [vmem:[%s0 + $0x4c2] sm:$0x1]
  %v469 = vld [vmem:[%s0 + $0x4d2] sm:$0x1]
  %v470 = vld [vmem:[%s0 + $0x4e2] sm:$0x1]
  %v471 = vld [vmem:[%s0 + $0x4f2] sm:$0x1]
  %v472 = vld [vmem:[%s0 + $0x502] sm:$0x1]
  %v473 = vld [vmem:[%s0 + $0x512] sm:$0x1]
  %v474 = vld [vmem:[%s0 + $0x522] sm:$0x1]
  %v475 = vld [vmem:[%s0 + $0x532] sm:$0x1]
  %v476 = vld [vmem:[%s0 + $0x542] sm:$0x1]
  %v477 = vld [vmem:[%s0 + $0x552] sm:$0x1]
  %v478 = vld [vmem:[%s0 + $0x562] sm:$0x1]
  %v479 = vld [vmem:[%s0 + $0x572] sm:$0x1]
  %v480 = vld [vmem:[%s0 + $0x582] sm:$0x1]
  %v481 = vld [vmem:[%s0 + $0x592] sm:$0x1]
  %v482 = vld [vmem:[%s0 + $0x5a2] sm:$0x1]
  %v483 = vld [vmem:[%s0 + $0x5b2] sm:$0x1]
  %v484 = vld [vmem:[%s0 + $0x5c2] sm:$0x1]
  %v485 = vld [vmem:[%s0 + $0x5d2] sm:$0x1]
  %v486 = vld [vmem:[%s0 + $0x5e2] sm:$0x1]
  %v487 = vld [vmem:[%s0 + $0x5f2] sm:$0x1]
  %v488 = vld [vmem:[%s0 + $0x602] sm:$0x1]
  %v489 = vld [vmem:[%s0 + $0x612] sm:$0x1]
  %v490 = vld [vmem:[%s0 + $0x622] sm:$0x1]
  %v491 = vld [vmem:[%s0 + $0x632] sm:$0x1]
  %v492 = vld [vmem:[%s0 + $0x642] sm:$0x1]
  %v493 = vld [vmem:[%s0 + $0x652] sm:$0x1]
  %v494 = vld [vmem:[%s0 + $0x662] sm:$0x1]
  %v495 = vld [vmem:[%s0 + $0x672] sm:$0x1]
  %v496 = vld [vmem:[%s0 + $0x682] sm:$0x1]
  %v497 = vld [vmem:[%s0 + $0x692] sm:$0x1]
  %v498 = vld [vmem:[%s0 + $0x6a2] sm:$0x1]
  %v499 = vld [vmem:[%s0 + $0x6b2] sm:$0x1]
  %v500 = vld [vmem:[%s0 + $0x6c2] sm:$0x1]
  %v501 = vld [vmem:[%s0 + $0x6d2] sm:$0x1]
  %v502 = vld [vmem:[%s0 + $0x6e2] sm:$0x1]
  %v503 = vld [vmem:[%s0 + $0x6f2] sm:$0x1]
  %v504 = vld [vmem:[%s0 + $0x702] sm:$0x1]
  %v505 = vld [vmem:[%s0 + $0x712] sm:$0x1]
  %v506 = vld [vmem:[%s0 + $0x722] sm:$0x1]
  %v507 = vld [vmem:[%s0 + $0x732] sm:$0x1]
  %v508 = vld [vmem:[%s0 + $0x742] sm:$0x1]
  %v509 = vld [vmem:[%s0 + $0x752] sm:$0x1]
  %v510 = vld [vmem:[%s0 + $0x762] sm:$0x1]
  %v511 = vld [vmem:[%s0 + $0x772] sm:$0x1]
  %v512 = vld [vmem:[%s0 + $0x782] sm:$0x1]
  %v513 = vld [vmem:[%s0 + $0x792] sm:$0x1]
  %v514 = vld [vmem:[%s0 + $0x7a2] sm:$0x1]
  %v515 = vld [vmem:[%s0 + $0x7b2] sm:$0x1]
  %v516 = vld [vmem:[%s0 + $0x7c2] sm:$0x1]
  %v517 = vld [vmem:[%s0 + $0x7d2] sm:$0x1]
  %v518 = vld [vmem:[%s0 + $0x7e2] sm:$0x1]
  %v519 = vld [vmem:[%s0 + $0x7f2] sm:$0x1]
  %v520 = vmax.f32 %v264, %v392
  %v521 = vmax.f32 %v265, %v393
  %v522 = vmax.f32 %v266, %v394
  %v523 = vmax.f32 %v267, %v395
  %v524 = vmax.f32 %v268, %v396
  %v525 = vmax.f32 %v269, %v397
  %v526 = vmax.f32 %v270, %v398
  %v527 = vmax.f32 %v271, %v399
  %v528 = vmax.f32 %v272, %v400
  %v529 = vmax.f32 %v273, %v401
  %v530 = vmax.f32 %v274, %v402
  %v531 = vmax.f32 %v275, %v403
  %v532 = vmax.f32 %v276, %v404
  %v533 = vmax.f32 %v277, %v405
  %v534 = vmax.f32 %v278, %v406
  %v535 = vmax.f32 %v279, %v407
  %v536 = vmax.f32 %v280, %v408
  %v537 = vmax.f32 %v281, %v409
  %v538 = vmax.f32 %v282, %v410
  %v539 = vmax.f32 %v283, %v411
  %v540 = vmax.f32 %v284, %v412
  %v541 = vmax.f32 %v285, %v413
  %v542 = vmax.f32 %v286, %v414
  %v543 = vmax.f32 %v287, %v415
  %v544 = vmax.f32 %v288, %v416
  %v545 = vmax.f32 %v289, %v417
  %v546 = vmax.f32 %v290, %v418
  %v547 = vmax.f32 %v291, %v419
  %v548 = vmax.f32 %v292, %v420
  %v549 = vmax.f32 %v293, %v421
  %v550 = vmax.f32 %v294, %v422
  %v551 = vmax.f32 %v295, %v423
  %v552 = vmax.f32 %v296, %v424
  %v553 = vmax.f32 %v297, %v425
  %v554 = vmax.f32 %v298, %v426
  %v555 = vmax.f32 %v299, %v427
  %v556 = vmax.f32 %v300, %v428
  %v557 = vmax.f32 %v301, %v429
  %v558 = vmax.f32 %v302, %v430
  %v559 = vmax.f32 %v303, %v431
  %v560 = vmax.f32 %v304, %v432
  %v561 = vmax.f32 %v305, %v433
  %v562 = vmax.f32 %v306, %v434
  %v563 = vmax.f32 %v307, %v435
  %v564 = vmax.f32 %v308, %v436
  %v565 = vmax.f32 %v309, %v437
  %v566 = vmax.f32 %v310, %v438
  %v567 = vmax.f32 %v311, %v439
  %v568 = vmax.f32 %v312, %v440
  %v569 = vmax.f32 %v313, %v441
  %v570 = vmax.f32 %v314, %v442
  %v571 = vmax.f32 %v315, %v443
  %v572 = vmax.f32 %v316, %v444
  %v573 = vmax.f32 %v317, %v445
  %v574 = vmax.f32 %v318, %v446
  %v575 = vmax.f32 %v319, %v447
  %v576 = vmax.f32 %v320, %v448
  %v577 = vmax.f32 %v321, %v449
  %v578 = vmax.f32 %v322, %v450
  %v579 = vmax.f32 %v323, %v451
  %v580 = vmax.f32 %v324, %v452
  %v581 = vmax.f32 %v325, %v453
  %v582 = vmax.f32 %v326, %v454
  %v583 = vmax.f32 %v327, %v455
  %v584 = vmax.f32 %v328, %v456
  %v585 = vmax.f32 %v329, %v457
  %v586 = vmax.f32 %v330, %v458
  %v587 = vmax.f32 %v331, %v459
  %v588 = vmax.f32 %v332, %v460
  %v589 = vmax.f32 %v333, %v461
  %v590 = vmax.f32 %v334, %v462
  %v591 = vmax.f32 %v335, %v463
  %v592 = vmax.f32 %v336, %v464
  %v593 = vmax.f32 %v337, %v465
  %v594 = vmax.f32 %v338, %v466
  %v595 = vmax.f32 %v339, %v467
  %v596 = vmax.f32 %v340, %v468
  %v597 = vmax.f32 %v341, %v469
  %v598 = vmax.f32 %v342, %v470
  %v599 = vmax.f32 %v343, %v471
  %v600 = vmax.f32 %v344, %v472
  %v601 = vmax.f32 %v345, %v473
  %v602 = vmax.f32 %v346, %v474
  %v603 = vmax.f32 %v347, %v475
  %v604 = vmax.f32 %v348, %v476
  %v605 = vmax.f32 %v349, %v477
  %v606 = vmax.f32 %v350, %v478
  %v607 = vmax.f32 %v351, %v479
  %v608 = vmax.f32 %v352, %v480
  %v609 = vmax.f32 %v353, %v481
  %v610 = vmax.f32 %v354, %v482
  %v611 = vmax.f32 %v355, %v483
  %v612 = vmax.f32 %v356, %v484
  %v613 = vmax.f32 %v357, %v485
  %v614 = vmax.f32 %v358, %v486
  %v615 = vmax.f32 %v359, %v487
  %v616 = vmax.f32 %v360, %v488
  %v617 = vmax.f32 %v361, %v489
  %v618 = vmax.f32 %v362, %v490
  %v619 = vmax.f32 %v363, %v491
  %v620 = vmax.f32 %v364, %v492
  %v621 = vmax.f32 %v365, %v493
  %v622 = vmax.f32 %v366, %v494
  %v623 = vmax.f32 %v367, %v495
  %v624 = vmax.f32 %v368, %v496
  %v625 = vmax.f32 %v369, %v497
  %v626 = vmax.f32 %v370, %v498
  %v627 = vmax.f32 %v371, %v499
  %v628 = vmax.f32 %v372, %v500
  %v629 = vmax.f32 %v373, %v501
  %v630 = vmax.f32 %v374, %v502
  %v631 = vmax.f32 %v375, %v503
  %v632 = vmax.f32 %v376, %v504
  %v633 = vmax.f32 %v377, %v505
  %v634 = vmax.f32 %v378, %v506
  %v635 = vmax.f32 %v379, %v507
  %v636 = vmax.f32 %v380, %v508
  %v637 = vmax.f32 %v381, %v509
  %v638 = vmax.f32 %v382, %v510
  %v639 = vmax.f32 %v383, %v511
  %v640 = vmax.f32 %v384, %v512
  %v641 = vmax.f32 %v385, %v513
  %v642 = vmax.f32 %v386, %v514
  %v643 = vmax.f32 %v387, %v515
  %v644 = vmax.f32 %v388, %v516
  %v645 = vmax.f32 %v389, %v517
  %v646 = vmax.f32 %v390, %v518
  %v647 = vmax.f32 %v391, %v519
  %v648 = vld [vmem:[%s0 + $0x3] sm:$0x1]
  %v649 = vld [vmem:[%s0 + $0x13] sm:$0x1]
  %v650 = vld [vmem:[%s0 + $0x23] sm:$0x1]
  %v651 = vld [vmem:[%s0 + $0x33] sm:$0x1]
  %v652 = vld [vmem:[%s0 + $0x43] sm:$0x1]
  %v653 = vld [vmem:[%s0 + $0x53] sm:$0x1]
  %v654 = vld [vmem:[%s0 + $0x63] sm:$0x1]
  %v655 = vld [vmem:[%s0 + $0x73] sm:$0x1]
  %v656 = vld [vmem:[%s0 + $0x83] sm:$0x1]
  %v657 = vld [vmem:[%s0 + $0x93] sm:$0x1]
  %v658 = vld [vmem:[%s0 + $0xa3] sm:$0x1]
  %v659 = vld [vmem:[%s0 + $0xb3] sm:$0x1]
  %v660 = vld [vmem:[%s0 + $0xc3] sm:$0x1]
  %v661 = vld [vmem:[%s0 + $0xd3] sm:$0x1]
  %v662 = vld [vmem:[%s0 + $0xe3] sm:$0x1]
  %v663 = vld [vmem:[%s0 + $0xf3] sm:$0x1]
  %v664 = vld [vmem:[%s0 + $0x103] sm:$0x1]
  %v665 = vld [vmem:[%s0 + $0x113] sm:$0x1]
  %v666 = vld [vmem:[%s0 + $0x123] sm:$0x1]
  %v667 = vld [vmem:[%s0 + $0x133] sm:$0x1]
  %v668 = vld [vmem:[%s0 + $0x143] sm:$0x1]
  %v669 = vld [vmem:[%s0 + $0x153] sm:$0x1]
  %v670 = vld [vmem:[%s0 + $0x163] sm:$0x1]
  %v671 = vld [vmem:[%s0 + $0x173] sm:$0x1]
  %v672 = vld [vmem:[%s0 + $0x183] sm:$0x1]
  %v673 = vld [vmem:[%s0 + $0x193] sm:$0x1]
  %v674 = vld [vmem:[%s0 + $0x1a3] sm:$0x1]
  %v675 = vld [vmem:[%s0 + $0x1b3] sm:$0x1]
  %v676 = vld [vmem:[%s0 + $0x1c3] sm:$0x1]
  %v677 = vld [vmem:[%s0 + $0x1d3] sm:$0x1]
  %v678 = vld [vmem:[%s0 + $0x1e3] sm:$0x1]
  %v679 = vld [vmem:[%s0 + $0x1f3] sm:$0x1]
  %v680 = vld [vmem:[%s0 + $0x203] sm:$0x1]
  %v681 = vld [vmem:[%s0 + $0x213] sm:$0x1]
  %v682 = vld [vmem:[%s0 + $0x223] sm:$0x1]
  %v683 = vld [vmem:[%s0 + $0x233] sm:$0x1]
  %v684 = vld [vmem:[%s0 + $0x243] sm:$0x1]
  %v685 = vld [vmem:[%s0 + $0x253] sm:$0x1]
  %v686 = vld [vmem:[%s0 + $0x263] sm:$0x1]
  %v687 = vld [vmem:[%s0 + $0x273] sm:$0x1]
  %v688 = vld [vmem:[%s0 + $0x283] sm:$0x1]
  %v689 = vld [vmem:[%s0 + $0x293] sm:$0x1]
  %v690 = vld [vmem:[%s0 + $0x2a3] sm:$0x1]
  %v691 = vld [vmem:[%s0 + $0x2b3] sm:$0x1]
  %v692 = vld [vmem:[%s0 + $0x2c3] sm:$0x1]
  %v693 = vld [vmem:[%s0 + $0x2d3] sm:$0x1]
  %v694 = vld [vmem:[%s0 + $0x2e3] sm:$0x1]
  %v695 = vld [vmem:[%s0 + $0x2f3] sm:$0x1]
  %v696 = vld [vmem:[%s0 + $0x303] sm:$0x1]
  %v697 = vld [vmem:[%s0 + $0x313] sm:$0x1]
  %v698 = vld [vmem:[%s0 + $0x323] sm:$0x1]
  %v699 = vld [vmem:[%s0 + $0x333] sm:$0x1]
  %v700 = vld [vmem:[%s0 + $0x343] sm:$0x1]
  %v701 = vld [vmem:[%s0 + $0x353] sm:$0x1]
  %v702 = vld [vmem:[%s0 + $0x363] sm:$0x1]
  %v703 = vld [vmem:[%s0 + $0x373] sm:$0x1]
  %v704 = vld [vmem:[%s0 + $0x383] sm:$0x1]
  %v705 = vld [vmem:[%s0 + $0x393] sm:$0x1]
  %v706 = vld [vmem:[%s0 + $0x3a3] sm:$0x1]
  %v707 = vld [vmem:[%s0 + $0x3b3] sm:$0x1]
  %v708 = vld [vmem:[%s0 + $0x3c3] sm:$0x1]
  %v709 = vld [vmem:[%s0 + $0x3d3] sm:$0x1]
  %v710 = vld [vmem:[%s0 + $0x3e3] sm:$0x1]
  %v711 = vld [vmem:[%s0 + $0x3f3] sm:$0x1]
  %v712 = vld [vmem:[%s0 + $0x403] sm:$0x1]
  %v713 = vld [vmem:[%s0 + $0x413] sm:$0x1]
  %v714 = vld [vmem:[%s0 + $0x423] sm:$0x1]
  %v715 = vld [vmem:[%s0 + $0x433] sm:$0x1]
  %v716 = vld [vmem:[%s0 + $0x443] sm:$0x1]
  %v717 = vld [vmem:[%s0 + $0x453] sm:$0x1]
  %v718 = vld [vmem:[%s0 + $0x463] sm:$0x1]
  %v719 = vld [vmem:[%s0 + $0x473] sm:$0x1]
  %v720 = vld [vmem:[%s0 + $0x483] sm:$0x1]
  %v721 = vld [vmem:[%s0 + $0x493] sm:$0x1]
  %v722 = vld [vmem:[%s0 + $0x4a3] sm:$0x1]
  %v723 = vld [vmem:[%s0 + $0x4b3] sm:$0x1]
  %v724 = vld [vmem:[%s0 + $0x4c3] sm:$0x1]
  %v725 = vld [vmem:[%s0 + $0x4d3] sm:$0x1]
  %v726 = vld [vmem:[%s0 + $0x4e3] sm:$0x1]
  %v727 = vld [vmem:[%s0 + $0x4f3] sm:$0x1]
  %v728 = vld [vmem:[%s0 + $0x503] sm:$0x1]
  %v729 = vld [vmem:[%s0 + $0x513] sm:$0x1]
  %v730 = vld [vmem:[%s0 + $0x523] sm:$0x1]
  %v731 = vld [vmem:[%s0 + $0x533] sm:$0x1]
  %v732 = vld [vmem:[%s0 + $0x543] sm:$0x1]
  %v733 = vld [vmem:[%s0 + $0x553] sm:$0x1]
  %v734 = vld [vmem:[%s0 + $0x563] sm:$0x1]
  %v735 = vld [vmem:[%s0 + $0x573] sm:$0x1]
  %v736 = vld [vmem:[%s0 + $0x583] sm:$0x1]
  %v737 = vld [vmem:[%s0 + $0x593] sm:$0x1]
  %v738 = vld [vmem:[%s0 + $0x5a3] sm:$0x1]
  %v739 = vld [vmem:[%s0 + $0x5b3] sm:$0x1]
  %v740 = vld [vmem:[%s0 + $0x5c3] sm:$0x1]
  %v741 = vld [vmem:[%s0 + $0x5d3] sm:$0x1]
  %v742 = vld [vmem:[%s0 + $0x5e3] sm:$0x1]
  %v743 = vld [vmem:[%s0 + $0x5f3] sm:$0x1]
  %v744 = vld [vmem:[%s0 + $0x603] sm:$0x1]
  %v745 = vld [vmem:[%s0 + $0x613] sm:$0x1]
  %v746 = vld [vmem:[%s0 + $0x623] sm:$0x1]
  %v747 = vld [vmem:[%s0 + $0x633] sm:$0x1]
  %v748 = vld [vmem:[%s0 + $0x643] sm:$0x1]
  %v749 = vld [vmem:[%s0 + $0x653] sm:$0x1]
  %v750 = vld [vmem:[%s0 + $0x663] sm:$0x1]
  %v751 = vld [vmem:[%s0 + $0x673] sm:$0x1]
  %v752 = vld [vmem:[%s0 + $0x683] sm:$0x1]
  %v753 = vld [vmem:[%s0 + $0x693] sm:$0x1]
  %v754 = vld [vmem:[%s0 + $0x6a3] sm:$0x1]
  %v755 = vld [vmem:[%s0 + $0x6b3] sm:$0x1]
  %v756 = vld [vmem:[%s0 + $0x6c3] sm:$0x1]
  %v757 = vld [vmem:[%s0 + $0x6d3] sm:$0x1]
  %v758 = vld [vmem:[%s0 + $0x6e3] sm:$0x1]
  %v759 = vld [vmem:[%s0 + $0x6f3] sm:$0x1]
  %v760 = vld [vmem:[%s0 + $0x703] sm:$0x1]
  %v761 = vld [vmem:[%s0 + $0x713] sm:$0x1]
  %v762 = vld [vmem:[%s0 + $0x723] sm:$0x1]
  %v763 = vld [vmem:[%s0 + $0x733] sm:$0x1]
  %v764 = vld [vmem:[%s0 + $0x743] sm:$0x1]
  %v765 = vld [vmem:[%s0 + $0x753] sm:$0x1]
  %v766 = vld [vmem:[%s0 + $0x763] sm:$0x1]
  %v767 = vld [vmem:[%s0 + $0x773] sm:$0x1]
  %v768 = vld [vmem:[%s0 + $0x783] sm:$0x1]
  %v769 = vld [vmem:[%s0 + $0x793] sm:$0x1]
  %v770 = vld [vmem:[%s0 + $0x7a3] sm:$0x1]
  %v771 = vld [vmem:[%s0 + $0x7b3] sm:$0x1]
  %v772 = vld [vmem:[%s0 + $0x7c3] sm:$0x1]
  %v773 = vld [vmem:[%s0 + $0x7d3] sm:$0x1]
  %v774 = vld [vmem:[%s0 + $0x7e3] sm:$0x1]
  %v775 = vld [vmem:[%s0 + $0x7f3] sm:$0x1]
  %v776 = vmax.f32 %v520, %v648
  %v777 = vmax.f32 %v521, %v649
  %v778 = vmax.f32 %v522, %v650
  %v779 = vmax.f32 %v523, %v651
  %v780 = vmax.f32 %v524, %v652
  %v781 = vmax.f32 %v525, %v653
  %v782 = vmax.f32 %v526, %v654
  %v783 = vmax.f32 %v527, %v655
  %v784 = vmax.f32 %v528, %v656
  %v785 = vmax.f32 %v529, %v657
  %v786 = vmax.f32 %v530, %v658
  %v787 = vmax.f32 %v531, %v659
  %v788 = vmax.f32 %v532, %v660
  %v789 = vmax.f32 %v533, %v661
  %v790 = vmax.f32 %v534, %v662
  %v791 = vmax.f32 %v535, %v663
  %v792 = vmax.f32 %v536, %v664
  %v793 = vmax.f32 %v537, %v665
  %v794 = vmax.f32 %v538, %v666
  %v795 = vmax.f32 %v539, %v667
  %v796 = vmax.f32 %v540, %v668
  %v797 = vmax.f32 %v541, %v669
  %v798 = vmax.f32 %v542, %v670
  %v799 = vmax.f32 %v543, %v671
  %v800 = vmax.f32 %v544, %v672
  %v801 = vmax.f32 %v545, %v673
  %v802 = vmax.f32 %v546, %v674
  %v803 = vmax.f32 %v547, %v675
  %v804 = vmax.f32 %v548, %v676
  %v805 = vmax.f32 %v549, %v677
  %v806 = vmax.f32 %v550, %v678
  %v807 = vmax.f32 %v551, %v679
  %v808 = vmax.f32 %v552, %v680
  %v809 = vmax.f32 %v553, %v681
  %v810 = vmax.f32 %v554, %v682
  %v811 = vmax.f32 %v555, %v683
  %v812 = vmax.f32 %v556, %v684
  %v813 = vmax.f32 %v557, %v685
  %v814 = vmax.f32 %v558, %v686
  %v815 = vmax.f32 %v559, %v687
  %v816 = vmax.f32 %v560, %v688
  %v817 = vmax.f32 %v561, %v689
  %v818 = vmax.f32 %v562, %v690
  %v819 = vmax.f32 %v563, %v691
  %v820 = vmax.f32 %v564, %v692
  %v821 = vmax.f32 %v565, %v693
  %v822 = vmax.f32 %v566, %v694
  %v823 = vmax.f32 %v567, %v695
  %v824 = vmax.f32 %v568, %v696
  %v825 = vmax.f32 %v569, %v697
  %v826 = vmax.f32 %v570, %v698
  %v827 = vmax.f32 %v571, %v699
  %v828 = vmax.f32 %v572, %v700
  %v829 = vmax.f32 %v573, %v701
  %v830 = vmax.f32 %v574, %v702
  %v831 = vmax.f32 %v575, %v703
  %v832 = vmax.f32 %v576, %v704
  %v833 = vmax.f32 %v577, %v705
  %v834 = vmax.f32 %v578, %v706
  %v835 = vmax.f32 %v579, %v707
  %v836 = vmax.f32 %v580, %v708
  %v837 = vmax.f32 %v581, %v709
  %v838 = vmax.f32 %v582, %v710
  %v839 = vmax.f32 %v583, %v711
  %v840 = vmax.f32 %v584, %v712
  %v841 = vmax.f32 %v585, %v713
  %v842 = vmax.f32 %v586, %v714
  %v843 = vmax.f32 %v587, %v715
  %v844 = vmax.f32 %v588, %v716
  %v845 = vmax.f32 %v589, %v717
  %v846 = vmax.f32 %v590, %v718
  %v847 = vmax.f32 %v591, %v719
  %v848 = vmax.f32 %v592, %v720
  %v849 = vmax.f32 %v593, %v721
  %v850 = vmax.f32 %v594, %v722
  %v851 = vmax.f32 %v595, %v723
  %v852 = vmax.f32 %v596, %v724
  %v853 = vmax.f32 %v597, %v725
  %v854 = vmax.f32 %v598, %v726
  %v855 = vmax.f32 %v599, %v727
  %v856 = vmax.f32 %v600, %v728
  %v857 = vmax.f32 %v601, %v729
  %v858 = vmax.f32 %v602, %v730
  %v859 = vmax.f32 %v603, %v731
  %v860 = vmax.f32 %v604, %v732
  %v861 = vmax.f32 %v605, %v733
  %v862 = vmax.f32 %v606, %v734
  %v863 = vmax.f32 %v607, %v735
  %v864 = vmax.f32 %v608, %v736
  %v865 = vmax.f32 %v609, %v737
  %v866 = vmax.f32 %v610, %v738
  %v867 = vmax.f32 %v611, %v739
  %v868 = vmax.f32 %v612, %v740
  %v869 = vmax.f32 %v613, %v741
  %v870 = vmax.f32 %v614, %v742
  %v871 = vmax.f32 %v615, %v743
  %v872 = vmax.f32 %v616, %v744
  %v873 = vmax.f32 %v617, %v745
  %v874 = vmax.f32 %v618, %v746
  %v875 = vmax.f32 %v619, %v747
  %v876 = vmax.f32 %v620, %v748
  %v877 = vmax.f32 %v621, %v749
  %v878 = vmax.f32 %v622, %v750
  %v879 = vmax.f32 %v623, %v751
  %v880 = vmax.f32 %v624, %v752
  %v881 = vmax.f32 %v625, %v753
  %v882 = vmax.f32 %v626, %v754
  %v883 = vmax.f32 %v627, %v755
  %v884 = vmax.f32 %v628, %v756
  %v885 = vmax.f32 %v629, %v757
  %v886 = vmax.f32 %v630, %v758
  %v887 = vmax.f32 %v631, %v759
  %v888 = vmax.f32 %v632, %v760
  %v889 = vmax.f32 %v633, %v761
  %v890 = vmax.f32 %v634, %v762
  %v891 = vmax.f32 %v635, %v763
  %v892 = vmax.f32 %v636, %v764
  %v893 = vmax.f32 %v637, %v765
  %v894 = vmax.f32 %v638, %v766
  %v895 = vmax.f32 %v639, %v767
  %v896 = vmax.f32 %v640, %v768
  %v897 = vmax.f32 %v641, %v769
  %v898 = vmax.f32 %v642, %v770
  %v899 = vmax.f32 %v643, %v771
  %v900 = vmax.f32 %v644, %v772
  %v901 = vmax.f32 %v645, %v773
  %v902 = vmax.f32 %v646, %v774
  %v903 = vmax.f32 %v647, %v775
  %v904 = vld [vmem:[%s0 + $0x4] sm:$0x1]
  %v905 = vld [vmem:[%s0 + $0x14] sm:$0x1]
  %v906 = vld [vmem:[%s0 + $0x24] sm:$0x1]
  %v907 = vld [vmem:[%s0 + $0x34] sm:$0x1]
  %v908 = vld [vmem:[%s0 + $0x44] sm:$0x1]
  %v909 = vld [vmem:[%s0 + $0x54] sm:$0x1]
  %v910 = vld [vmem:[%s0 + $0x64] sm:$0x1]
  %v911 = vld [vmem:[%s0 + $0x74] sm:$0x1]
  %v912 = vld [vmem:[%s0 + $0x84] sm:$0x1]
  %v913 = vld [vmem:[%s0 + $0x94] sm:$0x1]
  %v914 = vld [vmem:[%s0 + $0xa4] sm:$0x1]
  %v915 = vld [vmem:[%s0 + $0xb4] sm:$0x1]
  %v916 = vld [vmem:[%s0 + $0xc4] sm:$0x1]
  %v917 = vld [vmem:[%s0 + $0xd4] sm:$0x1]
  %v918 = vld [vmem:[%s0 + $0xe4] sm:$0x1]
  %v919 = vld [vmem:[%s0 + $0xf4] sm:$0x1]
  %v920 = vld [vmem:[%s0 + $0x104] sm:$0x1]
  %v921 = vld [vmem:[%s0 + $0x114] sm:$0x1]
  %v922 = vld [vmem:[%s0 + $0x124] sm:$0x1]
  %v923 = vld [vmem:[%s0 + $0x134] sm:$0x1]
  %v924 = vld [vmem:[%s0 + $0x144] sm:$0x1]
  %v925 = vld [vmem:[%s0 + $0x154] sm:$0x1]
  %v926 = vld [vmem:[%s0 + $0x164] sm:$0x1]
  %v927 = vld [vmem:[%s0 + $0x174] sm:$0x1]
  %v928 = vld [vmem:[%s0 + $0x184] sm:$0x1]
  %v929 = vld [vmem:[%s0 + $0x194] sm:$0x1]
  %v930 = vld [vmem:[%s0 + $0x1a4] sm:$0x1]
  %v931 = vld [vmem:[%s0 + $0x1b4] sm:$0x1]
  %v932 = vld [vmem:[%s0 + $0x1c4] sm:$0x1]
  %v933 = vld [vmem:[%s0 + $0x1d4] sm:$0x1]
  %v934 = vld [vmem:[%s0 + $0x1e4] sm:$0x1]
  %v935 = vld [vmem:[%s0 + $0x1f4] sm:$0x1]
  %v936 = vld [vmem:[%s0 + $0x204] sm:$0x1]
  %v937 = vld [vmem:[%s0 + $0x214] sm:$0x1]
  %v938 = vld [vmem:[%s0 + $0x224] sm:$0x1]
  %v939 = vld [vmem:[%s0 + $0x234] sm:$0x1]
  %v940 = vld [vmem:[%s0 + $0x244] sm:$0x1]
  %v941 = vld [vmem:[%s0 + $0x254] sm:$0x1]
  %v942 = vld [vmem:[%s0 + $0x264] sm:$0x1]
  %v943 = vld [vmem:[%s0 + $0x274] sm:$0x1]
  %v944 = vld [vmem:[%s0 + $0x284] sm:$0x1]
  %v945 = vld [vmem:[%s0 + $0x294] sm:$0x1]
  %v946 = vld [vmem:[%s0 + $0x2a4] sm:$0x1]
  %v947 = vld [vmem:[%s0 + $0x2b4] sm:$0x1]
  %v948 = vld [vmem:[%s0 + $0x2c4] sm:$0x1]
  %v949 = vld [vmem:[%s0 + $0x2d4] sm:$0x1]
  %v950 = vld [vmem:[%s0 + $0x2e4] sm:$0x1]
  %v951 = vld [vmem:[%s0 + $0x2f4] sm:$0x1]
  %v952 = vld [vmem:[%s0 + $0x304] sm:$0x1]
  %v953 = vld [vmem:[%s0 + $0x314] sm:$0x1]
  %v954 = vld [vmem:[%s0 + $0x324] sm:$0x1]
  %v955 = vld [vmem:[%s0 + $0x334] sm:$0x1]
  %v956 = vld [vmem:[%s0 + $0x344] sm:$0x1]
  %v957 = vld [vmem:[%s0 + $0x354] sm:$0x1]
  %v958 = vld [vmem:[%s0 + $0x364] sm:$0x1]
  %v959 = vld [vmem:[%s0 + $0x374] sm:$0x1]
  %v960 = vld [vmem:[%s0 + $0x384] sm:$0x1]
  %v961 = vld [vmem:[%s0 + $0x394] sm:$0x1]
  %v962 = vld [vmem:[%s0 + $0x3a4] sm:$0x1]
  %v963 = vld [vmem:[%s0 + $0x3b4] sm:$0x1]
  %v964 = vld [vmem:[%s0 + $0x3c4] sm:$0x1]
  %v965 = vld [vmem:[%s0 + $0x3d4] sm:$0x1]
  %v966 = vld [vmem:[%s0 + $0x3e4] sm:$0x1]
  %v967 = vld [vmem:[%s0 + $0x3f4] sm:$0x1]
  %v968 = vld [vmem:[%s0 + $0x404] sm:$0x1]
  %v969 = vld [vmem:[%s0 + $0x414] sm:$0x1]
  %v970 = vld [vmem:[%s0 + $0x424] sm:$0x1]
  %v971 = vld [vmem:[%s0 + $0x434] sm:$0x1]
  %v972 = vld [vmem:[%s0 + $0x444] sm:$0x1]
  %v973 = vld [vmem:[%s0 + $0x454] sm:$0x1]
  %v974 = vld [vmem:[%s0 + $0x464] sm:$0x1]
  %v975 = vld [vmem:[%s0 + $0x474] sm:$0x1]
  %v976 = vld [vmem:[%s0 + $0x484] sm:$0x1]
  %v977 = vld [vmem:[%s0 + $0x494] sm:$0x1]
  %v978 = vld [vmem:[%s0 + $0x4a4] sm:$0x1]
  %v979 = vld [vmem:[%s0 + $0x4b4] sm:$0x1]
  %v980 = vld [vmem:[%s0 + $0x4c4] sm:$0x1]
  %v981 = vld [vmem:[%s0 + $0x4d4] sm:$0x1]
  %v982 = vld [vmem:[%s0 + $0x4e4] sm:$0x1]
  %v983 = vld [vmem:[%s0 + $0x4f4] sm:$0x1]
  %v984 = vld [vmem:[%s0 + $0x504] sm:$0x1]
  %v985 = vld [vmem:[%s0 + $0x514] sm:$0x1]
  %v986 = vld [vmem:[%s0 + $0x524] sm:$0x1]
  %v987 = vld [vmem:[%s0 + $0x534] sm:$0x1]
  %v988 = vld [vmem:[%s0 + $0x544] sm:$0x1]
  %v989 = vld [vmem:[%s0 + $0x554] sm:$0x1]
  %v990 = vld [vmem:[%s0 + $0x564] sm:$0x1]
  %v991 = vld [vmem:[%s0 + $0x574] sm:$0x1]
  %v992 = vld [vmem:[%s0 + $0x584] sm:$0x1]
  %v993 = vld [vmem:[%s0 + $0x594] sm:$0x1]
  %v994 = vld [vmem:[%s0 + $0x5a4] sm:$0x1]
  %v995 = vld [vmem:[%s0 + $0x5b4] sm:$0x1]
  %v996 = vld [vmem:[%s0 + $0x5c4] sm:$0x1]
  %v997 = vld [vmem:[%s0 + $0x5d4] sm:$0x1]
  %v998 = vld [vmem:[%s0 + $0x5e4] sm:$0x1]
  %v999 = vld [vmem:[%s0 + $0x5f4] sm:$0x1]
  %v1000 = vld [vmem:[%s0 + $0x604] sm:$0x1]
  %v1001 = vld [vmem:[%s0 + $0x614] sm:$0x1]
  %v1002 = vld [vmem:[%s0 + $0x624] sm:$0x1]
  %v1003 = vld [vmem:[%s0 + $0x634] sm:$0x1]
  %v1004 = vld [vmem:[%s0 + $0x644] sm:$0x1]
  %v1005 = vld [vmem:[%s0 + $0x654] sm:$0x1]
  %v1006 = vld [vmem:[%s0 + $0x664] sm:$0x1]
  %v1007 = vld [vmem:[%s0 + $0x674] sm:$0x1]
  %v1008 = vld [vmem:[%s0 + $0x684] sm:$0x1]
  %v1009 = vld [vmem:[%s0 + $0x694] sm:$0x1]
  %v1010 = vld [vmem:[%s0 + $0x6a4] sm:$0x1]
  %v1011 = vld [vmem:[%s0 + $0x6b4] sm:$0x1]
  %v1012 = vld [vmem:[%s0 + $0x6c4] sm:$0x1]
  %v1013 = vld [vmem:[%s0 + $0x6d4] sm:$0x1]
  %v1014 = vld [vmem:[%s0 + $0x6e4] sm:$0x1]
  %v1015 = vld [vmem:[%s0 + $0x6f4] sm:$0x1]
  %v1016 = vld [vmem:[%s0 + $0x704] sm:$0x1]
  %v1017 = vld [vmem:[%s0 + $0x714] sm:$0x1]
  %v1018 = vld [vmem:[%s0 + $0x724] sm:$0x1]
  %v1019 = vld [vmem:[%s0 + $0x734] sm:$0x1]
  %v1020 = vld [vmem:[%s0 + $0x744] sm:$0x1]
  %v1021 = vld [vmem:[%s0 + $0x754] sm:$0x1]
  %v1022 = vld [vmem:[%s0 + $0x764] sm:$0x1]
  %v1023 = vld [vmem:[%s0 + $0x774] sm:$0x1]
  %v1024 = vld [vmem:[%s0 + $0x784] sm:$0x1]
  %v1025 = vld [vmem:[%s0 + $0x794] sm:$0x1]
  %v1026 = vld [vmem:[%s0 + $0x7a4] sm:$0x1]
  %v1027 = vld [vmem:[%s0 + $0x7b4] sm:$0x1]
  %v1028 = vld [vmem:[%s0 + $0x7c4] sm:$0x1]
  %v1029 = vld [vmem:[%s0 + $0x7d4] sm:$0x1]
  %v1030 = vld [vmem:[%s0 + $0x7e4] sm:$0x1]
  %v1031 = vld [vmem:[%s0 + $0x7f4] sm:$0x1]
  %v1032 = vmax.f32 %v776, %v904
  %v1033 = vmax.f32 %v777, %v905
  %v1034 = vmax.f32 %v778, %v906
  %v1035 = vmax.f32 %v779, %v907
  %v1036 = vmax.f32 %v780, %v908
  %v1037 = vmax.f32 %v781, %v909
  %v1038 = vmax.f32 %v782, %v910
  %v1039 = vmax.f32 %v783, %v911
  %v1040 = vmax.f32 %v784, %v912
  %v1041 = vmax.f32 %v785, %v913
  %v1042 = vmax.f32 %v786, %v914
  %v1043 = vmax.f32 %v787, %v915
  %v1044 = vmax.f32 %v788, %v916
  %v1045 = vmax.f32 %v789, %v917
  %v1046 = vmax.f32 %v790, %v918
  %v1047 = vmax.f32 %v791, %v919
  %v1048 = vmax.f32 %v792, %v920
  %v1049 = vmax.f32 %v793, %v921
  %v1050 = vmax.f32 %v794, %v922
  %v1051 = vmax.f32 %v795, %v923
  %v1052 = vmax.f32 %v796, %v924
  %v1053 = vmax.f32 %v797, %v925
  %v1054 = vmax.f32 %v798, %v926
  %v1055 = vmax.f32 %v799, %v927
  %v1056 = vmax.f32 %v800, %v928
  %v1057 = vmax.f32 %v801, %v929
  %v1058 = vmax.f32 %v802, %v930
  %v1059 = vmax.f32 %v803, %v931
  %v1060 = vmax.f32 %v804, %v932
  %v1061 = vmax.f32 %v805, %v933
  %v1062 = vmax.f32 %v806, %v934
  %v1063 = vmax.f32 %v807, %v935
  %v1064 = vmax.f32 %v808, %v936
  %v1065 = vmax.f32 %v809, %v937
  %v1066 = vmax.f32 %v810, %v938
  %v1067 = vmax.f32 %v811, %v939
  %v1068 = vmax.f32 %v812, %v940
  %v1069 = vmax.f32 %v813, %v941
  %v1070 = vmax.f32 %v814, %v942
  %v1071 = vmax.f32 %v815, %v943
  %v1072 = vmax.f32 %v816, %v944
  %v1073 = vmax.f32 %v817, %v945
  %v1074 = vmax.f32 %v818, %v946
  %v1075 = vmax.f32 %v819, %v947
  %v1076 = vmax.f32 %v820, %v948
  %v1077 = vmax.f32 %v821, %v949
  %v1078 = vmax.f32 %v822, %v950
  %v1079 = vmax.f32 %v823, %v951
  %v1080 = vmax.f32 %v824, %v952
  %v1081 = vmax.f32 %v825, %v953
  %v1082 = vmax.f32 %v826, %v954
  %v1083 = vmax.f32 %v827, %v955
  %v1084 = vmax.f32 %v828, %v956
  %v1085 = vmax.f32 %v829, %v957
  %v1086 = vmax.f32 %v830, %v958
  %v1087 = vmax.f32 %v831, %v959
  %v1088 = vmax.f32 %v832, %v960
  %v1089 = vmax.f32 %v833, %v961
  %v1090 = vmax.f32 %v834, %v962
  %v1091 = vmax.f32 %v835, %v963
  %v1092 = vmax.f32 %v836, %v964
  %v1093 = vmax.f32 %v837, %v965
  %v1094 = vmax.f32 %v838, %v966
  %v1095 = vmax.f32 %v839, %v967
  %v1096 = vmax.f32 %v840, %v968
  %v1097 = vmax.f32 %v841, %v969
  %v1098 = vmax.f32 %v842, %v970
  %v1099 = vmax.f32 %v843, %v971
  %v1100 = vmax.f32 %v844, %v972
  %v1101 = vmax.f32 %v845, %v973
  %v1102 = vmax.f32 %v846, %v974
  %v1103 = vmax.f32 %v847, %v975
  %v1104 = vmax.f32 %v848, %v976
  %v1105 = vmax.f32 %v849, %v977
  %v1106 = vmax.f32 %v850, %v978
  %v1107 = vmax.f32 %v851, %v979
  %v1108 = vmax.f32 %v852, %v980
  %v1109 = vmax.f32 %v853, %v981
  %v1110 = vmax.f32 %v854, %v982
  %v1111 = vmax.f32 %v855, %v983
  %v1112 = vmax.f32 %v856, %v984
  %v1113 = vmax.f32 %v857, %v985
  %v1114 = vmax.f32 %v858, %v986
  %v1115 = vmax.f32 %v859, %v987
  %v1116 = vmax.f32 %v860, %v988
  %v1117 = vmax.f32 %v861, %v989
  %v1118 = vmax.f32 %v862, %v990
  %v1119 = vmax.f32 %v863, %v991
  %v1120 = vmax.f32 %v864, %v992
  %v1121 = vmax.f32 %v865, %v993
  %v1122 = vmax.f32 %v866, %v994
  %v1123 = vmax.f32 %v867, %v995
  %v1124 = vmax.f32 %v868, %v996
  %v1125 = vmax.f32 %v869, %v997
  %v1126 = vmax.f32 %v870, %v998
  %v1127 = vmax.f32 %v871, %v999
  %v1128 = vmax.f32 %v872, %v1000
  %v1129 = vmax.f32 %v873, %v1001
  %v1130 = vmax.f32 %v874, %v1002
  %v1131 = vmax.f32 %v875, %v1003
  %v1132 = vmax.f32 %v876, %v1004
  %v1133 = vmax.f32 %v877, %v1005
  %v1134 = vmax.f32 %v878, %v1006
  %v1135 = vmax.f32 %v879, %v1007
  %v1136 = vmax.f32 %v880, %v1008
  %v1137 = vmax.f32 %v881, %v1009
  %v1138 = vmax.f32 %v882, %v1010
  %v1139 = vmax.f32 %v883, %v1011
  %v1140 = vmax.f32 %v884, %v1012
  %v1141 = vmax.f32 %v885, %v1013
  %v1142 = vmax.f32 %v886, %v1014
  %v1143 = vmax.f32 %v887, %v1015
  %v1144 = vmax.f32 %v888, %v1016
  %v1145 = vmax.f32 %v889, %v1017
  %v1146 = vmax.f32 %v890, %v1018
  %v1147 = vmax.f32 %v891, %v1019
  %v1148 = vmax.f32 %v892, %v1020
  %v1149 = vmax.f32 %v893, %v1021
  %v1150 = vmax.f32 %v894, %v1022
  %v1151 = vmax.f32 %v895, %v1023
  %v1152 = vmax.f32 %v896, %v1024
  %v1153 = vmax.f32 %v897, %v1025
  %v1154 = vmax.f32 %v898, %v1026
  %v1155 = vmax.f32 %v899, %v1027
  %v1156 = vmax.f32 %v900, %v1028
  %v1157 = vmax.f32 %v901, %v1029
  %v1158 = vmax.f32 %v902, %v1030
  %v1159 = vmax.f32 %v903, %v1031
  %v1160 = vld [vmem:[%s0 + $0x5] sm:$0x1]
  %v1161 = vld [vmem:[%s0 + $0x15] sm:$0x1]
  %v1162 = vld [vmem:[%s0 + $0x25] sm:$0x1]
  %v1163 = vld [vmem:[%s0 + $0x35] sm:$0x1]
  %v1164 = vld [vmem:[%s0 + $0x45] sm:$0x1]
  %v1165 = vld [vmem:[%s0 + $0x55] sm:$0x1]
  %v1166 = vld [vmem:[%s0 + $0x65] sm:$0x1]
  %v1167 = vld [vmem:[%s0 + $0x75] sm:$0x1]
  %v1168 = vld [vmem:[%s0 + $0x85] sm:$0x1]
  %v1169 = vld [vmem:[%s0 + $0x95] sm:$0x1]
  %v1170 = vld [vmem:[%s0 + $0xa5] sm:$0x1]
  %v1171 = vld [vmem:[%s0 + $0xb5] sm:$0x1]
  %v1172 = vld [vmem:[%s0 + $0xc5] sm:$0x1]
  %v1173 = vld [vmem:[%s0 + $0xd5] sm:$0x1]
  %v1174 = vld [vmem:[%s0 + $0xe5] sm:$0x1]
  %v1175 = vld [vmem:[%s0 + $0xf5] sm:$0x1]
  %v1176 = vld [vmem:[%s0 + $0x105] sm:$0x1]
  %v1177 = vld [vmem:[%s0 + $0x115] sm:$0x1]
  %v1178 = vld [vmem:[%s0 + $0x125] sm:$0x1]
  %v1179 = vld [vmem:[%s0 + $0x135] sm:$0x1]
  %v1180 = vld [vmem:[%s0 + $0x145] sm:$0x1]
  %v1181 = vld [vmem:[%s0 + $0x155] sm:$0x1]
  %v1182 = vld [vmem:[%s0 + $0x165] sm:$0x1]
  %v1183 = vld [vmem:[%s0 + $0x175] sm:$0x1]
  %v1184 = vld [vmem:[%s0 + $0x185] sm:$0x1]
  %v1185 = vld [vmem:[%s0 + $0x195] sm:$0x1]
  %v1186 = vld [vmem:[%s0 + $0x1a5] sm:$0x1]
  %v1187 = vld [vmem:[%s0 + $0x1b5] sm:$0x1]
  %v1188 = vld [vmem:[%s0 + $0x1c5] sm:$0x1]
  %v1189 = vld [vmem:[%s0 + $0x1d5] sm:$0x1]
  %v1190 = vld [vmem:[%s0 + $0x1e5] sm:$0x1]
  %v1191 = vld [vmem:[%s0 + $0x1f5] sm:$0x1]
  %v1192 = vld [vmem:[%s0 + $0x205] sm:$0x1]
  %v1193 = vld [vmem:[%s0 + $0x215] sm:$0x1]
  %v1194 = vld [vmem:[%s0 + $0x225] sm:$0x1]
  %v1195 = vld [vmem:[%s0 + $0x235] sm:$0x1]
  %v1196 = vld [vmem:[%s0 + $0x245] sm:$0x1]
  %v1197 = vld [vmem:[%s0 + $0x255] sm:$0x1]
  %v1198 = vld [vmem:[%s0 + $0x265] sm:$0x1]
  %v1199 = vld [vmem:[%s0 + $0x275] sm:$0x1]
  %v1200 = vld [vmem:[%s0 + $0x285] sm:$0x1]
  %v1201 = vld [vmem:[%s0 + $0x295] sm:$0x1]
  %v1202 = vld [vmem:[%s0 + $0x2a5] sm:$0x1]
  %v1203 = vld [vmem:[%s0 + $0x2b5] sm:$0x1]
  %v1204 = vld [vmem:[%s0 + $0x2c5] sm:$0x1]
  %v1205 = vld [vmem:[%s0 + $0x2d5] sm:$0x1]
  %v1206 = vld [vmem:[%s0 + $0x2e5] sm:$0x1]
  %v1207 = vld [vmem:[%s0 + $0x2f5] sm:$0x1]
  %v1208 = vld [vmem:[%s0 + $0x305] sm:$0x1]
  %v1209 = vld [vmem:[%s0 + $0x315] sm:$0x1]
  %v1210 = vld [vmem:[%s0 + $0x325] sm:$0x1]
  %v1211 = vld [vmem:[%s0 + $0x335] sm:$0x1]
  %v1212 = vld [vmem:[%s0 + $0x345] sm:$0x1]
  %v1213 = vld [vmem:[%s0 + $0x355] sm:$0x1]
  %v1214 = vld [vmem:[%s0 + $0x365] sm:$0x1]
  %v1215 = vld [vmem:[%s0 + $0x375] sm:$0x1]
  %v1216 = vld [vmem:[%s0 + $0x385] sm:$0x1]
  %v1217 = vld [vmem:[%s0 + $0x395] sm:$0x1]
  %v1218 = vld [vmem:[%s0 + $0x3a5] sm:$0x1]
  %v1219 = vld [vmem:[%s0 + $0x3b5] sm:$0x1]
  %v1220 = vld [vmem:[%s0 + $0x3c5] sm:$0x1]
  %v1221 = vld [vmem:[%s0 + $0x3d5] sm:$0x1]
  %v1222 = vld [vmem:[%s0 + $0x3e5] sm:$0x1]
  %v1223 = vld [vmem:[%s0 + $0x3f5] sm:$0x1]
  %v1224 = vld [vmem:[%s0 + $0x405] sm:$0x1]
  %v1225 = vld [vmem:[%s0 + $0x415] sm:$0x1]
  %v1226 = vld [vmem:[%s0 + $0x425] sm:$0x1]
  %v1227 = vld [vmem:[%s0 + $0x435] sm:$0x1]
  %v1228 = vld [vmem:[%s0 + $0x445] sm:$0x1]
  %v1229 = vld [vmem:[%s0 + $0x455] sm:$0x1]
  %v1230 = vld [vmem:[%s0 + $0x465] sm:$0x1]
  %v1231 = vld [vmem:[%s0 + $0x475] sm:$0x1]
  %v1232 = vld [vmem:[%s0 + $0x485] sm:$0x1]
  %v1233 = vld [vmem:[%s0 + $0x495] sm:$0x1]
  %v1234 = vld [vmem:[%s0 + $0x4a5] sm:$0x1]
  %v1235 = vld [vmem:[%s0 + $0x4b5] sm:$0x1]
  %v1236 = vld [vmem:[%s0 + $0x4c5] sm:$0x1]
  %v1237 = vld [vmem:[%s0 + $0x4d5] sm:$0x1]
  %v1238 = vld [vmem:[%s0 + $0x4e5] sm:$0x1]
  %v1239 = vld [vmem:[%s0 + $0x4f5] sm:$0x1]
  %v1240 = vld [vmem:[%s0 + $0x505] sm:$0x1]
  %v1241 = vld [vmem:[%s0 + $0x515] sm:$0x1]
  %v1242 = vld [vmem:[%s0 + $0x525] sm:$0x1]
  %v1243 = vld [vmem:[%s0 + $0x535] sm:$0x1]
  %v1244 = vld [vmem:[%s0 + $0x545] sm:$0x1]
  %v1245 = vld [vmem:[%s0 + $0x555] sm:$0x1]
  %v1246 = vld [vmem:[%s0 + $0x565] sm:$0x1]
  %v1247 = vld [vmem:[%s0 + $0x575] sm:$0x1]
  %v1248 = vld [vmem:[%s0 + $0x585] sm:$0x1]
  %v1249 = vld [vmem:[%s0 + $0x595] sm:$0x1]
  %v1250 = vld [vmem:[%s0 + $0x5a5] sm:$0x1]
  %v1251 = vld [vmem:[%s0 + $0x5b5] sm:$0x1]
  %v1252 = vld [vmem:[%s0 + $0x5c5] sm:$0x1]
  %v1253 = vld [vmem:[%s0 + $0x5d5] sm:$0x1]
  %v1254 = vld [vmem:[%s0 + $0x5e5] sm:$0x1]
  %v1255 = vld [vmem:[%s0 + $0x5f5] sm:$0x1]
  %v1256 = vld [vmem:[%s0 + $0x605] sm:$0x1]
  %v1257 = vld [vmem:[%s0 + $0x615] sm:$0x1]
  %v1258 = vld [vmem:[%s0 + $0x625] sm:$0x1]
  %v1259 = vld [vmem:[%s0 + $0x635] sm:$0x1]
  %v1260 = vld [vmem:[%s0 + $0x645] sm:$0x1]
  %v1261 = vld [vmem:[%s0 + $0x655] sm:$0x1]
  %v1262 = vld [vmem:[%s0 + $0x665] sm:$0x1]
  %v1263 = vld [vmem:[%s0 + $0x675] sm:$0x1]
  %v1264 = vld [vmem:[%s0 + $0x685] sm:$0x1]
  %v1265 = vld [vmem:[%s0 + $0x695] sm:$0x1]
  %v1266 = vld [vmem:[%s0 + $0x6a5] sm:$0x1]
  %v1267 = vld [vmem:[%s0 + $0x6b5] sm:$0x1]
  %v1268 = vld [vmem:[%s0 + $0x6c5] sm:$0x1]
  %v1269 = vld [vmem:[%s0 + $0x6d5] sm:$0x1]
  %v1270 = vld [vmem:[%s0 + $0x6e5] sm:$0x1]
  %v1271 = vld [vmem:[%s0 + $0x6f5] sm:$0x1]
  %v1272 = vld [vmem:[%s0 + $0x705] sm:$0x1]
  %v1273 = vld [vmem:[%s0 + $0x715] sm:$0x1]
  %v1274 = vld [vmem:[%s0 + $0x725] sm:$0x1]
  %v1275 = vld [vmem:[%s0 + $0x735] sm:$0x1]
  %v1276 = vld [vmem:[%s0 + $0x745] sm:$0x1]
  %v1277 = vld [vmem:[%s0 + $0x755] sm:$0x1]
  %v1278 = vld [vmem:[%s0 + $0x765] sm:$0x1]
  %v1279 = vld [vmem:[%s0 + $0x775] sm:$0x1]
  %v1280 = vld [vmem:[%s0 + $0x785] sm:$0x1]
  %v1281 = vld [vmem:[%s0 + $0x795] sm:$0x1]
  %v1282 = vld [vmem:[%s0 + $0x7a5] sm:$0x1]
  %v1283 = vld [vmem:[%s0 + $0x7b5] sm:$0x1]
  %v1284 = vld [vmem:[%s0 + $0x7c5] sm:$0x1]
  %v1285 = vld [vmem:[%s0 + $0x7d5] sm:$0x1]
  %v1286 = vld [vmem:[%s0 + $0x7e5] sm:$0x1]
  %v1287 = vld [vmem:[%s0 + $0x7f5] sm:$0x1]
  %v1288 = vmax.f32 %v1032, %v1160
  %v1289 = vmax.f32 %v1033, %v1161
  %v1290 = vmax.f32 %v1034, %v1162
  %v1291 = vmax.f32 %v1035, %v1163
  %v1292 = vmax.f32 %v1036, %v1164
  %v1293 = vmax.f32 %v1037, %v1165
  %v1294 = vmax.f32 %v1038, %v1166
  %v1295 = vmax.f32 %v1039, %v1167
  %v1296 = vmax.f32 %v1040, %v1168
  %v1297 = vmax.f32 %v1041, %v1169
  %v1298 = vmax.f32 %v1042, %v1170
  %v1299 = vmax.f32 %v1043, %v1171
  %v1300 = vmax.f32 %v1044, %v1172
  %v1301 = vmax.f32 %v1045, %v1173
  %v1302 = vmax.f32 %v1046, %v1174
  %v1303 = vmax.f32 %v1047, %v1175
  %v1304 = vmax.f32 %v1048, %v1176
  %v1305 = vmax.f32 %v1049, %v1177
  %v1306 = vmax.f32 %v1050, %v1178
  %v1307 = vmax.f32 %v1051, %v1179
  %v1308 = vmax.f32 %v1052, %v1180
  %v1309 = vmax.f32 %v1053, %v1181
  %v1310 = vmax.f32 %v1054, %v1182
  %v1311 = vmax.f32 %v1055, %v1183
  %v1312 = vmax.f32 %v1056, %v1184
  %v1313 = vmax.f32 %v1057, %v1185
  %v1314 = vmax.f32 %v1058, %v1186
  %v1315 = vmax.f32 %v1059, %v1187
  %v1316 = vmax.f32 %v1060, %v1188
  %v1317 = vmax.f32 %v1061, %v1189
  %v1318 = vmax.f32 %v1062, %v1190
  %v1319 = vmax.f32 %v1063, %v1191
  %v1320 = vmax.f32 %v1064, %v1192
  %v1321 = vmax.f32 %v1065, %v1193
  %v1322 = vmax.f32 %v1066, %v1194
  %v1323 = vmax.f32 %v1067, %v1195
  %v1324 = vmax.f32 %v1068, %v1196
  %v1325 = vmax.f32 %v1069, %v1197
  %v1326 = vmax.f32 %v1070, %v1198
  %v1327 = vmax.f32 %v1071, %v1199
  %v1328 = vmax.f32 %v1072, %v1200
  %v1329 = vmax.f32 %v1073, %v1201
  %v1330 = vmax.f32 %v1074, %v1202
  %v1331 = vmax.f32 %v1075, %v1203
  %v1332 = vmax.f32 %v1076, %v1204
  %v1333 = vmax.f32 %v1077, %v1205
  %v1334 = vmax.f32 %v1078, %v1206
  %v1335 = vmax.f32 %v1079, %v1207
  %v1336 = vmax.f32 %v1080, %v1208
  %v1337 = vmax.f32 %v1081, %v1209
  %v1338 = vmax.f32 %v1082, %v1210
  %v1339 = vmax.f32 %v1083, %v1211
  %v1340 = vmax.f32 %v1084, %v1212
  %v1341 = vmax.f32 %v1085, %v1213
  %v1342 = vmax.f32 %v1086, %v1214
  %v1343 = vmax.f32 %v1087, %v1215
  %v1344 = vmax.f32 %v1088, %v1216
  %v1345 = vmax.f32 %v1089, %v1217
  %v1346 = vmax.f32 %v1090, %v1218
  %v1347 = vmax.f32 %v1091, %v1219
  %v1348 = vmax.f32 %v1092, %v1220
  %v1349 = vmax.f32 %v1093, %v1221
  %v1350 = vmax.f32 %v1094, %v1222
  %v1351 = vmax.f32 %v1095, %v1223
  %v1352 = vmax.f32 %v1096, %v1224
  %v1353 = vmax.f32 %v1097, %v1225
  %v1354 = vmax.f32 %v1098, %v1226
  %v1355 = vmax.f32 %v1099, %v1227
  %v1356 = vmax.f32 %v1100, %v1228
  %v1357 = vmax.f32 %v1101, %v1229
  %v1358 = vmax.f32 %v1102, %v1230
  %v1359 = vmax.f32 %v1103, %v1231
  %v1360 = vmax.f32 %v1104, %v1232
  %v1361 = vmax.f32 %v1105, %v1233
  %v1362 = vmax.f32 %v1106, %v1234
  %v1363 = vmax.f32 %v1107, %v1235
  %v1364 = vmax.f32 %v1108, %v1236
  %v1365 = vmax.f32 %v1109, %v1237
  %v1366 = vmax.f32 %v1110, %v1238
  %v1367 = vmax.f32 %v1111, %v1239
  %v1368 = vmax.f32 %v1112, %v1240
  %v1369 = vmax.f32 %v1113, %v1241
  %v1370 = vmax.f32 %v1114, %v1242
  %v1371 = vmax.f32 %v1115, %v1243
  %v1372 = vmax.f32 %v1116, %v1244
  %v1373 = vmax.f32 %v1117, %v1245
  %v1374 = vmax.f32 %v1118, %v1246
  %v1375 = vmax.f32 %v1119, %v1247
  %v1376 = vmax.f32 %v1120, %v1248
  %v1377 = vmax.f32 %v1121, %v1249
  %v1378 = vmax.f32 %v1122, %v1250
  %v1379 = vmax.f32 %v1123, %v1251
  %v1380 = vmax.f32 %v1124, %v1252
  %v1381 = vmax.f32 %v1125, %v1253
  %v1382 = vmax.f32 %v1126, %v1254
  %v1383 = vmax.f32 %v1127, %v1255
  %v1384 = vmax.f32 %v1128, %v1256
  %v1385 = vmax.f32 %v1129, %v1257
  %v1386 = vmax.f32 %v1130, %v1258
  %v1387 = vmax.f32 %v1131, %v1259
  %v1388 = vmax.f32 %v1132, %v1260
  %v1389 = vmax.f32 %v1133, %v1261
  %v1390 = vmax.f32 %v1134, %v1262
  %v1391 = vmax.f32 %v1135, %v1263
  %v1392 = vmax.f32 %v1136, %v1264
  %v1393 = vmax.f32 %v1137, %v1265
  %v1394 = vmax.f32 %v1138, %v1266
  %v1395 = vmax.f32 %v1139, %v1267
  %v1396 = vmax.f32 %v1140, %v1268
  %v1397 = vmax.f32 %v1141, %v1269
  %v1398 = vmax.f32 %v1142, %v1270
  %v1399 = vmax.f32 %v1143, %v1271
  %v1400 = vmax.f32 %v1144, %v1272
  %v1401 = vmax.f32 %v1145, %v1273
  %v1402 = vmax.f32 %v1146, %v1274
  %v1403 = vmax.f32 %v1147, %v1275
  %v1404 = vmax.f32 %v1148, %v1276
  %v1405 = vmax.f32 %v1149, %v1277
  %v1406 = vmax.f32 %v1150, %v1278
  %v1407 = vmax.f32 %v1151, %v1279
  %v1408 = vmax.f32 %v1152, %v1280
  %v1409 = vmax.f32 %v1153, %v1281
  %v1410 = vmax.f32 %v1154, %v1282
  %v1411 = vmax.f32 %v1155, %v1283
  %v1412 = vmax.f32 %v1156, %v1284
  %v1413 = vmax.f32 %v1157, %v1285
  %v1414 = vmax.f32 %v1158, %v1286
  %v1415 = vmax.f32 %v1159, %v1287
  %v1416 = vld [vmem:[%s0 + $0x6] sm:$0x1]
  %v1417 = vld [vmem:[%s0 + $0x16] sm:$0x1]
  %v1418 = vld [vmem:[%s0 + $0x26] sm:$0x1]
  %v1419 = vld [vmem:[%s0 + $0x36] sm:$0x1]
  %v1420 = vld [vmem:[%s0 + $0x46] sm:$0x1]
  %v1421 = vld [vmem:[%s0 + $0x56] sm:$0x1]
  %v1422 = vld [vmem:[%s0 + $0x66] sm:$0x1]
  %v1423 = vld [vmem:[%s0 + $0x76] sm:$0x1]
  %v1424 = vld [vmem:[%s0 + $0x86] sm:$0x1]
  %v1425 = vld [vmem:[%s0 + $0x96] sm:$0x1]
  %v1426 = vld [vmem:[%s0 + $0xa6] sm:$0x1]
  %v1427 = vld [vmem:[%s0 + $0xb6] sm:$0x1]
  %v1428 = vld [vmem:[%s0 + $0xc6] sm:$0x1]
  %v1429 = vld [vmem:[%s0 + $0xd6] sm:$0x1]
  %v1430 = vld [vmem:[%s0 + $0xe6] sm:$0x1]
  %v1431 = vld [vmem:[%s0 + $0xf6] sm:$0x1]
  %v1432 = vld [vmem:[%s0 + $0x106] sm:$0x1]
  %v1433 = vld [vmem:[%s0 + $0x116] sm:$0x1]
  %v1434 = vld [vmem:[%s0 + $0x126] sm:$0x1]
  %v1435 = vld [vmem:[%s0 + $0x136] sm:$0x1]
  %v1436 = vld [vmem:[%s0 + $0x146] sm:$0x1]
  %v1437 = vld [vmem:[%s0 + $0x156] sm:$0x1]
  %v1438 = vld [vmem:[%s0 + $0x166] sm:$0x1]
  %v1439 = vld [vmem:[%s0 + $0x176] sm:$0x1]
  %v1440 = vld [vmem:[%s0 + $0x186] sm:$0x1]
  %v1441 = vld [vmem:[%s0 + $0x196] sm:$0x1]
  %v1442 = vld [vmem:[%s0 + $0x1a6] sm:$0x1]
  %v1443 = vld [vmem:[%s0 + $0x1b6] sm:$0x1]
  %v1444 = vld [vmem:[%s0 + $0x1c6] sm:$0x1]
  %v1445 = vld [vmem:[%s0 + $0x1d6] sm:$0x1]
  %v1446 = vld [vmem:[%s0 + $0x1e6] sm:$0x1]
  %v1447 = vld [vmem:[%s0 + $0x1f6] sm:$0x1]
  %v1448 = vld [vmem:[%s0 + $0x206] sm:$0x1]
  %v1449 = vld [vmem:[%s0 + $0x216] sm:$0x1]
  %v1450 = vld [vmem:[%s0 + $0x226] sm:$0x1]
  %v1451 = vld [vmem:[%s0 + $0x236] sm:$0x1]
  %v1452 = vld [vmem:[%s0 + $0x246] sm:$0x1]
  %v1453 = vld [vmem:[%s0 + $0x256] sm:$0x1]
  %v1454 = vld [vmem:[%s0 + $0x266] sm:$0x1]
  %v1455 = vld [vmem:[%s0 + $0x276] sm:$0x1]
  %v1456 = vld [vmem:[%s0 + $0x286] sm:$0x1]
  %v1457 = vld [vmem:[%s0 + $0x296] sm:$0x1]
  %v1458 = vld [vmem:[%s0 + $0x2a6] sm:$0x1]
  %v1459 = vld [vmem:[%s0 + $0x2b6] sm:$0x1]
  %v1460 = vld [vmem:[%s0 + $0x2c6] sm:$0x1]
  %v1461 = vld [vmem:[%s0 + $0x2d6] sm:$0x1]
  %v1462 = vld [vmem:[%s0 + $0x2e6] sm:$0x1]
  %v1463 = vld [vmem:[%s0 + $0x2f6] sm:$0x1]
  %v1464 = vld [vmem:[%s0 + $0x306] sm:$0x1]
  %v1465 = vld [vmem:[%s0 + $0x316] sm:$0x1]
  %v1466 = vld [vmem:[%s0 + $0x326] sm:$0x1]
  %v1467 = vld [vmem:[%s0 + $0x336] sm:$0x1]
  %v1468 = vld [vmem:[%s0 + $0x346] sm:$0x1]
  %v1469 = vld [vmem:[%s0 + $0x356] sm:$0x1]
  %v1470 = vld [vmem:[%s0 + $0x366] sm:$0x1]
  %v1471 = vld [vmem:[%s0 + $0x376] sm:$0x1]
  %v1472 = vld [vmem:[%s0 + $0x386] sm:$0x1]
  %v1473 = vld [vmem:[%s0 + $0x396] sm:$0x1]
  %v1474 = vld [vmem:[%s0 + $0x3a6] sm:$0x1]
  %v1475 = vld [vmem:[%s0 + $0x3b6] sm:$0x1]
  %v1476 = vld [vmem:[%s0 + $0x3c6] sm:$0x1]
  %v1477 = vld [vmem:[%s0 + $0x3d6] sm:$0x1]
  %v1478 = vld [vmem:[%s0 + $0x3e6] sm:$0x1]
  %v1479 = vld [vmem:[%s0 + $0x3f6] sm:$0x1]
  %v1480 = vld [vmem:[%s0 + $0x406] sm:$0x1]
  %v1481 = vld [vmem:[%s0 + $0x416] sm:$0x1]
  %v1482 = vld [vmem:[%s0 + $0x426] sm:$0x1]
  %v1483 = vld [vmem:[%s0 + $0x436] sm:$0x1]
  %v1484 = vld [vmem:[%s0 + $0x446] sm:$0x1]
  %v1485 = vld [vmem:[%s0 + $0x456] sm:$0x1]
  %v1486 = vld [vmem:[%s0 + $0x466] sm:$0x1]
  %v1487 = vld [vmem:[%s0 + $0x476] sm:$0x1]
  %v1488 = vld [vmem:[%s0 + $0x486] sm:$0x1]
  %v1489 = vld [vmem:[%s0 + $0x496] sm:$0x1]
  %v1490 = vld [vmem:[%s0 + $0x4a6] sm:$0x1]
  %v1491 = vld [vmem:[%s0 + $0x4b6] sm:$0x1]
  %v1492 = vld [vmem:[%s0 + $0x4c6] sm:$0x1]
  %v1493 = vld [vmem:[%s0 + $0x4d6] sm:$0x1]
  %v1494 = vld [vmem:[%s0 + $0x4e6] sm:$0x1]
  %v1495 = vld [vmem:[%s0 + $0x4f6] sm:$0x1]
  %v1496 = vld [vmem:[%s0 + $0x506] sm:$0x1]
  %v1497 = vld [vmem:[%s0 + $0x516] sm:$0x1]
  %v1498 = vld [vmem:[%s0 + $0x526] sm:$0x1]
  %v1499 = vld [vmem:[%s0 + $0x536] sm:$0x1]
  %v1500 = vld [vmem:[%s0 + $0x546] sm:$0x1]
  %v1501 = vld [vmem:[%s0 + $0x556] sm:$0x1]
  %v1502 = vld [vmem:[%s0 + $0x566] sm:$0x1]
  %v1503 = vld [vmem:[%s0 + $0x576] sm:$0x1]
  %v1504 = vld [vmem:[%s0 + $0x586] sm:$0x1]
  %v1505 = vld [vmem:[%s0 + $0x596] sm:$0x1]
  %v1506 = vld [vmem:[%s0 + $0x5a6] sm:$0x1]
  %v1507 = vld [vmem:[%s0 + $0x5b6] sm:$0x1]
  %v1508 = vld [vmem:[%s0 + $0x5c6] sm:$0x1]
  %v1509 = vld [vmem:[%s0 + $0x5d6] sm:$0x1]
  %v1510 = vld [vmem:[%s0 + $0x5e6] sm:$0x1]
  %v1511 = vld [vmem:[%s0 + $0x5f6] sm:$0x1]
  %v1512 = vld [vmem:[%s0 + $0x606] sm:$0x1]
  %v1513 = vld [vmem:[%s0 + $0x616] sm:$0x1]
  %v1514 = vld [vmem:[%s0 + $0x626] sm:$0x1]
  %v1515 = vld [vmem:[%s0 + $0x636] sm:$0x1]
  %v1516 = vld [vmem:[%s0 + $0x646] sm:$0x1]
  %v1517 = vld [vmem:[%s0 + $0x656] sm:$0x1]
  %v1518 = vld [vmem:[%s0 + $0x666] sm:$0x1]
  %v1519 = vld [vmem:[%s0 + $0x676] sm:$0x1]
  %v1520 = vld [vmem:[%s0 + $0x686] sm:$0x1]
  %v1521 = vld [vmem:[%s0 + $0x696] sm:$0x1]
  %v1522 = vld [vmem:[%s0 + $0x6a6] sm:$0x1]
  %v1523 = vld [vmem:[%s0 + $0x6b6] sm:$0x1]
  %v1524 = vld [vmem:[%s0 + $0x6c6] sm:$0x1]
  %v1525 = vld [vmem:[%s0 + $0x6d6] sm:$0x1]
  %v1526 = vld [vmem:[%s0 + $0x6e6] sm:$0x1]
  %v1527 = vld [vmem:[%s0 + $0x6f6] sm:$0x1]
  %v1528 = vld [vmem:[%s0 + $0x706] sm:$0x1]
  %v1529 = vld [vmem:[%s0 + $0x716] sm:$0x1]
  %v1530 = vld [vmem:[%s0 + $0x726] sm:$0x1]
  %v1531 = vld [vmem:[%s0 + $0x736] sm:$0x1]
  %v1532 = vld [vmem:[%s0 + $0x746] sm:$0x1]
  %v1533 = vld [vmem:[%s0 + $0x756] sm:$0x1]
  %v1534 = vld [vmem:[%s0 + $0x766] sm:$0x1]
  %v1535 = vld [vmem:[%s0 + $0x776] sm:$0x1]
  %v1536 = vld [vmem:[%s0 + $0x786] sm:$0x1]
  %v1537 = vld [vmem:[%s0 + $0x796] sm:$0x1]
  %v1538 = vld [vmem:[%s0 + $0x7a6] sm:$0x1]
  %v1539 = vld [vmem:[%s0 + $0x7b6] sm:$0x1]
  %v1540 = vld [vmem:[%s0 + $0x7c6] sm:$0x1]
  %v1541 = vld [vmem:[%s0 + $0x7d6] sm:$0x1]
  %v1542 = vld [vmem:[%s0 + $0x7e6] sm:$0x1]
  %v1543 = vld [vmem:[%s0 + $0x7f6] sm:$0x1]
  %v1544 = vmax.f32 %v1288, %v1416
  %v1545 = vmax.f32 %v1289, %v1417
  %v1546 = vmax.f32 %v1290, %v1418
  %v1547 = vmax.f32 %v1291, %v1419
  %v1548 = vmax.f32 %v1292, %v1420
  %v1549 = vmax.f32 %v1293, %v1421
  %v1550 = vmax.f32 %v1294, %v1422
  %v1551 = vmax.f32 %v1295, %v1423
  %v1552 = vmax.f32 %v1296, %v1424
  %v1553 = vmax.f32 %v1297, %v1425
  %v1554 = vmax.f32 %v1298, %v1426
  %v1555 = vmax.f32 %v1299, %v1427
  %v1556 = vmax.f32 %v1300, %v1428
  %v1557 = vmax.f32 %v1301, %v1429
  %v1558 = vmax.f32 %v1302, %v1430
  %v1559 = vmax.f32 %v1303, %v1431
  %v1560 = vmax.f32 %v1304, %v1432
  %v1561 = vmax.f32 %v1305, %v1433
  %v1562 = vmax.f32 %v1306, %v1434
  %v1563 = vmax.f32 %v1307, %v1435
  %v1564 = vmax.f32 %v1308, %v1436
  %v1565 = vmax.f32 %v1309, %v1437
  %v1566 = vmax.f32 %v1310, %v1438
  %v1567 = vmax.f32 %v1311, %v1439
  %v1568 = vmax.f32 %v1312, %v1440
  %v1569 = vmax.f32 %v1313, %v1441
  %v1570 = vmax.f32 %v1314, %v1442
  %v1571 = vmax.f32 %v1315, %v1443
  %v1572 = vmax.f32 %v1316, %v1444
  %v1573 = vmax.f32 %v1317, %v1445
  %v1574 = vmax.f32 %v1318, %v1446
  %v1575 = vmax.f32 %v1319, %v1447
  %v1576 = vmax.f32 %v1320, %v1448
  %v1577 = vmax.f32 %v1321, %v1449
  %v1578 = vmax.f32 %v1322, %v1450
  %v1579 = vmax.f32 %v1323, %v1451
  %v1580 = vmax.f32 %v1324, %v1452
  %v1581 = vmax.f32 %v1325, %v1453
  %v1582 = vmax.f32 %v1326, %v1454
  %v1583 = vmax.f32 %v1327, %v1455
  %v1584 = vmax.f32 %v1328, %v1456
  %v1585 = vmax.f32 %v1329, %v1457
  %v1586 = vmax.f32 %v1330, %v1458
  %v1587 = vmax.f32 %v1331, %v1459
  %v1588 = vmax.f32 %v1332, %v1460
  %v1589 = vmax.f32 %v1333, %v1461
  %v1590 = vmax.f32 %v1334, %v1462
  %v1591 = vmax.f32 %v1335, %v1463
  %v1592 = vmax.f32 %v1336, %v1464
  %v1593 = vmax.f32 %v1337, %v1465
  %v1594 = vmax.f32 %v1338, %v1466
  %v1595 = vmax.f32 %v1339, %v1467
  %v1596 = vmax.f32 %v1340, %v1468
  %v1597 = vmax.f32 %v1341, %v1469
  %v1598 = vmax.f32 %v1342, %v1470
  %v1599 = vmax.f32 %v1343, %v1471
  %v1600 = vmax.f32 %v1344, %v1472
  %v1601 = vmax.f32 %v1345, %v1473
  %v1602 = vmax.f32 %v1346, %v1474
  %v1603 = vmax.f32 %v1347, %v1475
  %v1604 = vmax.f32 %v1348, %v1476
  %v1605 = vmax.f32 %v1349, %v1477
  %v1606 = vmax.f32 %v1350, %v1478
  %v1607 = vmax.f32 %v1351, %v1479
  %v1608 = vmax.f32 %v1352, %v1480
  %v1609 = vmax.f32 %v1353, %v1481
  %v1610 = vmax.f32 %v1354, %v1482
  %v1611 = vmax.f32 %v1355, %v1483
  %v1612 = vmax.f32 %v1356, %v1484
  %v1613 = vmax.f32 %v1357, %v1485
  %v1614 = vmax.f32 %v1358, %v1486
  %v1615 = vmax.f32 %v1359, %v1487
  %v1616 = vmax.f32 %v1360, %v1488
  %v1617 = vmax.f32 %v1361, %v1489
  %v1618 = vmax.f32 %v1362, %v1490
  %v1619 = vmax.f32 %v1363, %v1491
  %v1620 = vmax.f32 %v1364, %v1492
  %v1621 = vmax.f32 %v1365, %v1493
  %v1622 = vmax.f32 %v1366, %v1494
  %v1623 = vmax.f32 %v1367, %v1495
  %v1624 = vmax.f32 %v1368, %v1496
  %v1625 = vmax.f32 %v1369, %v1497
  %v1626 = vmax.f32 %v1370, %v1498
  %v1627 = vmax.f32 %v1371, %v1499
  %v1628 = vmax.f32 %v1372, %v1500
  %v1629 = vmax.f32 %v1373, %v1501
  %v1630 = vmax.f32 %v1374, %v1502
  %v1631 = vmax.f32 %v1375, %v1503
  %v1632 = vmax.f32 %v1376, %v1504
  %v1633 = vmax.f32 %v1377, %v1505
  %v1634 = vmax.f32 %v1378, %v1506
  %v1635 = vmax.f32 %v1379, %v1507
  %v1636 = vmax.f32 %v1380, %v1508
  %v1637 = vmax.f32 %v1381, %v1509
  %v1638 = vmax.f32 %v1382, %v1510
  %v1639 = vmax.f32 %v1383, %v1511
  %v1640 = vmax.f32 %v1384, %v1512
  %v1641 = vmax.f32 %v1385, %v1513
  %v1642 = vmax.f32 %v1386, %v1514
  %v1643 = vmax.f32 %v1387, %v1515
  %v1644 = vmax.f32 %v1388, %v1516
  %v1645 = vmax.f32 %v1389, %v1517
  %v1646 = vmax.f32 %v1390, %v1518
  %v1647 = vmax.f32 %v1391, %v1519
  %v1648 = vmax.f32 %v1392, %v1520
  %v1649 = vmax.f32 %v1393, %v1521
  %v1650 = vmax.f32 %v1394, %v1522
  %v1651 = vmax.f32 %v1395, %v1523
  %v1652 = vmax.f32 %v1396, %v1524
  %v1653 = vmax.f32 %v1397, %v1525
  %v1654 = vmax.f32 %v1398, %v1526
  %v1655 = vmax.f32 %v1399, %v1527
  %v1656 = vmax.f32 %v1400, %v1528
  %v1657 = vmax.f32 %v1401, %v1529
  %v1658 = vmax.f32 %v1402, %v1530
  %v1659 = vmax.f32 %v1403, %v1531
  %v1660 = vmax.f32 %v1404, %v1532
  %v1661 = vmax.f32 %v1405, %v1533
  %v1662 = vmax.f32 %v1406, %v1534
  %v1663 = vmax.f32 %v1407, %v1535
  %v1664 = vmax.f32 %v1408, %v1536
  %v1665 = vmax.f32 %v1409, %v1537
  %v1666 = vmax.f32 %v1410, %v1538
  %v1667 = vmax.f32 %v1411, %v1539
  %v1668 = vmax.f32 %v1412, %v1540
  %v1669 = vmax.f32 %v1413, %v1541
  %v1670 = vmax.f32 %v1414, %v1542
  %v1671 = vmax.f32 %v1415, %v1543
  %v1672 = vld [vmem:[%s0 + $0x7] sm:$0x1]
  %v1673 = vld [vmem:[%s0 + $0x17] sm:$0x1]
  %v1674 = vld [vmem:[%s0 + $0x27] sm:$0x1]
  %v1675 = vld [vmem:[%s0 + $0x37] sm:$0x1]
  %v1676 = vld [vmem:[%s0 + $0x47] sm:$0x1]
  %v1677 = vld [vmem:[%s0 + $0x57] sm:$0x1]
  %v1678 = vld [vmem:[%s0 + $0x67] sm:$0x1]
  %v1679 = vld [vmem:[%s0 + $0x77] sm:$0x1]
  %v1680 = vld [vmem:[%s0 + $0x87] sm:$0x1]
  %v1681 = vld [vmem:[%s0 + $0x97] sm:$0x1]
  %v1682 = vld [vmem:[%s0 + $0xa7] sm:$0x1]
  %v1683 = vld [vmem:[%s0 + $0xb7] sm:$0x1]
  %v1684 = vld [vmem:[%s0 + $0xc7] sm:$0x1]
  %v1685 = vld [vmem:[%s0 + $0xd7] sm:$0x1]
  %v1686 = vld [vmem:[%s0 + $0xe7] sm:$0x1]
  %v1687 = vld [vmem:[%s0 + $0xf7] sm:$0x1]
  %v1688 = vld [vmem:[%s0 + $0x107] sm:$0x1]
  %v1689 = vld [vmem:[%s0 + $0x117] sm:$0x1]
  %v1690 = vld [vmem:[%s0 + $0x127] sm:$0x1]
  %v1691 = vld [vmem:[%s0 + $0x137] sm:$0x1]
  %v1692 = vld [vmem:[%s0 + $0x147] sm:$0x1]
  %v1693 = vld [vmem:[%s0 + $0x157] sm:$0x1]
  %v1694 = vld [vmem:[%s0 + $0x167] sm:$0x1]
  %v1695 = vld [vmem:[%s0 + $0x177] sm:$0x1]
  %v1696 = vld [vmem:[%s0 + $0x187] sm:$0x1]
  %v1697 = vld [vmem:[%s0 + $0x197] sm:$0x1]
  %v1698 = vld [vmem:[%s0 + $0x1a7] sm:$0x1]
  %v1699 = vld [vmem:[%s0 + $0x1b7] sm:$0x1]
  %v1700 = vld [vmem:[%s0 + $0x1c7] sm:$0x1]
  %v1701 = vld [vmem:[%s0 + $0x1d7] sm:$0x1]
  %v1702 = vld [vmem:[%s0 + $0x1e7] sm:$0x1]
  %v1703 = vld [vmem:[%s0 + $0x1f7] sm:$0x1]
  %v1704 = vld [vmem:[%s0 + $0x207] sm:$0x1]
  %v1705 = vld [vmem:[%s0 + $0x217] sm:$0x1]
  %v1706 = vld [vmem:[%s0 + $0x227] sm:$0x1]
  %v1707 = vld [vmem:[%s0 + $0x237] sm:$0x1]
  %v1708 = vld [vmem:[%s0 + $0x247] sm:$0x1]
  %v1709 = vld [vmem:[%s0 + $0x257] sm:$0x1]
  %v1710 = vld [vmem:[%s0 + $0x267] sm:$0x1]
  %v1711 = vld [vmem:[%s0 + $0x277] sm:$0x1]
  %v1712 = vld [vmem:[%s0 + $0x287] sm:$0x1]
  %v1713 = vld [vmem:[%s0 + $0x297] sm:$0x1]
  %v1714 = vld [vmem:[%s0 + $0x2a7] sm:$0x1]
  %v1715 = vld [vmem:[%s0 + $0x2b7] sm:$0x1]
  %v1716 = vld [vmem:[%s0 + $0x2c7] sm:$0x1]
  %v1717 = vld [vmem:[%s0 + $0x2d7] sm:$0x1]
  %v1718 = vld [vmem:[%s0 + $0x2e7] sm:$0x1]
  %v1719 = vld [vmem:[%s0 + $0x2f7] sm:$0x1]
  %v1720 = vld [vmem:[%s0 + $0x307] sm:$0x1]
  %v1721 = vld [vmem:[%s0 + $0x317] sm:$0x1]
  %v1722 = vld [vmem:[%s0 + $0x327] sm:$0x1]
  %v1723 = vld [vmem:[%s0 + $0x337] sm:$0x1]
  %v1724 = vld [vmem:[%s0 + $0x347] sm:$0x1]
  %v1725 = vld [vmem:[%s0 + $0x357] sm:$0x1]
  %v1726 = vld [vmem:[%s0 + $0x367] sm:$0x1]
  %v1727 = vld [vmem:[%s0 + $0x377] sm:$0x1]
  %v1728 = vld [vmem:[%s0 + $0x387] sm:$0x1]
  %v1729 = vld [vmem:[%s0 + $0x397] sm:$0x1]
  %v1730 = vld [vmem:[%s0 + $0x3a7] sm:$0x1]
  %v1731 = vld [vmem:[%s0 + $0x3b7] sm:$0x1]
  %v1732 = vld [vmem:[%s0 + $0x3c7] sm:$0x1]
  %v1733 = vld [vmem:[%s0 + $0x3d7] sm:$0x1]
  %v1734 = vld [vmem:[%s0 + $0x3e7] sm:$0x1]
  %v1735 = vld [vmem:[%s0 + $0x3f7] sm:$0x1]
  %v1736 = vld [vmem:[%s0 + $0x407] sm:$0x1]
  %v1737 = vld [vmem:[%s0 + $0x417] sm:$0x1]
  %v1738 = vld [vmem:[%s0 + $0x427] sm:$0x1]
  %v1739 = vld [vmem:[%s0 + $0x437] sm:$0x1]
  %v1740 = vld [vmem:[%s0 + $0x447] sm:$0x1]
  %v1741 = vld [vmem:[%s0 + $0x457] sm:$0x1]
  %v1742 = vld [vmem:[%s0 + $0x467] sm:$0x1]
  %v1743 = vld [vmem:[%s0 + $0x477] sm:$0x1]
  %v1744 = vld [vmem:[%s0 + $0x487] sm:$0x1]
  %v1745 = vld [vmem:[%s0 + $0x497] sm:$0x1]
  %v1746 = vld [vmem:[%s0 + $0x4a7] sm:$0x1]
  %v1747 = vld [vmem:[%s0 + $0x4b7] sm:$0x1]
  %v1748 = vld [vmem:[%s0 + $0x4c7] sm:$0x1]
  %v1749 = vld [vmem:[%s0 + $0x4d7] sm:$0x1]
  %v1750 = vld [vmem:[%s0 + $0x4e7] sm:$0x1]
  %v1751 = vld [vmem:[%s0 + $0x4f7] sm:$0x1]
  %v1752 = vld [vmem:[%s0 + $0x507] sm:$0x1]
  %v1753 = vld [vmem:[%s0 + $0x517] sm:$0x1]
  %v1754 = vld [vmem:[%s0 + $0x527] sm:$0x1]
  %v1755 = vld [vmem:[%s0 + $0x537] sm:$0x1]
  %v1756 = vld [vmem:[%s0 + $0x547] sm:$0x1]
  %v1757 = vld [vmem:[%s0 + $0x557] sm:$0x1]
  %v1758 = vld [vmem:[%s0 + $0x567] sm:$0x1]
  %v1759 = vld [vmem:[%s0 + $0x577] sm:$0x1]
  %v1760 = vld [vmem:[%s0 + $0x587] sm:$0x1]
  %v1761 = vld [vmem:[%s0 + $0x597] sm:$0x1]
  %v1762 = vld [vmem:[%s0 + $0x5a7] sm:$0x1]
  %v1763 = vld [vmem:[%s0 + $0x5b7] sm:$0x1]
  %v1764 = vld [vmem:[%s0 + $0x5c7] sm:$0x1]
  %v1765 = vld [vmem:[%s0 + $0x5d7] sm:$0x1]
  %v1766 = vld [vmem:[%s0 + $0x5e7] sm:$0x1]
  %v1767 = vld [vmem:[%s0 + $0x5f7] sm:$0x1]
  %v1768 = vld [vmem:[%s0 + $0x607] sm:$0x1]
  %v1769 = vld [vmem:[%s0 + $0x617] sm:$0x1]
  %v1770 = vld [vmem:[%s0 + $0x627] sm:$0x1]
  %v1771 = vld [vmem:[%s0 + $0x637] sm:$0x1]
  %v1772 = vld [vmem:[%s0 + $0x647] sm:$0x1]
  %v1773 = vld [vmem:[%s0 + $0x657] sm:$0x1]
  %v1774 = vld [vmem:[%s0 + $0x667] sm:$0x1]
  %v1775 = vld [vmem:[%s0 + $0x677] sm:$0x1]
  %v1776 = vld [vmem:[%s0 + $0x687] sm:$0x1]
  %v1777 = vld [vmem:[%s0 + $0x697] sm:$0x1]
  %v1778 = vld [vmem:[%s0 + $0x6a7] sm:$0x1]
  %v1779 = vld [vmem:[%s0 + $0x6b7] sm:$0x1]
  %v1780 = vld [vmem:[%s0 + $0x6c7] sm:$0x1]
  %v1781 = vld [vmem:[%s0 + $0x6d7] sm:$0x1]
  %v1782 = vld [vmem:[%s0 + $0x6e7] sm:$0x1]
  %v1783 = vld [vmem:[%s0 + $0x6f7] sm:$0x1]
  %v1784 = vld [vmem:[%s0 + $0x707] sm:$0x1]
  %v1785 = vld [vmem:[%s0 + $0x717] sm:$0x1]
  %v1786 = vld [vmem:[%s0 + $0x727] sm:$0x1]
  %v1787 = vld [vmem:[%s0 + $0x737] sm:$0x1]
  %v1788 = vld [vmem:[%s0 + $0x747] sm:$0x1]
  %v1789 = vld [vmem:[%s0 + $0x757] sm:$0x1]
  %v1790 = vld [vmem:[%s0 + $0x767] sm:$0x1]
  %v1791 = vld [vmem:[%s0 + $0x777] sm:$0x1]
  %v1792 = vld [vmem:[%s0 + $0x787] sm:$0x1]
  %v1793 = vld [vmem:[%s0 + $0x797] sm:$0x1]
  %v1794 = vld [vmem:[%s0 + $0x7a7] sm:$0x1]
  %v1795 = vld [vmem:[%s0 + $0x7b7] sm:$0x1]
  %v1796 = vld [vmem:[%s0 + $0x7c7] sm:$0x1]
  %v1797 = vld [vmem:[%s0 + $0x7d7] sm:$0x1]
  %v1798 = vld [vmem:[%s0 + $0x7e7] sm:$0x1]
  %v1799 = vld [vmem:[%s0 + $0x7f7] sm:$0x1]
  %v1800 = vmax.f32 %v1544, %v1672
  %v1801 = vmax.f32 %v1545, %v1673
  %v1802 = vmax.f32 %v1546, %v1674
  %v1803 = vmax.f32 %v1547, %v1675
  %v1804 = vmax.f32 %v1548, %v1676
  %v1805 = vmax.f32 %v1549, %v1677
  %v1806 = vmax.f32 %v1550, %v1678
  %v1807 = vmax.f32 %v1551, %v1679
  %v1808 = vmax.f32 %v1552, %v1680
  %v1809 = vmax.f32 %v1553, %v1681
  %v1810 = vmax.f32 %v1554, %v1682
  %v1811 = vmax.f32 %v1555, %v1683
  %v1812 = vmax.f32 %v1556, %v1684
  %v1813 = vmax.f32 %v1557, %v1685
  %v1814 = vmax.f32 %v1558, %v1686
  %v1815 = vmax.f32 %v1559, %v1687
  %v1816 = vmax.f32 %v1560, %v1688
  %v1817 = vmax.f32 %v1561, %v1689
  %v1818 = vmax.f32 %v1562, %v1690
  %v1819 = vmax.f32 %v1563, %v1691
  %v1820 = vmax.f32 %v1564, %v1692
  %v1821 = vmax.f32 %v1565, %v1693
  %v1822 = vmax.f32 %v1566, %v1694
  %v1823 = vmax.f32 %v1567, %v1695
  %v1824 = vmax.f32 %v1568, %v1696
  %v1825 = vmax.f32 %v1569, %v1697
  %v1826 = vmax.f32 %v1570, %v1698
  %v1827 = vmax.f32 %v1571, %v1699
  %v1828 = vmax.f32 %v1572, %v1700
  %v1829 = vmax.f32 %v1573, %v1701
  %v1830 = vmax.f32 %v1574, %v1702
  %v1831 = vmax.f32 %v1575, %v1703
  %v1832 = vmax.f32 %v1576, %v1704
  %v1833 = vmax.f32 %v1577, %v1705
  %v1834 = vmax.f32 %v1578, %v1706
  %v1835 = vmax.f32 %v1579, %v1707
  %v1836 = vmax.f32 %v1580, %v1708
  %v1837 = vmax.f32 %v1581, %v1709
  %v1838 = vmax.f32 %v1582, %v1710
  %v1839 = vmax.f32 %v1583, %v1711
  %v1840 = vmax.f32 %v1584, %v1712
  %v1841 = vmax.f32 %v1585, %v1713
  %v1842 = vmax.f32 %v1586, %v1714
  %v1843 = vmax.f32 %v1587, %v1715
  %v1844 = vmax.f32 %v1588, %v1716
  %v1845 = vmax.f32 %v1589, %v1717
  %v1846 = vmax.f32 %v1590, %v1718
  %v1847 = vmax.f32 %v1591, %v1719
  %v1848 = vmax.f32 %v1592, %v1720
  %v1849 = vmax.f32 %v1593, %v1721
  %v1850 = vmax.f32 %v1594, %v1722
  %v1851 = vmax.f32 %v1595, %v1723
  %v1852 = vmax.f32 %v1596, %v1724
  %v1853 = vmax.f32 %v1597, %v1725
  %v1854 = vmax.f32 %v1598, %v1726
  %v1855 = vmax.f32 %v1599, %v1727
  %v1856 = vmax.f32 %v1600, %v1728
  %v1857 = vmax.f32 %v1601, %v1729
  %v1858 = vmax.f32 %v1602, %v1730
  %v1859 = vmax.f32 %v1603, %v1731
  %v1860 = vmax.f32 %v1604, %v1732
  %v1861 = vmax.f32 %v1605, %v1733
  %v1862 = vmax.f32 %v1606, %v1734
  %v1863 = vmax.f32 %v1607, %v1735
  %v1864 = vmax.f32 %v1608, %v1736
  %v1865 = vmax.f32 %v1609, %v1737
  %v1866 = vmax.f32 %v1610, %v1738
  %v1867 = vmax.f32 %v1611, %v1739
  %v1868 = vmax.f32 %v1612, %v1740
  %v1869 = vmax.f32 %v1613, %v1741
  %v1870 = vmax.f32 %v1614, %v1742
  %v1871 = vmax.f32 %v1615, %v1743
  %v1872 = vmax.f32 %v1616, %v1744
  %v1873 = vmax.f32 %v1617, %v1745
  %v1874 = vmax.f32 %v1618, %v1746
  %v1875 = vmax.f32 %v1619, %v1747
  %v1876 = vmax.f32 %v1620, %v1748
  %v1877 = vmax.f32 %v1621, %v1749
  %v1878 = vmax.f32 %v1622, %v1750
  %v1879 = vmax.f32 %v1623, %v1751
  %v1880 = vmax.f32 %v1624, %v1752
  %v1881 = vmax.f32 %v1625, %v1753
  %v1882 = vmax.f32 %v1626, %v1754
  %v1883 = vmax.f32 %v1627, %v1755
  %v1884 = vmax.f32 %v1628, %v1756
  %v1885 = vmax.f32 %v1629, %v1757
  %v1886 = vmax.f32 %v1630, %v1758
  %v1887 = vmax.f32 %v1631, %v1759
  %v1888 = vmax.f32 %v1632, %v1760
  %v1889 = vmax.f32 %v1633, %v1761
  %v1890 = vmax.f32 %v1634, %v1762
  %v1891 = vmax.f32 %v1635, %v1763
  %v1892 = vmax.f32 %v1636, %v1764
  %v1893 = vmax.f32 %v1637, %v1765
  %v1894 = vmax.f32 %v1638, %v1766
  %v1895 = vmax.f32 %v1639, %v1767
  %v1896 = vmax.f32 %v1640, %v1768
  %v1897 = vmax.f32 %v1641, %v1769
  %v1898 = vmax.f32 %v1642, %v1770
  %v1899 = vmax.f32 %v1643, %v1771
  %v1900 = vmax.f32 %v1644, %v1772
  %v1901 = vmax.f32 %v1645, %v1773
  %v1902 = vmax.f32 %v1646, %v1774
  %v1903 = vmax.f32 %v1647, %v1775
  %v1904 = vmax.f32 %v1648, %v1776
  %v1905 = vmax.f32 %v1649, %v1777
  %v1906 = vmax.f32 %v1650, %v1778
  %v1907 = vmax.f32 %v1651, %v1779
  %v1908 = vmax.f32 %v1652, %v1780
  %v1909 = vmax.f32 %v1653, %v1781
  %v1910 = vmax.f32 %v1654, %v1782
  %v1911 = vmax.f32 %v1655, %v1783
  %v1912 = vmax.f32 %v1656, %v1784
  %v1913 = vmax.f32 %v1657, %v1785
  %v1914 = vmax.f32 %v1658, %v1786
  %v1915 = vmax.f32 %v1659, %v1787
  %v1916 = vmax.f32 %v1660, %v1788
  %v1917 = vmax.f32 %v1661, %v1789
  %v1918 = vmax.f32 %v1662, %v1790
  %v1919 = vmax.f32 %v1663, %v1791
  %v1920 = vmax.f32 %v1664, %v1792
  %v1921 = vmax.f32 %v1665, %v1793
  %v1922 = vmax.f32 %v1666, %v1794
  %v1923 = vmax.f32 %v1667, %v1795
  %v1924 = vmax.f32 %v1668, %v1796
  %v1925 = vmax.f32 %v1669, %v1797
  %v1926 = vmax.f32 %v1670, %v1798
  %v1927 = vmax.f32 %v1671, %v1799
  %v1928 = vld [vmem:[%s0 + $0x8] sm:$0x1]
  %v1929 = vld [vmem:[%s0 + $0x18] sm:$0x1]
  %v1930 = vld [vmem:[%s0 + $0x28] sm:$0x1]
  %v1931 = vld [vmem:[%s0 + $0x38] sm:$0x1]
  %v1932 = vld [vmem:[%s0 + $0x48] sm:$0x1]
  %v1933 = vld [vmem:[%s0 + $0x58] sm:$0x1]
  %v1934 = vld [vmem:[%s0 + $0x68] sm:$0x1]
  %v1935 = vld [vmem:[%s0 + $0x78] sm:$0x1]
  %v1936 = vld [vmem:[%s0 + $0x88] sm:$0x1]
  %v1937 = vld [vmem:[%s0 + $0x98] sm:$0x1]
  %v1938 = vld [vmem:[%s0 + $0xa8] sm:$0x1]
  %v1939 = vld [vmem:[%s0 + $0xb8] sm:$0x1]
  %v1940 = vld [vmem:[%s0 + $0xc8] sm:$0x1]
  %v1941 = vld [vmem:[%s0 + $0xd8] sm:$0x1]
  %v1942 = vld [vmem:[%s0 + $0xe8] sm:$0x1]
  %v1943 = vld [vmem:[%s0 + $0xf8] sm:$0x1]
  %v1944 = vld [vmem:[%s0 + $0x108] sm:$0x1]
  %v1945 = vld [vmem:[%s0 + $0x118] sm:$0x1]
  %v1946 = vld [vmem:[%s0 + $0x128] sm:$0x1]
  %v1947 = vld [vmem:[%s0 + $0x138] sm:$0x1]
  %v1948 = vld [vmem:[%s0 + $0x148] sm:$0x1]
  %v1949 = vld [vmem:[%s0 + $0x158] sm:$0x1]
  %v1950 = vld [vmem:[%s0 + $0x168] sm:$0x1]
  %v1951 = vld [vmem:[%s0 + $0x178] sm:$0x1]
  %v1952 = vld [vmem:[%s0 + $0x188] sm:$0x1]
  %v1953 = vld [vmem:[%s0 + $0x198] sm:$0x1]
  %v1954 = vld [vmem:[%s0 + $0x1a8] sm:$0x1]
  %v1955 = vld [vmem:[%s0 + $0x1b8] sm:$0x1]
  %v1956 = vld [vmem:[%s0 + $0x1c8] sm:$0x1]
  %v1957 = vld [vmem:[%s0 + $0x1d8] sm:$0x1]
  %v1958 = vld [vmem:[%s0 + $0x1e8] sm:$0x1]
  %v1959 = vld [vmem:[%s0 + $0x1f8] sm:$0x1]
  %v1960 = vld [vmem:[%s0 + $0x208] sm:$0x1]
  %v1961 = vld [vmem:[%s0 + $0x218] sm:$0x1]
  %v1962 = vld [vmem:[%s0 + $0x228] sm:$0x1]
  %v1963 = vld [vmem:[%s0 + $0x238] sm:$0x1]
  %v1964 = vld [vmem:[%s0 + $0x248] sm:$0x1]
  %v1965 = vld [vmem:[%s0 + $0x258] sm:$0x1]
  %v1966 = vld [vmem:[%s0 + $0x268] sm:$0x1]
  %v1967 = vld [vmem:[%s0 + $0x278] sm:$0x1]
  %v1968 = vld [vmem:[%s0 + $0x288] sm:$0x1]
  %v1969 = vld [vmem:[%s0 + $0x298] sm:$0x1]
  %v1970 = vld [vmem:[%s0 + $0x2a8] sm:$0x1]
  %v1971 = vld [vmem:[%s0 + $0x2b8] sm:$0x1]
  %v1972 = vld [vmem:[%s0 + $0x2c8] sm:$0x1]
  %v1973 = vld [vmem:[%s0 + $0x2d8] sm:$0x1]
  %v1974 = vld [vmem:[%s0 + $0x2e8] sm:$0x1]
  %v1975 = vld [vmem:[%s0 + $0x2f8] sm:$0x1]
  %v1976 = vld [vmem:[%s0 + $0x308] sm:$0x1]
  %v1977 = vld [vmem:[%s0 + $0x318] sm:$0x1]
  %v1978 = vld [vmem:[%s0 + $0x328] sm:$0x1]
  %v1979 = vld [vmem:[%s0 + $0x338] sm:$0x1]
  %v1980 = vld [vmem:[%s0 + $0x348] sm:$0x1]
  %v1981 = vld [vmem:[%s0 + $0x358] sm:$0x1]
  %v1982 = vld [vmem:[%s0 + $0x368] sm:$0x1]
  %v1983 = vld [vmem:[%s0 + $0x378] sm:$0x1]
  %v1984 = vld [vmem:[%s0 + $0x388] sm:$0x1]
  %v1985 = vld [vmem:[%s0 + $0x398] sm:$0x1]
  %v1986 = vld [vmem:[%s0 + $0x3a8] sm:$0x1]
  %v1987 = vld [vmem:[%s0 + $0x3b8] sm:$0x1]
  %v1988 = vld [vmem:[%s0 + $0x3c8] sm:$0x1]
  %v1989 = vld [vmem:[%s0 + $0x3d8] sm:$0x1]
  %v1990 = vld [vmem:[%s0 + $0x3e8] sm:$0x1]
  %v1991 = vld [vmem:[%s0 + $0x3f8] sm:$0x1]
  %v1992 = vld [vmem:[%s0 + $0x408] sm:$0x1]
  %v1993 = vld [vmem:[%s0 + $0x418] sm:$0x1]
  %v1994 = vld [vmem:[%s0 + $0x428] sm:$0x1]
  %v1995 = vld [vmem:[%s0 + $0x438] sm:$0x1]
  %v1996 = vld [vmem:[%s0 + $0x448] sm:$0x1]
  %v1997 = vld [vmem:[%s0 + $0x458] sm:$0x1]
  %v1998 = vld [vmem:[%s0 + $0x468] sm:$0x1]
  %v1999 = vld [vmem:[%s0 + $0x478] sm:$0x1]
  %v2000 = vld [vmem:[%s0 + $0x488] sm:$0x1]
  %v2001 = vld [vmem:[%s0 + $0x498] sm:$0x1]
  %v2002 = vld [vmem:[%s0 + $0x4a8] sm:$0x1]
  %v2003 = vld [vmem:[%s0 + $0x4b8] sm:$0x1]
  %v2004 = vld [vmem:[%s0 + $0x4c8] sm:$0x1]
  %v2005 = vld [vmem:[%s0 + $0x4d8] sm:$0x1]
  %v2006 = vld [vmem:[%s0 + $0x4e8] sm:$0x1]
  %v2007 = vld [vmem:[%s0 + $0x4f8] sm:$0x1]
  %v2008 = vld [vmem:[%s0 + $0x508] sm:$0x1]
  %v2009 = vld [vmem:[%s0 + $0x518] sm:$0x1]
  %v2010 = vld [vmem:[%s0 + $0x528] sm:$0x1]
  %v2011 = vld [vmem:[%s0 + $0x538] sm:$0x1]
  %v2012 = vld [vmem:[%s0 + $0x548] sm:$0x1]
  %v2013 = vld [vmem:[%s0 + $0x558] sm:$0x1]
  %v2014 = vld [vmem:[%s0 + $0x568] sm:$0x1]
  %v2015 = vld [vmem:[%s0 + $0x578] sm:$0x1]
  %v2016 = vld [vmem:[%s0 + $0x588] sm:$0x1]
  %v2017 = vld [vmem:[%s0 + $0x598] sm:$0x1]
  %v2018 = vld [vmem:[%s0 + $0x5a8] sm:$0x1]
  %v2019 = vld [vmem:[%s0 + $0x5b8] sm:$0x1]
  %v2020 = vld [vmem:[%s0 + $0x5c8] sm:$0x1]
  %v2021 = vld [vmem:[%s0 + $0x5d8] sm:$0x1]
  %v2022 = vld [vmem:[%s0 + $0x5e8] sm:$0x1]
  %v2023 = vld [vmem:[%s0 + $0x5f8] sm:$0x1]
  %v2024 = vld [vmem:[%s0 + $0x608] sm:$0x1]
  %v2025 = vld [vmem:[%s0 + $0x618] sm:$0x1]
  %v2026 = vld [vmem:[%s0 + $0x628] sm:$0x1]
  %v2027 = vld [vmem:[%s0 + $0x638] sm:$0x1]
  %v2028 = vld [vmem:[%s0 + $0x648] sm:$0x1]
  %v2029 = vld [vmem:[%s0 + $0x658] sm:$0x1]
  %v2030 = vld [vmem:[%s0 + $0x668] sm:$0x1]
  %v2031 = vld [vmem:[%s0 + $0x678] sm:$0x1]
  %v2032 = vld [vmem:[%s0 + $0x688] sm:$0x1]
  %v2033 = vld [vmem:[%s0 + $0x698] sm:$0x1]
  %v2034 = vld [vmem:[%s0 + $0x6a8] sm:$0x1]
  %v2035 = vld [vmem:[%s0 + $0x6b8] sm:$0x1]
  %v2036 = vld [vmem:[%s0 + $0x6c8] sm:$0x1]
  %v2037 = vld [vmem:[%s0 + $0x6d8] sm:$0x1]
  %v2038 = vld [vmem:[%s0 + $0x6e8] sm:$0x1]
  %v2039 = vld [vmem:[%s0 + $0x6f8] sm:$0x1]
  %v2040 = vld [vmem:[%s0 + $0x708] sm:$0x1]
  %v2041 = vld [vmem:[%s0 + $0x718] sm:$0x1]
  %v2042 = vld [vmem:[%s0 + $0x728] sm:$0x1]
  %v2043 = vld [vmem:[%s0 + $0x738] sm:$0x1]
  %v2044 = vld [vmem:[%s0 + $0x748] sm:$0x1]
  %v2045 = vld [vmem:[%s0 + $0x758] sm:$0x1]
  %v2046 = vld [vmem:[%s0 + $0x768] sm:$0x1]
  %v2047 = vld [vmem:[%s0 + $0x778] sm:$0x1]
  %v2048 = vld [vmem:[%s0 + $0x788] sm:$0x1]
  %v2049 = vld [vmem:[%s0 + $0x798] sm:$0x1]
  %v2050 = vld [vmem:[%s0 + $0x7a8] sm:$0x1]
  %v2051 = vld [vmem:[%s0 + $0x7b8] sm:$0x1]
  %v2052 = vld [vmem:[%s0 + $0x7c8] sm:$0x1]
  %v2053 = vld [vmem:[%s0 + $0x7d8] sm:$0x1]
  %v2054 = vld [vmem:[%s0 + $0x7e8] sm:$0x1]
  %v2055 = vld [vmem:[%s0 + $0x7f8] sm:$0x1]
  %v2056 = vmax.f32 %v1800, %v1928
  %v2057 = vmax.f32 %v1801, %v1929
  %v2058 = vmax.f32 %v1802, %v1930
  %v2059 = vmax.f32 %v1803, %v1931
  %v2060 = vmax.f32 %v1804, %v1932
  %v2061 = vmax.f32 %v1805, %v1933
  %v2062 = vmax.f32 %v1806, %v1934
  %v2063 = vmax.f32 %v1807, %v1935
  %v2064 = vmax.f32 %v1808, %v1936
  %v2065 = vmax.f32 %v1809, %v1937
  %v2066 = vmax.f32 %v1810, %v1938
  %v2067 = vmax.f32 %v1811, %v1939
  %v2068 = vmax.f32 %v1812, %v1940
  %v2069 = vmax.f32 %v1813, %v1941
  %v2070 = vmax.f32 %v1814, %v1942
  %v2071 = vmax.f32 %v1815, %v1943
  %v2072 = vmax.f32 %v1816, %v1944
  %v2073 = vmax.f32 %v1817, %v1945
  %v2074 = vmax.f32 %v1818, %v1946
  %v2075 = vmax.f32 %v1819, %v1947
  %v2076 = vmax.f32 %v1820, %v1948
  %v2077 = vmax.f32 %v1821, %v1949
  %v2078 = vmax.f32 %v1822, %v1950
  %v2079 = vmax.f32 %v1823, %v1951
  %v2080 = vmax.f32 %v1824, %v1952
  %v2081 = vmax.f32 %v1825, %v1953
  %v2082 = vmax.f32 %v1826, %v1954
  %v2083 = vmax.f32 %v1827, %v1955
  %v2084 = vmax.f32 %v1828, %v1956
  %v2085 = vmax.f32 %v1829, %v1957
  %v2086 = vmax.f32 %v1830, %v1958
  %v2087 = vmax.f32 %v1831, %v1959
  %v2088 = vmax.f32 %v1832, %v1960
  %v2089 = vmax.f32 %v1833, %v1961
  %v2090 = vmax.f32 %v1834, %v1962
  %v2091 = vmax.f32 %v1835, %v1963
  %v2092 = vmax.f32 %v1836, %v1964
  %v2093 = vmax.f32 %v1837, %v1965
  %v2094 = vmax.f32 %v1838, %v1966
  %v2095 = vmax.f32 %v1839, %v1967
  %v2096 = vmax.f32 %v1840, %v1968
  %v2097 = vmax.f32 %v1841, %v1969
  %v2098 = vmax.f32 %v1842, %v1970
  %v2099 = vmax.f32 %v1843, %v1971
  %v2100 = vmax.f32 %v1844, %v1972
  %v2101 = vmax.f32 %v1845, %v1973
  %v2102 = vmax.f32 %v1846, %v1974
  %v2103 = vmax.f32 %v1847, %v1975
  %v2104 = vmax.f32 %v1848, %v1976
  %v2105 = vmax.f32 %v1849, %v1977
  %v2106 = vmax.f32 %v1850, %v1978
  %v2107 = vmax.f32 %v1851, %v1979
  %v2108 = vmax.f32 %v1852, %v1980
  %v2109 = vmax.f32 %v1853, %v1981
  %v2110 = vmax.f32 %v1854, %v1982
  %v2111 = vmax.f32 %v1855, %v1983
  %v2112 = vmax.f32 %v1856, %v1984
  %v2113 = vmax.f32 %v1857, %v1985
  %v2114 = vmax.f32 %v1858, %v1986
  %v2115 = vmax.f32 %v1859, %v1987
  %v2116 = vmax.f32 %v1860, %v1988
  %v2117 = vmax.f32 %v1861, %v1989
  %v2118 = vmax.f32 %v1862, %v1990
  %v2119 = vmax.f32 %v1863, %v1991
  %v2120 = vmax.f32 %v1864, %v1992
  %v2121 = vmax.f32 %v1865, %v1993
  %v2122 = vmax.f32 %v1866, %v1994
  %v2123 = vmax.f32 %v1867, %v1995
  %v2124 = vmax.f32 %v1868, %v1996
  %v2125 = vmax.f32 %v1869, %v1997
  %v2126 = vmax.f32 %v1870, %v1998
  %v2127 = vmax.f32 %v1871, %v1999
  %v2128 = vmax.f32 %v1872, %v2000
  %v2129 = vmax.f32 %v1873, %v2001
  %v2130 = vmax.f32 %v1874, %v2002
  %v2131 = vmax.f32 %v1875, %v2003
  %v2132 = vmax.f32 %v1876, %v2004
  %v2133 = vmax.f32 %v1877, %v2005
  %v2134 = vmax.f32 %v1878, %v2006
  %v2135 = vmax.f32 %v1879, %v2007
  %v2136 = vmax.f32 %v1880, %v2008
  %v2137 = vmax.f32 %v1881, %v2009
  %v2138 = vmax.f32 %v1882, %v2010
  %v2139 = vmax.f32 %v1883, %v2011
  %v2140 = vmax.f32 %v1884, %v2012
  %v2141 = vmax.f32 %v1885, %v2013
  %v2142 = vmax.f32 %v1886, %v2014
  %v2143 = vmax.f32 %v1887, %v2015
  %v2144 = vmax.f32 %v1888, %v2016
  %v2145 = vmax.f32 %v1889, %v2017
  %v2146 = vmax.f32 %v1890, %v2018
  %v2147 = vmax.f32 %v1891, %v2019
  %v2148 = vmax.f32 %v1892, %v2020
  %v2149 = vmax.f32 %v1893, %v2021
  %v2150 = vmax.f32 %v1894, %v2022
  %v2151 = vmax.f32 %v1895, %v2023
  %v2152 = vmax.f32 %v1896, %v2024
  %v2153 = vmax.f32 %v1897, %v2025
  %v2154 = vmax.f32 %v1898, %v2026
  %v2155 = vmax.f32 %v1899, %v2027
  %v2156 = vmax.f32 %v1900, %v2028
  %v2157 = vmax.f32 %v1901, %v2029
  %v2158 = vmax.f32 %v1902, %v2030
  %v2159 = vmax.f32 %v1903, %v2031
  %v2160 = vmax.f32 %v1904, %v2032
  %v2161 = vmax.f32 %v1905, %v2033
  %v2162 = vmax.f32 %v1906, %v2034
  %v2163 = vmax.f32 %v1907, %v2035
  %v2164 = vmax.f32 %v1908, %v2036
  %v2165 = vmax.f32 %v1909, %v2037
  %v2166 = vmax.f32 %v1910, %v2038
  %v2167 = vmax.f32 %v1911, %v2039
  %v2168 = vmax.f32 %v1912, %v2040
  %v2169 = vmax.f32 %v1913, %v2041
  %v2170 = vmax.f32 %v1914, %v2042
  %v2171 = vmax.f32 %v1915, %v2043
  %v2172 = vmax.f32 %v1916, %v2044
  %v2173 = vmax.f32 %v1917, %v2045
  %v2174 = vmax.f32 %v1918, %v2046
  %v2175 = vmax.f32 %v1919, %v2047
  %v2176 = vmax.f32 %v1920, %v2048
  %v2177 = vmax.f32 %v1921, %v2049
  %v2178 = vmax.f32 %v1922, %v2050
  %v2179 = vmax.f32 %v1923, %v2051
  %v2180 = vmax.f32 %v1924, %v2052
  %v2181 = vmax.f32 %v1925, %v2053
  %v2182 = vmax.f32 %v1926, %v2054
  %v2183 = vmax.f32 %v1927, %v2055
  %v2312 = vrot.slane %v2057, 7
  %vm2313 = vcmask 1041409
  %v2314 = vsel %vm2313, %v2312, %v2056
  %v2315 = vrot.slane %v2058, 6
  %vm2316 = vcmask 1042434
  %v2317 = vsel %vm2316, %v2315, %v2314
  %v2318 = vrot.slane %v2059, 5
  %vm2319 = vcmask 1043459
  %v2320 = vsel %vm2319, %v2318, %v2317
  %v2321 = vrot.slane %v2060, 4
  %vm2322 = vcmask 1044484
  %v2323 = vsel %vm2322, %v2321, %v2320
  %v2324 = vrot.slane %v2061, 3
  %vm2325 = vcmask 1045509
  %v2326 = vsel %vm2325, %v2324, %v2323
  %v2327 = vrot.slane %v2062, 2
  %vm2328 = vcmask 1046534
  %v2329 = vsel %vm2328, %v2327, %v2326
  %v2330 = vrot.slane %v2063, 1
  %vm2331 = vcmask 1047559
  %v2332 = vsel %vm2331, %v2330, %v2329
  %v2333 = vrot.slane %v2065, 7
  %v2334 = vsel %vm2313, %v2333, %v2064
  %v2335 = vrot.slane %v2066, 6
  %v2336 = vsel %vm2316, %v2335, %v2334
  %v2337 = vrot.slane %v2067, 5
  %v2338 = vsel %vm2319, %v2337, %v2336
  %v2339 = vrot.slane %v2068, 4
  %v2340 = vsel %vm2322, %v2339, %v2338
  %v2341 = vrot.slane %v2069, 3
  %v2342 = vsel %vm2325, %v2341, %v2340
  %v2343 = vrot.slane %v2070, 2
  %v2344 = vsel %vm2328, %v2343, %v2342
  %v2345 = vrot.slane %v2071, 1
  %v2346 = vsel %vm2331, %v2345, %v2344
  %v2347 = vrot.slane %v2073, 7
  %v2348 = vsel %vm2313, %v2347, %v2072
  %v2349 = vrot.slane %v2074, 6
  %v2350 = vsel %vm2316, %v2349, %v2348
  %v2351 = vrot.slane %v2075, 5
  %v2352 = vsel %vm2319, %v2351, %v2350
  %v2353 = vrot.slane %v2076, 4
  %v2354 = vsel %vm2322, %v2353, %v2352
  %v2355 = vrot.slane %v2077, 3
  %v2356 = vsel %vm2325, %v2355, %v2354
  %v2357 = vrot.slane %v2078, 2
  %v2358 = vsel %vm2328, %v2357, %v2356
  %v2359 = vrot.slane %v2079, 1
  %v2360 = vsel %vm2331, %v2359, %v2358
  %v2361 = vrot.slane %v2081, 7
  %v2362 = vsel %vm2313, %v2361, %v2080
  %v2363 = vrot.slane %v2082, 6
  %v2364 = vsel %vm2316, %v2363, %v2362
  %v2365 = vrot.slane %v2083, 5
  %v2366 = vsel %vm2319, %v2365, %v2364
  %v2367 = vrot.slane %v2084, 4
  %v2368 = vsel %vm2322, %v2367, %v2366
  %v2369 = vrot.slane %v2085, 3
  %v2370 = vsel %vm2325, %v2369, %v2368
  %v2371 = vrot.slane %v2086, 2
  %v2372 = vsel %vm2328, %v2371, %v2370
  %v2373 = vrot.slane %v2087, 1
  %v2374 = vsel %vm2331, %v2373, %v2372
  %v2375 = vrot.slane %v2089, 7
  %v2376 = vsel %vm2313, %v2375, %v2088
  %v2377 = vrot.slane %v2090, 6
  %v2378 = vsel %vm2316, %v2377, %v2376
  %v2379 = vrot.slane %v2091, 5
  %v2380 = vsel %vm2319, %v2379, %v2378
  %v2381 = vrot.slane %v2092, 4
  %v2382 = vsel %vm2322, %v2381, %v2380
  %v2383 = vrot.slane %v2093, 3
  %v2384 = vsel %vm2325, %v2383, %v2382
  %v2385 = vrot.slane %v2094, 2
  %v2386 = vsel %vm2328, %v2385, %v2384
  %v2387 = vrot.slane %v2095, 1
  %v2388 = vsel %vm2331, %v2387, %v2386
  %v2389 = vrot.slane %v2097, 7
  %v2390 = vsel %vm2313, %v2389, %v2096
  %v2391 = vrot.slane %v2098, 6
  %v2392 = vsel %vm2316, %v2391, %v2390
  %v2393 = vrot.slane %v2099, 5
  %v2394 = vsel %vm2319, %v2393, %v2392
  %v2395 = vrot.slane %v2100, 4
  %v2396 = vsel %vm2322, %v2395, %v2394
  %v2397 = vrot.slane %v2101, 3
  %v2398 = vsel %vm2325, %v2397, %v2396
  %v2399 = vrot.slane %v2102, 2
  %v2400 = vsel %vm2328, %v2399, %v2398
  %v2401 = vrot.slane %v2103, 1
  %v2402 = vsel %vm2331, %v2401, %v2400
  %v2403 = vrot.slane %v2105, 7
  %v2404 = vsel %vm2313, %v2403, %v2104
  %v2405 = vrot.slane %v2106, 6
  %v2406 = vsel %vm2316, %v2405, %v2404
  %v2407 = vrot.slane %v2107, 5
  %v2408 = vsel %vm2319, %v2407, %v2406
  %v2409 = vrot.slane %v2108, 4
  %v2410 = vsel %vm2322, %v2409, %v2408
  %v2411 = vrot.slane %v2109, 3
  %v2412 = vsel %vm2325, %v2411, %v2410
  %v2413 = vrot.slane %v2110, 2
  %v2414 = vsel %vm2328, %v2413, %v2412
  %v2415 = vrot.slane %v2111, 1
  %v2416 = vsel %vm2331, %v2415, %v2414
  %v2417 = vrot.slane %v2113, 7
  %v2418 = vsel %vm2313, %v2417, %v2112
  %v2419 = vrot.slane %v2114, 6
  %v2420 = vsel %vm2316, %v2419, %v2418
  %v2421 = vrot.slane %v2115, 5
  %v2422 = vsel %vm2319, %v2421, %v2420
  %v2423 = vrot.slane %v2116, 4
  %v2424 = vsel %vm2322, %v2423, %v2422
  %v2425 = vrot.slane %v2117, 3
  %v2426 = vsel %vm2325, %v2425, %v2424
  %v2427 = vrot.slane %v2118, 2
  %v2428 = vsel %vm2328, %v2427, %v2426
  %v2429 = vrot.slane %v2119, 1
  %v2430 = vsel %vm2331, %v2429, %v2428
  %v2431 = vrot.slane %v2121, 7
  %v2432 = vsel %vm2313, %v2431, %v2120
  %v2433 = vrot.slane %v2122, 6
  %v2434 = vsel %vm2316, %v2433, %v2432
  %v2435 = vrot.slane %v2123, 5
  %v2436 = vsel %vm2319, %v2435, %v2434
  %v2437 = vrot.slane %v2124, 4
  %v2438 = vsel %vm2322, %v2437, %v2436
  %v2439 = vrot.slane %v2125, 3
  %v2440 = vsel %vm2325, %v2439, %v2438
  %v2441 = vrot.slane %v2126, 2
  %v2442 = vsel %vm2328, %v2441, %v2440
  %v2443 = vrot.slane %v2127, 1
  %v2444 = vsel %vm2331, %v2443, %v2442
  %v2445 = vrot.slane %v2129, 7
  %v2446 = vsel %vm2313, %v2445, %v2128
  %v2447 = vrot.slane %v2130, 6
  %v2448 = vsel %vm2316, %v2447, %v2446
  %v2449 = vrot.slane %v2131, 5
  %v2450 = vsel %vm2319, %v2449, %v2448
  %v2451 = vrot.slane %v2132, 4
  %v2452 = vsel %vm2322, %v2451, %v2450
  %v2453 = vrot.slane %v2133, 3
  %v2454 = vsel %vm2325, %v2453, %v2452
  %v2455 = vrot.slane %v2134, 2
  %v2456 = vsel %vm2328, %v2455, %v2454
  %v2457 = vrot.slane %v2135, 1
  %v2458 = vsel %vm2331, %v2457, %v2456
  %v2459 = vrot.slane %v2137, 7
  %v2460 = vsel %vm2313, %v2459, %v2136
  %v2461 = vrot.slane %v2138, 6
  %v2462 = vsel %vm2316, %v2461, %v2460
  %v2463 = vrot.slane %v2139, 5
  %v2464 = vsel %vm2319, %v2463, %v2462
  %v2465 = vrot.slane %v2140, 4
  %v2466 = vsel %vm2322, %v2465, %v2464
  %v2467 = vrot.slane %v2141, 3
  %v2468 = vsel %vm2325, %v2467, %v2466
  %v2469 = vrot.slane %v2142, 2
  %v2470 = vsel %vm2328, %v2469, %v2468
  %v2471 = vrot.slane %v2143, 1
  %v2472 = vsel %vm2331, %v2471, %v2470
  %v2473 = vrot.slane %v2145, 7
  %v2474 = vsel %vm2313, %v2473, %v2144
  %v2475 = vrot.slane %v2146, 6
  %v2476 = vsel %vm2316, %v2475, %v2474
  %v2477 = vrot.slane %v2147, 5
  %v2478 = vsel %vm2319, %v2477, %v2476
  %v2479 = vrot.slane %v2148, 4
  %v2480 = vsel %vm2322, %v2479, %v2478
  %v2481 = vrot.slane %v2149, 3
  %v2482 = vsel %vm2325, %v2481, %v2480
  %v2483 = vrot.slane %v2150, 2
  %v2484 = vsel %vm2328, %v2483, %v2482
  %v2485 = vrot.slane %v2151, 1
  %v2486 = vsel %vm2331, %v2485, %v2484
  %v2487 = vrot.slane %v2153, 7
  %v2488 = vsel %vm2313, %v2487, %v2152
  %v2489 = vrot.slane %v2154, 6
  %v2490 = vsel %vm2316, %v2489, %v2488
  %v2491 = vrot.slane %v2155, 5
  %v2492 = vsel %vm2319, %v2491, %v2490
  %v2493 = vrot.slane %v2156, 4
  %v2494 = vsel %vm2322, %v2493, %v2492
  %v2495 = vrot.slane %v2157, 3
  %v2496 = vsel %vm2325, %v2495, %v2494
  %v2497 = vrot.slane %v2158, 2
  %v2498 = vsel %vm2328, %v2497, %v2496
  %v2499 = vrot.slane %v2159, 1
  %v2500 = vsel %vm2331, %v2499, %v2498
  %v2501 = vrot.slane %v2161, 7
  %v2502 = vsel %vm2313, %v2501, %v2160
  %v2503 = vrot.slane %v2162, 6
  %v2504 = vsel %vm2316, %v2503, %v2502
  %v2505 = vrot.slane %v2163, 5
  %v2506 = vsel %vm2319, %v2505, %v2504
  %v2507 = vrot.slane %v2164, 4
  %v2508 = vsel %vm2322, %v2507, %v2506
  %v2509 = vrot.slane %v2165, 3
  %v2510 = vsel %vm2325, %v2509, %v2508
  %v2511 = vrot.slane %v2166, 2
  %v2512 = vsel %vm2328, %v2511, %v2510
  %v2513 = vrot.slane %v2167, 1
  %v2514 = vsel %vm2331, %v2513, %v2512
  %v2515 = vrot.slane %v2169, 7
  %v2516 = vsel %vm2313, %v2515, %v2168
  %v2517 = vrot.slane %v2170, 6
  %v2518 = vsel %vm2316, %v2517, %v2516
  %v2519 = vrot.slane %v2171, 5
  %v2520 = vsel %vm2319, %v2519, %v2518
  %v2521 = vrot.slane %v2172, 4
  %v2522 = vsel %vm2322, %v2521, %v2520
  %v2523 = vrot.slane %v2173, 3
  %v2524 = vsel %vm2325, %v2523, %v2522
  %v2525 = vrot.slane %v2174, 2
  %v2526 = vsel %vm2328, %v2525, %v2524
  %v2527 = vrot.slane %v2175, 1
  %v2528 = vsel %vm2331, %v2527, %v2526
  %v2529 = vrot.slane %v2177, 7
  %v2530 = vsel %vm2313, %v2529, %v2176
  %v2531 = vrot.slane %v2178, 6
  %v2532 = vsel %vm2316, %v2531, %v2530
  %v2533 = vrot.slane %v2179, 5
  %v2534 = vsel %vm2319, %v2533, %v2532
  %v2535 = vrot.slane %v2180, 4
  %v2536 = vsel %vm2322, %v2535, %v2534
  %v2537 = vrot.slane %v2181, 3
  %v2538 = vsel %vm2325, %v2537, %v2536
  %v2539 = vrot.slane %v2182, 2
  %v2540 = vsel %vm2328, %v2539, %v2538
  %v2541 = vrot.slane %v2183, 1
  %v2542 = vsel %vm2331, %v2541, %v2540
  %2559 = vst [vmem:[%s1] sm:$0xff] %v2332
  %2560 = vst [vmem:[%s1 + $0x8] sm:$0xff] %v2346
  %2561 = vst [vmem:[%s1 + $0x10] sm:$0xff] %v2360
  %2562 = vst [vmem:[%s1 + $0x18] sm:$0xff] %v2374
  %2563 = vst [vmem:[%s1 + $0x20] sm:$0xff] %v2388
  %2564 = vst [vmem:[%s1 + $0x28] sm:$0xff] %v2402
  %2565 = vst [vmem:[%s1 + $0x30] sm:$0xff] %v2416
  %2566 = vst [vmem:[%s1 + $0x38] sm:$0xff] %v2430
  %2567 = vst [vmem:[%s1 + $0x40] sm:$0xff] %v2444
  %2568 = vst [vmem:[%s1 + $0x48] sm:$0xff] %v2458
  %2569 = vst [vmem:[%s1 + $0x50] sm:$0xff] %v2472
  %2570 = vst [vmem:[%s1 + $0x58] sm:$0xff] %v2486
  %2571 = vst [vmem:[%s1 + $0x60] sm:$0xff] %v2500
  %2572 = vst [vmem:[%s1 + $0x68] sm:$0xff] %v2514
  %2573 = vst [vmem:[%s1 + $0x70] sm:$0xff] %v2528
  %2574 = vst [vmem:[%s1 + $0x78] sm:$0xff] %v2542
  // Predicated region
  $region6: #{_lambda_.43} parent=0 // pred_check
    _
  $region7: #{_lambda_.43} parent=0 // pred_check_branch
    %2576 = sbr.rel (0) target = $region9
  $region8: #{_lambda_.43} parent=0 // pred_region
    _
  $region9: #{_lambda_.43} parent=0 // pred_fallthru
    _
  // Predicated region
  $region10: #{_lambda_.43} parent=0 // pred_check
    _
  $region11: #{_lambda_.43} parent=0 // pred_check_branch
    %2578 = sbr.rel (0) target = $region13
  $region12: #{_lambda_.43} parent=0 // pred_region
    _
  $region13: #{_lambda_.43} parent=0 // pred_fallthru
    _

// kernel: _lambda_.44
$region0: #{_lambda_.44}
  #allocation0 [shape = 'u32[]', space=smem, size = 0x4, offset = 0x4, fixed_abs, tag = 'smem constant byte address 0x4 - core index']
  #allocation1 [shape = 'u32[144,128]{1,0:T(1,128)}', space=vmem, size = 0x12000, scoped, tag = 'internal scratch']
  #allocation2 [shape = 'f32[128,128]{1,0:T(8,128)}', space=vmem, size = 0x10000, scoped, tag = 'scratch operand']
  %s0 = inlined_call_operand.vmem [shape: bf16[128,128], index: 0, kind: input, shape index: {}]
  %s1 = inlined_call_operand.vmem [shape: bf16[128,128], index: 1, kind: input, shape index: {}]
  %s2 = inlined_call_operand.vmem [shape: f32[128,128], index: 2, kind: output, shape index: {0}]
  %s3 = inlined_call_operand.vmem [shape: f32[1,2,128], index: 3, kind: output, shape index: {1}]
  %4 = xla_tuple %s2, %s3
  %s5 = sld [smem:[#allocation0]]
  $region34: #{_lambda_.44} parent=0
    _
  %s7 = ssub.s32 1, %s5
  %s8 = scalar_select 0, %s7, %s5
  // Predicated region
  $region2: #{_lambda_.44} parent=0 // pred_check
    _
  $region3: #{_lambda_.44} parent=0 // pred_check_branch
    %10 = sbr.rel (0) target = $region5
  $region4: #{_lambda_.44} parent=0 // pred_region
    _
  $region5: #{_lambda_.44} parent=0 // pred_fallthru
    _
  // Predicated region
  $region6: #{_lambda_.44} parent=0 // pred_check
    _
  $region7: #{_lambda_.44} parent=0 // pred_check_branch
    %12 = sbr.rel (0) target = $region9
  $region8: #{_lambda_.44} parent=0 // pred_region
    _
  $region9: #{_lambda_.44} parent=0 // pred_fallthru
    _
  %p14 = scmp.eq.s32.totalorder 0, 0
  // Predicated region
  $region10: #{_lambda_.44} parent=0 // pred_check
    %p15 = pneg %p14
  $region11: #{_lambda_.44} parent=0 // pred_check_branch
    %17 = sbr.rel (%p15) target = $region13
  $region12: #{_lambda_.44} parent=0 // pred_region
    %18 = vst [vmem:[#allocation2] sm:$0xff] 0.0
    %19 = vst [vmem:[#allocation2 + $0x8] sm:$0xff] 0.0
    %20 = vst [vmem:[#allocation2 + $0x10] sm:$0xff] 0.0
    %21 = vst [vmem:[#allocation2 + $0x18] sm:$0xff] 0.0
    %22 = vst [vmem:[#allocation2 + $0x20] sm:$0xff] 0.0
    %23 = vst [vmem:[#allocation2 + $0x28] sm:$0xff] 0.0
    %24 = vst [vmem:[#allocation2 + $0x30] sm:$0xff] 0.0
    %25 = vst [vmem:[#allocation2 + $0x38] sm:$0xff] 0.0
    %26 = vst [vmem:[#allocation2 + $0x40] sm:$0xff] 0.0
    %27 = vst [vmem:[#allocation2 + $0x48] sm:$0xff] 0.0
    %28 = vst [vmem:[#allocation2 + $0x50] sm:$0xff] 0.0
    %29 = vst [vmem:[#allocation2 + $0x58] sm:$0xff] 0.0
    %30 = vst [vmem:[#allocation2 + $0x60] sm:$0xff] 0.0
    %31 = vst [vmem:[#allocation2 + $0x68] sm:$0xff] 0.0
    %32 = vst [vmem:[#allocation2 + $0x70] sm:$0xff] 0.0
    %33 = vst [vmem:[#allocation2 + $0x78] sm:$0xff] 0.0
  $region13: #{_lambda_.44} parent=0 // pred_fallthru
    _
  %v34 = vld [vmem:[#allocation2] sm:$0xff]
  %v35 = vld [vmem:[#allocation2 + $0x8] sm:$0xff]
  %v36 = vld [vmem:[#allocation2 + $0x10] sm:$0xff]
  %v37 = vld [vmem:[#allocation2 + $0x18] sm:$0xff]
  %v38 = vld [vmem:[#allocation2 + $0x20] sm:$0xff]
  %v39 = vld [vmem:[#allocation2 + $0x28] sm:$0xff]
  %v40 = vld [vmem:[#allocation2 + $0x30] sm:$0xff]
  %v41 = vld [vmem:[#allocation2 + $0x38] sm:$0xff]
  %v42 = vld [vmem:[#allocation2 + $0x40] sm:$0xff]
  %v43 = vld [vmem:[#allocation2 + $0x48] sm:$0xff]
  %v44 = vld [vmem:[#allocation2 + $0x50] sm:$0xff]
  %v45 = vld [vmem:[#allocation2 + $0x58] sm:$0xff]
  %v46 = vld [vmem:[#allocation2 + $0x60] sm:$0xff]
  %v47 = vld [vmem:[#allocation2 + $0x68] sm:$0xff]
  %v48 = vld [vmem:[#allocation2 + $0x70] sm:$0xff]
  %v49 = vld [vmem:[#allocation2 + $0x78] sm:$0xff]
  %v50 = vld [vmem:[%s0] sm:$0xf]
  %v51 = vld [vmem:[%s0 + $0x4] sm:$0xf]
  %v52 = vld [vmem:[%s0 + $0x8] sm:$0xf]
  %v53 = vld [vmem:[%s0 + $0xc] sm:$0xf]
  %v54 = vld [vmem:[%s0 + $0x10] sm:$0xf]
  %v55 = vld [vmem:[%s0 + $0x14] sm:$0xf]
  %v56 = vld [vmem:[%s0 + $0x18] sm:$0xf]
  %v57 = vld [vmem:[%s0 + $0x1c] sm:$0xf]
  %v58 = vld [vmem:[%s0 + $0x20] sm:$0xf]
  %v59 = vld [vmem:[%s0 + $0x24] sm:$0xf]
  %v60 = vld [vmem:[%s0 + $0x28] sm:$0xf]
  %v61 = vld [vmem:[%s0 + $0x2c] sm:$0xf]
  %v62 = vld [vmem:[%s0 + $0x30] sm:$0xf]
  %v63 = vld [vmem:[%s0 + $0x34] sm:$0xf]
  %v64 = vld [vmem:[%s0 + $0x38] sm:$0xf]
  %v65 = vld [vmem:[%s0 + $0x3c] sm:$0xf]
  %v66 = vld [vmem:[%s1] sm:$0xf]
  %v67 = vld [vmem:[%s1 + $0x4] sm:$0xf]
  %v68 = vld [vmem:[%s1 + $0x8] sm:$0xf]
  %v69 = vld [vmem:[%s1 + $0xc] sm:$0xf]
  %v70 = vld [vmem:[%s1 + $0x10] sm:$0xf]
  %v71 = vld [vmem:[%s1 + $0x14] sm:$0xf]
  %v72 = vld [vmem:[%s1 + $0x18] sm:$0xf]
  %v73 = vld [vmem:[%s1 + $0x1c] sm:$0xf]
  %v74 = vld [vmem:[%s1 + $0x20] sm:$0xf]
  %v75 = vld [vmem:[%s1 + $0x24] sm:$0xf]
  %v76 = vld [vmem:[%s1 + $0x28] sm:$0xf]
  %v77 = vld [vmem:[%s1 + $0x2c] sm:$0xf]
  %v78 = vld [vmem:[%s1 + $0x30] sm:$0xf]
  %v79 = vld [vmem:[%s1 + $0x34] sm:$0xf]
  %v80 = vld [vmem:[%s1 + $0x38] sm:$0xf]
  %v81 = vld [vmem:[%s1 + $0x3c] sm:$0xf]
  %v98 = vunpack.c.l.b16 %v50
  %v99 = vunpack.c.l.b16 %v51
  %v100 = vunpack.c.l.b16 %v52
  %v101 = vunpack.c.l.b16 %v53
  %v102 = vunpack.c.l.b16 %v54
  %v103 = vunpack.c.l.b16 %v55
  %v104 = vunpack.c.l.b16 %v56
  %v105 = vunpack.c.l.b16 %v57
  %v106 = vunpack.c.l.b16 %v58
  %v107 = vunpack.c.l.b16 %v59
  %v108 = vunpack.c.l.b16 %v60
  %v109 = vunpack.c.l.b16 %v61
  %v110 = vunpack.c.l.b16 %v62
  %v111 = vunpack.c.l.b16 %v63
  %v112 = vunpack.c.l.b16 %v64
  %v113 = vunpack.c.l.b16 %v65
  %v114 = vpack.c.b16 %v99, %v98
  %v115 = vpack.c.b16 %v101, %v100
  %v116 = vpack.c.b16 %v103, %v102
  %v117 = vpack.c.b16 %v105, %v104
  %v118 = vpack.c.b16 %v107, %v106
  %v119 = vpack.c.b16 %v109, %v108
  %v120 = vpack.c.b16 %v111, %v110
  %v121 = vpack.c.b16 %v113, %v112
  %v146 = vunpack.c.l.b16 %v66
  %v147 = vunpack.c.l.b16 %v67
  %v148 = vunpack.c.l.b16 %v68
  %v149 = vunpack.c.l.b16 %v69
  %v150 = vunpack.c.l.b16 %v70
  %v151 = vunpack.c.l.b16 %v71
  %v152 = vunpack.c.l.b16 %v72
  %v153 = vunpack.c.l.b16 %v73
  %v154 = vunpack.c.l.b16 %v74
  %v155 = vunpack.c.l.b16 %v75
  %v156 = vunpack.c.l.b16 %v76
  %v157 = vunpack.c.l.b16 %v77
  %v158 = vunpack.c.l.b16 %v78
  %v159 = vunpack.c.l.b16 %v79
  %v160 = vunpack.c.l.b16 %v80
  %v161 = vunpack.c.l.b16 %v81
  %v162 = vpack.c.b16 %v147, %v146
  %v163 = vpack.c.b16 %v149, %v148
  %v164 = vpack.c.b16 %v151, %v150
  %v165 = vpack.c.b16 %v153, %v152
  %v166 = vpack.c.b16 %v155, %v154
  %v167 = vpack.c.b16 %v157, %v156
  %v168 = vpack.c.b16 %v159, %v158
  %v169 = vpack.c.b16 %v161, %v160
  %178 = vmatprep.subr.bf16.mxu0 0
  %179 = vmatpush1.bf16.msra.mxu0 %v162
  %180 = vmatprep.subr.bf16.mxu0 0
  %181 = vmatpush1.bf16.msra.mxu0 %v163
  %182 = vmatprep.subr.bf16.mxu0 0
  %183 = vmatpush1.bf16.msra.mxu0 %v164
  %184 = vmatprep.subr.bf16.mxu0 0
  %185 = vmatpush1.bf16.msra.mxu0 %v165
  %186 = vmatprep.subr.bf16.mxu0 0
  %187 = vmatpush1.bf16.msra.mxu0 %v166
  %188 = vmatprep.subr.bf16.mxu0 0
  %189 = vmatpush1.bf16.msra.mxu0 %v167
  %190 = vmatprep.subr.bf16.mxu0 0
  %191 = vmatpush1.bf16.msra.mxu0 %v168
  %192 = vmatprep.subr.bf16.mxu0 0
  %193 = vmatpush1.bf16.msra.mxu0 %v169
  %194 = vmatprep.subr.bf16.mxu0 0
  %195 = vmatpush1.bf16.msra.mxu0 0
  %196 = vmatprep.subr.bf16.mxu0 0
  %197 = vmatpush1.bf16.msra.mxu0 0
  %198 = vmatprep.subr.bf16.mxu0 0
  %199 = vmatpush1.bf16.msra.mxu0 0
  %200 = vmatprep.subr.bf16.mxu0 0
  %201 = vmatpush1.bf16.msra.mxu0 0
  %202 = vmatprep.subr.bf16.mxu0 0
  %203 = vmatpush1.bf16.msra.mxu0 0
  %204 = vmatprep.subr.bf16.mxu0 0
  %205 = vmatpush1.bf16.msra.mxu0 0
  %206 = vmatprep.subr.bf16.mxu0 0
  %207 = vmatpush1.bf16.msra.mxu0 0
  %208 = vmatprep.subr.bf16.mxu0 0
  %209 = vmatpush1.bf16.msra.mxu0 0
  %210 = vmatprep.mubr.bf16.mxu0 0
  %211 = vmatmul.mubr.bf16.gmra.mrb[0].mxu0 %v114
  %v212 = vpop.f32.mrb[0].mxu0
  %v213 = vadd.f32 0.0, %v212
  %v214 = vpop.f32.mrb[0].mxu0
  %v215 = vpop.f32.mrb[0].mxu0
  %v216 = vadd.f32 0.0, %v215
  %v217 = vpop.f32.mrb[0].mxu0
  %218 = vmatprep.mubr.bf16.mxu0 0
  %219 = vmatmul.mubr.bf16.gmra.mrb[0].mxu0 %v115
  %v220 = vpop.f32.mrb[0].mxu0
  %v221 = vadd.f32 0.0, %v220
  %v222 = vpop.f32.mrb[0].mxu0
  %v223 = vpop.f32.mrb[0].mxu0
  %v224 = vadd.f32 0.0, %v223
  %v225 = vpop.f32.mrb[0].mxu0
  %226 = vmatprep.mubr.bf16.mxu0 0
  %227 = vmatmul.mubr.bf16.gmra.mrb[0].mxu0 %v116
  %v228 = vpop.f32.mrb[0].mxu0
  %v229 = vadd.f32 0.0, %v228
  %v230 = vpop.f32.mrb[0].mxu0
  %v231 = vpop.f32.mrb[0].mxu0
  %v232 = vadd.f32 0.0, %v231
  %v233 = vpop.f32.mrb[0].mxu0
  %234 = vmatprep.mubr.bf16.mxu0 0
  %235 = vmatmul.mubr.bf16.gmra.mrb[0].mxu0 %v117
  %v236 = vpop.f32.mrb[0].mxu0
  %v237 = vadd.f32 0.0, %v236
  %v238 = vpop.f32.mrb[0].mxu0
  %v239 = vpop.f32.mrb[0].mxu0
  %v240 = vadd.f32 0.0, %v239
  %v241 = vpop.f32.mrb[0].mxu0
  %242 = vmatprep.mubr.bf16.mxu0 0
  %243 = vmatmul.mubr.bf16.gmra.mrb[0].mxu0 %v118
  %v244 = vpop.f32.mrb[0].mxu0
  %v245 = vadd.f32 0.0, %v244
  %v246 = vpop.f32.mrb[0].mxu0
  %v247 = vpop.f32.mrb[0].mxu0
  %v248 = vadd.f32 0.0, %v247
  %v249 = vpop.f32.mrb[0].mxu0
  %250 = vmatprep.mubr.bf16.mxu0 0
  %251 = vmatmul.mubr.bf16.gmra.mrb[0].mxu0 %v119
  %v252 = vpop.f32.mrb[0].mxu0
  %v253 = vadd.f32 0.0, %v252
  %v254 = vpop.f32.mrb[0].mxu0
  %v255 = vpop.f32.mrb[0].mxu0
  %v256 = vadd.f32 0.0, %v255
  %v257 = vpop.f32.mrb[0].mxu0
  %258 = vmatprep.mubr.bf16.mxu0 0
  %259 = vmatmul.mubr.bf16.gmra.mrb[0].mxu0 %v120
  %v260 = vpop.f32.mrb[0].mxu0
  %v261 = vadd.f32 0.0, %v260
  %v262 = vpop.f32.mrb[0].mxu0
  %v263 = vpop.f32.mrb[0].mxu0
  %v264 = vadd.f32 0.0, %v263
  %v265 = vpop.f32.mrb[0].mxu0
  %266 = vmatprep.mubr.bf16.mxu0 0
  %267 = vmatmul.mubr.bf16.gmra.mrb[0].mxu0 %v121
  %v268 = vpop.f32.mrb[0].mxu0
  %v269 = vadd.f32 0.0, %v268
  %v270 = vpop.f32.mrb[0].mxu0
  %v271 = vpop.f32.mrb[0].mxu0
  %v272 = vadd.f32 0.0, %v271
  %v273 = vpop.f32.mrb[0].mxu0
  %274 = vdwg.mxu0
  %v275 = vadd.f32 %v34, %v213
  %v276 = vadd.f32 %v35, %v216
  %v277 = vadd.f32 %v36, %v221
  %v278 = vadd.f32 %v37, %v224
  %v279 = vadd.f32 %v38, %v229
  %v280 = vadd.f32 %v39, %v232
  %v281 = vadd.f32 %v40, %v237
  %v282 = vadd.f32 %v41, %v240
  %v283 = vadd.f32 %v42, %v245
  %v284 = vadd.f32 %v43, %v248
  %v285 = vadd.f32 %v44, %v253
  %v286 = vadd.f32 %v45, %v256
  %v287 = vadd.f32 %v46, %v261
  %v288 = vadd.f32 %v47, %v264
  %v289 = vadd.f32 %v48, %v269
  %v290 = vadd.f32 %v49, %v272
  %291 = vst [vmem:[#allocation2] sm:$0xff] %v275
  %292 = vst [vmem:[#allocation2 + $0x8] sm:$0xff] %v276
  %293 = vst [vmem:[#allocation2 + $0x10] sm:$0xff] %v277
  %294 = vst [vmem:[#allocation2 + $0x18] sm:$0xff] %v278
  %295 = vst [vmem:[#allocation2 + $0x20] sm:$0xff] %v279
  %296 = vst [vmem:[#allocation2 + $0x28] sm:$0xff] %v280
  %297 = vst [vmem:[#allocation2 + $0x30] sm:$0xff] %v281
  %298 = vst [vmem:[#allocation2 + $0x38] sm:$0xff] %v282
  %299 = vst [vmem:[#allocation2 + $0x40] sm:$0xff] %v283
  %300 = vst [vmem:[#allocation2 + $0x48] sm:$0xff] %v284
  %301 = vst [vmem:[#allocation2 + $0x50] sm:$0xff] %v285
  %302 = vst [vmem:[#allocation2 + $0x58] sm:$0xff] %v286
  %303 = vst [vmem:[#allocation2 + $0x60] sm:$0xff] %v287
  %304 = vst [vmem:[#allocation2 + $0x68] sm:$0xff] %v288
  %305 = vst [vmem:[#allocation2 + $0x70] sm:$0xff] %v289
  %306 = vst [vmem:[#allocation2 + $0x78] sm:$0xff] %v290
  // Predicated region
  $region14: #{_lambda_.44} parent=0 // pred_check
    %p307 = pneg %p14
  $region15: #{_lambda_.44} parent=0 // pred_check_branch
    %309 = sbr.rel (%p307) target = $region17
  $region16: #{_lambda_.44} parent=0 // pred_region
    %v310 = vld [vmem:[#allocation2] sm:$0xff]
    %v311 = vld [vmem:[#allocation2 + $0x8] sm:$0xff]
    %v312 = vld [vmem:[#allocation2 + $0x10] sm:$0xff]
    %v313 = vld [vmem:[#allocation2 + $0x18] sm:$0xff]
    %v314 = vld [vmem:[#allocation2 + $0x20] sm:$0xff]
    %v315 = vld [vmem:[#allocation2 + $0x28] sm:$0xff]
    %v316 = vld [vmem:[#allocation2 + $0x30] sm:$0xff]
    %v317 = vld [vmem:[#allocation2 + $0x38] sm:$0xff]
    %v318 = vld [vmem:[#allocation2 + $0x40] sm:$0xff]
    %v319 = vld [vmem:[#allocation2 + $0x48] sm:$0xff]
    %v320 = vld [vmem:[#allocation2 + $0x50] sm:$0xff]
    %v321 = vld [vmem:[#allocation2 + $0x58] sm:$0xff]
    %v322 = vld [vmem:[#allocation2 + $0x60] sm:$0xff]
    %v323 = vld [vmem:[#allocation2 + $0x68] sm:$0xff]
    %v324 = vld [vmem:[#allocation2 + $0x70] sm:$0xff]
    %v325 = vld [vmem:[#allocation2 + $0x78] sm:$0xff]
    %326 = vst [vmem:[%s2] sm:$0xff] %v310
    %327 = vst [vmem:[%s2 + $0x8] sm:$0xff] %v311
    %328 = vst [vmem:[%s2 + $0x10] sm:$0xff] %v312
    %329 = vst [vmem:[%s2 + $0x18] sm:$0xff] %v313
    %330 = vst [vmem:[%s2 + $0x20] sm:$0xff] %v314
    %331 = vst [vmem:[%s2 + $0x28] sm:$0xff] %v315
    %332 = vst [vmem:[%s2 + $0x30] sm:$0xff] %v316
    %333 = vst [vmem:[%s2 + $0x38] sm:$0xff] %v317
    %334 = vst [vmem:[%s2 + $0x40] sm:$0xff] %v318
    %335 = vst [vmem:[%s2 + $0x48] sm:$0xff] %v319
    %336 = vst [vmem:[%s2 + $0x50] sm:$0xff] %v320
    %337 = vst [vmem:[%s2 + $0x58] sm:$0xff] %v321
    %338 = vst [vmem:[%s2 + $0x60] sm:$0xff] %v322
    %339 = vst [vmem:[%s2 + $0x68] sm:$0xff] %v323
    %340 = vst [vmem:[%s2 + $0x70] sm:$0xff] %v324
    %341 = vst [vmem:[%s2 + $0x78] sm:$0xff] %v325
    %v342 = vadd.f32 %v310, %v311
    %v343 = vadd.f32 %v342, %v312
    %v344 = vadd.f32 %v343, %v313
    %v345 = vadd.f32 %v344, %v314
    %v346 = vadd.f32 %v345, %v315
    %v347 = vadd.f32 %v346, %v316
    %v348 = vadd.f32 %v347, %v317
    %v349 = vadd.f32 %v348, %v318
    %v350 = vadd.f32 %v349, %v319
    %v351 = vadd.f32 %v350, %v320
    %v352 = vadd.f32 %v351, %v321
    %v353 = vadd.f32 %v352, %v322
    %v354 = vadd.f32 %v353, %v323
    %v355 = vadd.f32 %v354, %v324
    %v356 = vadd.f32 %v355, %v325
    %v357 = vrot.slane %v356, 4
    %v358 = vadd.f32 %v356, %v357
    %v359 = vrot.slane %v358, 2
    %v360 = vadd.f32 %v358, %v359
    %v361 = vrot.slane %v360, 1
    %v362 = vadd.f32 %v360, %v361
    %v363 = vmul.f32 %v310, %v310
    %v364 = vmul.f32 %v311, %v311
    %v365 = vmul.f32 %v312, %v312
    %v366 = vmul.f32 %v313, %v313
    %v367 = vmul.f32 %v314, %v314
    %v368 = vmul.f32 %v315, %v315
    %v369 = vmul.f32 %v316, %v316
    %v370 = vmul.f32 %v317, %v317
    %v371 = vmul.f32 %v318, %v318
    %v372 = vmul.f32 %v319, %v319
    %v373 = vmul.f32 %v320, %v320
    %v374 = vmul.f32 %v321, %v321
    %v375 = vmul.f32 %v322, %v322
    %v376 = vmul.f32 %v323, %v323
    %v377 = vmul.f32 %v324, %v324
    %v378 = vmul.f32 %v325, %v325
    %v379 = vadd.f32 %v363, %v364
    %v380 = vadd.f32 %v379, %v365
    %v381 = vadd.f32 %v380, %v366
    %v382 = vadd.f32 %v381, %v367
    %v383 = vadd.f32 %v382, %v368
    %v384 = vadd.f32 %v383, %v369
    %v385 = vadd.f32 %v384, %v370
    %v386 = vadd.f32 %v385, %v371
    %v387 = vadd.f32 %v386, %v372
    %v388 = vadd.f32 %v387, %v373
    %v389 = vadd.f32 %v388, %v374
    %v390 = vadd.f32 %v389, %v375
    %v391 = vadd.f32 %v390, %v376
    %v392 = vadd.f32 %v391, %v377
    %v393 = vadd.f32 %v392, %v378
    %v394 = vrot.slane %v393, 4
    %v395 = vadd.f32 %v393, %v394
    %v396 = vrot.slane %v395, 2
    %v397 = vadd.f32 %v395, %v396
    %v398 = vrot.slane %v397, 1
    %v399 = vadd.f32 %v397, %v398
    %vm400 = vcmask 1040384
    %v401 = vsel %vm400, %v362, %v399
    %402 = vst [vmem:[%s3] sm:$0x3] %v401
  $region17: #{_lambda_.44} parent=0 // pred_fallthru
    _
  // Predicated region
  $region18: #{_lambda_.44} parent=0 // pred_check
    _
  $region19: #{_lambda_.44} parent=0 // pred_check_branch
    %404 = sbr.rel (0) target = $region21
  $region20: #{_lambda_.44} parent=0 // pred_region
    _
  $region21: #{_lambda_.44} parent=0 // pred_fallthru
    _
  // Predicated region
  $region22: #{_lambda_.44} parent=0 // pred_check
    _
  $region23: #{_lambda_.44} parent=0 // pred_check_branch
    %406 = sbr.rel (0) target = $region25
  $region24: #{_lambda_.44} parent=0 // pred_region
    _
  $region25: #{_lambda_.44} parent=0 // pred_fallthru
    _
  // Predicated region
  $region26: #{_lambda_.44} parent=0 // pred_check
    _
  $region27: #{_lambda_.44} parent=0 // pred_check_branch
    %408 = sbr.rel (0) target = $region29
  $region28: #{_lambda_.44} parent=0 // pred_region
    _
  $region29: #{_lambda_.44} parent=0 // pred_fallthru
    _
  // Predicated region
  $region30: #{_lambda_.44} parent=0 // pred_check
    _
  $region31: #{_lambda_.44} parent=0 // pred_check_branch
    %410 = sbr.rel (0) target = $region33
  $region32: #{_lambda_.44} parent=0 // pred_region
    _
  $region33: #{_lambda_.44} parent=0 // pred_fallthru
    _

// kernel: _lambda_.45
$region0: #{_lambda_.45}
  #allocation0 [shape = 'u32[]', space=smem, size = 0x4, offset = 0x4, fixed_abs, tag = 'smem constant byte address 0x4 - core index']
  #allocation1 [shape = 'u32[144,128]{1,0:T(1,128)}', space=vmem, size = 0x12000, scoped, tag = 'internal scratch']
  %s0 = inlined_call_operand.vmem [shape: f32[128,128], index: 0, kind: input, shape index: {}]
  %s1 = inlined_call_operand.vmem [shape: f32[1,128], index: 1, kind: input, shape index: {}]
  %s2 = inlined_call_operand.vmem [shape: f32[1,128], index: 2, kind: input, shape index: {}]
  %s3 = inlined_call_operand.vmem [shape: f32[128,128], index: 3, kind: output, shape index: {}]
  %s4 = sld [smem:[#allocation0]]
  $region22: #{_lambda_.45} parent=0
    _
  %s6 = ssub.s32 1, %s4
  %s7 = scalar_select 0, %s6, %s4
  // Predicated region
  $region2: #{_lambda_.45} parent=0 // pred_check
    _
  $region3: #{_lambda_.45} parent=0 // pred_check_branch
    %9 = sbr.rel (0) target = $region5
  $region4: #{_lambda_.45} parent=0 // pred_region
    _
  $region5: #{_lambda_.45} parent=0 // pred_fallthru
    _
  // Predicated region
  $region6: #{_lambda_.45} parent=0 // pred_check
    _
  $region7: #{_lambda_.45} parent=0 // pred_check_branch
    %11 = sbr.rel (0) target = $region9
  $region8: #{_lambda_.45} parent=0 // pred_region
    _
  $region9: #{_lambda_.45} parent=0 // pred_fallthru
    _
  // Predicated region
  $region10: #{_lambda_.45} parent=0 // pred_check
    _
  $region11: #{_lambda_.45} parent=0 // pred_check_branch
    %13 = sbr.rel (0) target = $region13
  $region12: #{_lambda_.45} parent=0 // pred_region
    _
  $region13: #{_lambda_.45} parent=0 // pred_fallthru
    _
  %v14 = vld [vmem:[%s0] sm:$0xff]
  %v15 = vld [vmem:[%s0 + $0x8] sm:$0xff]
  %v16 = vld [vmem:[%s0 + $0x10] sm:$0xff]
  %v17 = vld [vmem:[%s0 + $0x18] sm:$0xff]
  %v18 = vld [vmem:[%s0 + $0x20] sm:$0xff]
  %v19 = vld [vmem:[%s0 + $0x28] sm:$0xff]
  %v20 = vld [vmem:[%s0 + $0x30] sm:$0xff]
  %v21 = vld [vmem:[%s0 + $0x38] sm:$0xff]
  %v22 = vld [vmem:[%s0 + $0x40] sm:$0xff]
  %v23 = vld [vmem:[%s0 + $0x48] sm:$0xff]
  %v24 = vld [vmem:[%s0 + $0x50] sm:$0xff]
  %v25 = vld [vmem:[%s0 + $0x58] sm:$0xff]
  %v26 = vld [vmem:[%s0 + $0x60] sm:$0xff]
  %v27 = vld [vmem:[%s0 + $0x68] sm:$0xff]
  %v28 = vld [vmem:[%s0 + $0x70] sm:$0xff]
  %v29 = vld [vmem:[%s0 + $0x78] sm:$0xff]
  %v30 = vld [vmem:[%s1] sm:$0x1]
  %v32 = vlaneseq
  %v33 = vshrl.u32 %v32, 7
  %v34 = vsub.s32 0, %v33
  %v35 = vrot.slane %v30, %v34
  %v37 = vmul.f32 %v14, %v35
  %v38 = vmul.f32 %v15, %v35
  %v39 = vmul.f32 %v16, %v35
  %v40 = vmul.f32 %v17, %v35
  %v41 = vmul.f32 %v18, %v35
  %v42 = vmul.f32 %v19, %v35
  %v43 = vmul.f32 %v20, %v35
  %v44 = vmul.f32 %v21, %v35
  %v45 = vmul.f32 %v22, %v35
  %v46 = vmul.f32 %v23, %v35
  %v47 = vmul.f32 %v24, %v35
  %v48 = vmul.f32 %v25, %v35
  %v49 = vmul.f32 %v26, %v35
  %v50 = vmul.f32 %v27, %v35
  %v51 = vmul.f32 %v28, %v35
  %v52 = vmul.f32 %v29, %v35
  %v53 = vld [vmem:[%s2] sm:$0x1]
  %v55 = vlaneseq
  %v56 = vshrl.u32 %v55, 7
  %v57 = vsub.s32 0, %v56
  %v58 = vrot.slane %v53, %v57
  %v60 = vadd.f32 %v37, %v58
  %v61 = vadd.f32 %v38, %v58
  %v62 = vadd.f32 %v39, %v58
  %v63 = vadd.f32 %v40, %v58
  %v64 = vadd.f32 %v41, %v58
  %v65 = vadd.f32 %v42, %v58
  %v66 = vadd.f32 %v43, %v58
  %v67 = vadd.f32 %v44, %v58
  %v68 = vadd.f32 %v45, %v58
  %v69 = vadd.f32 %v46, %v58
  %v70 = vadd.f32 %v47, %v58
  %v71 = vadd.f32 %v48, %v58
  %v72 = vadd.f32 %v49, %v58
  %v73 = vadd.f32 %v50, %v58
  %v74 = vadd.f32 %v51, %v58
  %v75 = vadd.f32 %v52, %v58
  %v76 = vmax.f32 %v60, 0.0
  %v77 = vmax.f32 %v61, 0.0
  %v78 = vmax.f32 %v62, 0.0
  %v79 = vmax.f32 %v63, 0.0
  %v80 = vmax.f32 %v64, 0.0
  %v81 = vmax.f32 %v65, 0.0
  %v82 = vmax.f32 %v66, 0.0
  %v83 = vmax.f32 %v67, 0.0
  %v84 = vmax.f32 %v68, 0.0
  %v85 = vmax.f32 %v69, 0.0
  %v86 = vmax.f32 %v70, 0.0
  %v87 = vmax.f32 %v71, 0.0
  %v88 = vmax.f32 %v72, 0.0
  %v89 = vmax.f32 %v73, 0.0
  %v90 = vmax.f32 %v74, 0.0
  %v91 = vmax.f32 %v75, 0.0
  %92 = vst [vmem:[%s3] sm:$0xff] %v76
  %93 = vst [vmem:[%s3 + $0x8] sm:$0xff] %v77
  %94 = vst [vmem:[%s3 + $0x10] sm:$0xff] %v78
  %95 = vst [vmem:[%s3 + $0x18] sm:$0xff] %v79
  %96 = vst [vmem:[%s3 + $0x20] sm:$0xff] %v80
  %97 = vst [vmem:[%s3 + $0x28] sm:$0xff] %v81
  %98 = vst [vmem:[%s3 + $0x30] sm:$0xff] %v82
  %99 = vst [vmem:[%s3 + $0x38] sm:$0xff] %v83
  %100 = vst [vmem:[%s3 + $0x40] sm:$0xff] %v84
  %101 = vst [vmem:[%s3 + $0x48] sm:$0xff] %v85
  %102 = vst [vmem:[%s3 + $0x50] sm:$0xff] %v86
  %103 = vst [vmem:[%s3 + $0x58] sm:$0xff] %v87
  %104 = vst [vmem:[%s3 + $0x60] sm:$0xff] %v88
  %105 = vst [vmem:[%s3 + $0x68] sm:$0xff] %v89
  %106 = vst [vmem:[%s3 + $0x70] sm:$0xff] %v90
  %107 = vst [vmem:[%s3 + $0x78] sm:$0xff] %v91
  // Predicated region
  $region14: #{_lambda_.45} parent=0 // pred_check
    _
  $region15: #{_lambda_.45} parent=0 // pred_check_branch
    %109 = sbr.rel (0) target = $region17
  $region16: #{_lambda_.45} parent=0 // pred_region
    _
  $region17: #{_lambda_.45} parent=0 // pred_fallthru
    _
  // Predicated region
  $region18: #{_lambda_.45} parent=0 // pred_check
    _
  $region19: #{_lambda_.45} parent=0 // pred_check_branch
    %111 = sbr.rel (0) target = $region21
  $region20: #{_lambda_.45} parent=0 // pred_region
    _
  $region21: #{_lambda_.45} parent=0 // pred_fallthru
    _

// kernel: _lambda_.47
$region0: #{_lambda_.47}
  #allocation0 [shape = 'u32[]', space=smem, size = 0x4, offset = 0x4, fixed_abs, tag = 'smem constant byte address 0x4 - core index']
  #allocation1 [shape = 'u32[144,128]{1,0:T(1,128)}', space=vmem, size = 0x12000, scoped, tag = 'internal scratch']
  %s0 = inlined_call_operand.vmem [shape: f32[128,128], index: 0, kind: input, shape index: {}]
  %s1 = inlined_call_operand.vmem [shape: f32[1,128], index: 1, kind: input, shape index: {}]
  %s2 = inlined_call_operand.vmem [shape: f32[1,128], index: 2, kind: input, shape index: {}]
  %s3 = inlined_call_operand.vmem [shape: f32[128,128], index: 3, kind: input, shape index: {}]
  %s4 = inlined_call_operand.vmem [shape: f32[128,128], index: 4, kind: output, shape index: {}]
  %s5 = sld [smem:[#allocation0]]
  $region26: #{_lambda_.47} parent=0
    _
  %s7 = ssub.s32 1, %s5
  %s8 = scalar_select 0, %s7, %s5
  // Predicated region
  $region2: #{_lambda_.47} parent=0 // pred_check
    _
  $region3: #{_lambda_.47} parent=0 // pred_check_branch
    %10 = sbr.rel (0) target = $region5
  $region4: #{_lambda_.47} parent=0 // pred_region
    _
  $region5: #{_lambda_.47} parent=0 // pred_fallthru
    _
  // Predicated region
  $region6: #{_lambda_.47} parent=0 // pred_check
    _
  $region7: #{_lambda_.47} parent=0 // pred_check_branch
    %12 = sbr.rel (0) target = $region9
  $region8: #{_lambda_.47} parent=0 // pred_region
    _
  $region9: #{_lambda_.47} parent=0 // pred_fallthru
    _
  // Predicated region
  $region10: #{_lambda_.47} parent=0 // pred_check
    _
  $region11: #{_lambda_.47} parent=0 // pred_check_branch
    %14 = sbr.rel (0) target = $region13
  $region12: #{_lambda_.47} parent=0 // pred_region
    _
  $region13: #{_lambda_.47} parent=0 // pred_fallthru
    _
  // Predicated region
  $region14: #{_lambda_.47} parent=0 // pred_check
    _
  $region15: #{_lambda_.47} parent=0 // pred_check_branch
    %16 = sbr.rel (0) target = $region17
  $region16: #{_lambda_.47} parent=0 // pred_region
    _
  $region17: #{_lambda_.47} parent=0 // pred_fallthru
    _
  %v17 = vld [vmem:[%s0] sm:$0xff]
  %v18 = vld [vmem:[%s0 + $0x8] sm:$0xff]
  %v19 = vld [vmem:[%s0 + $0x10] sm:$0xff]
  %v20 = vld [vmem:[%s0 + $0x18] sm:$0xff]
  %v21 = vld [vmem:[%s0 + $0x20] sm:$0xff]
  %v22 = vld [vmem:[%s0 + $0x28] sm:$0xff]
  %v23 = vld [vmem:[%s0 + $0x30] sm:$0xff]
  %v24 = vld [vmem:[%s0 + $0x38] sm:$0xff]
  %v25 = vld [vmem:[%s0 + $0x40] sm:$0xff]
  %v26 = vld [vmem:[%s0 + $0x48] sm:$0xff]
  %v27 = vld [vmem:[%s0 + $0x50] sm:$0xff]
  %v28 = vld [vmem:[%s0 + $0x58] sm:$0xff]
  %v29 = vld [vmem:[%s0 + $0x60] sm:$0xff]
  %v30 = vld [vmem:[%s0 + $0x68] sm:$0xff]
  %v31 = vld [vmem:[%s0 + $0x70] sm:$0xff]
  %v32 = vld [vmem:[%s0 + $0x78] sm:$0xff]
  %v33 = vld [vmem:[%s1] sm:$0x1]
  %v35 = vlaneseq
  %v36 = vshrl.u32 %v35, 7
  %v37 = vsub.s32 0, %v36
  %v38 = vrot.slane %v33, %v37
  %v40 = vmul.f32 %v17, %v38
  %v41 = vmul.f32 %v18, %v38
  %v42 = vmul.f32 %v19, %v38
  %v43 = vmul.f32 %v20, %v38
  %v44 = vmul.f32 %v21, %v38
  %v45 = vmul.f32 %v22, %v38
  %v46 = vmul.f32 %v23, %v38
  %v47 = vmul.f32 %v24, %v38
  %v48 = vmul.f32 %v25, %v38
  %v49 = vmul.f32 %v26, %v38
  %v50 = vmul.f32 %v27, %v38
  %v51 = vmul.f32 %v28, %v38
  %v52 = vmul.f32 %v29, %v38
  %v53 = vmul.f32 %v30, %v38
  %v54 = vmul.f32 %v31, %v38
  %v55 = vmul.f32 %v32, %v38
  %v56 = vld [vmem:[%s2] sm:$0x1]
  %v58 = vlaneseq
  %v59 = vshrl.u32 %v58, 7
  %v60 = vsub.s32 0, %v59
  %v61 = vrot.slane %v56, %v60
  %v63 = vadd.f32 %v40, %v61
  %v64 = vadd.f32 %v41, %v61
  %v65 = vadd.f32 %v42, %v61
  %v66 = vadd.f32 %v43, %v61
  %v67 = vadd.f32 %v44, %v61
  %v68 = vadd.f32 %v45, %v61
  %v69 = vadd.f32 %v46, %v61
  %v70 = vadd.f32 %v47, %v61
  %v71 = vadd.f32 %v48, %v61
  %v72 = vadd.f32 %v49, %v61
  %v73 = vadd.f32 %v50, %v61
  %v74 = vadd.f32 %v51, %v61
  %v75 = vadd.f32 %v52, %v61
  %v76 = vadd.f32 %v53, %v61
  %v77 = vadd.f32 %v54, %v61
  %v78 = vadd.f32 %v55, %v61
  %v79 = vld [vmem:[%s3] sm:$0xff]
  %v80 = vld [vmem:[%s3 + $0x8] sm:$0xff]
  %v81 = vld [vmem:[%s3 + $0x10] sm:$0xff]
  %v82 = vld [vmem:[%s3 + $0x18] sm:$0xff]
  %v83 = vld [vmem:[%s3 + $0x20] sm:$0xff]
  %v84 = vld [vmem:[%s3 + $0x28] sm:$0xff]
  %v85 = vld [vmem:[%s3 + $0x30] sm:$0xff]
  %v86 = vld [vmem:[%s3 + $0x38] sm:$0xff]
  %v87 = vld [vmem:[%s3 + $0x40] sm:$0xff]
  %v88 = vld [vmem:[%s3 + $0x48] sm:$0xff]
  %v89 = vld [vmem:[%s3 + $0x50] sm:$0xff]
  %v90 = vld [vmem:[%s3 + $0x58] sm:$0xff]
  %v91 = vld [vmem:[%s3 + $0x60] sm:$0xff]
  %v92 = vld [vmem:[%s3 + $0x68] sm:$0xff]
  %v93 = vld [vmem:[%s3 + $0x70] sm:$0xff]
  %v94 = vld [vmem:[%s3 + $0x78] sm:$0xff]
  %v95 = vadd.f32 %v63, %v79
  %v96 = vadd.f32 %v64, %v80
  %v97 = vadd.f32 %v65, %v81
  %v98 = vadd.f32 %v66, %v82
  %v99 = vadd.f32 %v67, %v83
  %v100 = vadd.f32 %v68, %v84
  %v101 = vadd.f32 %v69, %v85
  %v102 = vadd.f32 %v70, %v86
  %v103 = vadd.f32 %v71, %v87
  %v104 = vadd.f32 %v72, %v88
  %v105 = vadd.f32 %v73, %v89
  %v106 = vadd.f32 %v74, %v90
  %v107 = vadd.f32 %v75, %v91
  %v108 = vadd.f32 %v76, %v92
  %v109 = vadd.f32 %v77, %v93
  %v110 = vadd.f32 %v78, %v94
  %111 = vst [vmem:[%s4] sm:$0xff] %v95
  %112 = vst [vmem:[%s4 + $0x8] sm:$0xff] %v96
  %113 = vst [vmem:[%s4 + $0x10] sm:$0xff] %v97
  %114 = vst [vmem:[%s4 + $0x18] sm:$0xff] %v98
  %115 = vst [vmem:[%s4 + $0x20] sm:$0xff] %v99
  %116 = vst [vmem:[%s4 + $0x28] sm:$0xff] %v100
  %117 = vst [vmem:[%s4 + $0x30] sm:$0xff] %v101
  %118 = vst [vmem:[%s4 + $0x38] sm:$0xff] %v102
  %119 = vst [vmem:[%s4 + $0x40] sm:$0xff] %v103
  %120 = vst [vmem:[%s4 + $0x48] sm:$0xff] %v104
  %121 = vst [vmem:[%s4 + $0x50] sm:$0xff] %v105
  %122 = vst [vmem:[%s4 + $0x58] sm:$0xff] %v106
  %123 = vst [vmem:[%s4 + $0x60] sm:$0xff] %v107
  %124 = vst [vmem:[%s4 + $0x68] sm:$0xff] %v108
  %125 = vst [vmem:[%s4 + $0x70] sm:$0xff] %v109
  %126 = vst [vmem:[%s4 + $0x78] sm:$0xff] %v110
  // Predicated region
  $region18: #{_lambda_.47} parent=0 // pred_check
    _
  $region19: #{_lambda_.47} parent=0 // pred_check_branch
    %128 = sbr.rel (0) target = $region21
  $region20: #{_lambda_.47} parent=0 // pred_region
    _
  $region21: #{_lambda_.47} parent=0 // pred_fallthru
    _
  // Predicated region
  $region22: #{_lambda_.47} parent=0 // pred_check
    _
  $region23: #{_lambda_.47} parent=0 // pred_check_branch
    %130 = sbr.rel (0) target = $region25
  $region24: #{_lambda_.47} parent=0 // pred_region
    _
  $region25: #{_lambda_.47} parent=0 // pred_fallthru
    _

// kernel: _lambda_.53
$region0: #{_lambda_.53}
  #allocation0 [shape = 'u32[]', space=smem, size = 0x4, offset = 0x4, fixed_abs, tag = 'smem constant byte address 0x4 - core index']
  #allocation1 [shape = 'u32[144,128]{1,0:T(1,128)}', space=vmem, size = 0x12000, scoped, tag = 'internal scratch']
  %s0 = inlined_call_operand.vmem [shape: f32[32,128], index: 0, kind: input, shape index: {}]
  %s1 = inlined_call_operand.vmem [shape: f32[1,128], index: 1, kind: input, shape index: {}]
  %s2 = inlined_call_operand.vmem [shape: f32[1,128], index: 2, kind: input, shape index: {}]
  %s3 = inlined_call_operand.vmem [shape: f32[32,128], index: 3, kind: output, shape index: {}]
  %s4 = sld [smem:[#allocation0]]
  $region22: #{_lambda_.53} parent=0
    _
  %s6 = ssub.s32 1, %s4
  %s7 = scalar_select 0, %s6, %s4
  // Predicated region
  $region2: #{_lambda_.53} parent=0 // pred_check
    _
  $region3: #{_lambda_.53} parent=0 // pred_check_branch
    %9 = sbr.rel (0) target = $region5
  $region4: #{_lambda_.53} parent=0 // pred_region
    _
  $region5: #{_lambda_.53} parent=0 // pred_fallthru
    _
  // Predicated region
  $region6: #{_lambda_.53} parent=0 // pred_check
    _
  $region7: #{_lambda_.53} parent=0 // pred_check_branch
    %11 = sbr.rel (0) target = $region9
  $region8: #{_lambda_.53} parent=0 // pred_region
    _
  $region9: #{_lambda_.53} parent=0 // pred_fallthru
    _
  // Predicated region
  $region10: #{_lambda_.53} parent=0 // pred_check
    _
  $region11: #{_lambda_.53} parent=0 // pred_check_branch
    %13 = sbr.rel (0) target = $region13
  $region12: #{_lambda_.53} parent=0 // pred_region
    _
  $region13: #{_lambda_.53} parent=0 // pred_fallthru
    _
  %v14 = vld [vmem:[%s0] sm:$0xff]
  %v15 = vld [vmem:[%s0 + $0x8] sm:$0xff]
  %v16 = vld [vmem:[%s0 + $0x10] sm:$0xff]
  %v17 = vld [vmem:[%s0 + $0x18] sm:$0xff]
  %v18 = vld [vmem:[%s1] sm:$0x1]
  %v20 = vlaneseq
  %v21 = vshrl.u32 %v20, 7
  %v22 = vsub.s32 0, %v21
  %v23 = vrot.slane %v18, %v22
  %v25 = vmul.f32 %v14, %v23
  %v26 = vmul.f32 %v15, %v23
  %v27 = vmul.f32 %v16, %v23
  %v28 = vmul.f32 %v17, %v23
  %v29 = vld [vmem:[%s2] sm:$0x1]
  %v31 = vlaneseq
  %v32 = vshrl.u32 %v31, 7
  %v33 = vsub.s32 0, %v32
  %v34 = vrot.slane %v29, %v33
  %v36 = vadd.f32 %v25, %v34
  %v37 = vadd.f32 %v26, %v34
  %v38 = vadd.f32 %v27, %v34
  %v39 = vadd.f32 %v28, %v34
  %v40 = vmax.f32 %v36, 0.0
  %v41 = vmax.f32 %v37, 0.0
  %v42 = vmax.f32 %v38, 0.0
  %v43 = vmax.f32 %v39, 0.0
  %44 = vst [vmem:[%s3] sm:$0xff] %v40
  %45 = vst [vmem:[%s3 + $0x8] sm:$0xff] %v41
  %46 = vst [vmem:[%s3 + $0x10] sm:$0xff] %v42
  %47 = vst [vmem:[%s3 + $0x18] sm:$0xff] %v43
  // Predicated region
  $region14: #{_lambda_.53} parent=0 // pred_check
    _
  $region15: #{_lambda_.53} parent=0 // pred_check_branch
    %49 = sbr.rel (0) target = $region17
  $region16: #{_lambda_.53} parent=0 // pred_region
    _
  $region17: #{_lambda_.53} parent=0 // pred_fallthru
    _
  // Predicated region
  $region18: #{_lambda_.53} parent=0 // pred_check
    _
  $region19: #{_lambda_.53} parent=0 // pred_check_branch
    %51 = sbr.rel (0) target = $region21
  $region20: #{_lambda_.53} parent=0 // pred_region
    _
  $region21: #{_lambda_.53} parent=0 // pred_fallthru
    _

// kernel: _lambda_.52
$region0: #{_lambda_.52}
  #allocation0 [shape = 'u32[]', space=smem, size = 0x4, offset = 0x4, fixed_abs, tag = 'smem constant byte address 0x4 - core index']
  #allocation1 [shape = 'u32[144,128]{1,0:T(1,128)}', space=vmem, size = 0x12000, scoped, tag = 'internal scratch']
  #allocation2 [shape = 'f32[32,128]{1,0:T(8,128)}', space=vmem, size = 0x4000, scoped, tag = 'scratch operand']
  %s0 = inlined_call_operand.vmem [shape: bf16[32,128], index: 0, kind: input, shape index: {}]
  %s1 = inlined_call_operand.vmem [shape: bf16[128,128], index: 1, kind: input, shape index: {}]
  %s2 = inlined_call_operand.vmem [shape: f32[32,128], index: 2, kind: output, shape index: {0}]
  %s3 = inlined_call_operand.vmem [shape: f32[1,2,128], index: 3, kind: output, shape index: {1}]
  %4 = xla_tuple %s2, %s3
  %s5 = sld [smem:[#allocation0]]
  $region34: #{_lambda_.52} parent=0
    _
  %s7 = ssub.s32 1, %s5
  %s8 = scalar_select 0, %s7, %s5
  // Predicated region
  $region2: #{_lambda_.52} parent=0 // pred_check
    _
  $region3: #{_lambda_.52} parent=0 // pred_check_branch
    %10 = sbr.rel (0) target = $region5
  $region4: #{_lambda_.52} parent=0 // pred_region
    _
  $region5: #{_lambda_.52} parent=0 // pred_fallthru
    _
  // Predicated region
  $region6: #{_lambda_.52} parent=0 // pred_check
    _
  $region7: #{_lambda_.52} parent=0 // pred_check_branch
    %12 = sbr.rel (0) target = $region9
  $region8: #{_lambda_.52} parent=0 // pred_region
    _
  $region9: #{_lambda_.52} parent=0 // pred_fallthru
    _
  %p14 = scmp.eq.s32.totalorder 0, 0
  // Predicated region
  $region10: #{_lambda_.52} parent=0 // pred_check
    %p15 = pneg %p14
  $region11: #{_lambda_.52} parent=0 // pred_check_branch
    %17 = sbr.rel (%p15) target = $region13
  $region12: #{_lambda_.52} parent=0 // pred_region
    %18 = vst [vmem:[#allocation2] sm:$0xff] 0.0
    %19 = vst [vmem:[#allocation2 + $0x8] sm:$0xff] 0.0
    %20 = vst [vmem:[#allocation2 + $0x10] sm:$0xff] 0.0
    %21 = vst [vmem:[#allocation2 + $0x18] sm:$0xff] 0.0
  $region13: #{_lambda_.52} parent=0 // pred_fallthru
    _
  %v22 = vld [vmem:[#allocation2] sm:$0xff]
  %v23 = vld [vmem:[#allocation2 + $0x8] sm:$0xff]
  %v24 = vld [vmem:[#allocation2 + $0x10] sm:$0xff]
  %v25 = vld [vmem:[#allocation2 + $0x18] sm:$0xff]
  %v26 = vld [vmem:[%s0] sm:$0xf]
  %v27 = vld [vmem:[%s0 + $0x4] sm:$0xf]
  %v28 = vld [vmem:[%s0 + $0x8] sm:$0xf]
  %v29 = vld [vmem:[%s0 + $0xc] sm:$0xf]
  %v30 = vld [vmem:[%s1] sm:$0xf]
  %v31 = vld [vmem:[%s1 + $0x4] sm:$0xf]
  %v32 = vld [vmem:[%s1 + $0x8] sm:$0xf]
  %v33 = vld [vmem:[%s1 + $0xc] sm:$0xf]
  %v34 = vld [vmem:[%s1 + $0x10] sm:$0xf]
  %v35 = vld [vmem:[%s1 + $0x14] sm:$0xf]
  %v36 = vld [vmem:[%s1 + $0x18] sm:$0xf]
  %v37 = vld [vmem:[%s1 + $0x1c] sm:$0xf]
  %v38 = vld [vmem:[%s1 + $0x20] sm:$0xf]
  %v39 = vld [vmem:[%s1 + $0x24] sm:$0xf]
  %v40 = vld [vmem:[%s1 + $0x28] sm:$0xf]
  %v41 = vld [vmem:[%s1 + $0x2c] sm:$0xf]
  %v42 = vld [vmem:[%s1 + $0x30] sm:$0xf]
  %v43 = vld [vmem:[%s1 + $0x34] sm:$0xf]
  %v44 = vld [vmem:[%s1 + $0x38] sm:$0xf]
  %v45 = vld [vmem:[%s1 + $0x3c] sm:$0xf]
  %v50 = vunpack.c.l.b16 %v26
  %v51 = vunpack.c.l.b16 %v27
  %v52 = vunpack.c.l.b16 %v28
  %v53 = vunpack.c.l.b16 %v29
  %v54 = vpack.c.b16 %v51, %v50
  %v55 = vpack.c.b16 %v53, %v52
  %v74 = vunpack.c.l.b16 %v30
  %v75 = vunpack.c.l.b16 %v31
  %v76 = vunpack.c.l.b16 %v32
  %v77 = vunpack.c.l.b16 %v33
  %v78 = vunpack.c.l.b16 %v34
  %v79 = vunpack.c.l.b16 %v35
  %v80 = vunpack.c.l.b16 %v36
  %v81 = vunpack.c.l.b16 %v37
  %v82 = vunpack.c.l.b16 %v38
  %v83 = vunpack.c.l.b16 %v39
  %v84 = vunpack.c.l.b16 %v40
  %v85 = vunpack.c.l.b16 %v41
  %v86 = vunpack.c.l.b16 %v42
  %v87 = vunpack.c.l.b16 %v43
  %v88 = vunpack.c.l.b16 %v44
  %v89 = vunpack.c.l.b16 %v45
  %v90 = vpack.c.b16 %v75, %v74
  %v91 = vpack.c.b16 %v77, %v76
  %v92 = vpack.c.b16 %v79, %v78
  %v93 = vpack.c.b16 %v81, %v80
  %v94 = vpack.c.b16 %v83, %v82
  %v95 = vpack.c.b16 %v85, %v84
  %v96 = vpack.c.b16 %v87, %v86
  %v97 = vpack.c.b16 %v89, %v88
  %106 = vmatprep.subr.bf16.mxu0 0
  %107 = vmatpush1.bf16.msra.mxu0 %v90
  %108 = vmatprep.subr.bf16.mxu0 0
  %109 = vmatpush1.bf16.msra.mxu0 %v91
  %110 = vmatprep.subr.bf16.mxu0 0
  %111 = vmatpush1.bf16.msra.mxu0 %v92
  %112 = vmatprep.subr.bf16.mxu0 0
  %113 = vmatpush1.bf16.msra.mxu0 %v93
  %114 = vmatprep.subr.bf16.mxu0 0
  %115 = vmatpush1.bf16.msra.mxu0 %v94
  %116 = vmatprep.subr.bf16.mxu0 0
  %117 = vmatpush1.bf16.msra.mxu0 %v95
  %118 = vmatprep.subr.bf16.mxu0 0
  %119 = vmatpush1.bf16.msra.mxu0 %v96
  %120 = vmatprep.subr.bf16.mxu0 0
  %121 = vmatpush1.bf16.msra.mxu0 %v97
  %122 = vmatprep.subr.bf16.mxu0 0
  %123 = vmatpush1.bf16.msra.mxu0 0
  %124 = vmatprep.subr.bf16.mxu0 0
  %125 = vmatpush1.bf16.msra.mxu0 0
  %126 = vmatprep.subr.bf16.mxu0 0
  %127 = vmatpush1.bf16.msra.mxu0 0
  %128 = vmatprep.subr.bf16.mxu0 0
  %129 = vmatpush1.bf16.msra.mxu0 0
  %130 = vmatprep.subr.bf16.mxu0 0
  %131 = vmatpush1.bf16.msra.mxu0 0
  %132 = vmatprep.subr.bf16.mxu0 0
  %133 = vmatpush1.bf16.msra.mxu0 0
  %134 = vmatprep.subr.bf16.mxu0 0
  %135 = vmatpush1.bf16.msra.mxu0 0
  %136 = vmatprep.subr.bf16.mxu0 0
  %137 = vmatpush1.bf16.msra.mxu0 0
  %138 = vmatprep.mubr.bf16.mxu0 0
  %139 = vmatmul.mubr.bf16.gmra.mrb[0].mxu0 %v54
  %v140 = vpop.f32.mrb[0].mxu0
  %v141 = vadd.f32 0.0, %v140
  %v142 = vpop.f32.mrb[0].mxu0
  %v143 = vpop.f32.mrb[0].mxu0
  %v144 = vadd.f32 0.0, %v143
  %v145 = vpop.f32.mrb[0].mxu0
  %146 = vmatprep.mubr.bf16.mxu0 0
  %147 = vmatmul.mubr.bf16.gmra.mrb[0].mxu0 %v55
  %v148 = vpop.f32.mrb[0].mxu0
  %v149 = vadd.f32 0.0, %v148
  %v150 = vpop.f32.mrb[0].mxu0
  %v151 = vpop.f32.mrb[0].mxu0
  %v152 = vadd.f32 0.0, %v151
  %v153 = vpop.f32.mrb[0].mxu0
  %154 = vdwg.mxu0
  %v155 = vadd.f32 %v22, %v141
  %v156 = vadd.f32 %v23, %v144
  %v157 = vadd.f32 %v24, %v149
  %v158 = vadd.f32 %v25, %v152
  %159 = vst [vmem:[#allocation2] sm:$0xff] %v155
  %160 = vst [vmem:[#allocation2 + $0x8] sm:$0xff] %v156
  %161 = vst [vmem:[#allocation2 + $0x10] sm:$0xff] %v157
  %162 = vst [vmem:[#allocation2 + $0x18] sm:$0xff] %v158
  // Predicated region
  $region14: #{_lambda_.52} parent=0 // pred_check
    %p163 = pneg %p14
  $region15: #{_lambda_.52} parent=0 // pred_check_branch
    %165 = sbr.rel (%p163) target = $region17
  $region16: #{_lambda_.52} parent=0 // pred_region
    %v166 = vld [vmem:[#allocation2] sm:$0xff]
    %v167 = vld [vmem:[#allocation2 + $0x8] sm:$0xff]
    %v168 = vld [vmem:[#allocation2 + $0x10] sm:$0xff]
    %v169 = vld [vmem:[#allocation2 + $0x18] sm:$0xff]
    %170 = vst [vmem:[%s2] sm:$0xff] %v166
    %171 = vst [vmem:[%s2 + $0x8] sm:$0xff] %v167
    %172 = vst [vmem:[%s2 + $0x10] sm:$0xff] %v168
    %173 = vst [vmem:[%s2 + $0x18] sm:$0xff] %v169
    %v174 = vadd.f32 %v166, %v167
    %v175 = vadd.f32 %v174, %v168
    %v176 = vadd.f32 %v175, %v169
    %v177 = vrot.slane %v176, 4
    %v178 = vadd.f32 %v176, %v177
    %v179 = vrot.slane %v178, 2
    %v180 = vadd.f32 %v178, %v179
    %v181 = vrot.slane %v180, 1
    %v182 = vadd.f32 %v180, %v181
    %v183 = vmul.f32 %v166, %v166
    %v184 = vmul.f32 %v167, %v167
    %v185 = vmul.f32 %v168, %v168
    %v186 = vmul.f32 %v169, %v169
    %v187 = vadd.f32 %v183, %v184
    %v188 = vadd.f32 %v187, %v185
    %v189 = vadd.f32 %v188, %v186
    %v190 = vrot.slane %v189, 4
    %v191 = vadd.f32 %v189, %v190
    %v192 = vrot.slane %v191, 2
    %v193 = vadd.f32 %v191, %v192
    %v194 = vrot.slane %v193, 1
    %v195 = vadd.f32 %v193, %v194
    %vm196 = vcmask 1040384
    %v197 = vsel %vm196, %v182, %v195
    %198 = vst [vmem:[%s3] sm:$0x3] %v197
  $region17: #{_lambda_.52} parent=0 // pred_fallthru
    _
  // Predicated region
  $region18: #{_lambda_.52} parent=0 // pred_check
    _
  $region19: #{_lambda_.52} parent=0 // pred_check_branch
    %200 = sbr.rel (0) target = $region21
  $region20: #{_lambda_.52} parent=0 // pred_region
    _
  $region21: #{_lambda_.52} parent=0 // pred_fallthru
    _
  // Predicated region
  $region22: #{_lambda_.52} parent=0 // pred_check
    _
  $region23: #{_lambda_.52} parent=0 // pred_check_branch
    %202 = sbr.rel (0) target = $region25
  $region24: #{_lambda_.52} parent=0 // pred_region
    _
  $region25: #{_lambda_.52} parent=0 // pred_fallthru
    _
  // Predicated region
  $region26: #{_lambda_.52} parent=0 // pred_check
    _
  $region27: #{_lambda_.52} parent=0 // pred_check_branch
    %204 = sbr.rel (0) target = $region29
  $region28: #{_lambda_.52} parent=0 // pred_region
    _
  $region29: #{_lambda_.52} parent=0 // pred_fallthru
    _
  // Predicated region
  $region30: #{_lambda_.52} parent=0 // pred_check
    _
  $region31: #{_lambda_.52} parent=0 // pred_check_branch
    %206 = sbr.rel (0) target = $region33
  $region32: #{_lambda_.52} parent=0 // pred_region
    _
  $region33: #{_lambda_.52} parent=0 // pred_fallthru
    _

// kernel: _lambda_.55
$region0: #{_lambda_.55}
  #allocation0 [shape = 'u32[]', space=smem, size = 0x4, offset = 0x4, fixed_abs, tag = 'smem constant byte address 0x4 - core index']
  #allocation1 [shape = 'u32[144,128]{1,0:T(1,128)}', space=vmem, size = 0x12000, scoped, tag = 'internal scratch']
  %s0 = inlined_call_operand.vmem [shape: f32[32,128], index: 0, kind: input, shape index: {}]
  %s1 = inlined_call_operand.vmem [shape: f32[1,128], index: 1, kind: input, shape index: {}]
  %s2 = inlined_call_operand.vmem [shape: f32[1,128], index: 2, kind: input, shape index: {}]
  %s3 = inlined_call_operand.vmem [shape: f32[32,128], index: 3, kind: output, shape index: {}]
  %s4 = sld [smem:[#allocation0]]
  $region22: #{_lambda_.55} parent=0
    _
  %s6 = ssub.s32 1, %s4
  %s7 = scalar_select 0, %s6, %s4
  // Predicated region
  $region2: #{_lambda_.55} parent=0 // pred_check
    _
  $region3: #{_lambda_.55} parent=0 // pred_check_branch
    %9 = sbr.rel (0) target = $region5
  $region4: #{_lambda_.55} parent=0 // pred_region
    _
  $region5: #{_lambda_.55} parent=0 // pred_fallthru
    _
  // Predicated region
  $region6: #{_lambda_.55} parent=0 // pred_check
    _
  $region7: #{_lambda_.55} parent=0 // pred_check_branch
    %11 = sbr.rel (0) target = $region9
  $region8: #{_lambda_.55} parent=0 // pred_region
    _
  $region9: #{_lambda_.55} parent=0 // pred_fallthru
    _
  // Predicated region
  $region10: #{_lambda_.55} parent=0 // pred_check
    _
  $region11: #{_lambda_.55} parent=0 // pred_check_branch
    %13 = sbr.rel (0) target = $region13
  $region12: #{_lambda_.55} parent=0 // pred_region
    _
  $region13: #{_lambda_.55} parent=0 // pred_fallthru
    _
  %v14 = vld [vmem:[%s0] sm:$0xff]
  %v15 = vld [vmem:[%s0 + $0x8] sm:$0xff]
  %v16 = vld [vmem:[%s0 + $0x10] sm:$0xff]
  %v17 = vld [vmem:[%s0 + $0x18] sm:$0xff]
  %v18 = vld [vmem:[%s1] sm:$0x1]
  %v20 = vlaneseq
  %v21 = vshrl.u32 %v20, 7
  %v22 = vsub.s32 0, %v21
  %v23 = vrot.slane %v18, %v22
  %v25 = vmul.f32 %v14, %v23
  %v26 = vmul.f32 %v15, %v23
  %v27 = vmul.f32 %v16, %v23
  %v28 = vmul.f32 %v17, %v23
  %v29 = vld [vmem:[%s2] sm:$0x1]
  %v31 = vlaneseq
  %v32 = vshrl.u32 %v31, 7
  %v33 = vsub.s32 0, %v32
  %v34 = vrot.slane %v29, %v33
  %v36 = vadd.f32 %v25, %v34
  %v37 = vadd.f32 %v26, %v34
  %v38 = vadd.f32 %v27, %v34
  %v39 = vadd.f32 %v28, %v34
  %40 = vst [vmem:[%s3] sm:$0xff] %v36
  %41 = vst [vmem:[%s3 + $0x8] sm:$0xff] %v37
  %42 = vst [vmem:[%s3 + $0x10] sm:$0xff] %v38
  %43 = vst [vmem:[%s3 + $0x18] sm:$0xff] %v39
  // Predicated region
  $region14: #{_lambda_.55} parent=0 // pred_check
    _
  $region15: #{_lambda_.55} parent=0 // pred_check_branch
    %45 = sbr.rel (0) target = $region17
  $region16: #{_lambda_.55} parent=0 // pred_region
    _
  $region17: #{_lambda_.55} parent=0 // pred_fallthru
    _
  // Predicated region
  $region18: #{_lambda_.55} parent=0 // pred_check
    _
  $region19: #{_lambda_.55} parent=0 // pred_check_branch
    %47 = sbr.rel (0) target = $region21
  $region20: #{_lambda_.55} parent=0 // pred_region
    _
  $region21: #{_lambda_.55} parent=0 // pred_fallthru
    _

// kernel: _lambda_.56
$region0: #{_lambda_.56}
  #allocation0 [shape = 'u32[]', space=smem, size = 0x4, offset = 0x4, fixed_abs, tag = 'smem constant byte address 0x4 - core index']
  #allocation1 [shape = 'u32[144,128]{1,0:T(1,128)}', space=vmem, size = 0x12000, scoped, tag = 'internal scratch']
  #allocation2 [shape = 'f32[32,128]{1,0:T(8,128)}', space=vmem, size = 0x4000, scoped, tag = 'scratch operand']
  %s0 = inlined_call_operand.vmem [shape: bf16[32,256], index: 0, kind: input, shape index: {}]
  %s1 = inlined_call_operand.vmem [shape: bf16[256,128], index: 1, kind: input, shape index: {}]
  %s2 = inlined_call_operand.vmem [shape: f32[32,128], index: 2, kind: output, shape index: {0}]
  %s3 = inlined_call_operand.vmem [shape: f32[1,2,128], index: 3, kind: output, shape index: {1}]
  %4 = xla_tuple %s2, %s3
  %s5 = sld [smem:[#allocation0]]
  $region34: #{_lambda_.56} parent=0
    _
  %s7 = ssub.s32 1, %s5
  %s8 = scalar_select 0, %s7, %s5
  // Predicated region
  $region2: #{_lambda_.56} parent=0 // pred_check
    _
  $region3: #{_lambda_.56} parent=0 // pred_check_branch
    %10 = sbr.rel (0) target = $region5
  $region4: #{_lambda_.56} parent=0 // pred_region
    _
  $region5: #{_lambda_.56} parent=0 // pred_fallthru
    _
  // Predicated region
  $region6: #{_lambda_.56} parent=0 // pred_check
    _
  $region7: #{_lambda_.56} parent=0 // pred_check_branch
    %12 = sbr.rel (0) target = $region9
  $region8: #{_lambda_.56} parent=0 // pred_region
    _
  $region9: #{_lambda_.56} parent=0 // pred_fallthru
    _
  %p14 = scmp.eq.s32.totalorder 0, 0
  // Predicated region
  $region10: #{_lambda_.56} parent=0 // pred_check
    %p15 = pneg %p14
  $region11: #{_lambda_.56} parent=0 // pred_check_branch
    %17 = sbr.rel (%p15) target = $region13
  $region12: #{_lambda_.56} parent=0 // pred_region
    %18 = vst [vmem:[#allocation2] sm:$0xff] 0.0
    %19 = vst [vmem:[#allocation2 + $0x8] sm:$0xff] 0.0
    %20 = vst [vmem:[#allocation2 + $0x10] sm:$0xff] 0.0
    %21 = vst [vmem:[#allocation2 + $0x18] sm:$0xff] 0.0
  $region13: #{_lambda_.56} parent=0 // pred_fallthru
    _
  %v22 = vld [vmem:[#allocation2] sm:$0xff]
  %v23 = vld [vmem:[#allocation2 + $0x8] sm:$0xff]
  %v24 = vld [vmem:[#allocation2 + $0x10] sm:$0xff]
  %v25 = vld [vmem:[#allocation2 + $0x18] sm:$0xff]
  %v26 = vld [vmem:[%s0] sm:$0xff]
  %v27 = vld [vmem:[%s0 + $0x8] sm:$0xff]
  %v28 = vld [vmem:[%s0 + $0x10] sm:$0xff]
  %v29 = vld [vmem:[%s0 + $0x18] sm:$0xff]
  %v30 = vld [vmem:[%s1] sm:$0xf]
  %v31 = vld [vmem:[%s1 + $0x4] sm:$0xf]
  %v32 = vld [vmem:[%s1 + $0x8] sm:$0xf]
  %v33 = vld [vmem:[%s1 + $0xc] sm:$0xf]
  %v34 = vld [vmem:[%s1 + $0x10] sm:$0xf]
  %v35 = vld [vmem:[%s1 + $0x14] sm:$0xf]
  %v36 = vld [vmem:[%s1 + $0x18] sm:$0xf]
  %v37 = vld [vmem:[%s1 + $0x1c] sm:$0xf]
  %v38 = vld [vmem:[%s1 + $0x20] sm:$0xf]
  %v39 = vld [vmem:[%s1 + $0x24] sm:$0xf]
  %v40 = vld [vmem:[%s1 + $0x28] sm:$0xf]
  %v41 = vld [vmem:[%s1 + $0x2c] sm:$0xf]
  %v42 = vld [vmem:[%s1 + $0x30] sm:$0xf]
  %v43 = vld [vmem:[%s1 + $0x34] sm:$0xf]
  %v44 = vld [vmem:[%s1 + $0x38] sm:$0xf]
  %v45 = vld [vmem:[%s1 + $0x3c] sm:$0xf]
  %v46 = vld [vmem:[%s1 + $0x40] sm:$0xf]
  %v47 = vld [vmem:[%s1 + $0x44] sm:$0xf]
  %v48 = vld [vmem:[%s1 + $0x48] sm:$0xf]
  %v49 = vld [vmem:[%s1 + $0x4c] sm:$0xf]
  %v50 = vld [vmem:[%s1 + $0x50] sm:$0xf]
  %v51 = vld [vmem:[%s1 + $0x54] sm:$0xf]
  %v52 = vld [vmem:[%s1 + $0x58] sm:$0xf]
  %v53 = vld [vmem:[%s1 + $0x5c] sm:$0xf]
  %v54 = vld [vmem:[%s1 + $0x60] sm:$0xf]
  %v55 = vld [vmem:[%s1 + $0x64] sm:$0xf]
  %v56 = vld [vmem:[%s1 + $0x68] sm:$0xf]
  %v57 = vld [vmem:[%s1 + $0x6c] sm:$0xf]
  %v58 = vld [vmem:[%s1 + $0x70] sm:$0xf]
  %v59 = vld [vmem:[%s1 + $0x74] sm:$0xf]
  %v60 = vld [vmem:[%s1 + $0x78] sm:$0xf]
  %v61 = vld [vmem:[%s1 + $0x7c] sm:$0xf]
  %v66 = vunpack.c.l.b16 %v26
  %v67 = vunpack.c.h.b16 %v26
  %v68 = vunpack.c.l.b16 %v27
  %v69 = vunpack.c.h.b16 %v27
  %v70 = vunpack.c.l.b16 %v28
  %v71 = vunpack.c.h.b16 %v28
  %v72 = vunpack.c.l.b16 %v29
  %v73 = vunpack.c.h.b16 %v29
  %v74 = vpack.c.b16 %v68, %v66
  %v75 = vpack.c.b16 %v69, %v67
  %v76 = vpack.c.b16 %v72, %v70
  %v77 = vpack.c.b16 %v73, %v71
  %v114 = vunpack.c.l.b16 %v30
  %v115 = vunpack.c.l.b16 %v31
  %v116 = vunpack.c.l.b16 %v32
  %v117 = vunpack.c.l.b16 %v33
  %v118 = vunpack.c.l.b16 %v34
  %v119 = vunpack.c.l.b16 %v35
  %v120 = vunpack.c.l.b16 %v36
  %v121 = vunpack.c.l.b16 %v37
  %v122 = vunpack.c.l.b16 %v38
  %v123 = vunpack.c.l.b16 %v39
  %v124 = vunpack.c.l.b16 %v40
  %v125 = vunpack.c.l.b16 %v41
  %v126 = vunpack.c.l.b16 %v42
  %v127 = vunpack.c.l.b16 %v43
  %v128 = vunpack.c.l.b16 %v44
  %v129 = vunpack.c.l.b16 %v45
  %v130 = vunpack.c.l.b16 %v46
  %v131 = vunpack.c.l.b16 %v47
  %v132 = vunpack.c.l.b16 %v48
  %v133 = vunpack.c.l.b16 %v49
  %v134 = vunpack.c.l.b16 %v50
  %v135 = vunpack.c.l.b16 %v51
  %v136 = vunpack.c.l.b16 %v52
  %v137 = vunpack.c.l.b16 %v53
  %v138 = vunpack.c.l.b16 %v54
  %v139 = vunpack.c.l.b16 %v55
  %v140 = vunpack.c.l.b16 %v56
  %v141 = vunpack.c.l.b16 %v57
  %v142 = vunpack.c.l.b16 %v58
  %v143 = vunpack.c.l.b16 %v59
  %v144 = vunpack.c.l.b16 %v60
  %v145 = vunpack.c.l.b16 %v61
  %v146 = vpack.c.b16 %v115, %v114
  %v147 = vpack.c.b16 %v117, %v116
  %v148 = vpack.c.b16 %v119, %v118
  %v149 = vpack.c.b16 %v121, %v120
  %v150 = vpack.c.b16 %v123, %v122
  %v151 = vpack.c.b16 %v125, %v124
  %v152 = vpack.c.b16 %v127, %v126
  %v153 = vpack.c.b16 %v129, %v128
  %v154 = vpack.c.b16 %v131, %v130
  %v155 = vpack.c.b16 %v133, %v132
  %v156 = vpack.c.b16 %v135, %v134
  %v157 = vpack.c.b16 %v137, %v136
  %v158 = vpack.c.b16 %v139, %v138
  %v159 = vpack.c.b16 %v141, %v140
  %v160 = vpack.c.b16 %v143, %v142
  %v161 = vpack.c.b16 %v145, %v144
  %178 = vmatprep.subr.bf16.mxu0 0
  %179 = vmatpush1.bf16.msra.mxu0 %v146
  %180 = vmatprep.subr.bf16.mxu0 0
  %181 = vmatpush1.bf16.msra.mxu0 %v147
  %182 = vmatprep.subr.bf16.mxu0 0
  %183 = vmatpush1.bf16.msra.mxu0 %v148
  %184 = vmatprep.subr.bf16.mxu0 0
  %185 = vmatpush1.bf16.msra.mxu0 %v149
  %186 = vmatprep.subr.bf16.mxu0 0
  %187 = vmatpush1.bf16.msra.mxu0 %v150
  %188 = vmatprep.subr.bf16.mxu0 0
  %189 = vmatpush1.bf16.msra.mxu0 %v151
  %190 = vmatprep.subr.bf16.mxu0 0
  %191 = vmatpush1.bf16.msra.mxu0 %v152
  %192 = vmatprep.subr.bf16.mxu0 0
  %193 = vmatpush1.bf16.msra.mxu0 %v153
  %194 = vmatprep.subr.bf16.mxu0 0
  %195 = vmatpush1.bf16.msra.mxu0 %v154
  %196 = vmatprep.subr.bf16.mxu0 0
  %197 = vmatpush1.bf16.msra.mxu0 %v155
  %198 = vmatprep.subr.bf16.mxu0 0
  %199 = vmatpush1.bf16.msra.mxu0 %v156
  %200 = vmatprep.subr.bf16.mxu0 0
  %201 = vmatpush1.bf16.msra.mxu0 %v157
  %202 = vmatprep.subr.bf16.mxu0 0
  %203 = vmatpush1.bf16.msra.mxu0 %v158
  %204 = vmatprep.subr.bf16.mxu0 0
  %205 = vmatpush1.bf16.msra.mxu0 %v159
  %206 = vmatprep.subr.bf16.mxu0 0
  %207 = vmatpush1.bf16.msra.mxu0 %v160
  %208 = vmatprep.subr.bf16.mxu0 0
  %209 = vmatpush1.bf16.msra.mxu0 %v161
  %210 = vmatprep.mubr.bf16.mxu0 %v75
  %211 = vmatmul.mubr.bf16.gmra.mrb[0].mxu0 %v74
  %v212 = vpop.f32.mrb[0].mxu0
  %v213 = vadd.f32 0.0, %v212
  %v214 = vpop.f32.mrb[0].mxu0
  %v215 = vpop.f32.mrb[0].mxu0
  %v216 = vadd.f32 0.0, %v215
  %v217 = vpop.f32.mrb[0].mxu0
  %218 = vmatprep.mubr.bf16.mxu0 %v77
  %219 = vmatmul.mubr.bf16.gmra.mrb[0].mxu0 %v76
  %v220 = vpop.f32.mrb[0].mxu0
  %v221 = vadd.f32 0.0, %v220
  %v222 = vpop.f32.mrb[0].mxu0
  %v223 = vpop.f32.mrb[0].mxu0
  %v224 = vadd.f32 0.0, %v223
  %v225 = vpop.f32.mrb[0].mxu0
  %226 = vdwg.mxu0
  %v227 = vadd.f32 %v22, %v213
  %v228 = vadd.f32 %v23, %v216
  %v229 = vadd.f32 %v24, %v221
  %v230 = vadd.f32 %v25, %v224
  %231 = vst [vmem:[#allocation2] sm:$0xff] %v227
  %232 = vst [vmem:[#allocation2 + $0x8] sm:$0xff] %v228
  %233 = vst [vmem:[#allocation2 + $0x10] sm:$0xff] %v229
  %234 = vst [vmem:[#allocation2 + $0x18] sm:$0xff] %v230
  // Predicated region
  $region14: #{_lambda_.56} parent=0 // pred_check
    %p235 = pneg %p14
  $region15: #{_lambda_.56} parent=0 // pred_check_branch
    %237 = sbr.rel (%p235) target = $region17
  $region16: #{_lambda_.56} parent=0 // pred_region
    %v238 = vld [vmem:[#allocation2] sm:$0xff]
    %v239 = vld [vmem:[#allocation2 + $0x8] sm:$0xff]
    %v240 = vld [vmem:[#allocation2 + $0x10] sm:$0xff]
    %v241 = vld [vmem:[#allocation2 + $0x18] sm:$0xff]
    %242 = vst [vmem:[%s2] sm:$0xff] %v238
    %243 = vst [vmem:[%s2 + $0x8] sm:$0xff] %v239
    %244 = vst [vmem:[%s2 + $0x10] sm:$0xff] %v240
    %245 = vst [vmem:[%s2 + $0x18] sm:$0xff] %v241
    %v246 = vadd.f32 %v238, %v239
    %v247 = vadd.f32 %v246, %v240
    %v248 = vadd.f32 %v247, %v241
    %v249 = vrot.slane %v248, 4
    %v250 = vadd.f32 %v248, %v249
    %v251 = vrot.slane %v250, 2
    %v252 = vadd.f32 %v250, %v251
    %v253 = vrot.slane %v252, 1
    %v254 = vadd.f32 %v252, %v253
    %v255 = vmul.f32 %v238, %v238
    %v256 = vmul.f32 %v239, %v239
    %v257 = vmul.f32 %v240, %v240
    %v258 = vmul.f32 %v241, %v241
    %v259 = vadd.f32 %v255, %v256
    %v260 = vadd.f32 %v259, %v257
    %v261 = vadd.f32 %v260, %v258
    %v262 = vrot.slane %v261, 4
    %v263 = vadd.f32 %v261, %v262
    %v264 = vrot.slane %v263, 2
    %v265 = vadd.f32 %v263, %v264
    %v266 = vrot.slane %v265, 1
    %v267 = vadd.f32 %v265, %v266
    %vm268 = vcmask 1040384
    %v269 = vsel %vm268, %v254, %v267
    %270 = vst [vmem:[%s3] sm:$0x3] %v269
  $region17: #{_lambda_.56} parent=0 // pred_fallthru
    _
  // Predicated region
  $region18: #{_lambda_.56} parent=0 // pred_check
    _
  $region19: #{_lambda_.56} parent=0 // pred_check_branch
    %272 = sbr.rel (0) target = $region21
  $region20: #{_lambda_.56} parent=0 // pred_region
    _
  $region21: #{_lambda_.56} parent=0 // pred_fallthru
    _
  // Predicated region
  $region22: #{_lambda_.56} parent=0 // pred_check
    _
  $region23: #{_lambda_.56} parent=0 // pred_check_branch
    %274 = sbr.rel (0) target = $region25
  $region24: #{_lambda_.56} parent=0 // pred_region
    _
  $region25: #{_lambda_.56} parent=0 // pred_fallthru
    _
  // Predicated region
  $region26: #{_lambda_.56} parent=0 // pred_check
    _
  $region27: #{_lambda_.56} parent=0 // pred_check_branch
    %276 = sbr.rel (0) target = $region29
  $region28: #{_lambda_.56} parent=0 // pred_region
    _
  $region29: #{_lambda_.56} parent=0 // pred_fallthru
    _
  // Predicated region
  $region30: #{_lambda_.56} parent=0 // pred_check
    _
  $region31: #{_lambda_.56} parent=0 // pred_check_branch
    %278 = sbr.rel (0) target = $region33
  $region32: #{_lambda_.56} parent=0 // pred_region
    _
  $region33: #{_lambda_.56} parent=0 // pred_fallthru
    _

// kernel: _lambda_.57
$region0: #{_lambda_.57}
  #allocation0 [shape = 'u32[]', space=smem, size = 0x4, offset = 0x4, fixed_abs, tag = 'smem constant byte address 0x4 - core index']
  #allocation1 [shape = 'u32[144,128]{1,0:T(1,128)}', space=vmem, size = 0x12000, scoped, tag = 'internal scratch']
  %s0 = inlined_call_operand.vmem [shape: f32[32,128], index: 0, kind: input, shape index: {}]
  %s1 = inlined_call_operand.vmem [shape: f32[1,128], index: 1, kind: input, shape index: {}]
  %s2 = inlined_call_operand.vmem [shape: f32[1,128], index: 2, kind: input, shape index: {}]
  %s3 = inlined_call_operand.vmem [shape: f32[32,128], index: 3, kind: input, shape index: {}]
  %s4 = inlined_call_operand.vmem [shape: f32[32,128], index: 4, kind: output, shape index: {}]
  %s5 = sld [smem:[#allocation0]]
  $region26: #{_lambda_.57} parent=0
    _
  %s7 = ssub.s32 1, %s5
  %s8 = scalar_select 0, %s7, %s5
  // Predicated region
  $region2: #{_lambda_.57} parent=0 // pred_check
    _
  $region3: #{_lambda_.57} parent=0 // pred_check_branch
    %10 = sbr.rel (0) target = $region5
  $region4: #{_lambda_.57} parent=0 // pred_region
    _
  $region5: #{_lambda_.57} parent=0 // pred_fallthru
    _
  // Predicated region
  $region6: #{_lambda_.57} parent=0 // pred_check
    _
  $region7: #{_lambda_.57} parent=0 // pred_check_branch
    %12 = sbr.rel (0) target = $region9
  $region8: #{_lambda_.57} parent=0 // pred_region
    _
  $region9: #{_lambda_.57} parent=0 // pred_fallthru
    _
  // Predicated region
  $region10: #{_lambda_.57} parent=0 // pred_check
    _
  $region11: #{_lambda_.57} parent=0 // pred_check_branch
    %14 = sbr.rel (0) target = $region13
  $region12: #{_lambda_.57} parent=0 // pred_region
    _
  $region13: #{_lambda_.57} parent=0 // pred_fallthru
    _
  // Predicated region
  $region14: #{_lambda_.57} parent=0 // pred_check
    _
  $region15: #{_lambda_.57} parent=0 // pred_check_branch
    %16 = sbr.rel (0) target = $region17
  $region16: #{_lambda_.57} parent=0 // pred_region
    _
  $region17: #{_lambda_.57} parent=0 // pred_fallthru
    _
  %v17 = vld [vmem:[%s0] sm:$0xff]
  %v18 = vld [vmem:[%s0 + $0x8] sm:$0xff]
  %v19 = vld [vmem:[%s0 + $0x10] sm:$0xff]
  %v20 = vld [vmem:[%s0 + $0x18] sm:$0xff]
  %v21 = vld [vmem:[%s1] sm:$0x1]
  %v23 = vlaneseq
  %v24 = vshrl.u32 %v23, 7
  %v25 = vsub.s32 0, %v24
  %v26 = vrot.slane %v21, %v25
  %v28 = vmul.f32 %v17, %v26
  %v29 = vmul.f32 %v18, %v26
  %v30 = vmul.f32 %v19, %v26
  %v31 = vmul.f32 %v20, %v26
  %v32 = vld [vmem:[%s2] sm:$0x1]
  %v34 = vlaneseq
  %v35 = vshrl.u32 %v34, 7
  %v36 = vsub.s32 0, %v35
  %v37 = vrot.slane %v32, %v36
  %v39 = vadd.f32 %v28, %v37
  %v40 = vadd.f32 %v29, %v37
  %v41 = vadd.f32 %v30, %v37
  %v42 = vadd.f32 %v31, %v37
  %v43 = vld [vmem:[%s3] sm:$0xff]
  %v44 = vld [vmem:[%s3 + $0x8] sm:$0xff]
  %v45 = vld [vmem:[%s3 + $0x10] sm:$0xff]
  %v46 = vld [vmem:[%s3 + $0x18] sm:$0xff]
  %v47 = vadd.f32 %v39, %v43
  %v48 = vadd.f32 %v40, %v44
  %v49 = vadd.f32 %v41, %v45
  %v50 = vadd.f32 %v42, %v46
  %51 = vst [vmem:[%s4] sm:$0xff] %v47
  %52 = vst [vmem:[%s4 + $0x8] sm:$0xff] %v48
  %53 = vst [vmem:[%s4 + $0x10] sm:$0xff] %v49
  %54 = vst [vmem:[%s4 + $0x18] sm:$0xff] %v50
  // Predicated region
  $region18: #{_lambda_.57} parent=0 // pred_check
    _
  $region19: #{_lambda_.57} parent=0 // pred_check_branch
    %56 = sbr.rel (0) target = $region21
  $region20: #{_lambda_.57} parent=0 // pred_region
    _
  $region21: #{_lambda_.57} parent=0 // pred_fallthru
    _
  // Predicated region
  $region22: #{_lambda_.57} parent=0 // pred_check
    _
  $region23: #{_lambda_.57} parent=0 // pred_check_branch
    %58 = sbr.rel (0) target = $region25
  $region24: #{_lambda_.57} parent=0 // pred_region
    _
  $region25: #{_lambda_.57} parent=0 // pred_fallthru
    _

// kernel: _lambda_.63
$region0: #{_lambda_.63}
  #allocation0 [shape = 'u32[]', space=smem, size = 0x4, offset = 0x4, fixed_abs, tag = 'smem constant byte address 0x4 - core index']
  #allocation1 [shape = 'u32[144,128]{1,0:T(1,128)}', space=vmem, size = 0x12000, scoped, tag = 'internal scratch']
  %s0 = inlined_call_operand.vmem [shape: f32[8,128], index: 0, kind: input, shape index: {}]
  %s1 = inlined_call_operand.vmem [shape: f32[1,128], index: 1, kind: input, shape index: {}]
  %s2 = inlined_call_operand.vmem [shape: f32[1,128], index: 2, kind: input, shape index: {}]
  %s3 = inlined_call_operand.vmem [shape: f32[8,128], index: 3, kind: output, shape index: {}]
  %s4 = sld [smem:[#allocation0]]
  $region22: #{_lambda_.63} parent=0
    _
  %s6 = ssub.s32 1, %s4
  %s7 = scalar_select 0, %s6, %s4
  // Predicated region
  $region2: #{_lambda_.63} parent=0 // pred_check
    _
  $region3: #{_lambda_.63} parent=0 // pred_check_branch
    %9 = sbr.rel (0) target = $region5
  $region4: #{_lambda_.63} parent=0 // pred_region
    _
  $region5: #{_lambda_.63} parent=0 // pred_fallthru
    _
  // Predicated region
  $region6: #{_lambda_.63} parent=0 // pred_check
    _
  $region7: #{_lambda_.63} parent=0 // pred_check_branch
    %11 = sbr.rel (0) target = $region9
  $region8: #{_lambda_.63} parent=0 // pred_region
    _
  $region9: #{_lambda_.63} parent=0 // pred_fallthru
    _
  // Predicated region
  $region10: #{_lambda_.63} parent=0 // pred_check
    _
  $region11: #{_lambda_.63} parent=0 // pred_check_branch
    %13 = sbr.rel (0) target = $region13
  $region12: #{_lambda_.63} parent=0 // pred_region
    _
  $region13: #{_lambda_.63} parent=0 // pred_fallthru
    _
  %v14 = vld [vmem:[%s0] sm:$0xff]
  %v15 = vld [vmem:[%s1] sm:$0x1]
  %v17 = vlaneseq
  %v18 = vshrl.u32 %v17, 7
  %v19 = vsub.s32 0, %v18
  %v20 = vrot.slane %v15, %v19
  %v22 = vmul.f32 %v14, %v20
  %v23 = vld [vmem:[%s2] sm:$0x1]
  %v25 = vlaneseq
  %v26 = vshrl.u32 %v25, 7
  %v27 = vsub.s32 0, %v26
  %v28 = vrot.slane %v23, %v27
  %v30 = vadd.f32 %v22, %v28
  %v31 = vmax.f32 %v30, 0.0
  %32 = vst [vmem:[%s3] sm:$0xff] %v31
  // Predicated region
  $region14: #{_lambda_.63} parent=0 // pred_check
    _
  $region15: #{_lambda_.63} parent=0 // pred_check_branch
    %34 = sbr.rel (0) target = $region17
  $region16: #{_lambda_.63} parent=0 // pred_region
    _
  $region17: #{_lambda_.63} parent=0 // pred_fallthru
    _
  // Predicated region
  $region18: #{_lambda_.63} parent=0 // pred_check
    _
  $region19: #{_lambda_.63} parent=0 // pred_check_branch
    %36 = sbr.rel (0) target = $region21
  $region20: #{_lambda_.63} parent=0 // pred_region
    _
  $region21: #{_lambda_.63} parent=0 // pred_fallthru
    _

// kernel: _lambda_.62
$region0: #{_lambda_.62}
  #allocation0 [shape = 'u32[]', space=smem, size = 0x4, offset = 0x4, fixed_abs, tag = 'smem constant byte address 0x4 - core index']
  #allocation1 [shape = 'u32[144,128]{1,0:T(1,128)}', space=vmem, size = 0x12000, scoped, tag = 'internal scratch']
  #allocation2 [shape = 'f32[8,128]{1,0:T(8,128)}', space=vmem, size = 0x1000, scoped, tag = 'scratch operand']
  %s0 = inlined_call_operand.vmem [shape: bf16[8,256], index: 0, kind: input, shape index: {}]
  %s1 = inlined_call_operand.vmem [shape: bf16[256,128], index: 1, kind: input, shape index: {}]
  %s2 = inlined_call_operand.vmem [shape: f32[8,128], index: 2, kind: output, shape index: {0}]
  %s3 = inlined_call_operand.vmem [shape: f32[1,2,128], index: 3, kind: output, shape index: {1}]
  %4 = xla_tuple %s2, %s3
  %s5 = sld [smem:[#allocation0]]
  $region34: #{_lambda_.62} parent=0
    _
  %s7 = ssub.s32 1, %s5
  %s8 = scalar_select 0, %s7, %s5
  // Predicated region
  $region2: #{_lambda_.62} parent=0 // pred_check
    _
  $region3: #{_lambda_.62} parent=0 // pred_check_branch
    %10 = sbr.rel (0) target = $region5
  $region4: #{_lambda_.62} parent=0 // pred_region
    _
  $region5: #{_lambda_.62} parent=0 // pred_fallthru
    _
  // Predicated region
  $region6: #{_lambda_.62} parent=0 // pred_check
    _
  $region7: #{_lambda_.62} parent=0 // pred_check_branch
    %12 = sbr.rel (0) target = $region9
  $region8: #{_lambda_.62} parent=0 // pred_region
    _
  $region9: #{_lambda_.62} parent=0 // pred_fallthru
    _
  %p14 = scmp.eq.s32.totalorder 0, 0
  // Predicated region
  $region10: #{_lambda_.62} parent=0 // pred_check
    %p15 = pneg %p14
  $region11: #{_lambda_.62} parent=0 // pred_check_branch
    %17 = sbr.rel (%p15) target = $region13
  $region12: #{_lambda_.62} parent=0 // pred_region
    %18 = vst [vmem:[#allocation2] sm:$0xff] 0.0
  $region13: #{_lambda_.62} parent=0 // pred_fallthru
    _
  %v19 = vld [vmem:[#allocation2] sm:$0xff]
  %v20 = vld [vmem:[%s0] sm:$0xff]
  %v21 = vld [vmem:[%s1] sm:$0xf]
  %v22 = vld [vmem:[%s1 + $0x4] sm:$0xf]
  %v23 = vld [vmem:[%s1 + $0x8] sm:$0xf]
  %v24 = vld [vmem:[%s1 + $0xc] sm:$0xf]
  %v25 = vld [vmem:[%s1 + $0x10] sm:$0xf]
  %v26 = vld [vmem:[%s1 + $0x14] sm:$0xf]
  %v27 = vld [vmem:[%s1 + $0x18] sm:$0xf]
  %v28 = vld [vmem:[%s1 + $0x1c] sm:$0xf]
  %v29 = vld [vmem:[%s1 + $0x20] sm:$0xf]
  %v30 = vld [vmem:[%s1 + $0x24] sm:$0xf]
  %v31 = vld [vmem:[%s1 + $0x28] sm:$0xf]
  %v32 = vld [vmem:[%s1 + $0x2c] sm:$0xf]
  %v33 = vld [vmem:[%s1 + $0x30] sm:$0xf]
  %v34 = vld [vmem:[%s1 + $0x34] sm:$0xf]
  %v35 = vld [vmem:[%s1 + $0x38] sm:$0xf]
  %v36 = vld [vmem:[%s1 + $0x3c] sm:$0xf]
  %v37 = vld [vmem:[%s1 + $0x40] sm:$0xf]
  %v38 = vld [vmem:[%s1 + $0x44] sm:$0xf]
  %v39 = vld [vmem:[%s1 + $0x48] sm:$0xf]
  %v40 = vld [vmem:[%s1 + $0x4c] sm:$0xf]
  %v41 = vld [vmem:[%s1 + $0x50] sm:$0xf]
  %v42 = vld [vmem:[%s1 + $0x54] sm:$0xf]
  %v43 = vld [vmem:[%s1 + $0x58] sm:$0xf]
  %v44 = vld [vmem:[%s1 + $0x5c] sm:$0xf]
  %v45 = vld [vmem:[%s1 + $0x60] sm:$0xf]
  %v46 = vld [vmem:[%s1 + $0x64] sm:$0xf]
  %v47 = vld [vmem:[%s1 + $0x68] sm:$0xf]
  %v48 = vld [vmem:[%s1 + $0x6c] sm:$0xf]
  %v49 = vld [vmem:[%s1 + $0x70] sm:$0xf]
  %v50 = vld [vmem:[%s1 + $0x74] sm:$0xf]
  %v51 = vld [vmem:[%s1 + $0x78] sm:$0xf]
  %v52 = vld [vmem:[%s1 + $0x7c] sm:$0xf]
  %v54 = vunpack.c.l.b16 %v20
  %v55 = vunpack.c.h.b16 %v20
  %v56 = vpack.c.b16 %v54, %v54
  %v57 = vpack.c.b16 %v55, %v55
  %v92 = vunpack.c.l.b16 %v21
  %v93 = vunpack.c.l.b16 %v22
  %v94 = vunpack.c.l.b16 %v23
  %v95 = vunpack.c.l.b16 %v24
  %v96 = vunpack.c.l.b16 %v25
  %v97 = vunpack.c.l.b16 %v26
  %v98 = vunpack.c.l.b16 %v27
  %v99 = vunpack.c.l.b16 %v28
  %v100 = vunpack.c.l.b16 %v29
  %v101 = vunpack.c.l.b16 %v30
  %v102 = vunpack.c.l.b16 %v31
  %v103 = vunpack.c.l.b16 %v32
  %v104 = vunpack.c.l.b16 %v33
  %v105 = vunpack.c.l.b16 %v34
  %v106 = vunpack.c.l.b16 %v35
  %v107 = vunpack.c.l.b16 %v36
  %v108 = vunpack.c.l.b16 %v37
  %v109 = vunpack.c.l.b16 %v38
  %v110 = vunpack.c.l.b16 %v39
  %v111 = vunpack.c.l.b16 %v40
  %v112 = vunpack.c.l.b16 %v41
  %v113 = vunpack.c.l.b16 %v42
  %v114 = vunpack.c.l.b16 %v43
  %v115 = vunpack.c.l.b16 %v44
  %v116 = vunpack.c.l.b16 %v45
  %v117 = vunpack.c.l.b16 %v46
  %v118 = vunpack.c.l.b16 %v47
  %v119 = vunpack.c.l.b16 %v48
  %v120 = vunpack.c.l.b16 %v49
  %v121 = vunpack.c.l.b16 %v50
  %v122 = vunpack.c.l.b16 %v51
  %v123 = vunpack.c.l.b16 %v52
  %v124 = vpack.c.b16 %v93, %v92
  %v125 = vpack.c.b16 %v95, %v94
  %v126 = vpack.c.b16 %v97, %v96
  %v127 = vpack.c.b16 %v99, %v98
  %v128 = vpack.c.b16 %v101, %v100
  %v129 = vpack.c.b16 %v103, %v102
  %v130 = vpack.c.b16 %v105, %v104
  %v131 = vpack.c.b16 %v107, %v106
  %v132 = vpack.c.b16 %v109, %v108
  %v133 = vpack.c.b16 %v111, %v110
  %v134 = vpack.c.b16 %v113, %v112
  %v135 = vpack.c.b16 %v115, %v114
  %v136 = vpack.c.b16 %v117, %v116
  %v137 = vpack.c.b16 %v119, %v118
  %v138 = vpack.c.b16 %v121, %v120
  %v139 = vpack.c.b16 %v123, %v122
  %156 = vmatprep.subr.bf16.mxu0 0
  %157 = vmatpush1.bf16.msra.mxu0 %v124
  %158 = vmatprep.subr.bf16.mxu0 0
  %159 = vmatpush1.bf16.msra.mxu0 %v125
  %160 = vmatprep.subr.bf16.mxu0 0
  %161 = vmatpush1.bf16.msra.mxu0 %v126
  %162 = vmatprep.subr.bf16.mxu0 0
  %163 = vmatpush1.bf16.msra.mxu0 %v127
  %164 = vmatprep.subr.bf16.mxu0 0
  %165 = vmatpush1.bf16.msra.mxu0 %v128
  %166 = vmatprep.subr.bf16.mxu0 0
  %167 = vmatpush1.bf16.msra.mxu0 %v129
  %168 = vmatprep.subr.bf16.mxu0 0
  %169 = vmatpush1.bf16.msra.mxu0 %v130
  %170 = vmatprep.subr.bf16.mxu0 0
  %171 = vmatpush1.bf16.msra.mxu0 %v131
  %172 = vmatprep.subr.bf16.mxu0 0
  %173 = vmatpush1.bf16.msra.mxu0 %v132
  %174 = vmatprep.subr.bf16.mxu0 0
  %175 = vmatpush1.bf16.msra.mxu0 %v133
  %176 = vmatprep.subr.bf16.mxu0 0
  %177 = vmatpush1.bf16.msra.mxu0 %v134
  %178 = vmatprep.subr.bf16.mxu0 0
  %179 = vmatpush1.bf16.msra.mxu0 %v135
  %180 = vmatprep.subr.bf16.mxu0 0
  %181 = vmatpush1.bf16.msra.mxu0 %v136
  %182 = vmatprep.subr.bf16.mxu0 0
  %183 = vmatpush1.bf16.msra.mxu0 %v137
  %184 = vmatprep.subr.bf16.mxu0 0
  %185 = vmatpush1.bf16.msra.mxu0 %v138
  %186 = vmatprep.subr.bf16.mxu0 0
  %187 = vmatpush1.bf16.msra.mxu0 %v139
  %188 = vmatprep.mubr.bf16.mxu0 %v57
  %189 = vmatmul.mubr.bf16.gmra.mrb[0].mxu0 %v56
  %v190 = vpop.f32.mrb[0].mxu0
  %v191 = vadd.f32 0.0, %v190
  %v192 = vpop.f32.mrb[0].mxu0
  %v193 = vpop.f32.mrb[0].mxu0
  %v194 = vpop.f32.mrb[0].mxu0
  %195 = vdwg.mxu0
  %v196 = vadd.f32 %v19, %v191
  %197 = vst [vmem:[#allocation2] sm:$0xff] %v196
  // Predicated region
  $region14: #{_lambda_.62} parent=0 // pred_check
    %p198 = pneg %p14
  $region15: #{_lambda_.62} parent=0 // pred_check_branch
    %200 = sbr.rel (%p198) target = $region17
  $region16: #{_lambda_.62} parent=0 // pred_region
    %v201 = vld [vmem:[#allocation2] sm:$0xff]
    %202 = vst [vmem:[%s2] sm:$0xff] %v201
    %v203 = vrot.slane %v201, 4
    %v204 = vadd.f32 %v201, %v203
    %v205 = vrot.slane %v204, 2
    %v206 = vadd.f32 %v204, %v205
    %v207 = vrot.slane %v206, 1
    %v208 = vadd.f32 %v206, %v207
    %v209 = vmul.f32 %v201, %v201
    %v210 = vrot.slane %v209, 4
    %v211 = vadd.f32 %v209, %v210
    %v212 = vrot.slane %v211, 2
    %v213 = vadd.f32 %v211, %v212
    %v214 = vrot.slane %v213, 1
    %v215 = vadd.f32 %v213, %v214
    %vm216 = vcmask 1040384
    %v217 = vsel %vm216, %v208, %v215
    %218 = vst [vmem:[%s3] sm:$0x3] %v217
  $region17: #{_lambda_.62} parent=0 // pred_fallthru
    _
  // Predicated region
  $region18: #{_lambda_.62} parent=0 // pred_check
    _
  $region19: #{_lambda_.62} parent=0 // pred_check_branch
    %220 = sbr.rel (0) target = $region21
  $region20: #{_lambda_.62} parent=0 // pred_region
    _
  $region21: #{_lambda_.62} parent=0 // pred_fallthru
    _
  // Predicated region
  $region22: #{_lambda_.62} parent=0 // pred_check
    _
  $region23: #{_lambda_.62} parent=0 // pred_check_branch
    %222 = sbr.rel (0) target = $region25
  $region24: #{_lambda_.62} parent=0 // pred_region
    _
  $region25: #{_lambda_.62} parent=0 // pred_fallthru
    _
  // Predicated region
  $region26: #{_lambda_.62} parent=0 // pred_check
    _
  $region27: #{_lambda_.62} parent=0 // pred_check_branch
    %224 = sbr.rel (0) target = $region29
  $region28: #{_lambda_.62} parent=0 // pred_region
    _
  $region29: #{_lambda_.62} parent=0 // pred_fallthru
    _
  // Predicated region
  $region30: #{_lambda_.62} parent=0 // pred_check
    _
  $region31: #{_lambda_.62} parent=0 // pred_check_branch
    %226 = sbr.rel (0) target = $region33
  $region32: #{_lambda_.62} parent=0 // pred_region
    _
  $region33: #{_lambda_.62} parent=0 // pred_fallthru
    _

// kernel: _lambda_.64
$region0: #{_lambda_.64}
  #allocation0 [shape = 'u32[]', space=smem, size = 0x4, offset = 0x4, fixed_abs, tag = 'smem constant byte address 0x4 - core index']
  #allocation1 [shape = 'u32[144,128]{1,0:T(1,128)}', space=vmem, size = 0x12000, scoped, tag = 'internal scratch']
  #allocation2 [shape = 'f32[8,128]{1,0:T(8,128)}', space=vmem, size = 0x1000, scoped, tag = 'scratch operand']
  %s0 = inlined_call_operand.vmem [shape: bf16[8,128], index: 0, kind: input, shape index: {}]
  %s1 = inlined_call_operand.vmem [shape: bf16[128,128], index: 1, kind: input, shape index: {}]
  %s2 = inlined_call_operand.vmem [shape: f32[8,128], index: 2, kind: output, shape index: {0}]
  %s3 = inlined_call_operand.vmem [shape: f32[1,2,128], index: 3, kind: output, shape index: {1}]
  %4 = xla_tuple %s2, %s3
  %s5 = sld [smem:[#allocation0]]
  $region34: #{_lambda_.64} parent=0
    _
  %s7 = ssub.s32 1, %s5
  %s8 = scalar_select 0, %s7, %s5
  // Predicated region
  $region2: #{_lambda_.64} parent=0 // pred_check
    _
  $region3: #{_lambda_.64} parent=0 // pred_check_branch
    %10 = sbr.rel (0) target = $region5
  $region4: #{_lambda_.64} parent=0 // pred_region
    _
  $region5: #{_lambda_.64} parent=0 // pred_fallthru
    _
  // Predicated region
  $region6: #{_lambda_.64} parent=0 // pred_check
    _
  $region7: #{_lambda_.64} parent=0 // pred_check_branch
    %12 = sbr.rel (0) target = $region9
  $region8: #{_lambda_.64} parent=0 // pred_region
    _
  $region9: #{_lambda_.64} parent=0 // pred_fallthru
    _
  %p14 = scmp.eq.s32.totalorder 0, 0
  // Predicated region
  $region10: #{_lambda_.64} parent=0 // pred_check
    %p15 = pneg %p14
  $region11: #{_lambda_.64} parent=0 // pred_check_branch
    %17 = sbr.rel (%p15) target = $region13
  $region12: #{_lambda_.64} parent=0 // pred_region
    %18 = vst [vmem:[#allocation2] sm:$0xff] 0.0
  $region13: #{_lambda_.64} parent=0 // pred_fallthru
    _
  %v19 = vld [vmem:[#allocation2] sm:$0xff]
  %v20 = vld [vmem:[%s0] sm:$0xf]
  %v21 = vld [vmem:[%s1] sm:$0xf]
  %v22 = vld [vmem:[%s1 + $0x4] sm:$0xf]
  %v23 = vld [vmem:[%s1 + $0x8] sm:$0xf]
  %v24 = vld [vmem:[%s1 + $0xc] sm:$0xf]
  %v25 = vld [vmem:[%s1 + $0x10] sm:$0xf]
  %v26 = vld [vmem:[%s1 + $0x14] sm:$0xf]
  %v27 = vld [vmem:[%s1 + $0x18] sm:$0xf]
  %v28 = vld [vmem:[%s1 + $0x1c] sm:$0xf]
  %v29 = vld [vmem:[%s1 + $0x20] sm:$0xf]
  %v30 = vld [vmem:[%s1 + $0x24] sm:$0xf]
  %v31 = vld [vmem:[%s1 + $0x28] sm:$0xf]
  %v32 = vld [vmem:[%s1 + $0x2c] sm:$0xf]
  %v33 = vld [vmem:[%s1 + $0x30] sm:$0xf]
  %v34 = vld [vmem:[%s1 + $0x34] sm:$0xf]
  %v35 = vld [vmem:[%s1 + $0x38] sm:$0xf]
  %v36 = vld [vmem:[%s1 + $0x3c] sm:$0xf]
  %v53 = vunpack.c.l.b16 %v21
  %v54 = vunpack.c.l.b16 %v22
  %v55 = vunpack.c.l.b16 %v23
  %v56 = vunpack.c.l.b16 %v24
  %v57 = vunpack.c.l.b16 %v25
  %v58 = vunpack.c.l.b16 %v26
  %v59 = vunpack.c.l.b16 %v27
  %v60 = vunpack.c.l.b16 %v28
  %v61 = vunpack.c.l.b16 %v29
  %v62 = vunpack.c.l.b16 %v30
  %v63 = vunpack.c.l.b16 %v31
  %v64 = vunpack.c.l.b16 %v32
  %v65 = vunpack.c.l.b16 %v33
  %v66 = vunpack.c.l.b16 %v34
  %v67 = vunpack.c.l.b16 %v35
  %v68 = vunpack.c.l.b16 %v36
  %v69 = vpack.c.b16 %v54, %v53
  %v70 = vpack.c.b16 %v56, %v55
  %v71 = vpack.c.b16 %v58, %v57
  %v72 = vpack.c.b16 %v60, %v59
  %v73 = vpack.c.b16 %v62, %v61
  %v74 = vpack.c.b16 %v64, %v63
  %v75 = vpack.c.b16 %v66, %v65
  %v76 = vpack.c.b16 %v68, %v67
  %85 = vmatprep.subr.bf16.mxu0 0
  %86 = vmatpush1.bf16.msra.mxu0 %v69
  %87 = vmatprep.subr.bf16.mxu0 0
  %88 = vmatpush1.bf16.msra.mxu0 %v70
  %89 = vmatprep.subr.bf16.mxu0 0
  %90 = vmatpush1.bf16.msra.mxu0 %v71
  %91 = vmatprep.subr.bf16.mxu0 0
  %92 = vmatpush1.bf16.msra.mxu0 %v72
  %93 = vmatprep.subr.bf16.mxu0 0
  %94 = vmatpush1.bf16.msra.mxu0 %v73
  %95 = vmatprep.subr.bf16.mxu0 0
  %96 = vmatpush1.bf16.msra.mxu0 %v74
  %97 = vmatprep.subr.bf16.mxu0 0
  %98 = vmatpush1.bf16.msra.mxu0 %v75
  %99 = vmatprep.subr.bf16.mxu0 0
  %100 = vmatpush1.bf16.msra.mxu0 %v76
  %101 = vmatprep.subr.bf16.mxu0 0
  %102 = vmatpush1.bf16.msra.mxu0 0
  %103 = vmatprep.subr.bf16.mxu0 0
  %104 = vmatpush1.bf16.msra.mxu0 0
  %105 = vmatprep.subr.bf16.mxu0 0
  %106 = vmatpush1.bf16.msra.mxu0 0
  %107 = vmatprep.subr.bf16.mxu0 0
  %108 = vmatpush1.bf16.msra.mxu0 0
  %109 = vmatprep.subr.bf16.mxu0 0
  %110 = vmatpush1.bf16.msra.mxu0 0
  %111 = vmatprep.subr.bf16.mxu0 0
  %112 = vmatpush1.bf16.msra.mxu0 0
  %113 = vmatprep.subr.bf16.mxu0 0
  %114 = vmatpush1.bf16.msra.mxu0 0
  %115 = vmatprep.subr.bf16.mxu0 0
  %116 = vmatpush1.bf16.msra.mxu0 0
  %117 = vmatprep.mubr.bf16.mxu0 0
  %118 = vmatmul.mubr.bf16.gmra.mrb[0].mxu0 %v20
  %v119 = vpop.f32.mrb[0].mxu0
  %v120 = vadd.f32 0.0, %v119
  %v121 = vpop.f32.mrb[0].mxu0
  %v122 = vpop.f32.mrb[0].mxu0
  %v123 = vpop.f32.mrb[0].mxu0
  %124 = vdwg.mxu0
  %v125 = vadd.f32 %v19, %v120
  %126 = vst [vmem:[#allocation2] sm:$0xff] %v125
  // Predicated region
  $region14: #{_lambda_.64} parent=0 // pred_check
    %p127 = pneg %p14
  $region15: #{_lambda_.64} parent=0 // pred_check_branch
    %129 = sbr.rel (%p127) target = $region17
  $region16: #{_lambda_.64} parent=0 // pred_region
    %v130 = vld [vmem:[#allocation2] sm:$0xff]
    %131 = vst [vmem:[%s2] sm:$0xff] %v130
    %v132 = vrot.slane %v130, 4
    %v133 = vadd.f32 %v130, %v132
    %v134 = vrot.slane %v133, 2
    %v135 = vadd.f32 %v133, %v134
    %v136 = vrot.slane %v135, 1
    %v137 = vadd.f32 %v135, %v136
    %v138 = vmul.f32 %v130, %v130
    %v139 = vrot.slane %v138, 4
    %v140 = vadd.f32 %v138, %v139
    %v141 = vrot.slane %v140, 2
    %v142 = vadd.f32 %v140, %v141
    %v143 = vrot.slane %v142, 1
    %v144 = vadd.f32 %v142, %v143
    %vm145 = vcmask 1040384
    %v146 = vsel %vm145, %v137, %v144
    %147 = vst [vmem:[%s3] sm:$0x3] %v146
  $region17: #{_lambda_.64} parent=0 // pred_fallthru
    _
  // Predicated region
  $region18: #{_lambda_.64} parent=0 // pred_check
    _
  $region19: #{_lambda_.64} parent=0 // pred_check_branch
    %149 = sbr.rel (0) target = $region21
  $region20: #{_lambda_.64} parent=0 // pred_region
    _
  $region21: #{_lambda_.64} parent=0 // pred_fallthru
    _
  // Predicated region
  $region22: #{_lambda_.64} parent=0 // pred_check
    _
  $region23: #{_lambda_.64} parent=0 // pred_check_branch
    %151 = sbr.rel (0) target = $region25
  $region24: #{_lambda_.64} parent=0 // pred_region
    _
  $region25: #{_lambda_.64} parent=0 // pred_fallthru
    _
  // Predicated region
  $region26: #{_lambda_.64} parent=0 // pred_check
    _
  $region27: #{_lambda_.64} parent=0 // pred_check_branch
    %153 = sbr.rel (0) target = $region29
  $region28: #{_lambda_.64} parent=0 // pred_region
    _
  $region29: #{_lambda_.64} parent=0 // pred_fallthru
    _
  // Predicated region
  $region30: #{_lambda_.64} parent=0 // pred_check
    _
  $region31: #{_lambda_.64} parent=0 // pred_check_branch
    %155 = sbr.rel (0) target = $region33
  $region32: #{_lambda_.64} parent=0 // pred_region
    _
  $region33: #{_lambda_.64} parent=0 // pred_fallthru
    _

// kernel: _lambda_.65
$region0: #{_lambda_.65}
  #allocation0 [shape = 'u32[]', space=smem, size = 0x4, offset = 0x4, fixed_abs, tag = 'smem constant byte address 0x4 - core index']
  #allocation1 [shape = 'u32[144,128]{1,0:T(1,128)}', space=vmem, size = 0x12000, scoped, tag = 'internal scratch']
  %s0 = inlined_call_operand.vmem [shape: f32[8,128], index: 0, kind: input, shape index: {}]
  %s1 = inlined_call_operand.vmem [shape: f32[1,128], index: 1, kind: input, shape index: {}]
  %s2 = inlined_call_operand.vmem [shape: f32[1,128], index: 2, kind: input, shape index: {}]
  %s3 = inlined_call_operand.vmem [shape: f32[8,128], index: 3, kind: output, shape index: {}]
  %s4 = sld [smem:[#allocation0]]
  $region22: #{_lambda_.65} parent=0
    _
  %s6 = ssub.s32 1, %s4
  %s7 = scalar_select 0, %s6, %s4
  // Predicated region
  $region2: #{_lambda_.65} parent=0 // pred_check
    _
  $region3: #{_lambda_.65} parent=0 // pred_check_branch
    %9 = sbr.rel (0) target = $region5
  $region4: #{_lambda_.65} parent=0 // pred_region
    _
  $region5: #{_lambda_.65} parent=0 // pred_fallthru
    _
  // Predicated region
  $region6: #{_lambda_.65} parent=0 // pred_check
    _
  $region7: #{_lambda_.65} parent=0 // pred_check_branch
    %11 = sbr.rel (0) target = $region9
  $region8: #{_lambda_.65} parent=0 // pred_region
    _
  $region9: #{_lambda_.65} parent=0 // pred_fallthru
    _
  // Predicated region
  $region10: #{_lambda_.65} parent=0 // pred_check
    _
  $region11: #{_lambda_.65} parent=0 // pred_check_branch
    %13 = sbr.rel (0) target = $region13
  $region12: #{_lambda_.65} parent=0 // pred_region
    _
  $region13: #{_lambda_.65} parent=0 // pred_fallthru
    _
  %v14 = vld [vmem:[%s0] sm:$0xff]
  %v15 = vld [vmem:[%s1] sm:$0x1]
  %v17 = vlaneseq
  %v18 = vshrl.u32 %v17, 7
  %v19 = vsub.s32 0, %v18
  %v20 = vrot.slane %v15, %v19
  %v22 = vmul.f32 %v14, %v20
  %v23 = vld [vmem:[%s2] sm:$0x1]
  %v25 = vlaneseq
  %v26 = vshrl.u32 %v25, 7
  %v27 = vsub.s32 0, %v26
  %v28 = vrot.slane %v23, %v27
  %v30 = vadd.f32 %v22, %v28
  %31 = vst [vmem:[%s3] sm:$0xff] %v30
  // Predicated region
  $region14: #{_lambda_.65} parent=0 // pred_check
    _
  $region15: #{_lambda_.65} parent=0 // pred_check_branch
    %33 = sbr.rel (0) target = $region17
  $region16: #{_lambda_.65} parent=0 // pred_region
    _
  $region17: #{_lambda_.65} parent=0 // pred_fallthru
    _
  // Predicated region
  $region18: #{_lambda_.65} parent=0 // pred_check
    _
  $region19: #{_lambda_.65} parent=0 // pred_check_branch
    %35 = sbr.rel (0) target = $region21
  $region20: #{_lambda_.65} parent=0 // pred_region
    _
  $region21: #{_lambda_.65} parent=0 // pred_fallthru
    _

// kernel: _lambda_.66
$region0: #{_lambda_.66}
  #allocation0 [shape = 'u32[]', space=smem, size = 0x4, offset = 0x4, fixed_abs, tag = 'smem constant byte address 0x4 - core index']
  #allocation1 [shape = 'u32[144,128]{1,0:T(1,128)}', space=vmem, size = 0x12000, scoped, tag = 'internal scratch']
  #allocation2 [shape = 'f32[8,128]{1,0:T(8,128)}', space=vmem, size = 0x1000, scoped, tag = 'scratch operand']
  %s0 = inlined_call_operand.vmem [shape: bf16[8,384], index: 0, kind: input, shape index: {}]
  %s1 = inlined_call_operand.vmem [shape: bf16[384,128], index: 1, kind: input, shape index: {}]
  %s2 = inlined_call_operand.vmem [shape: f32[8,128], index: 2, kind: output, shape index: {0}]
  %s3 = inlined_call_operand.vmem [shape: f32[1,2,128], index: 3, kind: output, shape index: {1}]
  %4 = xla_tuple %s2, %s3
  %s5 = sld [smem:[#allocation0]]
  $region34: #{_lambda_.66} parent=0
    _
  %s7 = ssub.s32 1, %s5
  %s8 = scalar_select 0, %s7, %s5
  // Predicated region
  $region2: #{_lambda_.66} parent=0 // pred_check
    _
  $region3: #{_lambda_.66} parent=0 // pred_check_branch
    %10 = sbr.rel (0) target = $region5
  $region4: #{_lambda_.66} parent=0 // pred_region
    _
  $region5: #{_lambda_.66} parent=0 // pred_fallthru
    _
  // Predicated region
  $region6: #{_lambda_.66} parent=0 // pred_check
    _
  $region7: #{_lambda_.66} parent=0 // pred_check_branch
    %12 = sbr.rel (0) target = $region9
  $region8: #{_lambda_.66} parent=0 // pred_region
    _
  $region9: #{_lambda_.66} parent=0 // pred_fallthru
    _
  %p14 = scmp.eq.s32.totalorder 0, 0
  // Predicated region
  $region10: #{_lambda_.66} parent=0 // pred_check
    %p15 = pneg %p14
  $region11: #{_lambda_.66} parent=0 // pred_check_branch
    %17 = sbr.rel (%p15) target = $region13
  $region12: #{_lambda_.66} parent=0 // pred_region
    %18 = vst [vmem:[#allocation2] sm:$0xff] 0.0
  $region13: #{_lambda_.66} parent=0 // pred_fallthru
    _
  %v19 = vld [vmem:[#allocation2] sm:$0xff]
  %v20 = vld [vmem:[%s0] sm:$0xff]
  %v21 = vld [vmem:[%s0 + $0x8] sm:$0xf]
  %v22 = vld [vmem:[%s1] sm:$0xf]
  %v23 = vld [vmem:[%s1 + $0x4] sm:$0xf]
  %v24 = vld [vmem:[%s1 + $0x8] sm:$0xf]
  %v25 = vld [vmem:[%s1 + $0xc] sm:$0xf]
  %v26 = vld [vmem:[%s1 + $0x10] sm:$0xf]
  %v27 = vld [vmem:[%s1 + $0x14] sm:$0xf]
  %v28 = vld [vmem:[%s1 + $0x18] sm:$0xf]
  %v29 = vld [vmem:[%s1 + $0x1c] sm:$0xf]
  %v30 = vld [vmem:[%s1 + $0x20] sm:$0xf]
  %v31 = vld [vmem:[%s1 + $0x24] sm:$0xf]
  %v32 = vld [vmem:[%s1 + $0x28] sm:$0xf]
  %v33 = vld [vmem:[%s1 + $0x2c] sm:$0xf]
  %v34 = vld [vmem:[%s1 + $0x30] sm:$0xf]
  %v35 = vld [vmem:[%s1 + $0x34] sm:$0xf]
  %v36 = vld [vmem:[%s1 + $0x38] sm:$0xf]
  %v37 = vld [vmem:[%s1 + $0x3c] sm:$0xf]
  %v38 = vld [vmem:[%s1 + $0x40] sm:$0xf]
  %v39 = vld [vmem:[%s1 + $0x44] sm:$0xf]
  %v40 = vld [vmem:[%s1 + $0x48] sm:$0xf]
  %v41 = vld [vmem:[%s1 + $0x4c] sm:$0xf]
  %v42 = vld [vmem:[%s1 + $0x50] sm:$0xf]
  %v43 = vld [vmem:[%s1 + $0x54] sm:$0xf]
  %v44 = vld [vmem:[%s1 + $0x58] sm:$0xf]
  %v45 = vld [vmem:[%s1 + $0x5c] sm:$0xf]
  %v46 = vld [vmem:[%s1 + $0x60] sm:$0xf]
  %v47 = vld [vmem:[%s1 + $0x64] sm:$0xf]
  %v48 = vld [vmem:[%s1 + $0x68] sm:$0xf]
  %v49 = vld [vmem:[%s1 + $0x6c] sm:$0xf]
  %v50 = vld [vmem:[%s1 + $0x70] sm:$0xf]
  %v51 = vld [vmem:[%s1 + $0x74] sm:$0xf]
  %v52 = vld [vmem:[%s1 + $0x78] sm:$0xf]
  %v53 = vld [vmem:[%s1 + $0x7c] sm:$0xf]
  %v54 = vld [vmem:[%s1 + $0x80] sm:$0xf]
  %v55 = vld [vmem:[%s1 + $0x84] sm:$0xf]
  %v56 = vld [vmem:[%s1 + $0x88] sm:$0xf]
  %v57 = vld [vmem:[%s1 + $0x8c] sm:$0xf]
  %v58 = vld [vmem:[%s1 + $0x90] sm:$0xf]
  %v59 = vld [vmem:[%s1 + $0x94] sm:$0xf]
  %v60 = vld [vmem:[%s1 + $0x98] sm:$0xf]
  %v61 = vld [vmem:[%s1 + $0x9c] sm:$0xf]
  %v62 = vld [vmem:[%s1 + $0xa0] sm:$0xf]
  %v63 = vld [vmem:[%s1 + $0xa4] sm:$0xf]
  %v64 = vld [vmem:[%s1 + $0xa8] sm:$0xf]
  %v65 = vld [vmem:[%s1 + $0xac] sm:$0xf]
  %v66 = vld [vmem:[%s1 + $0xb0] sm:$0xf]
  %v67 = vld [vmem:[%s1 + $0xb4] sm:$0xf]
  %v68 = vld [vmem:[%s1 + $0xb8] sm:$0xf]
  %v69 = vld [vmem:[%s1 + $0xbc] sm:$0xf]
  %v72 = vunpack.c.l.b16 %v20
  %v73 = vunpack.c.h.b16 %v20
  %v74 = vunpack.c.l.b16 %v21
  %v75 = vpack.c.b16 %v72, %v72
  %v76 = vpack.c.b16 %v73, %v73
  %v77 = vpack.c.b16 %v74, %v74
  %v129 = vunpack.c.l.b16 %v22
  %v130 = vunpack.c.l.b16 %v23
  %v131 = vunpack.c.l.b16 %v24
  %v132 = vunpack.c.l.b16 %v25
  %v133 = vunpack.c.l.b16 %v26
  %v134 = vunpack.c.l.b16 %v27
  %v135 = vunpack.c.l.b16 %v28
  %v136 = vunpack.c.l.b16 %v29
  %v137 = vunpack.c.l.b16 %v30
  %v138 = vunpack.c.l.b16 %v31
  %v139 = vunpack.c.l.b16 %v32
  %v140 = vunpack.c.l.b16 %v33
  %v141 = vunpack.c.l.b16 %v34
  %v142 = vunpack.c.l.b16 %v35
  %v143 = vunpack.c.l.b16 %v36
  %v144 = vunpack.c.l.b16 %v37
  %v145 = vunpack.c.l.b16 %v38
  %v146 = vunpack.c.l.b16 %v39
  %v147 = vunpack.c.l.b16 %v40
  %v148 = vunpack.c.l.b16 %v41
  %v149 = vunpack.c.l.b16 %v42
  %v150 = vunpack.c.l.b16 %v43
  %v151 = vunpack.c.l.b16 %v44
  %v152 = vunpack.c.l.b16 %v45
  %v153 = vunpack.c.l.b16 %v46
  %v154 = vunpack.c.l.b16 %v47
  %v155 = vunpack.c.l.b16 %v48
  %v156 = vunpack.c.l.b16 %v49
  %v157 = vunpack.c.l.b16 %v50
  %v158 = vunpack.c.l.b16 %v51
  %v159 = vunpack.c.l.b16 %v52
  %v160 = vunpack.c.l.b16 %v53
  %v161 = vunpack.c.l.b16 %v54
  %v162 = vunpack.c.l.b16 %v55
  %v163 = vunpack.c.l.b16 %v56
  %v164 = vunpack.c.l.b16 %v57
  %v165 = vunpack.c.l.b16 %v58
  %v166 = vunpack.c.l.b16 %v59
  %v167 = vunpack.c.l.b16 %v60
  %v168 = vunpack.c.l.b16 %v61
  %v169 = vunpack.c.l.b16 %v62
  %v170 = vunpack.c.l.b16 %v63
  %v171 = vunpack.c.l.b16 %v64
  %v172 = vunpack.c.l.b16 %v65
  %v173 = vunpack.c.l.b16 %v66
  %v174 = vunpack.c.l.b16 %v67
  %v175 = vunpack.c.l.b16 %v68
  %v176 = vunpack.c.l.b16 %v69
  %v177 = vpack.c.b16 %v130, %v129
  %v178 = vpack.c.b16 %v132, %v131
  %v179 = vpack.c.b16 %v134, %v133
  %v180 = vpack.c.b16 %v136, %v135
  %v181 = vpack.c.b16 %v138, %v137
  %v182 = vpack.c.b16 %v140, %v139
  %v183 = vpack.c.b16 %v142, %v141
  %v184 = vpack.c.b16 %v144, %v143
  %v185 = vpack.c.b16 %v146, %v145
  %v186 = vpack.c.b16 %v148, %v147
  %v187 = vpack.c.b16 %v150, %v149
  %v188 = vpack.c.b16 %v152, %v151
  %v189 = vpack.c.b16 %v154, %v153
  %v190 = vpack.c.b16 %v156, %v155
  %v191 = vpack.c.b16 %v158, %v157
  %v192 = vpack.c.b16 %v160, %v159
  %v193 = vpack.c.b16 %v162, %v161
  %v194 = vpack.c.b16 %v164, %v163
  %v195 = vpack.c.b16 %v166, %v165
  %v196 = vpack.c.b16 %v168, %v167
  %v197 = vpack.c.b16 %v170, %v169
  %v198 = vpack.c.b16 %v172, %v171
  %v199 = vpack.c.b16 %v174, %v173
  %v200 = vpack.c.b16 %v176, %v175
  %225 = vmatprep.subr.bf16.mxu0 0
  %226 = vmatpush1.bf16.msra.mxu0 %v177
  %227 = vmatprep.subr.bf16.mxu0 0
  %228 = vmatpush1.bf16.msra.mxu0 %v178
  %229 = vmatprep.subr.bf16.mxu0 0
  %230 = vmatpush1.bf16.msra.mxu0 %v179
  %231 = vmatprep.subr.bf16.mxu0 0
  %232 = vmatpush1.bf16.msra.mxu0 %v180
  %233 = vmatprep.subr.bf16.mxu0 0
  %234 = vmatpush1.bf16.msra.mxu0 %v181
  %235 = vmatprep.subr.bf16.mxu0 0
  %236 = vmatpush1.bf16.msra.mxu0 %v182
  %237 = vmatprep.subr.bf16.mxu0 0
  %238 = vmatpush1.bf16.msra.mxu0 %v183
  %239 = vmatprep.subr.bf16.mxu0 0
  %240 = vmatpush1.bf16.msra.mxu0 %v184
  %241 = vmatprep.subr.bf16.mxu0 0
  %242 = vmatpush1.bf16.msra.mxu0 %v185
  %243 = vmatprep.subr.bf16.mxu0 0
  %244 = vmatpush1.bf16.msra.mxu0 %v186
  %245 = vmatprep.subr.bf16.mxu0 0
  %246 = vmatpush1.bf16.msra.mxu0 %v187
  %247 = vmatprep.subr.bf16.mxu0 0
  %248 = vmatpush1.bf16.msra.mxu0 %v188
  %249 = vmatprep.subr.bf16.mxu0 0
  %250 = vmatpush1.bf16.msra.mxu0 %v189
  %251 = vmatprep.subr.bf16.mxu0 0
  %252 = vmatpush1.bf16.msra.mxu0 %v190
  %253 = vmatprep.subr.bf16.mxu0 0
  %254 = vmatpush1.bf16.msra.mxu0 %v191
  %255 = vmatprep.subr.bf16.mxu0 0
  %256 = vmatpush1.bf16.msra.mxu0 %v192
  %257 = vmatprep.mubr.bf16.mxu0 %v76
  %258 = vmatmul.mubr.bf16.gmra.mrb[0].mxu0 %v75
  %v259 = vpop.f32.mrb[0].mxu0
  %v260 = vadd.f32 0.0, %v259
  %v261 = vpop.f32.mrb[0].mxu0
  %v262 = vpop.f32.mrb[0].mxu0
  %v263 = vpop.f32.mrb[0].mxu0
  %264 = vdwg.mxu0
  %265 = vmatprep.subr.bf16.mxu0 0
  %266 = vmatpush1.bf16.msra.mxu0 %v193
  %267 = vmatprep.subr.bf16.mxu0 0
  %268 = vmatpush1.bf16.msra.mxu0 %v194
  %269 = vmatprep.subr.bf16.mxu0 0
  %270 = vmatpush1.bf16.msra.mxu0 %v195
  %271 = vmatprep.subr.bf16.mxu0 0
  %272 = vmatpush1.bf16.msra.mxu0 %v196
  %273 = vmatprep.subr.bf16.mxu0 0
  %274 = vmatpush1.bf16.msra.mxu0 %v197
  %275 = vmatprep.subr.bf16.mxu0 0
  %276 = vmatpush1.bf16.msra.mxu0 %v198
  %277 = vmatprep.subr.bf16.mxu0 0
  %278 = vmatpush1.bf16.msra.mxu0 %v199
  %279 = vmatprep.subr.bf16.mxu0 0
  %280 = vmatpush1.bf16.msra.mxu0 %v200
  %281 = vmatprep.subr.bf16.mxu0 0
  %282 = vmatpush1.bf16.msra.mxu0 0
  %283 = vmatprep.subr.bf16.mxu0 0
  %284 = vmatpush1.bf16.msra.mxu0 0
  %285 = vmatprep.subr.bf16.mxu0 0
  %286 = vmatpush1.bf16.msra.mxu0 0
  %287 = vmatprep.subr.bf16.mxu0 0
  %288 = vmatpush1.bf16.msra.mxu0 0
  %289 = vmatprep.subr.bf16.mxu0 0
  %290 = vmatpush1.bf16.msra.mxu0 0
  %291 = vmatprep.subr.bf16.mxu0 0
  %292 = vmatpush1.bf16.msra.mxu0 0
  %293 = vmatprep.subr.bf16.mxu0 0
  %294 = vmatpush1.bf16.msra.mxu0 0
  %295 = vmatprep.subr.bf16.mxu0 0
  %296 = vmatpush1.bf16.msra.mxu0 0
  %297 = vmatprep.mubr.bf16.mxu0 0
  %298 = vmatmul.mubr.bf16.gmra.mrb[0].mxu0 %v77
  %v299 = vpop.f32.mrb[0].mxu0
  %v300 = vadd.f32 %v260, %v299
  %v301 = vpop.f32.mrb[0].mxu0
  %v302 = vpop.f32.mrb[0].mxu0
  %v303 = vpop.f32.mrb[0].mxu0
  %304 = vdwg.mxu0
  %v305 = vadd.f32 %v19, %v300
  %306 = vst [vmem:[#allocation2] sm:$0xff] %v305
  // Predicated region
  $region14: #{_lambda_.66} parent=0 // pred_check
    %p307 = pneg %p14
  $region15: #{_lambda_.66} parent=0 // pred_check_branch
    %309 = sbr.rel (%p307) target = $region17
  $region16: #{_lambda_.66} parent=0 // pred_region
    %v310 = vld [vmem:[#allocation2] sm:$0xff]
    %311 = vst [vmem:[%s2] sm:$0xff] %v310
    %v312 = vrot.slane %v310, 4
    %v313 = vadd.f32 %v310, %v312
    %v314 = vrot.slane %v313, 2
    %v315 = vadd.f32 %v313, %v314
    %v316 = vrot.slane %v315, 1
    %v317 = vadd.f32 %v315, %v316
    %v318 = vmul.f32 %v310, %v310
    %v319 = vrot.slane %v318, 4
    %v320 = vadd.f32 %v318, %v319
    %v321 = vrot.slane %v320, 2
    %v322 = vadd.f32 %v320, %v321
    %v323 = vrot.slane %v322, 1
    %v324 = vadd.f32 %v322, %v323
    %vm325 = vcmask 1040384
    %v326 = vsel %vm325, %v317, %v324
    %327 = vst [vmem:[%s3] sm:$0x3] %v326
  $region17: #{_lambda_.66} parent=0 // pred_fallthru
    _
  // Predicated region
  $region18: #{_lambda_.66} parent=0 // pred_check
    _
  $region19: #{_lambda_.66} parent=0 // pred_check_branch
    %329 = sbr.rel (0) target = $region21
  $region20: #{_lambda_.66} parent=0 // pred_region
    _
  $region21: #{_lambda_.66} parent=0 // pred_fallthru
    _
  // Predicated region
  $region22: #{_lambda_.66} parent=0 // pred_check
    _
  $region23: #{_lambda_.66} parent=0 // pred_check_branch
    %331 = sbr.rel (0) target = $region25
  $region24: #{_lambda_.66} parent=0 // pred_region
    _
  $region25: #{_lambda_.66} parent=0 // pred_fallthru
    _
  // Predicated region
  $region26: #{_lambda_.66} parent=0 // pred_check
    _
  $region27: #{_lambda_.66} parent=0 // pred_check_branch
    %333 = sbr.rel (0) target = $region29
  $region28: #{_lambda_.66} parent=0 // pred_region
    _
  $region29: #{_lambda_.66} parent=0 // pred_fallthru
    _
  // Predicated region
  $region30: #{_lambda_.66} parent=0 // pred_check
    _
  $region31: #{_lambda_.66} parent=0 // pred_check_branch
    %335 = sbr.rel (0) target = $region33
  $region32: #{_lambda_.66} parent=0 // pred_region
    _
  $region33: #{_lambda_.66} parent=0 // pred_fallthru
    _

// kernel: _lambda_.67
$region0: #{_lambda_.67}
  #allocation0 [shape = 'u32[]', space=smem, size = 0x4, offset = 0x4, fixed_abs, tag = 'smem constant byte address 0x4 - core index']
  #allocation1 [shape = 'u32[144,128]{1,0:T(1,128)}', space=vmem, size = 0x12000, scoped, tag = 'internal scratch']
  %s0 = inlined_call_operand.vmem [shape: f32[8,128], index: 0, kind: input, shape index: {}]
  %s1 = inlined_call_operand.vmem [shape: f32[1,128], index: 1, kind: input, shape index: {}]
  %s2 = inlined_call_operand.vmem [shape: f32[1,128], index: 2, kind: input, shape index: {}]
  %s3 = inlined_call_operand.vmem [shape: f32[8,128], index: 3, kind: input, shape index: {}]
  %s4 = inlined_call_operand.vmem [shape: f32[8,128], index: 4, kind: output, shape index: {}]
  %s5 = sld [smem:[#allocation0]]
  $region26: #{_lambda_.67} parent=0
    _
  %s7 = ssub.s32 1, %s5
  %s8 = scalar_select 0, %s7, %s5
  // Predicated region
  $region2: #{_lambda_.67} parent=0 // pred_check
    _
  $region3: #{_lambda_.67} parent=0 // pred_check_branch
    %10 = sbr.rel (0) target = $region5
  $region4: #{_lambda_.67} parent=0 // pred_region
    _
  $region5: #{_lambda_.67} parent=0 // pred_fallthru
    _
  // Predicated region
  $region6: #{_lambda_.67} parent=0 // pred_check
    _
  $region7: #{_lambda_.67} parent=0 // pred_check_branch
    %12 = sbr.rel (0) target = $region9
  $region8: #{_lambda_.67} parent=0 // pred_region
    _
  $region9: #{_lambda_.67} parent=0 // pred_fallthru
    _
  // Predicated region
  $region10: #{_lambda_.67} parent=0 // pred_check
    _
  $region11: #{_lambda_.67} parent=0 // pred_check_branch
    %14 = sbr.rel (0) target = $region13
  $region12: #{_lambda_.67} parent=0 // pred_region
    _
  $region13: #{_lambda_.67} parent=0 // pred_fallthru
    _
  // Predicated region
  $region14: #{_lambda_.67} parent=0 // pred_check
    _
  $region15: #{_lambda_.67} parent=0 // pred_check_branch
    %16 = sbr.rel (0) target = $region17
  $region16: #{_lambda_.67} parent=0 // pred_region
    _
  $region17: #{_lambda_.67} parent=0 // pred_fallthru
    _
  %v17 = vld [vmem:[%s0] sm:$0xff]
  %v18 = vld [vmem:[%s1] sm:$0x1]
  %v20 = vlaneseq
  %v21 = vshrl.u32 %v20, 7
  %v22 = vsub.s32 0, %v21
  %v23 = vrot.slane %v18, %v22
  %v25 = vmul.f32 %v17, %v23
  %v26 = vld [vmem:[%s2] sm:$0x1]
  %v28 = vlaneseq
  %v29 = vshrl.u32 %v28, 7
  %v30 = vsub.s32 0, %v29
  %v31 = vrot.slane %v26, %v30
  %v33 = vadd.f32 %v25, %v31
  %v34 = vld [vmem:[%s3] sm:$0xff]
  %v35 = vadd.f32 %v33, %v34
  %36 = vst [vmem:[%s4] sm:$0xff] %v35
  // Predicated region
  $region18: #{_lambda_.67} parent=0 // pred_check
    _
  $region19: #{_lambda_.67} parent=0 // pred_check_branch
    %38 = sbr.rel (0) target = $region21
  $region20: #{_lambda_.67} parent=0 // pred_region
    _
  $region21: #{_lambda_.67} parent=0 // pred_fallthru
    _
  // Predicated region
  $region22: #{_lambda_.67} parent=0 // pred_check
    _
  $region23: #{_lambda_.67} parent=0 // pred_check_branch
    %40 = sbr.rel (0) target = $region25
  $region24: #{_lambda_.67} parent=0 // pred_region
    _
  $region25: #{_lambda_.67} parent=0 // pred_fallthru
    _

// kernel: _lambda_.76
$region0: #{_lambda_.76}
  #allocation0 [shape = 'u32[]', space=smem, size = 0x4, offset = 0x4, fixed_abs, tag = 'smem constant byte address 0x4 - core index']
  #allocation1 [shape = 'u32[144,128]{1,0:T(1,128)}', space=vmem, size = 0x12000, scoped, tag = 'internal scratch']
  #allocation2 [shape = 'f32[8,128]{1,0:T(8,128)}', space=vmem, size = 0x1000, scoped, tag = 'scratch operand']
  %s0 = inlined_call_operand.vmem [shape: bf16[8,640], index: 0, kind: input, shape index: {}]
  %s1 = inlined_call_operand.vmem [shape: bf16[640,128], index: 1, kind: input, shape index: {}]
  %s2 = inlined_call_operand.vmem [shape: f32[8,128], index: 2, kind: output, shape index: {0}]
  %s3 = inlined_call_operand.vmem [shape: f32[1,2,128], index: 3, kind: output, shape index: {1}]
  %4 = xla_tuple %s2, %s3
  %s5 = sld [smem:[#allocation0]]
  $region34: #{_lambda_.76} parent=0
    _
  %s7 = ssub.s32 1, %s5
  %s8 = scalar_select 0, %s7, %s5
  // Predicated region
  $region2: #{_lambda_.76} parent=0 // pred_check
    _
  $region3: #{_lambda_.76} parent=0 // pred_check_branch
    %10 = sbr.rel (0) target = $region5
  $region4: #{_lambda_.76} parent=0 // pred_region
    _
  $region5: #{_lambda_.76} parent=0 // pred_fallthru
    _
  // Predicated region
  $region6: #{_lambda_.76} parent=0 // pred_check
    _
  $region7: #{_lambda_.76} parent=0 // pred_check_branch
    %12 = sbr.rel (0) target = $region9
  $region8: #{_lambda_.76} parent=0 // pred_region
    _
  $region9: #{_lambda_.76} parent=0 // pred_fallthru
    _
  %p14 = scmp.eq.s32.totalorder 0, 0
  // Predicated region
  $region10: #{_lambda_.76} parent=0 // pred_check
    %p15 = pneg %p14
  $region11: #{_lambda_.76} parent=0 // pred_check_branch
    %17 = sbr.rel (%p15) target = $region13
  $region12: #{_lambda_.76} parent=0 // pred_region
    %18 = vst [vmem:[#allocation2] sm:$0xff] 0.0
  $region13: #{_lambda_.76} parent=0 // pred_fallthru
    _
  %v19 = vld [vmem:[#allocation2] sm:$0xff]
  %v20 = vld [vmem:[%s0] sm:$0xff]
  %v21 = vld [vmem:[%s0 + $0x8] sm:$0xff]
  %v22 = vld [vmem:[%s0 + $0x10] sm:$0xf]
  %v23 = vld [vmem:[%s1] sm:$0xf]
  %v24 = vld [vmem:[%s1 + $0x4] sm:$0xf]
  %v25 = vld [vmem:[%s1 + $0x8] sm:$0xf]
  %v26 = vld [vmem:[%s1 + $0xc] sm:$0xf]
  %v27 = vld [vmem:[%s1 + $0x10] sm:$0xf]
  %v28 = vld [vmem:[%s1 + $0x14] sm:$0xf]
  %v29 = vld [vmem:[%s1 + $0x18] sm:$0xf]
  %v30 = vld [vmem:[%s1 + $0x1c] sm:$0xf]
  %v31 = vld [vmem:[%s1 + $0x20] sm:$0xf]
  %v32 = vld [vmem:[%s1 + $0x24] sm:$0xf]
  %v33 = vld [vmem:[%s1 + $0x28] sm:$0xf]
  %v34 = vld [vmem:[%s1 + $0x2c] sm:$0xf]
  %v35 = vld [vmem:[%s1 + $0x30] sm:$0xf]
  %v36 = vld [vmem:[%s1 + $0x34] sm:$0xf]
  %v37 = vld [vmem:[%s1 + $0x38] sm:$0xf]
  %v38 = vld [vmem:[%s1 + $0x3c] sm:$0xf]
  %v39 = vld [vmem:[%s1 + $0x40] sm:$0xf]
  %v40 = vld [vmem:[%s1 + $0x44] sm:$0xf]
  %v41 = vld [vmem:[%s1 + $0x48] sm:$0xf]
  %v42 = vld [vmem:[%s1 + $0x4c] sm:$0xf]
  %v43 = vld [vmem:[%s1 + $0x50] sm:$0xf]
  %v44 = vld [vmem:[%s1 + $0x54] sm:$0xf]
  %v45 = vld [vmem:[%s1 + $0x58] sm:$0xf]
  %v46 = vld [vmem:[%s1 + $0x5c] sm:$0xf]
  %v47 = vld [vmem:[%s1 + $0x60] sm:$0xf]
  %v48 = vld [vmem:[%s1 + $0x64] sm:$0xf]
  %v49 = vld [vmem:[%s1 + $0x68] sm:$0xf]
  %v50 = vld [vmem:[%s1 + $0x6c] sm:$0xf]
  %v51 = vld [vmem:[%s1 + $0x70] sm:$0xf]
  %v52 = vld [vmem:[%s1 + $0x74] sm:$0xf]
  %v53 = vld [vmem:[%s1 + $0x78] sm:$0xf]
  %v54 = vld [vmem:[%s1 + $0x7c] sm:$0xf]
  %v55 = vld [vmem:[%s1 + $0x80] sm:$0xf]
  %v56 = vld [vmem:[%s1 + $0x84] sm:$0xf]
  %v57 = vld [vmem:[%s1 + $0x88] sm:$0xf]
  %v58 = vld [vmem:[%s1 + $0x8c] sm:$0xf]
  %v59 = vld [vmem:[%s1 + $0x90] sm:$0xf]
  %v60 = vld [vmem:[%s1 + $0x94] sm:$0xf]
  %v61 = vld [vmem:[%s1 + $0x98] sm:$0xf]
  %v62 = vld [vmem:[%s1 + $0x9c] sm:$0xf]
  %v63 = vld [vmem:[%s1 + $0xa0] sm:$0xf]
  %v64 = vld [vmem:[%s1 + $0xa4] sm:$0xf]
  %v65 = vld [vmem:[%s1 + $0xa8] sm:$0xf]
  %v66 = vld [vmem:[%s1 + $0xac] sm:$0xf]
  %v67 = vld [vmem:[%s1 + $0xb0] sm:$0xf]
  %v68 = vld [vmem:[%s1 + $0xb4] sm:$0xf]
  %v69 = vld [vmem:[%s1 + $0xb8] sm:$0xf]
  %v70 = vld [vmem:[%s1 + $0xbc] sm:$0xf]
  %v71 = vld [vmem:[%s1 + $0xc0] sm:$0xf]
  %v72 = vld [vmem:[%s1 + $0xc4] sm:$0xf]
  %v73 = vld [vmem:[%s1 + $0xc8] sm:$0xf]
  %v74 = vld [vmem:[%s1 + $0xcc] sm:$0xf]
  %v75 = vld [vmem:[%s1 + $0xd0] sm:$0xf]
  %v76 = vld [vmem:[%s1 + $0xd4] sm:$0xf]
  %v77 = vld [vmem:[%s1 + $0xd8] sm:$0xf]
  %v78 = vld [vmem:[%s1 + $0xdc] sm:$0xf]
  %v79 = vld [vmem:[%s1 + $0xe0] sm:$0xf]
  %v80 = vld [vmem:[%s1 + $0xe4] sm:$0xf]
  %v81 = vld [vmem:[%s1 + $0xe8] sm:$0xf]
  %v82 = vld [vmem:[%s1 + $0xec] sm:$0xf]
  %v83 = vld [vmem:[%s1 + $0xf0] sm:$0xf]
  %v84 = vld [vmem:[%s1 + $0xf4] sm:$0xf]
  %v85 = vld [vmem:[%s1 + $0xf8] sm:$0xf]
  %v86 = vld [vmem:[%s1 + $0xfc] sm:$0xf]
  %v87 = vld [vmem:[%s1 + $0x100] sm:$0xf]
  %v88 = vld [vmem:[%s1 + $0x104] sm:$0xf]
  %v89 = vld [vmem:[%s1 + $0x108] sm:$0xf]
  %v90 = vld [vmem:[%s1 + $0x10c] sm:$0xf]
  %v91 = vld [vmem:[%s1 + $0x110] sm:$0xf]
  %v92 = vld [vmem:[%s1 + $0x114] sm:$0xf]
  %v93 = vld [vmem:[%s1 + $0x118] sm:$0xf]
  %v94 = vld [vmem:[%s1 + $0x11c] sm:$0xf]
  %v95 = vld [vmem:[%s1 + $0x120] sm:$0xf]
  %v96 = vld [vmem:[%s1 + $0x124] sm:$0xf]
  %v97 = vld [vmem:[%s1 + $0x128] sm:$0xf]
  %v98 = vld [vmem:[%s1 + $0x12c] sm:$0xf]
  %v99 = vld [vmem:[%s1 + $0x130] sm:$0xf]
  %v100 = vld [vmem:[%s1 + $0x134] sm:$0xf]
  %v101 = vld [vmem:[%s1 + $0x138] sm:$0xf]
  %v102 = vld [vmem:[%s1 + $0x13c] sm:$0xf]
  %v106 = vunpack.c.l.b16 %v20
  %v107 = vunpack.c.h.b16 %v20
  %v108 = vunpack.c.l.b16 %v21
  %v109 = vunpack.c.h.b16 %v21
  %v110 = vunpack.c.l.b16 %v22
  %v111 = vpack.c.b16 %v106, %v106
  %v112 = vpack.c.b16 %v107, %v107
  %v113 = vpack.c.b16 %v108, %v108
  %v114 = vpack.c.b16 %v109, %v109
  %v115 = vpack.c.b16 %v110, %v110
  %v201 = vunpack.c.l.b16 %v23
  %v202 = vunpack.c.l.b16 %v24
  %v203 = vunpack.c.l.b16 %v25
  %v204 = vunpack.c.l.b16 %v26
  %v205 = vunpack.c.l.b16 %v27
  %v206 = vunpack.c.l.b16 %v28
  %v207 = vunpack.c.l.b16 %v29
  %v208 = vunpack.c.l.b16 %v30
  %v209 = vunpack.c.l.b16 %v31
  %v210 = vunpack.c.l.b16 %v32
  %v211 = vunpack.c.l.b16 %v33
  %v212 = vunpack.c.l.b16 %v34
  %v213 = vunpack.c.l.b16 %v35
  %v214 = vunpack.c.l.b16 %v36
  %v215 = vunpack.c.l.b16 %v37
  %v216 = vunpack.c.l.b16 %v38
  %v217 = vunpack.c.l.b16 %v39
  %v218 = vunpack.c.l.b16 %v40
  %v219 = vunpack.c.l.b16 %v41
  %v220 = vunpack.c.l.b16 %v42
  %v221 = vunpack.c.l.b16 %v43
  %v222 = vunpack.c.l.b16 %v44
  %v223 = vunpack.c.l.b16 %v45
  %v224 = vunpack.c.l.b16 %v46
  %v225 = vunpack.c.l.b16 %v47
  %v226 = vunpack.c.l.b16 %v48
  %v227 = vunpack.c.l.b16 %v49
  %v228 = vunpack.c.l.b16 %v50
  %v229 = vunpack.c.l.b16 %v51
  %v230 = vunpack.c.l.b16 %v52
  %v231 = vunpack.c.l.b16 %v53
  %v232 = vunpack.c.l.b16 %v54
  %v233 = vunpack.c.l.b16 %v55
  %v234 = vunpack.c.l.b16 %v56
  %v235 = vunpack.c.l.b16 %v57
  %v236 = vunpack.c.l.b16 %v58
  %v237 = vunpack.c.l.b16 %v59
  %v238 = vunpack.c.l.b16 %v60
  %v239 = vunpack.c.l.b16 %v61
  %v240 = vunpack.c.l.b16 %v62
  %v241 = vunpack.c.l.b16 %v63
  %v242 = vunpack.c.l.b16 %v64
  %v243 = vunpack.c.l.b16 %v65
  %v244 = vunpack.c.l.b16 %v66
  %v245 = vunpack.c.l.b16 %v67
  %v246 = vunpack.c.l.b16 %v68
  %v247 = vunpack.c.l.b16 %v69
  %v248 = vunpack.c.l.b16 %v70
  %v249 = vunpack.c.l.b16 %v71
  %v250 = vunpack.c.l.b16 %v72
  %v251 = vunpack.c.l.b16 %v73
  %v252 = vunpack.c.l.b16 %v74
  %v253 = vunpack.c.l.b16 %v75
  %v254 = vunpack.c.l.b16 %v76
  %v255 = vunpack.c.l.b16 %v77
  %v256 = vunpack.c.l.b16 %v78
  %v257 = vunpack.c.l.b16 %v79
  %v258 = vunpack.c.l.b16 %v80
  %v259 = vunpack.c.l.b16 %v81
  %v260 = vunpack.c.l.b16 %v82
  %v261 = vunpack.c.l.b16 %v83
  %v262 = vunpack.c.l.b16 %v84
  %v263 = vunpack.c.l.b16 %v85
  %v264 = vunpack.c.l.b16 %v86
  %v265 = vunpack.c.l.b16 %v87
  %v266 = vunpack.c.l.b16 %v88
  %v267 = vunpack.c.l.b16 %v89
  %v268 = vunpack.c.l.b16 %v90
  %v269 = vunpack.c.l.b16 %v91
  %v270 = vunpack.c.l.b16 %v92
  %v271 = vunpack.c.l.b16 %v93
  %v272 = vunpack.c.l.b16 %v94
  %v273 = vunpack.c.l.b16 %v95
  %v274 = vunpack.c.l.b16 %v96
  %v275 = vunpack.c.l.b16 %v97
  %v276 = vunpack.c.l.b16 %v98
  %v277 = vunpack.c.l.b16 %v99
  %v278 = vunpack.c.l.b16 %v100
  %v279 = vunpack.c.l.b16 %v101
  %v280 = vunpack.c.l.b16 %v102
  %v281 = vpack.c.b16 %v202, %v201
  %v282 = vpack.c.b16 %v204, %v203
  %v283 = vpack.c.b16 %v206, %v205
  %v284 = vpack.c.b16 %v208, %v207
  %v285 = vpack.c.b16 %v210, %v209
  %v286 = vpack.c.b16 %v212, %v211
  %v287 = vpack.c.b16 %v214, %v213
  %v288 = vpack.c.b16 %v216, %v215
  %v289 = vpack.c.b16 %v218, %v217
  %v290 = vpack.c.b16 %v220, %v219
  %v291 = vpack.c.b16 %v222, %v221
  %v292 = vpack.c.b16 %v224, %v223
  %v293 = vpack.c.b16 %v226, %v225
  %v294 = vpack.c.b16 %v228, %v227
  %v295 = vpack.c.b16 %v230, %v229
  %v296 = vpack.c.b16 %v232, %v231
  %v297 = vpack.c.b16 %v234, %v233
  %v298 = vpack.c.b16 %v236, %v235
  %v299 = vpack.c.b16 %v238, %v237
  %v300 = vpack.c.b16 %v240, %v239
  %v301 = vpack.c.b16 %v242, %v241
  %v302 = vpack.c.b16 %v244, %v243
  %v303 = vpack.c.b16 %v246, %v245
  %v304 = vpack.c.b16 %v248, %v247
  %v305 = vpack.c.b16 %v250, %v249
  %v306 = vpack.c.b16 %v252, %v251
  %v307 = vpack.c.b16 %v254, %v253
  %v308 = vpack.c.b16 %v256, %v255
  %v309 = vpack.c.b16 %v258, %v257
  %v310 = vpack.c.b16 %v260, %v259
  %v311 = vpack.c.b16 %v262, %v261
  %v312 = vpack.c.b16 %v264, %v263
  %v313 = vpack.c.b16 %v266, %v265
  %v314 = vpack.c.b16 %v268, %v267
  %v315 = vpack.c.b16 %v270, %v269
  %v316 = vpack.c.b16 %v272, %v271
  %v317 = vpack.c.b16 %v274, %v273
  %v318 = vpack.c.b16 %v276, %v275
  %v319 = vpack.c.b16 %v278, %v277
  %v320 = vpack.c.b16 %v280, %v279
  %361 = vmatprep.subr.bf16.mxu0 0
  %362 = vmatpush1.bf16.msra.mxu0 %v281
  %363 = vmatprep.subr.bf16.mxu0 0
  %364 = vmatpush1.bf16.msra.mxu0 %v282
  %365 = vmatprep.subr.bf16.mxu0 0
  %366 = vmatpush1.bf16.msra.mxu0 %v283
  %367 = vmatprep.subr.bf16.mxu0 0
  %368 = vmatpush1.bf16.msra.mxu0 %v284
  %369 = vmatprep.subr.bf16.mxu0 0
  %370 = vmatpush1.bf16.msra.mxu0 %v285
  %371 = vmatprep.subr.bf16.mxu0 0
  %372 = vmatpush1.bf16.msra.mxu0 %v286
  %373 = vmatprep.subr.bf16.mxu0 0
  %374 = vmatpush1.bf16.msra.mxu0 %v287
  %375 = vmatprep.subr.bf16.mxu0 0
  %376 = vmatpush1.bf16.msra.mxu0 %v288
  %377 = vmatprep.subr.bf16.mxu0 0
  %378 = vmatpush1.bf16.msra.mxu0 %v289
  %379 = vmatprep.subr.bf16.mxu0 0
  %380 = vmatpush1.bf16.msra.mxu0 %v290
  %381 = vmatprep.subr.bf16.mxu0 0
  %382 = vmatpush1.bf16.msra.mxu0 %v291
  %383 = vmatprep.subr.bf16.mxu0 0
  %384 = vmatpush1.bf16.msra.mxu0 %v292
  %385 = vmatprep.subr.bf16.mxu0 0
  %386 = vmatpush1.bf16.msra.mxu0 %v293
  %387 = vmatprep.subr.bf16.mxu0 0
  %388 = vmatpush1.bf16.msra.mxu0 %v294
  %389 = vmatprep.subr.bf16.mxu0 0
  %390 = vmatpush1.bf16.msra.mxu0 %v295
  %391 = vmatprep.subr.bf16.mxu0 0
  %392 = vmatpush1.bf16.msra.mxu0 %v296
  %393 = vmatprep.mubr.bf16.mxu0 %v112
  %394 = vmatmul.mubr.bf16.gmra.mrb[0].mxu0 %v111
  %v395 = vpop.f32.mrb[0].mxu0
  %v396 = vadd.f32 0.0, %v395
  %v397 = vpop.f32.mrb[0].mxu0
  %v398 = vpop.f32.mrb[0].mxu0
  %v399 = vpop.f32.mrb[0].mxu0
  %400 = vdwg.mxu0
  %401 = vmatprep.subr.bf16.mxu0 0
  %402 = vmatpush1.bf16.msra.mxu0 %v297
  %403 = vmatprep.subr.bf16.mxu0 0
  %404 = vmatpush1.bf16.msra.mxu0 %v298
  %405 = vmatprep.subr.bf16.mxu0 0
  %406 = vmatpush1.bf16.msra.mxu0 %v299
  %407 = vmatprep.subr.bf16.mxu0 0
  %408 = vmatpush1.bf16.msra.mxu0 %v300
  %409 = vmatprep.subr.bf16.mxu0 0
  %410 = vmatpush1.bf16.msra.mxu0 %v301
  %411 = vmatprep.subr.bf16.mxu0 0
  %412 = vmatpush1.bf16.msra.mxu0 %v302
  %413 = vmatprep.subr.bf16.mxu0 0
  %414 = vmatpush1.bf16.msra.mxu0 %v303
  %415 = vmatprep.subr.bf16.mxu0 0
  %416 = vmatpush1.bf16.msra.mxu0 %v304
  %417 = vmatprep.subr.bf16.mxu0 0
  %418 = vmatpush1.bf16.msra.mxu0 %v305
  %419 = vmatprep.subr.bf16.mxu0 0
  %420 = vmatpush1.bf16.msra.mxu0 %v306
  %421 = vmatprep.subr.bf16.mxu0 0
  %422 = vmatpush1.bf16.msra.mxu0 %v307
  %423 = vmatprep.subr.bf16.mxu0 0
  %424 = vmatpush1.bf16.msra.mxu0 %v308
  %425 = vmatprep.subr.bf16.mxu0 0
  %426 = vmatpush1.bf16.msra.mxu0 %v309
  %427 = vmatprep.subr.bf16.mxu0 0
  %428 = vmatpush1.bf16.msra.mxu0 %v310
  %429 = vmatprep.subr.bf16.mxu0 0
  %430 = vmatpush1.bf16.msra.mxu0 %v311
  %431 = vmatprep.subr.bf16.mxu0 0
  %432 = vmatpush1.bf16.msra.mxu0 %v312
  %433 = vmatprep.mubr.bf16.mxu0 %v114
  %434 = vmatmul.mubr.bf16.gmra.mrb[0].mxu0 %v113
  %v435 = vpop.f32.mrb[0].mxu0
  %v436 = vadd.f32 %v396, %v435
  %v437 = vpop.f32.mrb[0].mxu0
  %v438 = vpop.f32.mrb[0].mxu0
  %v439 = vpop.f32.mrb[0].mxu0
  %440 = vdwg.mxu0
  %441 = vmatprep.subr.bf16.mxu0 0
  %442 = vmatpush1.bf16.msra.mxu0 %v313
  %443 = vmatprep.subr.bf16.mxu0 0
  %444 = vmatpush1.bf16.msra.mxu0 %v314
  %445 = vmatprep.subr.bf16.mxu0 0
  %446 = vmatpush1.bf16.msra.mxu0 %v315
  %447 = vmatprep.subr.bf16.mxu0 0
  %448 = vmatpush1.bf16.msra.mxu0 %v316
  %449 = vmatprep.subr.bf16.mxu0 0
  %450 = vmatpush1.bf16.msra.mxu0 %v317
  %451 = vmatprep.subr.bf16.mxu0 0
  %452 = vmatpush1.bf16.msra.mxu0 %v318
  %453 = vmatprep.subr.bf16.mxu0 0
  %454 = vmatpush1.bf16.msra.mxu0 %v319
  %455 = vmatprep.subr.bf16.mxu0 0
  %456 = vmatpush1.bf16.msra.mxu0 %v320
  %457 = vmatprep.subr.bf16.mxu0 0
  %458 = vmatpush1.bf16.msra.mxu0 0
  %459 = vmatprep.subr.bf16.mxu0 0
  %460 = vmatpush1.bf16.msra.mxu0 0
  %461 = vmatprep.subr.bf16.mxu0 0
  %462 = vmatpush1.bf16.msra.mxu0 0
  %463 = vmatprep.subr.bf16.mxu0 0
  %464 = vmatpush1.bf16.msra.mxu0 0
  %465 = vmatprep.subr.bf16.mxu0 0
  %466 = vmatpush1.bf16.msra.mxu0 0
  %467 = vmatprep.subr.bf16.mxu0 0
  %468 = vmatpush1.bf16.msra.mxu0 0
  %469 = vmatprep.subr.bf16.mxu0 0
  %470 = vmatpush1.bf16.msra.mxu0 0
  %471 = vmatprep.subr.bf16.mxu0 0
  %472 = vmatpush1.bf16.msra.mxu0 0
  %473 = vmatprep.mubr.bf16.mxu0 0
  %474 = vmatmul.mubr.bf16.gmra.mrb[0].mxu0 %v115
  %v475 = vpop.f32.mrb[0].mxu0
  %v476 = vadd.f32 %v436, %v475
  %v477 = vpop.f32.mrb[0].mxu0
  %v478 = vpop.f32.mrb[0].mxu0
  %v479 = vpop.f32.mrb[0].mxu0
  %480 = vdwg.mxu0
  %v481 = vadd.f32 %v19, %v476
  %482 = vst [vmem:[#allocation2] sm:$0xff] %v481
  // Predicated region
  $region14: #{_lambda_.76} parent=0 // pred_check
    %p483 = pneg %p14
  $region15: #{_lambda_.76} parent=0 // pred_check_branch
    %485 = sbr.rel (%p483) target = $region17
  $region16: #{_lambda_.76} parent=0 // pred_region
    %v486 = vld [vmem:[#allocation2] sm:$0xff]
    %487 = vst [vmem:[%s2] sm:$0xff] %v486
    %v488 = vrot.slane %v486, 4
    %v489 = vadd.f32 %v486, %v488
    %v490 = vrot.slane %v489, 2
    %v491 = vadd.f32 %v489, %v490
    %v492 = vrot.slane %v491, 1
    %v493 = vadd.f32 %v491, %v492
    %v494 = vmul.f32 %v486, %v486
    %v495 = vrot.slane %v494, 4
    %v496 = vadd.f32 %v494, %v495
    %v497 = vrot.slane %v496, 2
    %v498 = vadd.f32 %v496, %v497
    %v499 = vrot.slane %v498, 1
    %v500 = vadd.f32 %v498, %v499
    %vm501 = vcmask 1040384
    %v502 = vsel %vm501, %v493, %v500
    %503 = vst [vmem:[%s3] sm:$0x3] %v502
  $region17: #{_lambda_.76} parent=0 // pred_fallthru
    _
  // Predicated region
  $region18: #{_lambda_.76} parent=0 // pred_check
    _
  $region19: #{_lambda_.76} parent=0 // pred_check_branch
    %505 = sbr.rel (0) target = $region21
  $region20: #{_lambda_.76} parent=0 // pred_region
    _
  $region21: #{_lambda_.76} parent=0 // pred_fallthru
    _
  // Predicated region
  $region22: #{_lambda_.76} parent=0 // pred_check
    _
  $region23: #{_lambda_.76} parent=0 // pred_check_branch
    %507 = sbr.rel (0) target = $region25
  $region24: #{_lambda_.76} parent=0 // pred_region
    _
  $region25: #{_lambda_.76} parent=0 // pred_fallthru
    _
  // Predicated region
  $region26: #{_lambda_.76} parent=0 // pred_check
    _
  $region27: #{_lambda_.76} parent=0 // pred_check_branch
    %509 = sbr.rel (0) target = $region29
  $region28: #{_lambda_.76} parent=0 // pred_region
    _
  $region29: #{_lambda_.76} parent=0 // pred_fallthru
    _
  // Predicated region
  $region30: #{_lambda_.76} parent=0 // pred_check
    _
  $region31: #{_lambda_.76} parent=0 // pred_check_branch
    %511 = sbr.rel (0) target = $region33
  $region32: #{_lambda_.76} parent=0 // pred_region
    _
  $region33: #{_lambda_.76} parent=0 // pred_fallthru
    _

</llo_original>
